<compile_context>
chip_gen: v7x
topology: tpu7x:2x2x1
jax: 0.10.0
libtpu: 0.0.40
codegen_flags: <defaults>
</compile_context>

<pallas_src>
import functools
import numpy as np
import jax
import jax.numpy as jnp
from jax import lax
from jax.experimental import pallas as pl
from jax.experimental.pallas import tpu as pltpu

EPS = 1e-5  # nn.LayerNorm default


def _encoder_kernel(B, S, D, H, F, eps, compute_dtype,
                    x_ref, pos_ref,
                    wq_ref, wk_ref, wv_ref, bq_ref, bk_ref, bv_ref,
                    wout_ref, bout_ref,
                    g1_ref, bt1_ref, g2_ref, bt2_ref,
                    wff1_ref, bff1_ref, wff2_ref, bff2_ref,
                    out_ref, h_sc):
    """One grid step == one nn.TransformerEncoderLayer (post-norm, ReLU)."""
    l = pl.program_id(0)
    N = B * S
    hd = D // H
    scale = 1.0 / float(hd) ** 0.5
    cd = compute_dtype
    f32 = jnp.float32

    # --- first layer: add positional encoding, flatten (B,S,D)->(N,D) ---
    @pl.when(l == 0)
    def _():
        h_sc[...] = (x_ref[...] + pos_ref[...][None]).reshape(N, D)

    h = h_sc[...]                       # (N, D) f32 residual stream
    h_c = h.astype(cd)                  # MXU input dtype (f32 or bf16)

    # --- multi-head self attention -------------------------------------
    # Per head: aligned (hd, D) head-major weight blocks, B-batched einsums
    # for scores / p@v, and a fused (N, hd) @ (hd, D) output projection that
    # accumulates lane-dense (N, D) partials.  No concatenate, no activation
    # lane slicing, no VMEM round trip.
    attn = jnp.zeros((N, D), f32)
    for hh in range(H):
        q = lax.dot_general(h_c, wq_ref[hh], (((1,), (1,)), ((), ())),
                            preferred_element_type=f32) + bq_ref[hh:hh + 1, :]
        k = lax.dot_general(h_c, wk_ref[hh], (((1,), (1,)), ((), ())),
                            preferred_element_type=f32) + bk_ref[hh:hh + 1, :]
        v = lax.dot_general(h_c, wv_ref[hh], (((1,), (1,)), ((), ())),
                            preferred_element_type=f32) + bv_ref[hh:hh + 1, :]

        q3 = (q * scale).reshape(B, S, hd).astype(cd)
        k3 = k.reshape(B, S, hd).astype(cd)
        v3 = v.reshape(B, S, hd).astype(cd)

        sc = jnp.einsum('bqd,bkd->bqk', q3, k3,
                        preferred_element_type=f32)          # (B, S, S)
        sc = sc - jnp.max(sc, axis=-1, keepdims=True)
        p = jnp.exp(sc)
        p = p * pl.reciprocal(jnp.sum(p, axis=-1, keepdims=True), approx=True)

        o = jnp.einsum('bqk,bkd->bqd', p.astype(cd), v3,
                       preferred_element_type=f32)           # (B, S, hd)

        # fused per-head output projection -> lane-dense (N, D) partial
        attn = attn + jnp.dot(o.reshape(N, hd).astype(cd), wout_ref[hh],
                              preferred_element_type=f32)
    a = attn + bout_ref[...]

    # --- residual + LayerNorm 1 (f32) ---
    h1 = h + a
    mu = jnp.mean(h1, axis=-1, keepdims=True)
    var = jnp.mean((h1 - mu) ** 2, axis=-1, keepdims=True)
    h1 = (h1 - mu) * lax.rsqrt(var + eps) * g1_ref[...] + bt1_ref[...]

    # --- feed forward (ReLU) ---
    f = jnp.dot(h1.astype(cd), wff1_ref[...],
                preferred_element_type=f32) + bff1_ref[...]
    f = jnp.maximum(f, 0.0)
    f = jnp.dot(f.astype(cd), wff2_ref[...],
                preferred_element_type=f32) + bff2_ref[...]

    # --- residual + LayerNorm 2 (f32) ---
    h2 = h1 + f
    mu2 = jnp.mean(h2, axis=-1, keepdims=True)
    var2 = jnp.mean((h2 - mu2) ** 2, axis=-1, keepdims=True)
    h2 = (h2 - mu2) * lax.rsqrt(var2 + eps) * g2_ref[...] + bt2_ref[...]

    h_sc[...] = h2

    # --- last layer: mean over the sequence axis per batch element ---
    @pl.when(l == pl.num_programs(0) - 1)
    def _():
        out_ref[...] = jnp.mean(h2.reshape(B, S, D), axis=1)


def transformer_encoder(x, pos, params, num_heads, compute_dtype=jnp.float32):
    """compute_dtype=jnp.bfloat16 is recommended on v6e/v7x; f32 on v5e."""
    B, S, D = x.shape
    L = params["wqkv"].shape[0]
    F = params["wff1"].shape[-1]
    H = num_heads
    hd = D // H
    N = B * S
    f32 = jnp.float32
    cd = compute_dtype

    # ---- wrapper-side (free) head-major re-layout of attention weights ----
    wqkv = params["wqkv"]                              # (L, D, 3D)
    bqkv = params["bqkv"].reshape(L, 3 * D)            # (L, 3D)
    wq, wk, wv = (wqkv[:, :, i * D:(i + 1) * D] for i in range(3))

    def head_major(w):   # (L, D, D) -> (L, H, hd, D): [l,h,e,d] = w[l,d,h*hd+e]
        return jnp.transpose(w.reshape(L, D, H, hd), (0, 2, 3, 1))

    wq_hm = head_major(wq).astype(cd)
    wk_hm = head_major(wk).astype(cd)
    wv_hm = head_major(wv).astype(cd)
    bq_hm = bqkv[:, 0 * D:1 * D].reshape(L, H, hd).astype(f32)
    bk_hm = bqkv[:, 1 * D:2 * D].reshape(L, H, hd).astype(f32)
    bv_hm = bqkv[:, 2 * D:3 * D].reshape(L, H, hd).astype(f32)
    wout_hm = params["wout"].reshape(L, H, hd, D).astype(cd)
    wff1 = params["wff1"].astype(cd)
    wff2 = params["wff2"].astype(cd)

    kernel = functools.partial(_encoder_kernel, B, S, D, H, F, EPS, cd)

    def per_layer(tail):
        nd = len(tail)
        return pl.BlockSpec((pl.Squeezed(),) + tuple(tail),
                            lambda l, nd=nd: (l,) + (0,) * nd)

    grid_spec = pltpu.PrefetchScalarGridSpec(
        num_scalar_prefetch=0,
        grid=(L,),
        in_specs=[
            pl.BlockSpec((B, S, D), lambda l: (0, 0, 0)),   # x
            pl.BlockSpec((S, D), lambda l: (0, 0)),         # positional enc
            per_layer((H, hd, D)),                          # wq (head-major)
            per_layer((H, hd, D)),                          # wk
            per_layer((H, hd, D)),                          # wv
            per_layer((H, hd)),                             # bq
            per_layer((H, hd)),                             # bk
            per_layer((H, hd)),                             # bv
            per_layer((H, hd, D)),                          # wout (head-major)
            per_layer((1, D)),                              # bout
            per_layer((1, D)),                              # gamma1
            per_layer((1, D)),                              # beta1
            per_layer((1, D)),                              # gamma2
            per_layer((1, D)),                              # beta2
            per_layer((D, F)),                              # wff1
            per_layer((1, F)),                              # bff1
            per_layer((F, D)),                              # wff2
            per_layer((1, D)),                              # bff2
        ],
        out_specs=pl.BlockSpec((B, D), lambda l: (0, 0)),
        scratch_shapes=[pltpu.VMEM((N, D), jnp.float32)],   # residual stream
    )
    return pl.pallas_call(
        kernel,
        out_shape=jax.ShapeDtypeStruct((B, D), jnp.float32),
        grid_spec=grid_spec,
        compiler_params=pltpu.CompilerParams(
            dimension_semantics=("arbitrary",)),
    )(x, pos,
      wq_hm, wk_hm, wv_hm, bq_hm, bk_hm, bv_hm, wout_hm, params["bout"],
      params["g1"], params["bt1"], params["g2"], params["bt2"],
      wff1, params["bff1"], wff2, params["bff2"])


def init_params(key, L, D, F):
    ks = jax.random.split(key, 8)
    s = 0.02
    f32 = jnp.float32
    return {
        "wqkv": jax.random.normal(ks[0], (L, D, 3 * D), f32) * s,
        "bqkv": jax.random.normal(ks[1], (L, 1, 3 * D), f32) * s,
        "wout": jax.random.normal(ks[2], (L, D, D), f32) * s,
        "bout": jax.random.normal(ks[3], (L, 1, D), f32) * s,
        "g1": jnp.ones((L, 1, D), f32),
        "bt1": jnp.zeros((L, 1, D), f32),
        "g2": jnp.ones((L, 1, D), f32),
        "bt2": jnp.zeros((L, 1, D), f32),
        "wff1": jax.random.normal(ks[4], (L, D, F), f32) * s,
        "bff1": jax.random.normal(ks[5], (L, 1, F), f32) * s,
        "wff2": jax.random.normal(ks[6], (L, F, D), f32) * s,
        "bff2": jax.random.normal(ks[7], (L, 1, D), f32) * s,
    }


def reference(x, pos, params, H):
    """Pure-JAX reference mirroring nn.TransformerEncoder (post-norm, eval)."""
    B, S, D = x.shape
    L = params["wqkv"].shape[0]
    hd = D // H

    def ln(y, g, b):
        mu = jnp.mean(y, axis=-1, keepdims=True)
        var = jnp.mean((y - mu) ** 2, axis=-1, keepdims=True)
        return (y - mu) / jnp.sqrt(var + EPS) * g + b

    h = x + pos[None]
    for l in range(L):
        qkv = jnp.einsum("bsd,de->bse", h, params["wqkv"][l]) + params["bqkv"][l][None]
        q, k, v = jnp.split(qkv, 3, axis=-1)
        q = q.reshape(B, S, H, hd)
        k = k.reshape(B, S, H, hd)
        v = v.reshape(B, S, H, hd)
        sc = jnp.einsum("bqhd,bkhd->bhqk", q, k) / jnp.sqrt(float(hd))
        p = jax.nn.softmax(sc, axis=-1)
        o = jnp.einsum("bhqk,bkhd->bqhd", p, v).reshape(B, S, D)
        o = o @ params["wout"][l] + params["bout"][l][None]
        h1 = ln(h + o, params["g1"][l], params["bt1"][l])
        f = jnp.maximum(h1 @ params["wff1"][l] + params["bff1"][l][None], 0.0)
        f = f @ params["wff2"][l] + params["bff2"][l][None]
        h = ln(h1 + f, params["g2"][l], params["bt2"][l])
    return h.mean(axis=1)


if __name__ == "__main__":
    # Scaled-down config: feature_dim=128, num_heads=8, num_layers=2, ffn=256.
    B, S, D, H, L, F = 2, 8, 128, 8, 2, 256

    key = jax.random.PRNGKey(0)
    kx, kpos, kp = jax.random.split(key, 3)
    x = jax.random.normal(kx, (B, S, D), jnp.float32)
    pos_full = jax.random.normal(kpos, (100, D), jnp.float32)  # nn.Parameter(torch.randn(100, D))
    pos = pos_full[:S]
    params = init_params(kp, L, D, F)

    ref = reference(x, pos, params, H)

    # f32 compute path (safe default on all generations, incl. v5e).
    out = transformer_encoder(x, pos, params, H, compute_dtype=jnp.float32)
    out = jax.block_until_ready(out)
    assert out.shape == (B, D)
    np.testing.assert_allclose(np.asarray(out), np.asarray(ref),
                               atol=5e-3, rtol=5e-3)

    # bf16 MXU-input path (recommended on v6e/v7x); elementwise math stays f32.
    out_bf16 = transformer_encoder(x, pos, params, H, compute_dtype=jnp.bfloat16)
    out_bf16 = jax.block_until_ready(out_bf16)
    np.testing.assert_allclose(np.asarray(out_bf16), np.asarray(ref),
                               atol=5e-2, rtol=5e-2)

    print("KERNEL_OK")
</pallas_src>

<mosaic_0001>
module attributes {stable_mosaic.version = 11 : i64} {
  func.func @_encoder_kernel(%arg0: i32, %arg1: memref<2x8x128xf32, #tpu.memory_space<vmem>>, %arg2: memref<8x128xf32, #tpu.memory_space<vmem>>, %arg3: memref<1x8x16x128xf32, #tpu.memory_space<vmem>>, %arg4: memref<1x8x16x128xf32, #tpu.memory_space<vmem>>, %arg5: memref<1x8x16x128xf32, #tpu.memory_space<vmem>>, %arg6: memref<1x8x16xf32, #tpu.memory_space<vmem>>, %arg7: memref<1x8x16xf32, #tpu.memory_space<vmem>>, %arg8: memref<1x8x16xf32, #tpu.memory_space<vmem>>, %arg9: memref<1x8x16x128xf32, #tpu.memory_space<vmem>>, %arg10: memref<1x1x128xf32, #tpu.memory_space<vmem>>, %arg11: memref<1x1x128xf32, #tpu.memory_space<vmem>>, %arg12: memref<1x1x128xf32, #tpu.memory_space<vmem>>, %arg13: memref<1x1x128xf32, #tpu.memory_space<vmem>>, %arg14: memref<1x1x128xf32, #tpu.memory_space<vmem>>, %arg15: memref<1x128x256xf32, #tpu.memory_space<vmem>>, %arg16: memref<1x1x256xf32, #tpu.memory_space<vmem>>, %arg17: memref<1x256x128xf32, #tpu.memory_space<vmem>>, %arg18: memref<1x1x128xf32, #tpu.memory_space<vmem>>, %arg19: memref<2x128xf32, #tpu.memory_space<vmem>>, %arg20: memref<16x128xf32, #tpu.memory_space<vmem>>) attributes {dimension_semantics = [#tpu.dimension_semantics<arbitrary>], iteration_bounds = array<i64: 2>, scalar_prefetch = 0 : i64, scratch_operands = 1 : i64, tpu.core_type = #tpu.core_type<tc>, window_params = [{pipeline_mode = #tpu.pipeline_mode<synchronous>, transform_indices = @transform_0, window_bounds = array<i64: 2, 8, 128>}, {pipeline_mode = #tpu.pipeline_mode<synchronous>, transform_indices = @transform_1, window_bounds = array<i64: 8, 128>}, {transform_indices = @transform_2, window_bounds = array<i64: 1, 8, 16, 128>}, {transform_indices = @transform_3, window_bounds = array<i64: 1, 8, 16, 128>}, {transform_indices = @transform_4, window_bounds = array<i64: 1, 8, 16, 128>}, {transform_indices = @transform_5, window_bounds = array<i64: 1, 8, 16>}, {transform_indices = @transform_6, window_bounds = array<i64: 1, 8, 16>}, {transform_indices = @transform_7, window_bounds = array<i64: 1, 8, 16>}, {transform_indices = @transform_8, window_bounds = array<i64: 1, 8, 16, 128>}, {transform_indices = @transform_9, window_bounds = array<i64: 1, 1, 128>}, {transform_indices = @transform_10, window_bounds = array<i64: 1, 1, 128>}, {transform_indices = @transform_11, window_bounds = array<i64: 1, 1, 128>}, {transform_indices = @transform_12, window_bounds = array<i64: 1, 1, 128>}, {transform_indices = @transform_13, window_bounds = array<i64: 1, 1, 128>}, {transform_indices = @transform_14, window_bounds = array<i64: 1, 128, 256>}, {transform_indices = @transform_15, window_bounds = array<i64: 1, 1, 256>}, {transform_indices = @transform_16, window_bounds = array<i64: 1, 256, 128>}, {transform_indices = @transform_17, window_bounds = array<i64: 1, 1, 128>}, {pipeline_mode = #tpu.pipeline_mode<synchronous>, transform_indices = @transform_18, window_bounds = array<i64: 2, 128>}]} {
    %c0_i32 = arith.constant 0 : i32
    %0 = arith.cmpi eq, %arg0, %c0_i32 : i32
    %1 = arith.extui %0 : i1 to i32
    %c0_i32_0 = arith.constant 0 : i32
    %2 = arith.cmpi ne, %1, %c0_i32_0 : i32
    scf.if %2 {
      %c0_310 = arith.constant 0 : index
      %c0_311 = arith.constant 0 : index
      %c0_312 = arith.constant 0 : index
      %427 = vector.load %arg1[%c0_310, %c0_311, %c0_312] : memref<2x8x128xf32, #tpu.memory_space<vmem>>, vector<2x8x128xf32>
      %c0_313 = arith.constant 0 : index
      %c0_314 = arith.constant 0 : index
      %428 = vector.load %arg2[%c0_313, %c0_314] : memref<8x128xf32, #tpu.memory_space<vmem>>, vector<8x128xf32>
      %429 = vector.shape_cast %428 : vector<8x128xf32> to vector<1x8x128xf32>
      %430 = vector.broadcast %429 : vector<1x8x128xf32> to vector<2x8x128xf32>
      %431 = arith.addf %427, %430 : vector<2x8x128xf32>
      %432 = vector.shape_cast %431 : vector<2x8x128xf32> to vector<16x128xf32>
      %c0_315 = arith.constant 0 : index
      %c0_316 = arith.constant 0 : index
      %433 = vector.load %arg20[%c0_315, %c0_316] : memref<16x128xf32, #tpu.memory_space<vmem>>, vector<16x128xf32>
      tpu.vector_store %arg20[%c0_315, %c0_316], %432 {strides = array<i32>} : memref<16x128xf32, #tpu.memory_space<vmem>>, vector<16x128xf32>,
    } else {
    }
    %c0 = arith.constant 0 : index
    %c0_1 = arith.constant 0 : index
    %3 = vector.load %arg20[%c0, %c0_1] : memref<16x128xf32, #tpu.memory_space<vmem>>, vector<16x128xf32>
    %cst = arith.constant 0.000000e+00 : f32
    %4 = vector.broadcast %cst : f32 to vector<16x128xf32>
    %c0_2 = arith.constant 0 : index
    %c0_3 = arith.constant 0 : index
    %c0_4 = arith.constant 0 : index
    %c0_5 = arith.constant 0 : index
    %5 = vector.load %arg3[%c0_2, %c0_3, %c0_4, %c0_5] : memref<1x8x16x128xf32, #tpu.memory_space<vmem>>, vector<1x1x16x128xf32>
    %6 = vector.shape_cast %5 : vector<1x1x16x128xf32> to vector<16x128xf32>
    %cst_6 = arith.constant dense<0.000000e+00> : vector<16x16xf32>
    %7 = tpu.matmul %3, %6, %cst_6 {dimension_numbers = #tpu.dot_dimension_numbers<[1], [1], [0], [0], [0, 0, 1, 0], [], []>} : vector<16x128xf32>, vector<16x128xf32>, vector<16x16xf32> -> vector<16x16xf32>
    %c0_7 = arith.constant 0 : index
    %c0_8 = arith.constant 0 : index
    %c0_9 = arith.constant 0 : index
    %8 = vector.load %arg6[%c0_7, %c0_8, %c0_9] : memref<1x8x16xf32, #tpu.memory_space<vmem>>, vector<1x1x16xf32>
    %9 = vector.shape_cast %8 : vector<1x1x16xf32> to vector<1x16xf32>
    %10 = vector.broadcast %9 : vector<1x16xf32> to vector<16x16xf32>
    %11 = arith.addf %7, %10 : vector<16x16xf32>
    %c0_10 = arith.constant 0 : index
    %c0_11 = arith.constant 0 : index
    %c0_12 = arith.constant 0 : index
    %c0_13 = arith.constant 0 : index
    %12 = vector.load %arg4[%c0_10, %c0_11, %c0_12, %c0_13] : memref<1x8x16x128xf32, #tpu.memory_space<vmem>>, vector<1x1x16x128xf32>
    %13 = vector.shape_cast %12 : vector<1x1x16x128xf32> to vector<16x128xf32>
    %cst_14 = arith.constant dense<0.000000e+00> : vector<16x16xf32>
    %14 = tpu.matmul %3, %13, %cst_14 {dimension_numbers = #tpu.dot_dimension_numbers<[1], [1], [0], [0], [0, 0, 1, 0], [], []>} : vector<16x128xf32>, vector<16x128xf32>, vector<16x16xf32> -> vector<16x16xf32>
    %c0_15 = arith.constant 0 : index
    %c0_16 = arith.constant 0 : index
    %c0_17 = arith.constant 0 : index
    %15 = vector.load %arg7[%c0_15, %c0_16, %c0_17] : memref<1x8x16xf32, #tpu.memory_space<vmem>>, vector<1x1x16xf32>
    %16 = vector.shape_cast %15 : vector<1x1x16xf32> to vector<1x16xf32>
    %17 = vector.broadcast %16 : vector<1x16xf32> to vector<16x16xf32>
    %18 = arith.addf %14, %17 : vector<16x16xf32>
    %c0_18 = arith.constant 0 : index
    %c0_19 = arith.constant 0 : index
    %c0_20 = arith.constant 0 : index
    %c0_21 = arith.constant 0 : index
    %19 = vector.load %arg5[%c0_18, %c0_19, %c0_20, %c0_21] : memref<1x8x16x128xf32, #tpu.memory_space<vmem>>, vector<1x1x16x128xf32>
    %20 = vector.shape_cast %19 : vector<1x1x16x128xf32> to vector<16x128xf32>
    %cst_22 = arith.constant dense<0.000000e+00> : vector<16x16xf32>
    %21 = tpu.matmul %3, %20, %cst_22 {dimension_numbers = #tpu.dot_dimension_numbers<[1], [1], [0], [0], [0, 0, 1, 0], [], []>} : vector<16x128xf32>, vector<16x128xf32>, vector<16x16xf32> -> vector<16x16xf32>
    %c0_23 = arith.constant 0 : index
    %c0_24 = arith.constant 0 : index
    %c0_25 = arith.constant 0 : index
    %22 = vector.load %arg8[%c0_23, %c0_24, %c0_25] : memref<1x8x16xf32, #tpu.memory_space<vmem>>, vector<1x1x16xf32>
    %23 = vector.shape_cast %22 : vector<1x1x16xf32> to vector<1x16xf32>
    %24 = vector.broadcast %23 : vector<1x16xf32> to vector<16x16xf32>
    %25 = arith.addf %21, %24 : vector<16x16xf32>
    %cst_26 = arith.constant 2.500000e-01 : f32
    %26 = vector.broadcast %cst_26 : f32 to vector<16x16xf32>
    %27 = arith.mulf %11, %26 : vector<16x16xf32>
    %28 = vector.shape_cast %27 : vector<16x16xf32> to vector<2x8x16xf32>
    %29 = vector.shape_cast %18 : vector<16x16xf32> to vector<2x8x16xf32>
    %30 = vector.shape_cast %25 : vector<16x16xf32> to vector<2x8x16xf32>
    "tpu.trace_start"() <{level = 10 : i32, message = "bqd,bkd->bqk"}> : () -> ()
    %cst_27 = arith.constant dense<0.000000e+00> : vector<2x8x8xf32>
    %31 = tpu.matmul %28, %29, %cst_27 {dimension_numbers = #tpu.dot_dimension_numbers<[2], [2], [1], [1], [0, 0, 0, 1, 1, 1], [0], [0]>} : vector<2x8x16xf32>, vector<2x8x16xf32>, vector<2x8x8xf32> -> vector<2x8x8xf32>
    "tpu.trace_stop"() : () -> ()
    %cst_28 = arith.constant dense<0xFF800000> : vector<2x8xf32>
    %32 = vector.multi_reduction <maximumf>, %31, %cst_28 [2] : vector<2x8x8xf32> to vector<2x8xf32>
    %33 = vector.shape_cast %32 : vector<2x8xf32> to vector<2x8x1xf32>
    %34 = vector.broadcast %33 : vector<2x8x1xf32> to vector<2x8x8xf32>
    %35 = arith.subf %31, %34 : vector<2x8x8xf32>
    %36 = math.exp %35 : vector<2x8x8xf32>
    %cst_29 = arith.constant dense<0.000000e+00> : vector<2x8xf32>
    %37 = vector.multi_reduction <add>, %36, %cst_29 [2] : vector<2x8x8xf32> to vector<2x8xf32>
    %38 = vector.shape_cast %37 : vector<2x8xf32> to vector<2x8x1xf32>
    %39 = tpu.reciprocal %38 {approx = true} : vector<2x8x1xf32> -> vector<2x8x1xf32>
    %40 = vector.broadcast %39 : vector<2x8x1xf32> to vector<2x8x8xf32>
    %41 = arith.mulf %36, %40 : vector<2x8x8xf32>
    "tpu.trace_start"() <{level = 10 : i32, message = "bqk,bkd->bqd"}> : () -> ()
    %cst_30 = arith.constant dense<0.000000e+00> : vector<2x8x16xf32>
    %42 = tpu.matmul %41, %30, %cst_30 {dimension_numbers = #tpu.dot_dimension_numbers<[2], [1], [1], [2], [0, 0, 0, 1, 1, 2], [0], [0]>} : vector<2x8x8xf32>, vector<2x8x16xf32>, vector<2x8x16xf32> -> vector<2x8x16xf32>
    "tpu.trace_stop"() : () -> ()
    %43 = vector.shape_cast %42 : vector<2x8x16xf32> to vector<16x16xf32>
    %c0_31 = arith.constant 0 : index
    %c0_32 = arith.constant 0 : index
    %c0_33 = arith.constant 0 : index
    %c0_34 = arith.constant 0 : index
    %44 = vector.load %arg9[%c0_31, %c0_32, %c0_33, %c0_34] : memref<1x8x16x128xf32, #tpu.memory_space<vmem>>, vector<1x1x16x128xf32>
    %45 = vector.shape_cast %44 : vector<1x1x16x128xf32> to vector<16x128xf32>
    %cst_35 = arith.constant dense<0.000000e+00> : vector<16x128xf32>
    %46 = tpu.matmul %43, %45, %cst_35 {dimension_numbers = #tpu.dot_dimension_numbers<[1], [0], [0], [1], [0, 0, 1, 1], [], []>} : vector<16x16xf32>, vector<16x128xf32>, vector<16x128xf32> -> vector<16x128xf32>
    %47 = arith.addf %4, %46 : vector<16x128xf32>
    %c0_36 = arith.constant 0 : index
    %c1 = arith.constant 1 : index
    %c0_37 = arith.constant 0 : index
    %c0_38 = arith.constant 0 : index
    %48 = vector.load %arg3[%c0_36, %c1, %c0_37, %c0_38] : memref<1x8x16x128xf32, #tpu.memory_space<vmem>>, vector<1x1x16x128xf32>
    %49 = vector.shape_cast %48 : vector<1x1x16x128xf32> to vector<16x128xf32>
    %cst_39 = arith.constant dense<0.000000e+00> : vector<16x16xf32>
    %50 = tpu.matmul %3, %49, %cst_39 {dimension_numbers = #tpu.dot_dimension_numbers<[1], [1], [0], [0], [0, 0, 1, 0], [], []>} : vector<16x128xf32>, vector<16x128xf32>, vector<16x16xf32> -> vector<16x16xf32>
    %c0_40 = arith.constant 0 : index
    %c1_41 = arith.constant 1 : index
    %c0_42 = arith.constant 0 : index
    %51 = vector.load %arg6[%c0_40, %c1_41, %c0_42] : memref<1x8x16xf32, #tpu.memory_space<vmem>>, vector<1x1x16xf32>
    %52 = vector.shape_cast %51 : vector<1x1x16xf32> to vector<1x16xf32>
    %53 = vector.broadcast %52 : vector<1x16xf32> to vector<16x16xf32>
    %54 = arith.addf %50, %53 : vector<16x16xf32>
    %c0_43 = arith.constant 0 : index
    %c1_44 = arith.constant 1 : index
    %c0_45 = arith.constant 0 : index
    %c0_46 = arith.constant 0 : index
    %55 = vector.load %arg4[%c0_43, %c1_44, %c0_45, %c0_46] : memref<1x8x16x128xf32, #tpu.memory_space<vmem>>, vector<1x1x16x128xf32>
    %56 = vector.shape_cast %55 : vector<1x1x16x128xf32> to vector<16x128xf32>
    %cst_47 = arith.constant dense<0.000000e+00> : vector<16x16xf32>
    %57 = tpu.matmul %3, %56, %cst_47 {dimension_numbers = #tpu.dot_dimension_numbers<[1], [1], [0], [0], [0, 0, 1, 0], [], []>} : vector<16x128xf32>, vector<16x128xf32>, vector<16x16xf32> -> vector<16x16xf32>
    %c0_48 = arith.constant 0 : index
    %c1_49 = arith.constant 1 : index
    %c0_50 = arith.constant 0 : index
    %58 = vector.load %arg7[%c0_48, %c1_49, %c0_50] : memref<1x8x16xf32, #tpu.memory_space<vmem>>, vector<1x1x16xf32>
    %59 = vector.shape_cast %58 : vector<1x1x16xf32> to vector<1x16xf32>
    %60 = vector.broadcast %59 : vector<1x16xf32> to vector<16x16xf32>
    %61 = arith.addf %57, %60 : vector<16x16xf32>
    %c0_51 = arith.constant 0 : index
    %c1_52 = arith.constant 1 : index
    %c0_53 = arith.constant 0 : index
    %c0_54 = arith.constant 0 : index
    %62 = vector.load %arg5[%c0_51, %c1_52, %c0_53, %c0_54] : memref<1x8x16x128xf32, #tpu.memory_space<vmem>>, vector<1x1x16x128xf32>
    %63 = vector.shape_cast %62 : vector<1x1x16x128xf32> to vector<16x128xf32>
    %cst_55 = arith.constant dense<0.000000e+00> : vector<16x16xf32>
    %64 = tpu.matmul %3, %63, %cst_55 {dimension_numbers = #tpu.dot_dimension_numbers<[1], [1], [0], [0], [0, 0, 1, 0], [], []>} : vector<16x128xf32>, vector<16x128xf32>, vector<16x16xf32> -> vector<16x16xf32>
    %c0_56 = arith.constant 0 : index
    %c1_57 = arith.constant 1 : index
    %c0_58 = arith.constant 0 : index
    %65 = vector.load %arg8[%c0_56, %c1_57, %c0_58] : memref<1x8x16xf32, #tpu.memory_space<vmem>>, vector<1x1x16xf32>
    %66 = vector.shape_cast %65 : vector<1x1x16xf32> to vector<1x16xf32>
    %67 = vector.broadcast %66 : vector<1x16xf32> to vector<16x16xf32>
    %68 = arith.addf %64, %67 : vector<16x16xf32>
    %cst_59 = arith.constant 2.500000e-01 : f32
    %69 = vector.broadcast %cst_59 : f32 to vector<16x16xf32>
    %70 = arith.mulf %54, %69 : vector<16x16xf32>
    %71 = vector.shape_cast %70 : vector<16x16xf32> to vector<2x8x16xf32>
    %72 = vector.shape_cast %61 : vector<16x16xf32> to vector<2x8x16xf32>
    %73 = vector.shape_cast %68 : vector<16x16xf32> to vector<2x8x16xf32>
    "tpu.trace_start"() <{level = 10 : i32, message = "bqd,bkd->bqk"}> : () -> ()
    %cst_60 = arith.constant dense<0.000000e+00> : vector<2x8x8xf32>
    %74 = tpu.matmul %71, %72, %cst_60 {dimension_numbers = #tpu.dot_dimension_numbers<[2], [2], [1], [1], [0, 0, 0, 1, 1, 1], [0], [0]>} : vector<2x8x16xf32>, vector<2x8x16xf32>, vector<2x8x8xf32> -> vector<2x8x8xf32>
    "tpu.trace_stop"() : () -> ()
    %cst_61 = arith.constant dense<0xFF800000> : vector<2x8xf32>
    %75 = vector.multi_reduction <maximumf>, %74, %cst_61 [2] : vector<2x8x8xf32> to vector<2x8xf32>
    %76 = vector.shape_cast %75 : vector<2x8xf32> to vector<2x8x1xf32>
    %77 = vector.broadcast %76 : vector<2x8x1xf32> to vector<2x8x8xf32>
    %78 = arith.subf %74, %77 : vector<2x8x8xf32>
    %79 = math.exp %78 : vector<2x8x8xf32>
    %cst_62 = arith.constant dense<0.000000e+00> : vector<2x8xf32>
    %80 = vector.multi_reduction <add>, %79, %cst_62 [2] : vector<2x8x8xf32> to vector<2x8xf32>
    %81 = vector.shape_cast %80 : vector<2x8xf32> to vector<2x8x1xf32>
    %82 = tpu.reciprocal %81 {approx = true} : vector<2x8x1xf32> -> vector<2x8x1xf32>
    %83 = vector.broadcast %82 : vector<2x8x1xf32> to vector<2x8x8xf32>
    %84 = arith.mulf %79, %83 : vector<2x8x8xf32>
    "tpu.trace_start"() <{level = 10 : i32, message = "bqk,bkd->bqd"}> : () -> ()
    %cst_63 = arith.constant dense<0.000000e+00> : vector<2x8x16xf32>
    %85 = tpu.matmul %84, %73, %cst_63 {dimension_numbers = #tpu.dot_dimension_numbers<[2], [1], [1], [2], [0, 0, 0, 1, 1, 2], [0], [0]>} : vector<2x8x8xf32>, vector<2x8x16xf32>, vector<2x8x16xf32> -> vector<2x8x16xf32>
    "tpu.trace_stop"() : () -> ()
    %86 = vector.shape_cast %85 : vector<2x8x16xf32> to vector<16x16xf32>
    %c0_64 = arith.constant 0 : index
    %c1_65 = arith.constant 1 : index
    %c0_66 = arith.constant 0 : index
    %c0_67 = arith.constant 0 : index
    %87 = vector.load %arg9[%c0_64, %c1_65, %c0_66, %c0_67] : memref<1x8x16x128xf32, #tpu.memory_space<vmem>>, vector<1x1x16x128xf32>
    %88 = vector.shape_cast %87 : vector<1x1x16x128xf32> to vector<16x128xf32>
    %cst_68 = arith.constant dense<0.000000e+00> : vector<16x128xf32>
    %89 = tpu.matmul %86, %88, %cst_68 {dimension_numbers = #tpu.dot_dimension_numbers<[1], [0], [0], [1], [0, 0, 1, 1], [], []>} : vector<16x16xf32>, vector<16x128xf32>, vector<16x128xf32> -> vector<16x128xf32>
    %90 = arith.addf %47, %89 : vector<16x128xf32>
    %c0_69 = arith.constant 0 : index
    %c2 = arith.constant 2 : index
    %c0_70 = arith.constant 0 : index
    %c0_71 = arith.constant 0 : index
    %91 = vector.load %arg3[%c0_69, %c2, %c0_70, %c0_71] : memref<1x8x16x128xf32, #tpu.memory_space<vmem>>, vector<1x1x16x128xf32>
    %92 = vector.shape_cast %91 : vector<1x1x16x128xf32> to vector<16x128xf32>
    %cst_72 = arith.constant dense<0.000000e+00> : vector<16x16xf32>
    %93 = tpu.matmul %3, %92, %cst_72 {dimension_numbers = #tpu.dot_dimension_numbers<[1], [1], [0], [0], [0, 0, 1, 0], [], []>} : vector<16x128xf32>, vector<16x128xf32>, vector<16x16xf32> -> vector<16x16xf32>
    %c0_73 = arith.constant 0 : index
    %c2_74 = arith.constant 2 : index
    %c0_75 = arith.constant 0 : index
    %94 = vector.load %arg6[%c0_73, %c2_74, %c0_75] : memref<1x8x16xf32, #tpu.memory_space<vmem>>, vector<1x1x16xf32>
    %95 = vector.shape_cast %94 : vector<1x1x16xf32> to vector<1x16xf32>
    %96 = vector.broadcast %95 : vector<1x16xf32> to vector<16x16xf32>
    %97 = arith.addf %93, %96 : vector<16x16xf32>
    %c0_76 = arith.constant 0 : index
    %c2_77 = arith.constant 2 : index
    %c0_78 = arith.constant 0 : index
    %c0_79 = arith.constant 0 : index
    %98 = vector.load %arg4[%c0_76, %c2_77, %c0_78, %c0_79] : memref<1x8x16x128xf32, #tpu.memory_space<vmem>>, vector<1x1x16x128xf32>
    %99 = vector.shape_cast %98 : vector<1x1x16x128xf32> to vector<16x128xf32>
    %cst_80 = arith.constant dense<0.000000e+00> : vector<16x16xf32>
    %100 = tpu.matmul %3, %99, %cst_80 {dimension_numbers = #tpu.dot_dimension_numbers<[1], [1], [0], [0], [0, 0, 1, 0], [], []>} : vector<16x128xf32>, vector<16x128xf32>, vector<16x16xf32> -> vector<16x16xf32>
    %c0_81 = arith.constant 0 : index
    %c2_82 = arith.constant 2 : index
    %c0_83 = arith.constant 0 : index
    %101 = vector.load %arg7[%c0_81, %c2_82, %c0_83] : memref<1x8x16xf32, #tpu.memory_space<vmem>>, vector<1x1x16xf32>
    %102 = vector.shape_cast %101 : vector<1x1x16xf32> to vector<1x16xf32>
    %103 = vector.broadcast %102 : vector<1x16xf32> to vector<16x16xf32>
    %104 = arith.addf %100, %103 : vector<16x16xf32>
    %c0_84 = arith.constant 0 : index
    %c2_85 = arith.constant 2 : index
    %c0_86 = arith.constant 0 : index
    %c0_87 = arith.constant 0 : index
    %105 = vector.load %arg5[%c0_84, %c2_85, %c0_86, %c0_87] : memref<1x8x16x128xf32, #tpu.memory_space<vmem>>, vector<1x1x16x128xf32>
    %106 = vector.shape_cast %105 : vector<1x1x16x128xf32> to vector<16x128xf32>
    %cst_88 = arith.constant dense<0.000000e+00> : vector<16x16xf32>
    %107 = tpu.matmul %3, %106, %cst_88 {dimension_numbers = #tpu.dot_dimension_numbers<[1], [1], [0], [0], [0, 0, 1, 0], [], []>} : vector<16x128xf32>, vector<16x128xf32>, vector<16x16xf32> -> vector<16x16xf32>
    %c0_89 = arith.constant 0 : index
    %c2_90 = arith.constant 2 : index
    %c0_91 = arith.constant 0 : index
    %108 = vector.load %arg8[%c0_89, %c2_90, %c0_91] : memref<1x8x16xf32, #tpu.memory_space<vmem>>, vector<1x1x16xf32>
    %109 = vector.shape_cast %108 : vector<1x1x16xf32> to vector<1x16xf32>
    %110 = vector.broadcast %109 : vector<1x16xf32> to vector<16x16xf32>
    %111 = arith.addf %107, %110 : vector<16x16xf32>
    %cst_92 = arith.constant 2.500000e-01 : f32
    %112 = vector.broadcast %cst_92 : f32 to vector<16x16xf32>
    %113 = arith.mulf %97, %112 : vector<16x16xf32>
    %114 = vector.shape_cast %113 : vector<16x16xf32> to vector<2x8x16xf32>
    %115 = vector.shape_cast %104 : vector<16x16xf32> to vector<2x8x16xf32>
    %116 = vector.shape_cast %111 : vector<16x16xf32> to vector<2x8x16xf32>
    "tpu.trace_start"() <{level = 10 : i32, message = "bqd,bkd->bqk"}> : () -> ()
    %cst_93 = arith.constant dense<0.000000e+00> : vector<2x8x8xf32>
    %117 = tpu.matmul %114, %115, %cst_93 {dimension_numbers = #tpu.dot_dimension_numbers<[2], [2], [1], [1], [0, 0, 0, 1, 1, 1], [0], [0]>} : vector<2x8x16xf32>, vector<2x8x16xf32>, vector<2x8x8xf32> -> vector<2x8x8xf32>
    "tpu.trace_stop"() : () -> ()
    %cst_94 = arith.constant dense<0xFF800000> : vector<2x8xf32>
    %118 = vector.multi_reduction <maximumf>, %117, %cst_94 [2] : vector<2x8x8xf32> to vector<2x8xf32>
    %119 = vector.shape_cast %118 : vector<2x8xf32> to vector<2x8x1xf32>
    %120 = vector.broadcast %119 : vector<2x8x1xf32> to vector<2x8x8xf32>
    %121 = arith.subf %117, %120 : vector<2x8x8xf32>
    %122 = math.exp %121 : vector<2x8x8xf32>
    %cst_95 = arith.constant dense<0.000000e+00> : vector<2x8xf32>
    %123 = vector.multi_reduction <add>, %122, %cst_95 [2] : vector<2x8x8xf32> to vector<2x8xf32>
    %124 = vector.shape_cast %123 : vector<2x8xf32> to vector<2x8x1xf32>
    %125 = tpu.reciprocal %124 {approx = true} : vector<2x8x1xf32> -> vector<2x8x1xf32>
    %126 = vector.broadcast %125 : vector<2x8x1xf32> to vector<2x8x8xf32>
    %127 = arith.mulf %122, %126 : vector<2x8x8xf32>
    "tpu.trace_start"() <{level = 10 : i32, message = "bqk,bkd->bqd"}> : () -> ()
    %cst_96 = arith.constant dense<0.000000e+00> : vector<2x8x16xf32>
    %128 = tpu.matmul %127, %116, %cst_96 {dimension_numbers = #tpu.dot_dimension_numbers<[2], [1], [1], [2], [0, 0, 0, 1, 1, 2], [0], [0]>} : vector<2x8x8xf32>, vector<2x8x16xf32>, vector<2x8x16xf32> -> vector<2x8x16xf32>
    "tpu.trace_stop"() : () -> ()
    %129 = vector.shape_cast %128 : vector<2x8x16xf32> to vector<16x16xf32>
    %c0_97 = arith.constant 0 : index
    %c2_98 = arith.constant 2 : index
    %c0_99 = arith.constant 0 : index
    %c0_100 = arith.constant 0 : index
    %130 = vector.load %arg9[%c0_97, %c2_98, %c0_99, %c0_100] : memref<1x8x16x128xf32, #tpu.memory_space<vmem>>, vector<1x1x16x128xf32>
    %131 = vector.shape_cast %130 : vector<1x1x16x128xf32> to vector<16x128xf32>
    %cst_101 = arith.constant dense<0.000000e+00> : vector<16x128xf32>
    %132 = tpu.matmul %129, %131, %cst_101 {dimension_numbers = #tpu.dot_dimension_numbers<[1], [0], [0], [1], [0, 0, 1, 1], [], []>} : vector<16x16xf32>, vector<16x128xf32>, vector<16x128xf32> -> vector<16x128xf32>
    %133 = arith.addf %90, %132 : vector<16x128xf32>
    %c0_102 = arith.constant 0 : index
    %c3 = arith.constant 3 : index
    %c0_103 = arith.constant 0 : index
    %c0_104 = arith.constant 0 : index
    %134 = vector.load %arg3[%c0_102, %c3, %c0_103, %c0_104] : memref<1x8x16x128xf32, #tpu.memory_space<vmem>>, vector<1x1x16x128xf32>
    %135 = vector.shape_cast %134 : vector<1x1x16x128xf32> to vector<16x128xf32>
    %cst_105 = arith.constant dense<0.000000e+00> : vector<16x16xf32>
    %136 = tpu.matmul %3, %135, %cst_105 {dimension_numbers = #tpu.dot_dimension_numbers<[1], [1], [0], [0], [0, 0, 1, 0], [], []>} : vector<16x128xf32>, vector<16x128xf32>, vector<16x16xf32> -> vector<16x16xf32>
    %c0_106 = arith.constant 0 : index
    %c3_107 = arith.constant 3 : index
    %c0_108 = arith.constant 0 : index
    %137 = vector.load %arg6[%c0_106, %c3_107, %c0_108] : memref<1x8x16xf32, #tpu.memory_space<vmem>>, vector<1x1x16xf32>
    %138 = vector.shape_cast %137 : vector<1x1x16xf32> to vector<1x16xf32>
    %139 = vector.broadcast %138 : vector<1x16xf32> to vector<16x16xf32>
    %140 = arith.addf %136, %139 : vector<16x16xf32>
    %c0_109 = arith.constant 0 : index
    %c3_110 = arith.constant 3 : index
    %c0_111 = arith.constant 0 : index
    %c0_112 = arith.constant 0 : index
    %141 = vector.load %arg4[%c0_109, %c3_110, %c0_111, %c0_112] : memref<1x8x16x128xf32, #tpu.memory_space<vmem>>, vector<1x1x16x128xf32>
    %142 = vector.shape_cast %141 : vector<1x1x16x128xf32> to vector<16x128xf32>
    %cst_113 = arith.constant dense<0.000000e+00> : vector<16x16xf32>
    %143 = tpu.matmul %3, %142, %cst_113 {dimension_numbers = #tpu.dot_dimension_numbers<[1], [1], [0], [0], [0, 0, 1, 0], [], []>} : vector<16x128xf32>, vector<16x128xf32>, vector<16x16xf32> -> vector<16x16xf32>
    %c0_114 = arith.constant 0 : index
    %c3_115 = arith.constant 3 : index
    %c0_116 = arith.constant 0 : index
    %144 = vector.load %arg7[%c0_114, %c3_115, %c0_116] : memref<1x8x16xf32, #tpu.memory_space<vmem>>, vector<1x1x16xf32>
    %145 = vector.shape_cast %144 : vector<1x1x16xf32> to vector<1x16xf32>
    %146 = vector.broadcast %145 : vector<1x16xf32> to vector<16x16xf32>
    %147 = arith.addf %143, %146 : vector<16x16xf32>
    %c0_117 = arith.constant 0 : index
    %c3_118 = arith.constant 3 : index
    %c0_119 = arith.constant 0 : index
    %c0_120 = arith.constant 0 : index
    %148 = vector.load %arg5[%c0_117, %c3_118, %c0_119, %c0_120] : memref<1x8x16x128xf32, #tpu.memory_space<vmem>>, vector<1x1x16x128xf32>
    %149 = vector.shape_cast %148 : vector<1x1x16x128xf32> to vector<16x128xf32>
    %cst_121 = arith.constant dense<0.000000e+00> : vector<16x16xf32>
    %150 = tpu.matmul %3, %149, %cst_121 {dimension_numbers = #tpu.dot_dimension_numbers<[1], [1], [0], [0], [0, 0, 1, 0], [], []>} : vector<16x128xf32>, vector<16x128xf32>, vector<16x16xf32> -> vector<16x16xf32>
    %c0_122 = arith.constant 0 : index
    %c3_123 = arith.constant 3 : index
    %c0_124 = arith.constant 0 : index
    %151 = vector.load %arg8[%c0_122, %c3_123, %c0_124] : memref<1x8x16xf32, #tpu.memory_space<vmem>>, vector<1x1x16xf32>
    %152 = vector.shape_cast %151 : vector<1x1x16xf32> to vector<1x16xf32>
    %153 = vector.broadcast %152 : vector<1x16xf32> to vector<16x16xf32>
    %154 = arith.addf %150, %153 : vector<16x16xf32>
    %cst_125 = arith.constant 2.500000e-01 : f32
    %155 = vector.broadcast %cst_125 : f32 to vector<16x16xf32>
    %156 = arith.mulf %140, %155 : vector<16x16xf32>
    %157 = vector.shape_cast %156 : vector<16x16xf32> to vector<2x8x16xf32>
    %158 = vector.shape_cast %147 : vector<16x16xf32> to vector<2x8x16xf32>
    %159 = vector.shape_cast %154 : vector<16x16xf32> to vector<2x8x16xf32>
    "tpu.trace_start"() <{level = 10 : i32, message = "bqd,bkd->bqk"}> : () -> ()
    %cst_126 = arith.constant dense<0.000000e+00> : vector<2x8x8xf32>
    %160 = tpu.matmul %157, %158, %cst_126 {dimension_numbers = #tpu.dot_dimension_numbers<[2], [2], [1], [1], [0, 0, 0, 1, 1, 1], [0], [0]>} : vector<2x8x16xf32>, vector<2x8x16xf32>, vector<2x8x8xf32> -> vector<2x8x8xf32>
    "tpu.trace_stop"() : () -> ()
    %cst_127 = arith.constant dense<0xFF800000> : vector<2x8xf32>
    %161 = vector.multi_reduction <maximumf>, %160, %cst_127 [2] : vector<2x8x8xf32> to vector<2x8xf32>
    %162 = vector.shape_cast %161 : vector<2x8xf32> to vector<2x8x1xf32>
    %163 = vector.broadcast %162 : vector<2x8x1xf32> to vector<2x8x8xf32>
    %164 = arith.subf %160, %163 : vector<2x8x8xf32>
    %165 = math.exp %164 : vector<2x8x8xf32>
    %cst_128 = arith.constant dense<0.000000e+00> : vector<2x8xf32>
    %166 = vector.multi_reduction <add>, %165, %cst_128 [2] : vector<2x8x8xf32> to vector<2x8xf32>
    %167 = vector.shape_cast %166 : vector<2x8xf32> to vector<2x8x1xf32>
    %168 = tpu.reciprocal %167 {approx = true} : vector<2x8x1xf32> -> vector<2x8x1xf32>
    %169 = vector.broadcast %168 : vector<2x8x1xf32> to vector<2x8x8xf32>
    %170 = arith.mulf %165, %169 : vector<2x8x8xf32>
    "tpu.trace_start"() <{level = 10 : i32, message = "bqk,bkd->bqd"}> : () -> ()
    %cst_129 = arith.constant dense<0.000000e+00> : vector<2x8x16xf32>
    %171 = tpu.matmul %170, %159, %cst_129 {dimension_numbers = #tpu.dot_dimension_numbers<[2], [1], [1], [2], [0, 0, 0, 1, 1, 2], [0], [0]>} : vector<2x8x8xf32>, vector<2x8x16xf32>, vector<2x8x16xf32> -> vector<2x8x16xf32>
    "tpu.trace_stop"() : () -> ()
    %172 = vector.shape_cast %171 : vector<2x8x16xf32> to vector<16x16xf32>
    %c0_130 = arith.constant 0 : index
    %c3_131 = arith.constant 3 : index
    %c0_132 = arith.constant 0 : index
    %c0_133 = arith.constant 0 : index
    %173 = vector.load %arg9[%c0_130, %c3_131, %c0_132, %c0_133] : memref<1x8x16x128xf32, #tpu.memory_space<vmem>>, vector<1x1x16x128xf32>
    %174 = vector.shape_cast %173 : vector<1x1x16x128xf32> to vector<16x128xf32>
    %cst_134 = arith.constant dense<0.000000e+00> : vector<16x128xf32>
    %175 = tpu.matmul %172, %174, %cst_134 {dimension_numbers = #tpu.dot_dimension_numbers<[1], [0], [0], [1], [0, 0, 1, 1], [], []>} : vector<16x16xf32>, vector<16x128xf32>, vector<16x128xf32> -> vector<16x128xf32>
    %176 = arith.addf %133, %175 : vector<16x128xf32>
    %c0_135 = arith.constant 0 : index
    %c4 = arith.constant 4 : index
    %c0_136 = arith.constant 0 : index
    %c0_137 = arith.constant 0 : index
    %177 = vector.load %arg3[%c0_135, %c4, %c0_136, %c0_137] : memref<1x8x16x128xf32, #tpu.memory_space<vmem>>, vector<1x1x16x128xf32>
    %178 = vector.shape_cast %177 : vector<1x1x16x128xf32> to vector<16x128xf32>
    %cst_138 = arith.constant dense<0.000000e+00> : vector<16x16xf32>
    %179 = tpu.matmul %3, %178, %cst_138 {dimension_numbers = #tpu.dot_dimension_numbers<[1], [1], [0], [0], [0, 0, 1, 0], [], []>} : vector<16x128xf32>, vector<16x128xf32>, vector<16x16xf32> -> vector<16x16xf32>
    %c0_139 = arith.constant 0 : index
    %c4_140 = arith.constant 4 : index
    %c0_141 = arith.constant 0 : index
    %180 = vector.load %arg6[%c0_139, %c4_140, %c0_141] : memref<1x8x16xf32, #tpu.memory_space<vmem>>, vector<1x1x16xf32>
    %181 = vector.shape_cast %180 : vector<1x1x16xf32> to vector<1x16xf32>
    %182 = vector.broadcast %181 : vector<1x16xf32> to vector<16x16xf32>
    %183 = arith.addf %179, %182 : vector<16x16xf32>
    %c0_142 = arith.constant 0 : index
    %c4_143 = arith.constant 4 : index
    %c0_144 = arith.constant 0 : index
    %c0_145 = arith.constant 0 : index
    %184 = vector.load %arg4[%c0_142, %c4_143, %c0_144, %c0_145] : memref<1x8x16x128xf32, #tpu.memory_space<vmem>>, vector<1x1x16x128xf32>
    %185 = vector.shape_cast %184 : vector<1x1x16x128xf32> to vector<16x128xf32>
    %cst_146 = arith.constant dense<0.000000e+00> : vector<16x16xf32>
    %186 = tpu.matmul %3, %185, %cst_146 {dimension_numbers = #tpu.dot_dimension_numbers<[1], [1], [0], [0], [0, 0, 1, 0], [], []>} : vector<16x128xf32>, vector<16x128xf32>, vector<16x16xf32> -> vector<16x16xf32>
    %c0_147 = arith.constant 0 : index
    %c4_148 = arith.constant 4 : index
    %c0_149 = arith.constant 0 : index
    %187 = vector.load %arg7[%c0_147, %c4_148, %c0_149] : memref<1x8x16xf32, #tpu.memory_space<vmem>>, vector<1x1x16xf32>
    %188 = vector.shape_cast %187 : vector<1x1x16xf32> to vector<1x16xf32>
    %189 = vector.broadcast %188 : vector<1x16xf32> to vector<16x16xf32>
    %190 = arith.addf %186, %189 : vector<16x16xf32>
    %c0_150 = arith.constant 0 : index
    %c4_151 = arith.constant 4 : index
    %c0_152 = arith.constant 0 : index
    %c0_153 = arith.constant 0 : index
    %191 = vector.load %arg5[%c0_150, %c4_151, %c0_152, %c0_153] : memref<1x8x16x128xf32, #tpu.memory_space<vmem>>, vector<1x1x16x128xf32>
    %192 = vector.shape_cast %191 : vector<1x1x16x128xf32> to vector<16x128xf32>
    %cst_154 = arith.constant dense<0.000000e+00> : vector<16x16xf32>
    %193 = tpu.matmul %3, %192, %cst_154 {dimension_numbers = #tpu.dot_dimension_numbers<[1], [1], [0], [0], [0, 0, 1, 0], [], []>} : vector<16x128xf32>, vector<16x128xf32>, vector<16x16xf32> -> vector<16x16xf32>
    %c0_155 = arith.constant 0 : index
    %c4_156 = arith.constant 4 : index
    %c0_157 = arith.constant 0 : index
    %194 = vector.load %arg8[%c0_155, %c4_156, %c0_157] : memref<1x8x16xf32, #tpu.memory_space<vmem>>, vector<1x1x16xf32>
    %195 = vector.shape_cast %194 : vector<1x1x16xf32> to vector<1x16xf32>
    %196 = vector.broadcast %195 : vector<1x16xf32> to vector<16x16xf32>
    %197 = arith.addf %193, %196 : vector<16x16xf32>
    %cst_158 = arith.constant 2.500000e-01 : f32
    %198 = vector.broadcast %cst_158 : f32 to vector<16x16xf32>
    %199 = arith.mulf %183, %198 : vector<16x16xf32>
    %200 = vector.shape_cast %199 : vector<16x16xf32> to vector<2x8x16xf32>
    %201 = vector.shape_cast %190 : vector<16x16xf32> to vector<2x8x16xf32>
    %202 = vector.shape_cast %197 : vector<16x16xf32> to vector<2x8x16xf32>
    "tpu.trace_start"() <{level = 10 : i32, message = "bqd,bkd->bqk"}> : () -> ()
    %cst_159 = arith.constant dense<0.000000e+00> : vector<2x8x8xf32>
    %203 = tpu.matmul %200, %201, %cst_159 {dimension_numbers = #tpu.dot_dimension_numbers<[2], [2], [1], [1], [0, 0, 0, 1, 1, 1], [0], [0]>} : vector<2x8x16xf32>, vector<2x8x16xf32>, vector<2x8x8xf32> -> vector<2x8x8xf32>
    "tpu.trace_stop"() : () -> ()
    %cst_160 = arith.constant dense<0xFF800000> : vector<2x8xf32>
    %204 = vector.multi_reduction <maximumf>, %203, %cst_160 [2] : vector<2x8x8xf32> to vector<2x8xf32>
    %205 = vector.shape_cast %204 : vector<2x8xf32> to vector<2x8x1xf32>
    %206 = vector.broadcast %205 : vector<2x8x1xf32> to vector<2x8x8xf32>
    %207 = arith.subf %203, %206 : vector<2x8x8xf32>
    %208 = math.exp %207 : vector<2x8x8xf32>
    %cst_161 = arith.constant dense<0.000000e+00> : vector<2x8xf32>
    %209 = vector.multi_reduction <add>, %208, %cst_161 [2] : vector<2x8x8xf32> to vector<2x8xf32>
    %210 = vector.shape_cast %209 : vector<2x8xf32> to vector<2x8x1xf32>
    %211 = tpu.reciprocal %210 {approx = true} : vector<2x8x1xf32> -> vector<2x8x1xf32>
    %212 = vector.broadcast %211 : vector<2x8x1xf32> to vector<2x8x8xf32>
    %213 = arith.mulf %208, %212 : vector<2x8x8xf32>
    "tpu.trace_start"() <{level = 10 : i32, message = "bqk,bkd->bqd"}> : () -> ()
    %cst_162 = arith.constant dense<0.000000e+00> : vector<2x8x16xf32>
    %214 = tpu.matmul %213, %202, %cst_162 {dimension_numbers = #tpu.dot_dimension_numbers<[2], [1], [1], [2], [0, 0, 0, 1, 1, 2], [0], [0]>} : vector<2x8x8xf32>, vector<2x8x16xf32>, vector<2x8x16xf32> -> vector<2x8x16xf32>
    "tpu.trace_stop"() : () -> ()
    %215 = vector.shape_cast %214 : vector<2x8x16xf32> to vector<16x16xf32>
    %c0_163 = arith.constant 0 : index
    %c4_164 = arith.constant 4 : index
    %c0_165 = arith.constant 0 : index
    %c0_166 = arith.constant 0 : index
    %216 = vector.load %arg9[%c0_163, %c4_164, %c0_165, %c0_166] : memref<1x8x16x128xf32, #tpu.memory_space<vmem>>, vector<1x1x16x128xf32>
    %217 = vector.shape_cast %216 : vector<1x1x16x128xf32> to vector<16x128xf32>
    %cst_167 = arith.constant dense<0.000000e+00> : vector<16x128xf32>
    %218 = tpu.matmul %215, %217, %cst_167 {dimension_numbers = #tpu.dot_dimension_numbers<[1], [0], [0], [1], [0, 0, 1, 1], [], []>} : vector<16x16xf32>, vector<16x128xf32>, vector<16x128xf32> -> vector<16x128xf32>
    %219 = arith.addf %176, %218 : vector<16x128xf32>
    %c0_168 = arith.constant 0 : index
    %c5 = arith.constant 5 : index
    %c0_169 = arith.constant 0 : index
    %c0_170 = arith.constant 0 : index
    %220 = vector.load %arg3[%c0_168, %c5, %c0_169, %c0_170] : memref<1x8x16x128xf32, #tpu.memory_space<vmem>>, vector<1x1x16x128xf32>
    %221 = vector.shape_cast %220 : vector<1x1x16x128xf32> to vector<16x128xf32>
    %cst_171 = arith.constant dense<0.000000e+00> : vector<16x16xf32>
    %222 = tpu.matmul %3, %221, %cst_171 {dimension_numbers = #tpu.dot_dimension_numbers<[1], [1], [0], [0], [0, 0, 1, 0], [], []>} : vector<16x128xf32>, vector<16x128xf32>, vector<16x16xf32> -> vector<16x16xf32>
    %c0_172 = arith.constant 0 : index
    %c5_173 = arith.constant 5 : index
    %c0_174 = arith.constant 0 : index
    %223 = vector.load %arg6[%c0_172, %c5_173, %c0_174] : memref<1x8x16xf32, #tpu.memory_space<vmem>>, vector<1x1x16xf32>
    %224 = vector.shape_cast %223 : vector<1x1x16xf32> to vector<1x16xf32>
    %225 = vector.broadcast %224 : vector<1x16xf32> to vector<16x16xf32>
    %226 = arith.addf %222, %225 : vector<16x16xf32>
    %c0_175 = arith.constant 0 : index
    %c5_176 = arith.constant 5 : index
    %c0_177 = arith.constant 0 : index
    %c0_178 = arith.constant 0 : index
    %227 = vector.load %arg4[%c0_175, %c5_176, %c0_177, %c0_178] : memref<1x8x16x128xf32, #tpu.memory_space<vmem>>, vector<1x1x16x128xf32>
    %228 = vector.shape_cast %227 : vector<1x1x16x128xf32> to vector<16x128xf32>
    %cst_179 = arith.constant dense<0.000000e+00> : vector<16x16xf32>
    %229 = tpu.matmul %3, %228, %cst_179 {dimension_numbers = #tpu.dot_dimension_numbers<[1], [1], [0], [0], [0, 0, 1, 0], [], []>} : vector<16x128xf32>, vector<16x128xf32>, vector<16x16xf32> -> vector<16x16xf32>
    %c0_180 = arith.constant 0 : index
    %c5_181 = arith.constant 5 : index
    %c0_182 = arith.constant 0 : index
    %230 = vector.load %arg7[%c0_180, %c5_181, %c0_182] : memref<1x8x16xf32, #tpu.memory_space<vmem>>, vector<1x1x16xf32>
    %231 = vector.shape_cast %230 : vector<1x1x16xf32> to vector<1x16xf32>
    %232 = vector.broadcast %231 : vector<1x16xf32> to vector<16x16xf32>
    %233 = arith.addf %229, %232 : vector<16x16xf32>
    %c0_183 = arith.constant 0 : index
    %c5_184 = arith.constant 5 : index
    %c0_185 = arith.constant 0 : index
    %c0_186 = arith.constant 0 : index
    %234 = vector.load %arg5[%c0_183, %c5_184, %c0_185, %c0_186] : memref<1x8x16x128xf32, #tpu.memory_space<vmem>>, vector<1x1x16x128xf32>
    %235 = vector.shape_cast %234 : vector<1x1x16x128xf32> to vector<16x128xf32>
    %cst_187 = arith.constant dense<0.000000e+00> : vector<16x16xf32>
    %236 = tpu.matmul %3, %235, %cst_187 {dimension_numbers = #tpu.dot_dimension_numbers<[1], [1], [0], [0], [0, 0, 1, 0], [], []>} : vector<16x128xf32>, vector<16x128xf32>, vector<16x16xf32> -> vector<16x16xf32>
    %c0_188 = arith.constant 0 : index
    %c5_189 = arith.constant 5 : index
    %c0_190 = arith.constant 0 : index
    %237 = vector.load %arg8[%c0_188, %c5_189, %c0_190] : memref<1x8x16xf32, #tpu.memory_space<vmem>>, vector<1x1x16xf32>
    %238 = vector.shape_cast %237 : vector<1x1x16xf32> to vector<1x16xf32>
    %239 = vector.broadcast %238 : vector<1x16xf32> to vector<16x16xf32>
    %240 = arith.addf %236, %239 : vector<16x16xf32>
    %cst_191 = arith.constant 2.500000e-01 : f32
    %241 = vector.broadcast %cst_191 : f32 to vector<16x16xf32>
    %242 = arith.mulf %226, %241 : vector<16x16xf32>
    %243 = vector.shape_cast %242 : vector<16x16xf32> to vector<2x8x16xf32>
    %244 = vector.shape_cast %233 : vector<16x16xf32> to vector<2x8x16xf32>
    %245 = vector.shape_cast %240 : vector<16x16xf32> to vector<2x8x16xf32>
    "tpu.trace_start"() <{level = 10 : i32, message = "bqd,bkd->bqk"}> : () -> ()
    %cst_192 = arith.constant dense<0.000000e+00> : vector<2x8x8xf32>
    %246 = tpu.matmul %243, %244, %cst_192 {dimension_numbers = #tpu.dot_dimension_numbers<[2], [2], [1], [1], [0, 0, 0, 1, 1, 1], [0], [0]>} : vector<2x8x16xf32>, vector<2x8x16xf32>, vector<2x8x8xf32> -> vector<2x8x8xf32>
    "tpu.trace_stop"() : () -> ()
    %cst_193 = arith.constant dense<0xFF800000> : vector<2x8xf32>
    %247 = vector.multi_reduction <maximumf>, %246, %cst_193 [2] : vector<2x8x8xf32> to vector<2x8xf32>
    %248 = vector.shape_cast %247 : vector<2x8xf32> to vector<2x8x1xf32>
    %249 = vector.broadcast %248 : vector<2x8x1xf32> to vector<2x8x8xf32>
    %250 = arith.subf %246, %249 : vector<2x8x8xf32>
    %251 = math.exp %250 : vector<2x8x8xf32>
    %cst_194 = arith.constant dense<0.000000e+00> : vector<2x8xf32>
    %252 = vector.multi_reduction <add>, %251, %cst_194 [2] : vector<2x8x8xf32> to vector<2x8xf32>
    %253 = vector.shape_cast %252 : vector<2x8xf32> to vector<2x8x1xf32>
    %254 = tpu.reciprocal %253 {approx = true} : vector<2x8x1xf32> -> vector<2x8x1xf32>
    %255 = vector.broadcast %254 : vector<2x8x1xf32> to vector<2x8x8xf32>
    %256 = arith.mulf %251, %255 : vector<2x8x8xf32>
    "tpu.trace_start"() <{level = 10 : i32, message = "bqk,bkd->bqd"}> : () -> ()
    %cst_195 = arith.constant dense<0.000000e+00> : vector<2x8x16xf32>
    %257 = tpu.matmul %256, %245, %cst_195 {dimension_numbers = #tpu.dot_dimension_numbers<[2], [1], [1], [2], [0, 0, 0, 1, 1, 2], [0], [0]>} : vector<2x8x8xf32>, vector<2x8x16xf32>, vector<2x8x16xf32> -> vector<2x8x16xf32>
    "tpu.trace_stop"() : () -> ()
    %258 = vector.shape_cast %257 : vector<2x8x16xf32> to vector<16x16xf32>
    %c0_196 = arith.constant 0 : index
    %c5_197 = arith.constant 5 : index
    %c0_198 = arith.constant 0 : index
    %c0_199 = arith.constant 0 : index
    %259 = vector.load %arg9[%c0_196, %c5_197, %c0_198, %c0_199] : memref<1x8x16x128xf32, #tpu.memory_space<vmem>>, vector<1x1x16x128xf32>
    %260 = vector.shape_cast %259 : vector<1x1x16x128xf32> to vector<16x128xf32>
    %cst_200 = arith.constant dense<0.000000e+00> : vector<16x128xf32>
    %261 = tpu.matmul %258, %260, %cst_200 {dimension_numbers = #tpu.dot_dimension_numbers<[1], [0], [0], [1], [0, 0, 1, 1], [], []>} : vector<16x16xf32>, vector<16x128xf32>, vector<16x128xf32> -> vector<16x128xf32>
    %262 = arith.addf %219, %261 : vector<16x128xf32>
    %c0_201 = arith.constant 0 : index
    %c6 = arith.constant 6 : index
    %c0_202 = arith.constant 0 : index
    %c0_203 = arith.constant 0 : index
    %263 = vector.load %arg3[%c0_201, %c6, %c0_202, %c0_203] : memref<1x8x16x128xf32, #tpu.memory_space<vmem>>, vector<1x1x16x128xf32>
    %264 = vector.shape_cast %263 : vector<1x1x16x128xf32> to vector<16x128xf32>
    %cst_204 = arith.constant dense<0.000000e+00> : vector<16x16xf32>
    %265 = tpu.matmul %3, %264, %cst_204 {dimension_numbers = #tpu.dot_dimension_numbers<[1], [1], [0], [0], [0, 0, 1, 0], [], []>} : vector<16x128xf32>, vector<16x128xf32>, vector<16x16xf32> -> vector<16x16xf32>
    %c0_205 = arith.constant 0 : index
    %c6_206 = arith.constant 6 : index
    %c0_207 = arith.constant 0 : index
    %266 = vector.load %arg6[%c0_205, %c6_206, %c0_207] : memref<1x8x16xf32, #tpu.memory_space<vmem>>, vector<1x1x16xf32>
    %267 = vector.shape_cast %266 : vector<1x1x16xf32> to vector<1x16xf32>
    %268 = vector.broadcast %267 : vector<1x16xf32> to vector<16x16xf32>
    %269 = arith.addf %265, %268 : vector<16x16xf32>
    %c0_208 = arith.constant 0 : index
    %c6_209 = arith.constant 6 : index
    %c0_210 = arith.constant 0 : index
    %c0_211 = arith.constant 0 : index
    %270 = vector.load %arg4[%c0_208, %c6_209, %c0_210, %c0_211] : memref<1x8x16x128xf32, #tpu.memory_space<vmem>>, vector<1x1x16x128xf32>
    %271 = vector.shape_cast %270 : vector<1x1x16x128xf32> to vector<16x128xf32>
    %cst_212 = arith.constant dense<0.000000e+00> : vector<16x16xf32>
    %272 = tpu.matmul %3, %271, %cst_212 {dimension_numbers = #tpu.dot_dimension_numbers<[1], [1], [0], [0], [0, 0, 1, 0], [], []>} : vector<16x128xf32>, vector<16x128xf32>, vector<16x16xf32> -> vector<16x16xf32>
    %c0_213 = arith.constant 0 : index
    %c6_214 = arith.constant 6 : index
    %c0_215 = arith.constant 0 : index
    %273 = vector.load %arg7[%c0_213, %c6_214, %c0_215] : memref<1x8x16xf32, #tpu.memory_space<vmem>>, vector<1x1x16xf32>
    %274 = vector.shape_cast %273 : vector<1x1x16xf32> to vector<1x16xf32>
    %275 = vector.broadcast %274 : vector<1x16xf32> to vector<16x16xf32>
    %276 = arith.addf %272, %275 : vector<16x16xf32>
    %c0_216 = arith.constant 0 : index
    %c6_217 = arith.constant 6 : index
    %c0_218 = arith.constant 0 : index
    %c0_219 = arith.constant 0 : index
    %277 = vector.load %arg5[%c0_216, %c6_217, %c0_218, %c0_219] : memref<1x8x16x128xf32, #tpu.memory_space<vmem>>, vector<1x1x16x128xf32>
    %278 = vector.shape_cast %277 : vector<1x1x16x128xf32> to vector<16x128xf32>
    %cst_220 = arith.constant dense<0.000000e+00> : vector<16x16xf32>
    %279 = tpu.matmul %3, %278, %cst_220 {dimension_numbers = #tpu.dot_dimension_numbers<[1], [1], [0], [0], [0, 0, 1, 0], [], []>} : vector<16x128xf32>, vector<16x128xf32>, vector<16x16xf32> -> vector<16x16xf32>
    %c0_221 = arith.constant 0 : index
    %c6_222 = arith.constant 6 : index
    %c0_223 = arith.constant 0 : index
    %280 = vector.load %arg8[%c0_221, %c6_222, %c0_223] : memref<1x8x16xf32, #tpu.memory_space<vmem>>, vector<1x1x16xf32>
    %281 = vector.shape_cast %280 : vector<1x1x16xf32> to vector<1x16xf32>
    %282 = vector.broadcast %281 : vector<1x16xf32> to vector<16x16xf32>
    %283 = arith.addf %279, %282 : vector<16x16xf32>
    %cst_224 = arith.constant 2.500000e-01 : f32
    %284 = vector.broadcast %cst_224 : f32 to vector<16x16xf32>
    %285 = arith.mulf %269, %284 : vector<16x16xf32>
    %286 = vector.shape_cast %285 : vector<16x16xf32> to vector<2x8x16xf32>
    %287 = vector.shape_cast %276 : vector<16x16xf32> to vector<2x8x16xf32>
    %288 = vector.shape_cast %283 : vector<16x16xf32> to vector<2x8x16xf32>
    "tpu.trace_start"() <{level = 10 : i32, message = "bqd,bkd->bqk"}> : () -> ()
    %cst_225 = arith.constant dense<0.000000e+00> : vector<2x8x8xf32>
    %289 = tpu.matmul %286, %287, %cst_225 {dimension_numbers = #tpu.dot_dimension_numbers<[2], [2], [1], [1], [0, 0, 0, 1, 1, 1], [0], [0]>} : vector<2x8x16xf32>, vector<2x8x16xf32>, vector<2x8x8xf32> -> vector<2x8x8xf32>
    "tpu.trace_stop"() : () -> ()
    %cst_226 = arith.constant dense<0xFF800000> : vector<2x8xf32>
    %290 = vector.multi_reduction <maximumf>, %289, %cst_226 [2] : vector<2x8x8xf32> to vector<2x8xf32>
    %291 = vector.shape_cast %290 : vector<2x8xf32> to vector<2x8x1xf32>
    %292 = vector.broadcast %291 : vector<2x8x1xf32> to vector<2x8x8xf32>
    %293 = arith.subf %289, %292 : vector<2x8x8xf32>
    %294 = math.exp %293 : vector<2x8x8xf32>
    %cst_227 = arith.constant dense<0.000000e+00> : vector<2x8xf32>
    %295 = vector.multi_reduction <add>, %294, %cst_227 [2] : vector<2x8x8xf32> to vector<2x8xf32>
    %296 = vector.shape_cast %295 : vector<2x8xf32> to vector<2x8x1xf32>
    %297 = tpu.reciprocal %296 {approx = true} : vector<2x8x1xf32> -> vector<2x8x1xf32>
    %298 = vector.broadcast %297 : vector<2x8x1xf32> to vector<2x8x8xf32>
    %299 = arith.mulf %294, %298 : vector<2x8x8xf32>
    "tpu.trace_start"() <{level = 10 : i32, message = "bqk,bkd->bqd"}> : () -> ()
    %cst_228 = arith.constant dense<0.000000e+00> : vector<2x8x16xf32>
    %300 = tpu.matmul %299, %288, %cst_228 {dimension_numbers = #tpu.dot_dimension_numbers<[2], [1], [1], [2], [0, 0, 0, 1, 1, 2], [0], [0]>} : vector<2x8x8xf32>, vector<2x8x16xf32>, vector<2x8x16xf32> -> vector<2x8x16xf32>
    "tpu.trace_stop"() : () -> ()
    %301 = vector.shape_cast %300 : vector<2x8x16xf32> to vector<16x16xf32>
    %c0_229 = arith.constant 0 : index
    %c6_230 = arith.constant 6 : index
    %c0_231 = arith.constant 0 : index
    %c0_232 = arith.constant 0 : index
    %302 = vector.load %arg9[%c0_229, %c6_230, %c0_231, %c0_232] : memref<1x8x16x128xf32, #tpu.memory_space<vmem>>, vector<1x1x16x128xf32>
    %303 = vector.shape_cast %302 : vector<1x1x16x128xf32> to vector<16x128xf32>
    %cst_233 = arith.constant dense<0.000000e+00> : vector<16x128xf32>
    %304 = tpu.matmul %301, %303, %cst_233 {dimension_numbers = #tpu.dot_dimension_numbers<[1], [0], [0], [1], [0, 0, 1, 1], [], []>} : vector<16x16xf32>, vector<16x128xf32>, vector<16x128xf32> -> vector<16x128xf32>
    %305 = arith.addf %262, %304 : vector<16x128xf32>
    %c0_234 = arith.constant 0 : index
    %c7 = arith.constant 7 : index
    %c0_235 = arith.constant 0 : index
    %c0_236 = arith.constant 0 : index
    %306 = vector.load %arg3[%c0_234, %c7, %c0_235, %c0_236] : memref<1x8x16x128xf32, #tpu.memory_space<vmem>>, vector<1x1x16x128xf32>
    %307 = vector.shape_cast %306 : vector<1x1x16x128xf32> to vector<16x128xf32>
    %cst_237 = arith.constant dense<0.000000e+00> : vector<16x16xf32>
    %308 = tpu.matmul %3, %307, %cst_237 {dimension_numbers = #tpu.dot_dimension_numbers<[1], [1], [0], [0], [0, 0, 1, 0], [], []>} : vector<16x128xf32>, vector<16x128xf32>, vector<16x16xf32> -> vector<16x16xf32>
    %c0_238 = arith.constant 0 : index
    %c7_239 = arith.constant 7 : index
    %c0_240 = arith.constant 0 : index
    %309 = vector.load %arg6[%c0_238, %c7_239, %c0_240] : memref<1x8x16xf32, #tpu.memory_space<vmem>>, vector<1x1x16xf32>
    %310 = vector.shape_cast %309 : vector<1x1x16xf32> to vector<1x16xf32>
    %311 = vector.broadcast %310 : vector<1x16xf32> to vector<16x16xf32>
    %312 = arith.addf %308, %311 : vector<16x16xf32>
    %c0_241 = arith.constant 0 : index
    %c7_242 = arith.constant 7 : index
    %c0_243 = arith.constant 0 : index
    %c0_244 = arith.constant 0 : index
    %313 = vector.load %arg4[%c0_241, %c7_242, %c0_243, %c0_244] : memref<1x8x16x128xf32, #tpu.memory_space<vmem>>, vector<1x1x16x128xf32>
    %314 = vector.shape_cast %313 : vector<1x1x16x128xf32> to vector<16x128xf32>
    %cst_245 = arith.constant dense<0.000000e+00> : vector<16x16xf32>
    %315 = tpu.matmul %3, %314, %cst_245 {dimension_numbers = #tpu.dot_dimension_numbers<[1], [1], [0], [0], [0, 0, 1, 0], [], []>} : vector<16x128xf32>, vector<16x128xf32>, vector<16x16xf32> -> vector<16x16xf32>
    %c0_246 = arith.constant 0 : index
    %c7_247 = arith.constant 7 : index
    %c0_248 = arith.constant 0 : index
    %316 = vector.load %arg7[%c0_246, %c7_247, %c0_248] : memref<1x8x16xf32, #tpu.memory_space<vmem>>, vector<1x1x16xf32>
    %317 = vector.shape_cast %316 : vector<1x1x16xf32> to vector<1x16xf32>
    %318 = vector.broadcast %317 : vector<1x16xf32> to vector<16x16xf32>
    %319 = arith.addf %315, %318 : vector<16x16xf32>
    %c0_249 = arith.constant 0 : index
    %c7_250 = arith.constant 7 : index
    %c0_251 = arith.constant 0 : index
    %c0_252 = arith.constant 0 : index
    %320 = vector.load %arg5[%c0_249, %c7_250, %c0_251, %c0_252] : memref<1x8x16x128xf32, #tpu.memory_space<vmem>>, vector<1x1x16x128xf32>
    %321 = vector.shape_cast %320 : vector<1x1x16x128xf32> to vector<16x128xf32>
    %cst_253 = arith.constant dense<0.000000e+00> : vector<16x16xf32>
    %322 = tpu.matmul %3, %321, %cst_253 {dimension_numbers = #tpu.dot_dimension_numbers<[1], [1], [0], [0], [0, 0, 1, 0], [], []>} : vector<16x128xf32>, vector<16x128xf32>, vector<16x16xf32> -> vector<16x16xf32>
    %c0_254 = arith.constant 0 : index
    %c7_255 = arith.constant 7 : index
    %c0_256 = arith.constant 0 : index
    %323 = vector.load %arg8[%c0_254, %c7_255, %c0_256] : memref<1x8x16xf32, #tpu.memory_space<vmem>>, vector<1x1x16xf32>
    %324 = vector.shape_cast %323 : vector<1x1x16xf32> to vector<1x16xf32>
    %325 = vector.broadcast %324 : vector<1x16xf32> to vector<16x16xf32>
    %326 = arith.addf %322, %325 : vector<16x16xf32>
    %cst_257 = arith.constant 2.500000e-01 : f32
    %327 = vector.broadcast %cst_257 : f32 to vector<16x16xf32>
    %328 = arith.mulf %312, %327 : vector<16x16xf32>
    %329 = vector.shape_cast %328 : vector<16x16xf32> to vector<2x8x16xf32>
    %330 = vector.shape_cast %319 : vector<16x16xf32> to vector<2x8x16xf32>
    %331 = vector.shape_cast %326 : vector<16x16xf32> to vector<2x8x16xf32>
    "tpu.trace_start"() <{level = 10 : i32, message = "bqd,bkd->bqk"}> : () -> ()
    %cst_258 = arith.constant dense<0.000000e+00> : vector<2x8x8xf32>
    %332 = tpu.matmul %329, %330, %cst_258 {dimension_numbers = #tpu.dot_dimension_numbers<[2], [2], [1], [1], [0, 0, 0, 1, 1, 1], [0], [0]>} : vector<2x8x16xf32>, vector<2x8x16xf32>, vector<2x8x8xf32> -> vector<2x8x8xf32>
    "tpu.trace_stop"() : () -> ()
    %cst_259 = arith.constant dense<0xFF800000> : vector<2x8xf32>
    %333 = vector.multi_reduction <maximumf>, %332, %cst_259 [2] : vector<2x8x8xf32> to vector<2x8xf32>
    %334 = vector.shape_cast %333 : vector<2x8xf32> to vector<2x8x1xf32>
    %335 = vector.broadcast %334 : vector<2x8x1xf32> to vector<2x8x8xf32>
    %336 = arith.subf %332, %335 : vector<2x8x8xf32>
    %337 = math.exp %336 : vector<2x8x8xf32>
    %cst_260 = arith.constant dense<0.000000e+00> : vector<2x8xf32>
    %338 = vector.multi_reduction <add>, %337, %cst_260 [2] : vector<2x8x8xf32> to vector<2x8xf32>
    %339 = vector.shape_cast %338 : vector<2x8xf32> to vector<2x8x1xf32>
    %340 = tpu.reciprocal %339 {approx = true} : vector<2x8x1xf32> -> vector<2x8x1xf32>
    %341 = vector.broadcast %340 : vector<2x8x1xf32> to vector<2x8x8xf32>
    %342 = arith.mulf %337, %341 : vector<2x8x8xf32>
    "tpu.trace_start"() <{level = 10 : i32, message = "bqk,bkd->bqd"}> : () -> ()
    %cst_261 = arith.constant dense<0.000000e+00> : vector<2x8x16xf32>
    %343 = tpu.matmul %342, %331, %cst_261 {dimension_numbers = #tpu.dot_dimension_numbers<[2], [1], [1], [2], [0, 0, 0, 1, 1, 2], [0], [0]>} : vector<2x8x8xf32>, vector<2x8x16xf32>, vector<2x8x16xf32> -> vector<2x8x16xf32>
    "tpu.trace_stop"() : () -> ()
    %344 = vector.shape_cast %343 : vector<2x8x16xf32> to vector<16x16xf32>
    %c0_262 = arith.constant 0 : index
    %c7_263 = arith.constant 7 : index
    %c0_264 = arith.constant 0 : index
    %c0_265 = arith.constant 0 : index
    %345 = vector.load %arg9[%c0_262, %c7_263, %c0_264, %c0_265] : memref<1x8x16x128xf32, #tpu.memory_space<vmem>>, vector<1x1x16x128xf32>
    %346 = vector.shape_cast %345 : vector<1x1x16x128xf32> to vector<16x128xf32>
    %cst_266 = arith.constant dense<0.000000e+00> : vector<16x128xf32>
    %347 = tpu.matmul %344, %346, %cst_266 {dimension_numbers = #tpu.dot_dimension_numbers<[1], [0], [0], [1], [0, 0, 1, 1], [], []>} : vector<16x16xf32>, vector<16x128xf32>, vector<16x128xf32> -> vector<16x128xf32>
    %348 = arith.addf %305, %347 : vector<16x128xf32>
    %c0_267 = arith.constant 0 : index
    %c0_268 = arith.constant 0 : index
    %c0_269 = arith.constant 0 : index
    %349 = vector.load %arg10[%c0_267, %c0_268, %c0_269] : memref<1x1x128xf32, #tpu.memory_space<vmem>>, vector<1x1x128xf32>
    %350 = vector.shape_cast %349 : vector<1x1x128xf32> to vector<1x128xf32>
    %351 = vector.broadcast %350 : vector<1x128xf32> to vector<16x128xf32>
    %352 = arith.addf %348, %351 : vector<16x128xf32>
    %353 = arith.addf %3, %352 : vector<16x128xf32>
    %cst_270 = arith.constant dense<0.000000e+00> : vector<16xf32>
    %354 = vector.multi_reduction <add>, %353, %cst_270 [1] : vector<16x128xf32> to vector<16xf32>
    %355 = vector.shape_cast %354 : vector<16xf32> to vector<16x1xf32>
    %cst_271 = arith.constant 1.280000e+02 : f32
    %356 = vector.broadcast %cst_271 : f32 to vector<16x1xf32>
    %357 = arith.divf %355, %356 : vector<16x1xf32>
    %358 = vector.broadcast %357 : vector<16x1xf32> to vector<16x128xf32>
    %359 = arith.subf %353, %358 : vector<16x128xf32>
    %360 = arith.mulf %359, %359 : vector<16x128xf32>
    %cst_272 = arith.constant dense<0.000000e+00> : vector<16xf32>
    %361 = vector.multi_reduction <add>, %360, %cst_272 [1] : vector<16x128xf32> to vector<16xf32>
    %362 = vector.shape_cast %361 : vector<16xf32> to vector<16x1xf32>
    %cst_273 = arith.constant 1.280000e+02 : f32
    %363 = vector.broadcast %cst_273 : f32 to vector<16x1xf32>
    %364 = arith.divf %362, %363 : vector<16x1xf32>
    %365 = vector.broadcast %357 : vector<16x1xf32> to vector<16x128xf32>
    %366 = arith.subf %353, %365 : vector<16x128xf32>
    %cst_274 = arith.constant 9.99999974E-6 : f32
    %367 = vector.broadcast %cst_274 : f32 to vector<16x1xf32>
    %368 = arith.addf %364, %367 : vector<16x1xf32>
    %369 = math.rsqrt %368 : vector<16x1xf32>
    %370 = vector.broadcast %369 : vector<16x1xf32> to vector<16x128xf32>
    %371 = arith.mulf %366, %370 : vector<16x128xf32>
    %c0_275 = arith.constant 0 : index
    %c0_276 = arith.constant 0 : index
    %c0_277 = arith.constant 0 : index
    %372 = vector.load %arg11[%c0_275, %c0_276, %c0_277] : memref<1x1x128xf32, #tpu.memory_space<vmem>>, vector<1x1x128xf32>
    %373 = vector.shape_cast %372 : vector<1x1x128xf32> to vector<1x128xf32>
    %374 = vector.broadcast %373 : vector<1x128xf32> to vector<16x128xf32>
    %375 = arith.mulf %371, %374 : vector<16x128xf32>
    %c0_278 = arith.constant 0 : index
    %c0_279 = arith.constant 0 : index
    %c0_280 = arith.constant 0 : index
    %376 = vector.load %arg12[%c0_278, %c0_279, %c0_280] : memref<1x1x128xf32, #tpu.memory_space<vmem>>, vector<1x1x128xf32>
    %377 = vector.shape_cast %376 : vector<1x1x128xf32> to vector<1x128xf32>
    %378 = vector.broadcast %377 : vector<1x128xf32> to vector<16x128xf32>
    %379 = arith.addf %375, %378 : vector<16x128xf32>
    %c0_281 = arith.constant 0 : index
    %c0_282 = arith.constant 0 : index
    %c0_283 = arith.constant 0 : index
    %380 = vector.load %arg15[%c0_281, %c0_282, %c0_283] : memref<1x128x256xf32, #tpu.memory_space<vmem>>, vector<1x128x256xf32>
    %381 = vector.shape_cast %380 : vector<1x128x256xf32> to vector<128x256xf32>
    %cst_284 = arith.constant dense<0.000000e+00> : vector<16x256xf32>
    %382 = tpu.matmul %379, %381, %cst_284 {dimension_numbers = #tpu.dot_dimension_numbers<[1], [0], [0], [1], [0, 0, 1, 1], [], []>} : vector<16x128xf32>, vector<128x256xf32>, vector<16x256xf32> -> vector<16x256xf32>
    %c0_285 = arith.constant 0 : index
    %c0_286 = arith.constant 0 : index
    %c0_287 = arith.constant 0 : index
    %383 = vector.load %arg16[%c0_285, %c0_286, %c0_287] : memref<1x1x256xf32, #tpu.memory_space<vmem>>, vector<1x1x256xf32>
    %384 = vector.shape_cast %383 : vector<1x1x256xf32> to vector<1x256xf32>
    %385 = vector.broadcast %384 : vector<1x256xf32> to vector<16x256xf32>
    %386 = arith.addf %382, %385 : vector<16x256xf32>
    %cst_288 = arith.constant 0.000000e+00 : f32
    %387 = vector.broadcast %cst_288 : f32 to vector<16x256xf32>
    %388 = arith.maximumf %386, %387 : vector<16x256xf32>
    %c0_289 = arith.constant 0 : index
    %c0_290 = arith.constant 0 : index
    %c0_291 = arith.constant 0 : index
    %389 = vector.load %arg17[%c0_289, %c0_290, %c0_291] : memref<1x256x128xf32, #tpu.memory_space<vmem>>, vector<1x256x128xf32>
    %390 = vector.shape_cast %389 : vector<1x256x128xf32> to vector<256x128xf32>
    %cst_292 = arith.constant dense<0.000000e+00> : vector<16x128xf32>
    %391 = tpu.matmul %388, %390, %cst_292 {dimension_numbers = #tpu.dot_dimension_numbers<[1], [0], [0], [1], [0, 0, 1, 1], [], []>} : vector<16x256xf32>, vector<256x128xf32>, vector<16x128xf32> -> vector<16x128xf32>
    %c0_293 = arith.constant 0 : index
    %c0_294 = arith.constant 0 : index
    %c0_295 = arith.constant 0 : index
    %392 = vector.load %arg18[%c0_293, %c0_294, %c0_295] : memref<1x1x128xf32, #tpu.memory_space<vmem>>, vector<1x1x128xf32>
    %393 = vector.shape_cast %392 : vector<1x1x128xf32> to vector<1x128xf32>
    %394 = vector.broadcast %393 : vector<1x128xf32> to vector<16x128xf32>
    %395 = arith.addf %391, %394 : vector<16x128xf32>
    %396 = arith.addf %379, %395 : vector<16x128xf32>
    %cst_296 = arith.constant dense<0.000000e+00> : vector<16xf32>
    %397 = vector.multi_reduction <add>, %396, %cst_296 [1] : vector<16x128xf32> to vector<16xf32>
    %398 = vector.shape_cast %397 : vector<16xf32> to vector<16x1xf32>
    %cst_297 = arith.constant 1.280000e+02 : f32
    %399 = vector.broadcast %cst_297 : f32 to vector<16x1xf32>
    %400 = arith.divf %398, %399 : vector<16x1xf32>
    %401 = vector.broadcast %400 : vector<16x1xf32> to vector<16x128xf32>
    %402 = arith.subf %396, %401 : vector<16x128xf32>
    %403 = arith.mulf %402, %402 : vector<16x128xf32>
    %cst_298 = arith.constant dense<0.000000e+00> : vector<16xf32>
    %404 = vector.multi_reduction <add>, %403, %cst_298 [1] : vector<16x128xf32> to vector<16xf32>
    %405 = vector.shape_cast %404 : vector<16xf32> to vector<16x1xf32>
    %cst_299 = arith.constant 1.280000e+02 : f32
    %406 = vector.broadcast %cst_299 : f32 to vector<16x1xf32>
    %407 = arith.divf %405, %406 : vector<16x1xf32>
    %408 = vector.broadcast %400 : vector<16x1xf32> to vector<16x128xf32>
    %409 = arith.subf %396, %408 : vector<16x128xf32>
    %cst_300 = arith.constant 9.99999974E-6 : f32
    %410 = vector.broadcast %cst_300 : f32 to vector<16x1xf32>
    %411 = arith.addf %407, %410 : vector<16x1xf32>
    %412 = math.rsqrt %411 : vector<16x1xf32>
    %413 = vector.broadcast %412 : vector<16x1xf32> to vector<16x128xf32>
    %414 = arith.mulf %409, %413 : vector<16x128xf32>
    %c0_301 = arith.constant 0 : index
    %c0_302 = arith.constant 0 : index
    %c0_303 = arith.constant 0 : index
    %415 = vector.load %arg13[%c0_301, %c0_302, %c0_303] : memref<1x1x128xf32, #tpu.memory_space<vmem>>, vector<1x1x128xf32>
    %416 = vector.shape_cast %415 : vector<1x1x128xf32> to vector<1x128xf32>
    %417 = vector.broadcast %416 : vector<1x128xf32> to vector<16x128xf32>
    %418 = arith.mulf %414, %417 : vector<16x128xf32>
    %c0_304 = arith.constant 0 : index
    %c0_305 = arith.constant 0 : index
    %c0_306 = arith.constant 0 : index
    %419 = vector.load %arg14[%c0_304, %c0_305, %c0_306] : memref<1x1x128xf32, #tpu.memory_space<vmem>>, vector<1x1x128xf32>
    %420 = vector.shape_cast %419 : vector<1x1x128xf32> to vector<1x128xf32>
    %421 = vector.broadcast %420 : vector<1x128xf32> to vector<16x128xf32>
    %422 = arith.addf %418, %421 : vector<16x128xf32>
    %c0_307 = arith.constant 0 : index
    %c0_308 = arith.constant 0 : index
    %423 = vector.load %arg20[%c0_307, %c0_308] : memref<16x128xf32, #tpu.memory_space<vmem>>, vector<16x128xf32>
    tpu.vector_store %arg20[%c0_307, %c0_308], %422 {strides = array<i32>} : memref<16x128xf32, #tpu.memory_space<vmem>>, vector<16x128xf32>,
    %c1_i32 = arith.constant 1 : i32
    %424 = arith.cmpi eq, %arg0, %c1_i32 : i32
    %425 = arith.extui %424 : i1 to i32
    %c0_i32_309 = arith.constant 0 : i32
    %426 = arith.cmpi ne, %425, %c0_i32_309 : i32
    scf.if %426 {
      %427 = vector.shape_cast %422 : vector<16x128xf32> to vector<2x8x128xf32>
      %cst_310 = arith.constant dense<0.000000e+00> : vector<2x128xf32>
      %428 = vector.multi_reduction <add>, %427, %cst_310 [1] : vector<2x8x128xf32> to vector<2x128xf32>
      %cst_311 = arith.constant 8.000000e+00 : f32
      %429 = vector.broadcast %cst_311 : f32 to vector<2x128xf32>
      %430 = arith.divf %428, %429 : vector<2x128xf32>
      %c0_312 = arith.constant 0 : index
      %c0_313 = arith.constant 0 : index
      %431 = vector.load %arg19[%c0_312, %c0_313] : memref<2x128xf32, #tpu.memory_space<vmem>>, vector<2x128xf32>
      tpu.vector_store %arg19[%c0_312, %c0_313], %430 {strides = array<i32>} : memref<2x128xf32, #tpu.memory_space<vmem>>, vector<2x128xf32>,
    } else {
    }
    return
  }
  func.func @transform_0(%arg0: i32) -> (i32, i32, i32) {
    %c0_i32 = arith.constant 0 : i32
    %c0_i32_0 = arith.constant 0 : i32
    %c0_i32_1 = arith.constant 0 : i32
    %c0_i32_2 = arith.constant 0 : i32
    return %c0_i32, %c0_i32_0, %c0_i32_1 : i32, i32, i32
  }
  func.func @transform_1(%arg0: i32) -> (i32, i32) {
    %c0_i32 = arith.constant 0 : i32
    %c0_i32_0 = arith.constant 0 : i32
    %c0_i32_1 = arith.constant 0 : i32
    return %c0_i32, %c0_i32_0 : i32, i32
  }
  func.func @transform_2(%arg0: i32) -> (i32, i32, i32, i32) {
    %c0_i32 = arith.constant 0 : i32
    %c0_i32_0 = arith.constant 0 : i32
    %c0_i32_1 = arith.constant 0 : i32
    %c0_i32_2 = arith.constant 0 : i32
    return %arg0, %c0_i32, %c0_i32_0, %c0_i32_1 : i32, i32, i32, i32
  }
  func.func @transform_3(%arg0: i32) -> (i32, i32, i32, i32) {
    %c0_i32 = arith.constant 0 : i32
    %c0_i32_0 = arith.constant 0 : i32
    %c0_i32_1 = arith.constant 0 : i32
    %c0_i32_2 = arith.constant 0 : i32
    return %arg0, %c0_i32, %c0_i32_0, %c0_i32_1 : i32, i32, i32, i32
  }
  func.func @transform_4(%arg0: i32) -> (i32, i32, i32, i32) {
    %c0_i32 = arith.constant 0 : i32
    %c0_i32_0 = arith.constant 0 : i32
    %c0_i32_1 = arith.constant 0 : i32
    %c0_i32_2 = arith.constant 0 : i32
    return %arg0, %c0_i32, %c0_i32_0, %c0_i32_1 : i32, i32, i32, i32
  }
  func.func @transform_5(%arg0: i32) -> (i32, i32, i32) {
    %c0_i32 = arith.constant 0 : i32
    %c0_i32_0 = arith.constant 0 : i32
    %c0_i32_1 = arith.constant 0 : i32
    return %arg0, %c0_i32, %c0_i32_0 : i32, i32, i32
  }
  func.func @transform_6(%arg0: i32) -> (i32, i32, i32) {
    %c0_i32 = arith.constant 0 : i32
    %c0_i32_0 = arith.constant 0 : i32
    %c0_i32_1 = arith.constant 0 : i32
    return %arg0, %c0_i32, %c0_i32_0 : i32, i32, i32
  }
  func.func @transform_7(%arg0: i32) -> (i32, i32, i32) {
    %c0_i32 = arith.constant 0 : i32
    %c0_i32_0 = arith.constant 0 : i32
    %c0_i32_1 = arith.constant 0 : i32
    return %arg0, %c0_i32, %c0_i32_0 : i32, i32, i32
  }
  func.func @transform_8(%arg0: i32) -> (i32, i32, i32, i32) {
    %c0_i32 = arith.constant 0 : i32
    %c0_i32_0 = arith.constant 0 : i32
    %c0_i32_1 = arith.constant 0 : i32
    %c0_i32_2 = arith.constant 0 : i32
    return %arg0, %c0_i32, %c0_i32_0, %c0_i32_1 : i32, i32, i32, i32
  }
  func.func @transform_9(%arg0: i32) -> (i32, i32, i32) {
    %c0_i32 = arith.constant 0 : i32
    %c0_i32_0 = arith.constant 0 : i32
    %c0_i32_1 = arith.constant 0 : i32
    return %arg0, %c0_i32, %c0_i32_0 : i32, i32, i32
  }
  func.func @transform_10(%arg0: i32) -> (i32, i32, i32) {
    %c0_i32 = arith.constant 0 : i32
    %c0_i32_0 = arith.constant 0 : i32
    %c0_i32_1 = arith.constant 0 : i32
    return %arg0, %c0_i32, %c0_i32_0 : i32, i32, i32
  }
  func.func @transform_11(%arg0: i32) -> (i32, i32, i32) {
    %c0_i32 = arith.constant 0 : i32
    %c0_i32_0 = arith.constant 0 : i32
    %c0_i32_1 = arith.constant 0 : i32
    return %arg0, %c0_i32, %c0_i32_0 : i32, i32, i32
  }
  func.func @transform_12(%arg0: i32) -> (i32, i32, i32) {
    %c0_i32 = arith.constant 0 : i32
    %c0_i32_0 = arith.constant 0 : i32
    %c0_i32_1 = arith.constant 0 : i32
    return %arg0, %c0_i32, %c0_i32_0 : i32, i32, i32
  }
  func.func @transform_13(%arg0: i32) -> (i32, i32, i32) {
    %c0_i32 = arith.constant 0 : i32
    %c0_i32_0 = arith.constant 0 : i32
    %c0_i32_1 = arith.constant 0 : i32
    return %arg0, %c0_i32, %c0_i32_0 : i32, i32, i32
  }
  func.func @transform_14(%arg0: i32) -> (i32, i32, i32) {
    %c0_i32 = arith.constant 0 : i32
    %c0_i32_0 = arith.constant 0 : i32
    %c0_i32_1 = arith.constant 0 : i32
    return %arg0, %c0_i32, %c0_i32_0 : i32, i32, i32
  }
  func.func @transform_15(%arg0: i32) -> (i32, i32, i32) {
    %c0_i32 = arith.constant 0 : i32
    %c0_i32_0 = arith.constant 0 : i32
    %c0_i32_1 = arith.constant 0 : i32
    return %arg0, %c0_i32, %c0_i32_0 : i32, i32, i32
  }
  func.func @transform_16(%arg0: i32) -> (i32, i32, i32) {
    %c0_i32 = arith.constant 0 : i32
    %c0_i32_0 = arith.constant 0 : i32
    %c0_i32_1 = arith.constant 0 : i32
    return %arg0, %c0_i32, %c0_i32_0 : i32, i32, i32
  }
  func.func @transform_17(%arg0: i32) -> (i32, i32, i32) {
    %c0_i32 = arith.constant 0 : i32
    %c0_i32_0 = arith.constant 0 : i32
    %c0_i32_1 = arith.constant 0 : i32
    return %arg0, %c0_i32, %c0_i32_0 : i32, i32, i32
  }
  func.func @transform_18(%arg0: i32) -> (i32, i32) {
    %c0_i32 = arith.constant 0 : i32
    %c0_i32_0 = arith.constant 0 : i32
    %c0_i32_1 = arith.constant 0 : i32
    return %c0_i32, %c0_i32_0 : i32, i32
  }
}

</mosaic_0001>

<llo_original>
// kernel: tpu_custom_call.1
$region0: #{tpu_custom_call.1}
  #allocation0 [shape = 'u32[]', space=smem, size = 0x4, offset = 0x4, fixed_abs, tag = 'smem constant byte address 0x4 - core index']
  #allocation1 [shape = 'u32[144,128]{1,0:T(1,128)}', space=vmem, size = 0x12000, scoped, tag = 'internal scratch']
  #allocation2 [shape = 'f32[16,128]{1,0:T(8,128)}', space=vmem, size = 0x2000, scoped, tag = 'scratch operand']
  %s0 = inlined_call_operand.hbm [shape: f32[2,8,128], index: 0, kind: input, shape index: {}]
  %s1 = inlined_call_operand.hbm [shape: f32[8,128], index: 1, kind: input, shape index: {}]
  %s2 = inlined_call_operand.hbm [shape: f32[2,8,16,128], index: 2, kind: input, shape index: {}]
  %s3 = inlined_call_operand.hbm [shape: f32[2,8,16,128], index: 3, kind: input, shape index: {}]
  %s4 = inlined_call_operand.hbm [shape: f32[2,8,16,128], index: 4, kind: input, shape index: {}]
  %s5 = inlined_call_operand.vmem [shape: f32[2,8,16], index: 5, kind: input, shape index: {}]
  %s6 = inlined_call_operand.hbm [shape: f32[2,8,16], index: 6, kind: input, shape index: {}]
  %s7 = inlined_call_operand.hbm [shape: f32[2,8,16], index: 7, kind: input, shape index: {}]
  %s8 = inlined_call_operand.hbm [shape: f32[2,8,16,128], index: 8, kind: input, shape index: {}]
  %s9 = inlined_call_operand.vmem [shape: f32[2,1,128], index: 9, kind: input, shape index: {}]
  %s10 = inlined_call_operand.vmem [shape: f32[2,1,128], index: 10, kind: input, shape index: {}]
  %s11 = inlined_call_operand.vmem [shape: f32[2,1,128], index: 11, kind: input, shape index: {}]
  %s12 = inlined_call_operand.vmem [shape: f32[2,1,128], index: 12, kind: input, shape index: {}]
  %s13 = inlined_call_operand.vmem [shape: f32[2,1,128], index: 13, kind: input, shape index: {}]
  %s14 = inlined_call_operand.hbm [shape: f32[2,128,256], index: 14, kind: input, shape index: {}]
  %s15 = inlined_call_operand.vmem [shape: f32[2,1,256], index: 15, kind: input, shape index: {}]
  %s16 = inlined_call_operand.hbm [shape: f32[2,256,128], index: 16, kind: input, shape index: {}]
  %s17 = inlined_call_operand.vmem [shape: f32[2,1,128], index: 17, kind: input, shape index: {}]
  %s18 = inlined_call_operand.hbm [shape: f32[2,128], index: 18, kind: output, shape index: {}]
  %s19 = sld [smem:[#allocation0]]
  $region153: #{tpu_custom_call.1} parent=0
    _
  %s21 = ssub.s32 1, %s19
  %s22 = scalar_select 0, %s21, %s19
  $region1: #{tpu_custom_call.1} parent=0
    #allocation3 [shape = 'u8[8192]{0}', space=vmem, size = 0x2000, scoped, tag = 'input window, operand 0, single buffered']
    #allocation4 [shape = 's32[2]{0}', space=sflag, size = 0x8, scoped, tag = 'scoped memory for tpu_custom_call.1']
    #allocation5 [shape = 's32[2]{0}', space=sflag, size = 0x8, scoped, tag = 'scoped memory for tpu_custom_call.1']
    #allocation6 [shape = 'u8[4096]{0}', space=vmem, size = 0x1000, scoped, tag = 'input window, operand 1, single buffered']
    #allocation7 [shape = 's32[1]{0}', space=sflag, size = 0x4, scoped, tag = 'scoped memory for tpu_custom_call.1']
    #allocation8 [shape = 'u8[131072]{0}', space=vmem, size = 0x20000, scoped, tag = 'input window, operand 2']
    #allocation9 [shape = 'u8[131072]{0}', space=vmem, size = 0x20000, scoped, tag = 'input window, operand 3']
    #allocation10 [shape = 'u8[131072]{0}', space=vmem, size = 0x20000, scoped, tag = 'input window, operand 4']
    #allocation11 [shape = 'u8[8192]{0}', space=vmem, size = 0x2000, scoped, tag = 'input window, operand 6']
    #allocation12 [shape = 'u8[8192]{0}', space=vmem, size = 0x2000, scoped, tag = 'input window, operand 7']
    #allocation13 [shape = 'u8[131072]{0}', space=vmem, size = 0x20000, scoped, tag = 'input window, operand 8']
    #allocation14 [shape = 'u8[262144]{0}', space=vmem, size = 0x40000, scoped, tag = 'input window, operand 14']
    #allocation15 [shape = 'u8[262144]{0}', space=vmem, size = 0x40000, scoped, tag = 'input window, operand 16']
    #allocation16 [shape = 'u8[1024]{0}', space=vmem, size = 0x400, scoped, tag = 'output window, operand 0, single buffered']
    %23 = vsyncpa [#allocation4], 0
    %24 = vsyncpa [#allocation7], 0
    %25 = vsyncpa [#allocation5], 0
    loop: start=0, step=1, limit=4
    $region2: #{tpu_custom_call.1} parent=1 // loop_pre_header
      _
    $region3: #{tpu_custom_call.1} parent=1 // loop_header
      %s27 = sphi 0, %s31
      %p28 = scmp.ge.s32.totalorder %s27, 4
      %s35 = sphi 0, %s35
      %s37 = sphi 0, %s35
      %s38 = sphi 0, %s37
      %s52 = sphi 0, %s38
      %s56 = sphi 0, %s56
      %s58 = sphi 0, %s56
      %s59 = sphi 0, %s58
      %s73 = sphi 0, %s59
      %s79 = sphi 0, %s81
      %s82 = sphi 0, %s79
      %s83 = sphi 0, %s82
      %s99 = sphi 0, %s83
      %s105 = sphi 0, %s107
      %s108 = sphi 0, %s105
      %s109 = sphi 0, %s108
      %s125 = sphi 0, %s109
      %s131 = sphi 0, %s133
      %s134 = sphi 0, %s131
      %s135 = sphi 0, %s134
      %s151 = sphi 0, %s135
      %s157 = sphi 0, %s159
      %s160 = sphi 0, %s157
      %s161 = sphi 0, %s160
      %s177 = sphi 0, %s161
      %s183 = sphi 0, %s185
      %s186 = sphi 0, %s183
      %s187 = sphi 0, %s186
      %s203 = sphi 0, %s187
      %s209 = sphi 0, %s211
      %s212 = sphi 0, %s209
      %s213 = sphi 0, %s212
      %s229 = sphi 0, %s213
      %s235 = sphi 0, %s237
      %s238 = sphi 0, %s235
      %s239 = sphi 0, %s238
      %s255 = sphi 0, %s239
      %s261 = sphi 0, %s263
      %s264 = sphi 0, %s261
      %s265 = sphi 0, %s264
      %s281 = sphi 0, %s265
      %s287 = sphi 0, %s289
      %s290 = sphi 0, %s287
      %s291 = sphi 0, %s290
      %s307 = sphi 0, %s291
      %s313 = sphi 0, %s315
      %s316 = sphi 0, %s313
      %s317 = sphi 0, %s316
      %s333 = sphi 0, %s317
      %s339 = sphi 0, %s341
      %s342 = sphi 0, %s339
      %s343 = sphi 0, %s342
      %s359 = sphi 0, %s343
      %s365 = sphi 0, %s367
      %s368 = sphi 0, %s365
      %s369 = sphi 0, %s368
      %s385 = sphi 0, %s369
      %s391 = sphi 0, %s393
      %s394 = sphi 0, %s391
      %s395 = sphi 0, %s394
      %s411 = sphi 0, %s395
      %s417 = sphi 0, %s419
      %s420 = sphi 0, %s417
      %s421 = sphi 0, %s420
      %s437 = sphi 0, %s421
      %s443 = sphi 0, %s445
      %s446 = sphi 0, %s443
      %s447 = sphi 0, %s446
      %s463 = sphi 0, %s447
      %s469 = sphi 0, %s471
      %s472 = sphi 0, %s469
      %s473 = sphi 0, %s472
      %s489 = sphi 0, %s473
      %s493 = sphi 0, %s493
      %s495 = sphi 0, %s493
      %s496 = sphi 0, %s495
      %s510 = sphi 0, %s496
    $region4: #{tpu_custom_call.1} parent=1 // loop_header_branch
      %30 = sbr.rel (%p28) target = $region8
    $region5: #{tpu_custom_call.1} parent=1 // loop_body
      %s32 = ssub.s32 %s27, 1
      %s33 = ssub.s32 %s27, 2
      %s34 = sadd.s32 %s27, 1
      %s36 = sadd.s32 %s35, 1
      %p39 = scmp.eq.s32.totalorder %s27, 1
      %p40 = scmp.ne.s32.totalorder %s35, %s37
      %p41 = scmp.eq.s32.totalorder %s27, 0
      %p42 = por %p40, %p41
      %p43 = scmp.ne.s32.totalorder %s35, %s37
      %p44 = scmp.eq.s32.totalorder %s32, 1
      %p45 = por %p43, %p44
      %p46 = scmp.ne.s32.totalorder %s37, %s38
      %p47 = scmp.eq.s32.totalorder %s32, 0
      %p48 = por %p46, %p47
      %p49 = scmp.ne.s32.totalorder %s37, %s38
      %p50 = scmp.eq.s32.totalorder %s33, 1
      %p51 = por %p49, %p50
      %p53 = scmp.ne.s32.totalorder %s38, %s52
      %p54 = scmp.eq.s32.totalorder %s33, 0
      %p55 = por %p53, %p54
      %s57 = sadd.s32 %s56, 1
      %p60 = scmp.eq.s32.totalorder %s27, 1
      %p61 = scmp.ne.s32.totalorder %s56, %s58
      %p62 = scmp.eq.s32.totalorder %s27, 0
      %p63 = por %p61, %p62
      %p64 = scmp.ne.s32.totalorder %s56, %s58
      %p65 = scmp.eq.s32.totalorder %s32, 1
      %p66 = por %p64, %p65
      %p67 = scmp.ne.s32.totalorder %s58, %s59
      %p68 = scmp.eq.s32.totalorder %s32, 0
      %p69 = por %p67, %p68
      %p70 = scmp.ne.s32.totalorder %s58, %s59
      %p71 = scmp.eq.s32.totalorder %s33, 1
      %p72 = por %p70, %p71
      %p74 = scmp.ne.s32.totalorder %s59, %s73
      %p75 = scmp.eq.s32.totalorder %s33, 0
      %p76 = por %p74, %p75
      %s77 = ssub.s32 %s27, %s34
      %p78 = scmp.eq.s32.totalorder %s77, 0
      %s80 = sadd.s32 %s79, 1
      %s81 = scalar_select %p78, %s79, %s80
      %p84 = pneg %p78
      %p85 = scmp.eq.s32.totalorder %s27, 1
      %p86 = por %p84, %p85
      %p87 = scmp.ne.s32.totalorder %s79, %s82
      %p88 = scmp.eq.s32.totalorder %s27, 0
      %p89 = por %p87, %p88
      %p90 = scmp.ne.s32.totalorder %s79, %s82
      %p91 = scmp.eq.s32.totalorder %s32, 1
      %p92 = por %p90, %p91
      %p93 = scmp.ne.s32.totalorder %s82, %s83
      %p94 = scmp.eq.s32.totalorder %s32, 0
      %p95 = por %p93, %p94
      %p96 = scmp.ne.s32.totalorder %s82, %s83
      %p97 = scmp.eq.s32.totalorder %s33, 1
      %p98 = por %p96, %p97
      %p100 = scmp.ne.s32.totalorder %s83, %s99
      %p101 = scmp.eq.s32.totalorder %s33, 0
      %p102 = por %p100, %p101
      %s103 = ssub.s32 %s27, %s34
      %p104 = scmp.eq.s32.totalorder %s103, 0
      %s106 = sadd.s32 %s105, 1
      %s107 = scalar_select %p104, %s105, %s106
      %p110 = pneg %p104
      %p111 = scmp.eq.s32.totalorder %s27, 1
      %p112 = por %p110, %p111
      %p113 = scmp.ne.s32.totalorder %s105, %s108
      %p114 = scmp.eq.s32.totalorder %s27, 0
      %p115 = por %p113, %p114
      %p116 = scmp.ne.s32.totalorder %s105, %s108
      %p117 = scmp.eq.s32.totalorder %s32, 1
      %p118 = por %p116, %p117
      %p119 = scmp.ne.s32.totalorder %s108, %s109
      %p120 = scmp.eq.s32.totalorder %s32, 0
      %p121 = por %p119, %p120
      %p122 = scmp.ne.s32.totalorder %s108, %s109
      %p123 = scmp.eq.s32.totalorder %s33, 1
      %p124 = por %p122, %p123
      %p126 = scmp.ne.s32.totalorder %s109, %s125
      %p127 = scmp.eq.s32.totalorder %s33, 0
      %p128 = por %p126, %p127
      %s129 = ssub.s32 %s27, %s34
      %p130 = scmp.eq.s32.totalorder %s129, 0
      %s132 = sadd.s32 %s131, 1
      %s133 = scalar_select %p130, %s131, %s132
      %p136 = pneg %p130
      %p137 = scmp.eq.s32.totalorder %s27, 1
      %p138 = por %p136, %p137
      %p139 = scmp.ne.s32.totalorder %s131, %s134
      %p140 = scmp.eq.s32.totalorder %s27, 0
      %p141 = por %p139, %p140
      %p142 = scmp.ne.s32.totalorder %s131, %s134
      %p143 = scmp.eq.s32.totalorder %s32, 1
      %p144 = por %p142, %p143
      %p145 = scmp.ne.s32.totalorder %s134, %s135
      %p146 = scmp.eq.s32.totalorder %s32, 0
      %p147 = por %p145, %p146
      %p148 = scmp.ne.s32.totalorder %s134, %s135
      %p149 = scmp.eq.s32.totalorder %s33, 1
      %p150 = por %p148, %p149
      %p152 = scmp.ne.s32.totalorder %s135, %s151
      %p153 = scmp.eq.s32.totalorder %s33, 0
      %p154 = por %p152, %p153
      %s155 = ssub.s32 %s27, %s34
      %p156 = scmp.eq.s32.totalorder %s155, 0
      %s158 = sadd.s32 %s157, 1
      %s159 = scalar_select %p156, %s157, %s158
      %p162 = pneg %p156
      %p163 = scmp.eq.s32.totalorder %s27, 1
      %p164 = por %p162, %p163
      %p165 = scmp.ne.s32.totalorder %s157, %s160
      %p166 = scmp.eq.s32.totalorder %s27, 0
      %p167 = por %p165, %p166
      %p168 = scmp.ne.s32.totalorder %s157, %s160
      %p169 = scmp.eq.s32.totalorder %s32, 1
      %p170 = por %p168, %p169
      %p171 = scmp.ne.s32.totalorder %s160, %s161
      %p172 = scmp.eq.s32.totalorder %s32, 0
      %p173 = por %p171, %p172
      %p174 = scmp.ne.s32.totalorder %s160, %s161
      %p175 = scmp.eq.s32.totalorder %s33, 1
      %p176 = por %p174, %p175
      %p178 = scmp.ne.s32.totalorder %s161, %s177
      %p179 = scmp.eq.s32.totalorder %s33, 0
      %p180 = por %p178, %p179
      %s181 = ssub.s32 %s27, %s34
      %p182 = scmp.eq.s32.totalorder %s181, 0
      %s184 = sadd.s32 %s183, 1
      %s185 = scalar_select %p182, %s183, %s184
      %p188 = pneg %p182
      %p189 = scmp.eq.s32.totalorder %s27, 1
      %p190 = por %p188, %p189
      %p191 = scmp.ne.s32.totalorder %s183, %s186
      %p192 = scmp.eq.s32.totalorder %s27, 0
      %p193 = por %p191, %p192
      %p194 = scmp.ne.s32.totalorder %s183, %s186
      %p195 = scmp.eq.s32.totalorder %s32, 1
      %p196 = por %p194, %p195
      %p197 = scmp.ne.s32.totalorder %s186, %s187
      %p198 = scmp.eq.s32.totalorder %s32, 0
      %p199 = por %p197, %p198
      %p200 = scmp.ne.s32.totalorder %s186, %s187
      %p201 = scmp.eq.s32.totalorder %s33, 1
      %p202 = por %p200, %p201
      %p204 = scmp.ne.s32.totalorder %s187, %s203
      %p205 = scmp.eq.s32.totalorder %s33, 0
      %p206 = por %p204, %p205
      %s207 = ssub.s32 %s27, %s34
      %p208 = scmp.eq.s32.totalorder %s207, 0
      %s210 = sadd.s32 %s209, 1
      %s211 = scalar_select %p208, %s209, %s210
      %p214 = pneg %p208
      %p215 = scmp.eq.s32.totalorder %s27, 1
      %p216 = por %p214, %p215
      %p217 = scmp.ne.s32.totalorder %s209, %s212
      %p218 = scmp.eq.s32.totalorder %s27, 0
      %p219 = por %p217, %p218
      %p220 = scmp.ne.s32.totalorder %s209, %s212
      %p221 = scmp.eq.s32.totalorder %s32, 1
      %p222 = por %p220, %p221
      %p223 = scmp.ne.s32.totalorder %s212, %s213
      %p224 = scmp.eq.s32.totalorder %s32, 0
      %p225 = por %p223, %p224
      %p226 = scmp.ne.s32.totalorder %s212, %s213
      %p227 = scmp.eq.s32.totalorder %s33, 1
      %p228 = por %p226, %p227
      %p230 = scmp.ne.s32.totalorder %s213, %s229
      %p231 = scmp.eq.s32.totalorder %s33, 0
      %p232 = por %p230, %p231
      %s233 = ssub.s32 %s27, %s34
      %p234 = scmp.eq.s32.totalorder %s233, 0
      %s236 = sadd.s32 %s235, 1
      %s237 = scalar_select %p234, %s235, %s236
      %p240 = pneg %p234
      %p241 = scmp.eq.s32.totalorder %s27, 1
      %p242 = por %p240, %p241
      %p243 = scmp.ne.s32.totalorder %s235, %s238
      %p244 = scmp.eq.s32.totalorder %s27, 0
      %p245 = por %p243, %p244
      %p246 = scmp.ne.s32.totalorder %s235, %s238
      %p247 = scmp.eq.s32.totalorder %s32, 1
      %p248 = por %p246, %p247
      %p249 = scmp.ne.s32.totalorder %s238, %s239
      %p250 = scmp.eq.s32.totalorder %s32, 0
      %p251 = por %p249, %p250
      %p252 = scmp.ne.s32.totalorder %s238, %s239
      %p253 = scmp.eq.s32.totalorder %s33, 1
      %p254 = por %p252, %p253
      %p256 = scmp.ne.s32.totalorder %s239, %s255
      %p257 = scmp.eq.s32.totalorder %s33, 0
      %p258 = por %p256, %p257
      %s259 = ssub.s32 %s27, %s34
      %p260 = scmp.eq.s32.totalorder %s259, 0
      %s262 = sadd.s32 %s261, 1
      %s263 = scalar_select %p260, %s261, %s262
      %p266 = pneg %p260
      %p267 = scmp.eq.s32.totalorder %s27, 1
      %p268 = por %p266, %p267
      %p269 = scmp.ne.s32.totalorder %s261, %s264
      %p270 = scmp.eq.s32.totalorder %s27, 0
      %p271 = por %p269, %p270
      %p272 = scmp.ne.s32.totalorder %s261, %s264
      %p273 = scmp.eq.s32.totalorder %s32, 1
      %p274 = por %p272, %p273
      %p275 = scmp.ne.s32.totalorder %s264, %s265
      %p276 = scmp.eq.s32.totalorder %s32, 0
      %p277 = por %p275, %p276
      %p278 = scmp.ne.s32.totalorder %s264, %s265
      %p279 = scmp.eq.s32.totalorder %s33, 1
      %p280 = por %p278, %p279
      %p282 = scmp.ne.s32.totalorder %s265, %s281
      %p283 = scmp.eq.s32.totalorder %s33, 0
      %p284 = por %p282, %p283
      %s285 = ssub.s32 %s27, %s34
      %p286 = scmp.eq.s32.totalorder %s285, 0
      %s288 = sadd.s32 %s287, 1
      %s289 = scalar_select %p286, %s287, %s288
      %p292 = pneg %p286
      %p293 = scmp.eq.s32.totalorder %s27, 1
      %p294 = por %p292, %p293
      %p295 = scmp.ne.s32.totalorder %s287, %s290
      %p296 = scmp.eq.s32.totalorder %s27, 0
      %p297 = por %p295, %p296
      %p298 = scmp.ne.s32.totalorder %s287, %s290
      %p299 = scmp.eq.s32.totalorder %s32, 1
      %p300 = por %p298, %p299
      %p301 = scmp.ne.s32.totalorder %s290, %s291
      %p302 = scmp.eq.s32.totalorder %s32, 0
      %p303 = por %p301, %p302
      %p304 = scmp.ne.s32.totalorder %s290, %s291
      %p305 = scmp.eq.s32.totalorder %s33, 1
      %p306 = por %p304, %p305
      %p308 = scmp.ne.s32.totalorder %s291, %s307
      %p309 = scmp.eq.s32.totalorder %s33, 0
      %p310 = por %p308, %p309
      %s311 = ssub.s32 %s27, %s34
      %p312 = scmp.eq.s32.totalorder %s311, 0
      %s314 = sadd.s32 %s313, 1
      %s315 = scalar_select %p312, %s313, %s314
      %p318 = pneg %p312
      %p319 = scmp.eq.s32.totalorder %s27, 1
      %p320 = por %p318, %p319
      %p321 = scmp.ne.s32.totalorder %s313, %s316
      %p322 = scmp.eq.s32.totalorder %s27, 0
      %p323 = por %p321, %p322
      %p324 = scmp.ne.s32.totalorder %s313, %s316
      %p325 = scmp.eq.s32.totalorder %s32, 1
      %p326 = por %p324, %p325
      %p327 = scmp.ne.s32.totalorder %s316, %s317
      %p328 = scmp.eq.s32.totalorder %s32, 0
      %p329 = por %p327, %p328
      %p330 = scmp.ne.s32.totalorder %s316, %s317
      %p331 = scmp.eq.s32.totalorder %s33, 1
      %p332 = por %p330, %p331
      %p334 = scmp.ne.s32.totalorder %s317, %s333
      %p335 = scmp.eq.s32.totalorder %s33, 0
      %p336 = por %p334, %p335
      %s337 = ssub.s32 %s27, %s34
      %p338 = scmp.eq.s32.totalorder %s337, 0
      %s340 = sadd.s32 %s339, 1
      %s341 = scalar_select %p338, %s339, %s340
      %p344 = pneg %p338
      %p345 = scmp.eq.s32.totalorder %s27, 1
      %p346 = por %p344, %p345
      %p347 = scmp.ne.s32.totalorder %s339, %s342
      %p348 = scmp.eq.s32.totalorder %s27, 0
      %p349 = por %p347, %p348
      %p350 = scmp.ne.s32.totalorder %s339, %s342
      %p351 = scmp.eq.s32.totalorder %s32, 1
      %p352 = por %p350, %p351
      %p353 = scmp.ne.s32.totalorder %s342, %s343
      %p354 = scmp.eq.s32.totalorder %s32, 0
      %p355 = por %p353, %p354
      %p356 = scmp.ne.s32.totalorder %s342, %s343
      %p357 = scmp.eq.s32.totalorder %s33, 1
      %p358 = por %p356, %p357
      %p360 = scmp.ne.s32.totalorder %s343, %s359
      %p361 = scmp.eq.s32.totalorder %s33, 0
      %p362 = por %p360, %p361
      %s363 = ssub.s32 %s27, %s34
      %p364 = scmp.eq.s32.totalorder %s363, 0
      %s366 = sadd.s32 %s365, 1
      %s367 = scalar_select %p364, %s365, %s366
      %p370 = pneg %p364
      %p371 = scmp.eq.s32.totalorder %s27, 1
      %p372 = por %p370, %p371
      %p373 = scmp.ne.s32.totalorder %s365, %s368
      %p374 = scmp.eq.s32.totalorder %s27, 0
      %p375 = por %p373, %p374
      %p376 = scmp.ne.s32.totalorder %s365, %s368
      %p377 = scmp.eq.s32.totalorder %s32, 1
      %p378 = por %p376, %p377
      %p379 = scmp.ne.s32.totalorder %s368, %s369
      %p380 = scmp.eq.s32.totalorder %s32, 0
      %p381 = por %p379, %p380
      %p382 = scmp.ne.s32.totalorder %s368, %s369
      %p383 = scmp.eq.s32.totalorder %s33, 1
      %p384 = por %p382, %p383
      %p386 = scmp.ne.s32.totalorder %s369, %s385
      %p387 = scmp.eq.s32.totalorder %s33, 0
      %p388 = por %p386, %p387
      %s389 = ssub.s32 %s27, %s34
      %p390 = scmp.eq.s32.totalorder %s389, 0
      %s392 = sadd.s32 %s391, 1
      %s393 = scalar_select %p390, %s391, %s392
      %p396 = pneg %p390
      %p397 = scmp.eq.s32.totalorder %s27, 1
      %p398 = por %p396, %p397
      %p399 = scmp.ne.s32.totalorder %s391, %s394
      %p400 = scmp.eq.s32.totalorder %s27, 0
      %p401 = por %p399, %p400
      %p402 = scmp.ne.s32.totalorder %s391, %s394
      %p403 = scmp.eq.s32.totalorder %s32, 1
      %p404 = por %p402, %p403
      %p405 = scmp.ne.s32.totalorder %s394, %s395
      %p406 = scmp.eq.s32.totalorder %s32, 0
      %p407 = por %p405, %p406
      %p408 = scmp.ne.s32.totalorder %s394, %s395
      %p409 = scmp.eq.s32.totalorder %s33, 1
      %p410 = por %p408, %p409
      %p412 = scmp.ne.s32.totalorder %s395, %s411
      %p413 = scmp.eq.s32.totalorder %s33, 0
      %p414 = por %p412, %p413
      %s415 = ssub.s32 %s27, %s34
      %p416 = scmp.eq.s32.totalorder %s415, 0
      %s418 = sadd.s32 %s417, 1
      %s419 = scalar_select %p416, %s417, %s418
      %p422 = pneg %p416
      %p423 = scmp.eq.s32.totalorder %s27, 1
      %p424 = por %p422, %p423
      %p425 = scmp.ne.s32.totalorder %s417, %s420
      %p426 = scmp.eq.s32.totalorder %s27, 0
      %p427 = por %p425, %p426
      %p428 = scmp.ne.s32.totalorder %s417, %s420
      %p429 = scmp.eq.s32.totalorder %s32, 1
      %p430 = por %p428, %p429
      %p431 = scmp.ne.s32.totalorder %s420, %s421
      %p432 = scmp.eq.s32.totalorder %s32, 0
      %p433 = por %p431, %p432
      %p434 = scmp.ne.s32.totalorder %s420, %s421
      %p435 = scmp.eq.s32.totalorder %s33, 1
      %p436 = por %p434, %p435
      %p438 = scmp.ne.s32.totalorder %s421, %s437
      %p439 = scmp.eq.s32.totalorder %s33, 0
      %p440 = por %p438, %p439
      %s441 = ssub.s32 %s27, %s34
      %p442 = scmp.eq.s32.totalorder %s441, 0
      %s444 = sadd.s32 %s443, 1
      %s445 = scalar_select %p442, %s443, %s444
      %p448 = pneg %p442
      %p449 = scmp.eq.s32.totalorder %s27, 1
      %p450 = por %p448, %p449
      %p451 = scmp.ne.s32.totalorder %s443, %s446
      %p452 = scmp.eq.s32.totalorder %s27, 0
      %p453 = por %p451, %p452
      %p454 = scmp.ne.s32.totalorder %s443, %s446
      %p455 = scmp.eq.s32.totalorder %s32, 1
      %p456 = por %p454, %p455
      %p457 = scmp.ne.s32.totalorder %s446, %s447
      %p458 = scmp.eq.s32.totalorder %s32, 0
      %p459 = por %p457, %p458
      %p460 = scmp.ne.s32.totalorder %s446, %s447
      %p461 = scmp.eq.s32.totalorder %s33, 1
      %p462 = por %p460, %p461
      %p464 = scmp.ne.s32.totalorder %s447, %s463
      %p465 = scmp.eq.s32.totalorder %s33, 0
      %p466 = por %p464, %p465
      %s467 = ssub.s32 %s27, %s34
      %p468 = scmp.eq.s32.totalorder %s467, 0
      %s470 = sadd.s32 %s469, 1
      %s471 = scalar_select %p468, %s469, %s470
      %p474 = pneg %p468
      %p475 = scmp.eq.s32.totalorder %s27, 1
      %p476 = por %p474, %p475
      %p477 = scmp.ne.s32.totalorder %s469, %s472
      %p478 = scmp.eq.s32.totalorder %s27, 0
      %p479 = por %p477, %p478
      %p480 = scmp.ne.s32.totalorder %s469, %s472
      %p481 = scmp.eq.s32.totalorder %s32, 1
      %p482 = por %p480, %p481
      %p483 = scmp.ne.s32.totalorder %s472, %s473
      %p484 = scmp.eq.s32.totalorder %s32, 0
      %p485 = por %p483, %p484
      %p486 = scmp.ne.s32.totalorder %s472, %s473
      %p487 = scmp.eq.s32.totalorder %s33, 1
      %p488 = por %p486, %p487
      %p490 = scmp.ne.s32.totalorder %s473, %s489
      %p491 = scmp.eq.s32.totalorder %s33, 0
      %p492 = por %p490, %p491
      %s494 = sadd.s32 %s493, 1
      %p497 = scmp.eq.s32.totalorder %s27, 1
      %p498 = scmp.ne.s32.totalorder %s493, %s495
      %p499 = scmp.eq.s32.totalorder %s27, 0
      %p500 = por %p498, %p499
      %p501 = scmp.ne.s32.totalorder %s493, %s495
      %p502 = scmp.eq.s32.totalorder %s32, 1
      %p503 = por %p501, %p502
      %p504 = scmp.ne.s32.totalorder %s495, %s496
      %p505 = scmp.eq.s32.totalorder %s32, 0
      %p506 = por %p504, %p505
      %p507 = scmp.ne.s32.totalorder %s495, %s496
      %p508 = scmp.eq.s32.totalorder %s33, 1
      %p509 = por %p507, %p508
      %p511 = scmp.ne.s32.totalorder %s496, %s510
      %p512 = scmp.eq.s32.totalorder %s33, 0
      %p513 = por %p511, %p512
      %p514 = scmp.le.s32.totalorder 1, %s27
      %p515 = scmp.lt.s32.totalorder %s27, 3
      %p516 = pnand %p514, %p515
      %p517 = pneg %p516
      // Predicated region
      $region9: #{tpu_custom_call.1} parent=5 // pred_check
        _
      $region10: #{tpu_custom_call.1} parent=5 // pred_check_branch
        %519 = sbr.rel (%p516) target = $region12
      $region11: #{tpu_custom_call.1} parent=5 // pred_region
        %s520 = ssub.s32 %s27, 1
        // Predicated region
        $region13: #{tpu_custom_call.1} parent=11 // pred_check
          %p521 = pneg %p48
        $region14: #{tpu_custom_call.1} parent=11 // pred_check_branch
          %523 = sbr.rel (%p521) target = $region16
        $region15: #{tpu_custom_call.1} parent=11 // pred_region
          %s525 = ssub.s32 256, 256
          %526 = vsyncadd [#allocation4], %s525
          %s527 = sshll.u32 [#allocation3], 4
          %s528 = int_to_ptr.vmem [resolvable:$true] %s527
          %533 = dma.hbm_to_vmem [thread:$0]  %s0, 256, %s528, [#allocation4], 128, 128, 8
        $region16: #{tpu_custom_call.1} parent=11 // pred_fallthru
          _
        // Predicated region
        $region17: #{tpu_custom_call.1} parent=11 // pred_check
          %p534 = pneg %p69
        $region18: #{tpu_custom_call.1} parent=11 // pred_check_branch
          %536 = sbr.rel (%p534) target = $region20
        $region19: #{tpu_custom_call.1} parent=11 // pred_region
          %s538 = ssub.s32 128, 128
          %539 = vsyncadd [#allocation7], %s538
          %s541 = sshll.u32 [#allocation6], 4
          %s542 = int_to_ptr.vmem [resolvable:$true] %s541
          %544 = dma.hbm_to_vmem [thread:$0]  %s1, 128, %s542, [#allocation7]
        $region20: #{tpu_custom_call.1} parent=11 // pred_fallthru
          _
      $region12: #{tpu_custom_call.1} parent=5 // pred_fallthru
        _
      %p545 = scmp.lt.s32.totalorder %s27, 2
      // Predicated region
      $region21: #{tpu_custom_call.1} parent=5 // pred_check
        %p546 = pneg %p545
      $region22: #{tpu_custom_call.1} parent=5 // pred_check_branch
        %548 = sbr.rel (%p546) target = $region24
      $region23: #{tpu_custom_call.1} parent=5 // pred_region
        // Predicated region
        $region25: #{tpu_custom_call.1} parent=23 // pred_check
          %p549 = pneg %p89
        $region26: #{tpu_custom_call.1} parent=23 // pred_check_branch
          %551 = sbr.rel (%p549) target = $region28
        $region27: #{tpu_custom_call.1} parent=23 // pred_region
          %s552 = sand.u32 %s27, 1
          %s553 = scalar_lea.sflag [#allocation4], %s552
          %s554 = sand.u32 %s79, 1
          %s555 = smul.addr %s554, 128
          %s556 = scalar_lea.vmem [#allocation8], %s555
          %s558 = ssub.s32 2048, 2048
          %559 = vsyncadd %s553, %s558
          %s560 = smul.addr %s27, 16
          %s561 = smul.addr %s560, 128
          %s562 = scalar_lea.hbm %s2, %s561
          %s563 = sshll.u32 %s556, 4
          %s564 = int_to_ptr.vmem [resolvable:$true] %s563
          %569 = dma.hbm_to_vmem [thread:$0]  %s562, 2048, %s564, %s553, 128, 128, 8
        $region28: #{tpu_custom_call.1} parent=23 // pred_fallthru
          _
        // Predicated region
        $region29: #{tpu_custom_call.1} parent=23 // pred_check
          %p570 = pneg %p115
        $region30: #{tpu_custom_call.1} parent=23 // pred_check_branch
          %572 = sbr.rel (%p570) target = $region32
        $region31: #{tpu_custom_call.1} parent=23 // pred_region
          %s573 = sand.u32 %s27, 1
          %s574 = scalar_lea.sflag [#allocation4], %s573
          %s575 = sand.u32 %s105, 1
          %s576 = smul.addr %s575, 128
          %s577 = scalar_lea.vmem [#allocation9], %s576
          %s579 = ssub.s32 2048, 2048
          %580 = vsyncadd %s574, %s579
          %s581 = smul.addr %s27, 16
          %s582 = smul.addr %s581, 128
          %s583 = scalar_lea.hbm %s3, %s582
          %s584 = sshll.u32 %s577, 4
          %s585 = int_to_ptr.vmem [resolvable:$true] %s584
          %590 = dma.hbm_to_vmem [thread:$0]  %s583, 2048, %s585, %s574, 128, 128, 8
        $region32: #{tpu_custom_call.1} parent=23 // pred_fallthru
          _
        // Predicated region
        $region33: #{tpu_custom_call.1} parent=23 // pred_check
          %p591 = pneg %p141
        $region34: #{tpu_custom_call.1} parent=23 // pred_check_branch
          %593 = sbr.rel (%p591) target = $region36
        $region35: #{tpu_custom_call.1} parent=23 // pred_region
          %s594 = sand.u32 %s27, 1
          %s595 = scalar_lea.sflag [#allocation4], %s594
          %s596 = sand.u32 %s131, 1
          %s597 = smul.addr %s596, 128
          %s598 = scalar_lea.vmem [#allocation10], %s597
          %s600 = ssub.s32 2048, 2048
          %601 = vsyncadd %s595, %s600
          %s602 = smul.addr %s27, 16
          %s603 = smul.addr %s602, 128
          %s604 = scalar_lea.hbm %s4, %s603
          %s605 = sshll.u32 %s598, 4
          %s606 = int_to_ptr.vmem [resolvable:$true] %s605
          %611 = dma.hbm_to_vmem [thread:$0]  %s604, 2048, %s606, %s595, 128, 128, 8
        $region36: #{tpu_custom_call.1} parent=23 // pred_fallthru
          _
        // Predicated region
        $region37: #{tpu_custom_call.1} parent=23 // pred_check
          %p612 = pneg %p167
        $region38: #{tpu_custom_call.1} parent=23 // pred_check_branch
          %614 = sbr.rel (%p612) target = $region40
        $region39: #{tpu_custom_call.1} parent=23 // pred_region
          %p615 = scmp.lt.s32.totalorder %s27, 1
          %s616 = scalar_select %p615, %s27, 1
          %s617 = smul.addr %s616, 8
          %s618 = scalar_lea.vmem %s5, %s617
        $region40: #{tpu_custom_call.1} parent=23 // pred_fallthru
          _
        // Predicated region
        $region41: #{tpu_custom_call.1} parent=23 // pred_check
          %p619 = pneg %p193
        $region42: #{tpu_custom_call.1} parent=23 // pred_check_branch
          %621 = sbr.rel (%p619) target = $region44
        $region43: #{tpu_custom_call.1} parent=23 // pred_region
          %s622 = sand.u32 %s27, 1
          %s623 = scalar_lea.sflag [#allocation4], %s622
          %s624 = sand.u32 %s183, 1
          %s625 = smul.addr %s624, 8
          %s626 = scalar_lea.vmem [#allocation11], %s625
          %s628 = ssub.s32 128, 128
          %629 = vsyncadd %s623, %s628
          %s630 = smul.addr %s27, 128
          %s631 = scalar_lea.hbm %s6, %s630
          %s633 = sshll.u32 %s626, 4
          %s634 = int_to_ptr.vmem [resolvable:$true] %s633
          %636 = dma.hbm_to_vmem [thread:$0]  %s631, 128, %s634, %s623
        $region44: #{tpu_custom_call.1} parent=23 // pred_fallthru
          _
        // Predicated region
        $region45: #{tpu_custom_call.1} parent=23 // pred_check
          %p637 = pneg %p219
        $region46: #{tpu_custom_call.1} parent=23 // pred_check_branch
          %639 = sbr.rel (%p637) target = $region48
        $region47: #{tpu_custom_call.1} parent=23 // pred_region
          %s640 = sand.u32 %s27, 1
          %s641 = scalar_lea.sflag [#allocation4], %s640
          %s642 = sand.u32 %s209, 1
          %s643 = smul.addr %s642, 8
          %s644 = scalar_lea.vmem [#allocation12], %s643
          %s646 = ssub.s32 128, 128
          %647 = vsyncadd %s641, %s646
          %s648 = smul.addr %s27, 128
          %s649 = scalar_lea.hbm %s7, %s648
          %s651 = sshll.u32 %s644, 4
          %s652 = int_to_ptr.vmem [resolvable:$true] %s651
          %654 = dma.hbm_to_vmem [thread:$0]  %s649, 128, %s652, %s641
        $region48: #{tpu_custom_call.1} parent=23 // pred_fallthru
          _
        // Predicated region
        $region49: #{tpu_custom_call.1} parent=23 // pred_check
          %p655 = pneg %p245
        $region50: #{tpu_custom_call.1} parent=23 // pred_check_branch
          %657 = sbr.rel (%p655) target = $region52
        $region51: #{tpu_custom_call.1} parent=23 // pred_region
          %s658 = sand.u32 %s27, 1
          %s659 = scalar_lea.sflag [#allocation4], %s658
          %s660 = sand.u32 %s235, 1
          %s661 = smul.addr %s660, 128
          %s662 = scalar_lea.vmem [#allocation13], %s661
          %s664 = ssub.s32 2048, 2048
          %665 = vsyncadd %s659, %s664
          %s666 = smul.addr %s27, 16
          %s667 = smul.addr %s666, 128
          %s668 = scalar_lea.hbm %s8, %s667
          %s669 = sshll.u32 %s662, 4
          %s670 = int_to_ptr.vmem [resolvable:$true] %s669
          %675 = dma.hbm_to_vmem [thread:$0]  %s668, 2048, %s670, %s659, 128, 128, 8
        $region52: #{tpu_custom_call.1} parent=23 // pred_fallthru
          _
        // Predicated region
        $region53: #{tpu_custom_call.1} parent=23 // pred_check
          %p676 = pneg %p271
        $region54: #{tpu_custom_call.1} parent=23 // pred_check_branch
          %678 = sbr.rel (%p676) target = $region56
        $region55: #{tpu_custom_call.1} parent=23 // pred_region
          %p679 = scmp.lt.s32.totalorder %s27, 1
          %s680 = scalar_select %p679, %s27, 1
          %s681 = scalar_lea.vmem %s9, %s680
        $region56: #{tpu_custom_call.1} parent=23 // pred_fallthru
          _
        // Predicated region
        $region57: #{tpu_custom_call.1} parent=23 // pred_check
          %p682 = pneg %p297
        $region58: #{tpu_custom_call.1} parent=23 // pred_check_branch
          %684 = sbr.rel (%p682) target = $region60
        $region59: #{tpu_custom_call.1} parent=23 // pred_region
          %p685 = scmp.lt.s32.totalorder %s27, 1
          %s686 = scalar_select %p685, %s27, 1
          %s687 = scalar_lea.vmem %s10, %s686
        $region60: #{tpu_custom_call.1} parent=23 // pred_fallthru
          _
        // Predicated region
        $region61: #{tpu_custom_call.1} parent=23 // pred_check
          %p688 = pneg %p323
        $region62: #{tpu_custom_call.1} parent=23 // pred_check_branch
          %690 = sbr.rel (%p688) target = $region64
        $region63: #{tpu_custom_call.1} parent=23 // pred_region
          %p691 = scmp.lt.s32.totalorder %s27, 1
          %s692 = scalar_select %p691, %s27, 1
          %s693 = scalar_lea.vmem %s11, %s692
        $region64: #{tpu_custom_call.1} parent=23 // pred_fallthru
          _
        // Predicated region
        $region65: #{tpu_custom_call.1} parent=23 // pred_check
          %p694 = pneg %p349
        $region66: #{tpu_custom_call.1} parent=23 // pred_check_branch
          %696 = sbr.rel (%p694) target = $region68
        $region67: #{tpu_custom_call.1} parent=23 // pred_region
          %p697 = scmp.lt.s32.totalorder %s27, 1
          %s698 = scalar_select %p697, %s27, 1
          %s699 = scalar_lea.vmem %s12, %s698
        $region68: #{tpu_custom_call.1} parent=23 // pred_fallthru
          _
        // Predicated region
        $region69: #{tpu_custom_call.1} parent=23 // pred_check
          %p700 = pneg %p375
        $region70: #{tpu_custom_call.1} parent=23 // pred_check_branch
          %702 = sbr.rel (%p700) target = $region72
        $region71: #{tpu_custom_call.1} parent=23 // pred_region
          %p703 = scmp.lt.s32.totalorder %s27, 1
          %s704 = scalar_select %p703, %s27, 1
          %s705 = scalar_lea.vmem %s13, %s704
        $region72: #{tpu_custom_call.1} parent=23 // pred_fallthru
          _
        // Predicated region
        $region73: #{tpu_custom_call.1} parent=23 // pred_check
          %p706 = pneg %p401
        $region74: #{tpu_custom_call.1} parent=23 // pred_check_branch
          %708 = sbr.rel (%p706) target = $region76
        $region75: #{tpu_custom_call.1} parent=23 // pred_region
          %s709 = sand.u32 %s27, 1
          %s710 = scalar_lea.sflag [#allocation4], %s709
          %s711 = sand.u32 %s391, 1
          %s712 = smul.addr %s711, 256
          %s713 = scalar_lea.vmem [#allocation14], %s712
          %s715 = ssub.s32 4096, 4096
          %716 = vsyncadd %s710, %s715
          %s717 = smul.addr %s27, 32
          %s718 = smul.addr %s717, 128
          %s719 = scalar_lea.hbm %s14, %s718
          %s720 = sshll.u32 %s713, 4
          %s721 = int_to_ptr.vmem [resolvable:$true] %s720
          %726 = dma.hbm_to_vmem [thread:$0]  %s719, 4096, %s721, %s710, 256, 256, 16
        $region76: #{tpu_custom_call.1} parent=23 // pred_fallthru
          _
        // Predicated region
        $region77: #{tpu_custom_call.1} parent=23 // pred_check
          %p727 = pneg %p427
        $region78: #{tpu_custom_call.1} parent=23 // pred_check_branch
          %729 = sbr.rel (%p727) target = $region80
        $region79: #{tpu_custom_call.1} parent=23 // pred_region
          %p730 = scmp.lt.s32.totalorder %s27, 1
          %s731 = scalar_select %p730, %s27, 1
          %s732 = smul.addr %s731, 2
          %s733 = scalar_lea.vmem %s15, %s732
        $region80: #{tpu_custom_call.1} parent=23 // pred_fallthru
          _
        // Predicated region
        $region81: #{tpu_custom_call.1} parent=23 // pred_check
          %p734 = pneg %p453
        $region82: #{tpu_custom_call.1} parent=23 // pred_check_branch
          %736 = sbr.rel (%p734) target = $region84
        $region83: #{tpu_custom_call.1} parent=23 // pred_region
          %s737 = sand.u32 %s27, 1
          %s738 = scalar_lea.sflag [#allocation4], %s737
          %s739 = sand.u32 %s443, 1
          %s740 = smul.addr %s739, 256
          %s741 = scalar_lea.vmem [#allocation15], %s740
          %s743 = ssub.s32 4096, 4096
          %744 = vsyncadd %s738, %s743
          %s745 = smul.addr %s27, 32
          %s746 = smul.addr %s745, 128
          %s747 = scalar_lea.hbm %s16, %s746
          %s748 = sshll.u32 %s741, 4
          %s749 = int_to_ptr.vmem [resolvable:$true] %s748
          %754 = dma.hbm_to_vmem [thread:$0]  %s747, 4096, %s749, %s738, 128, 128, 8
        $region84: #{tpu_custom_call.1} parent=23 // pred_fallthru
          _
        // Predicated region
        $region85: #{tpu_custom_call.1} parent=23 // pred_check
          %p755 = pneg %p479
        $region86: #{tpu_custom_call.1} parent=23 // pred_check_branch
          %757 = sbr.rel (%p755) target = $region88
        $region87: #{tpu_custom_call.1} parent=23 // pred_region
          %p758 = scmp.lt.s32.totalorder %s27, 1
          %s759 = scalar_select %p758, %s27, 1
          %s760 = scalar_lea.vmem %s17, %s759
        $region88: #{tpu_custom_call.1} parent=23 // pred_fallthru
          _
      $region24: #{tpu_custom_call.1} parent=5 // pred_fallthru
        _
      %p761 = scmp.le.s32.totalorder 1, %s27
      %p762 = scmp.lt.s32.totalorder %s27, 3
      %p763 = pnand %p761, %p762
      %p764 = pneg %p763
      // Predicated region
      $region89: #{tpu_custom_call.1} parent=5 // pred_check
        _
      $region90: #{tpu_custom_call.1} parent=5 // pred_check_branch
        %766 = sbr.rel (%p763) target = $region92
      $region91: #{tpu_custom_call.1} parent=5 // pred_region
        %s767 = ssub.s32 %s27, 1
        // Predicated region
        $region93: #{tpu_custom_call.1} parent=91 // pred_check
          %p768 = pneg %p48
        $region94: #{tpu_custom_call.1} parent=91 // pred_check_branch
          %770 = sbr.rel (%p768) target = $region96
        $region95: #{tpu_custom_call.1} parent=91 // pred_region
          %771 = dma.done [#allocation4], 256
        $region96: #{tpu_custom_call.1} parent=91 // pred_fallthru
          _
        // Predicated region
        $region97: #{tpu_custom_call.1} parent=91 // pred_check
          %p772 = pneg %p69
        $region98: #{tpu_custom_call.1} parent=91 // pred_check_branch
          %774 = sbr.rel (%p772) target = $region100
        $region99: #{tpu_custom_call.1} parent=91 // pred_region
          %775 = dma.done [#allocation7], 128
        $region100: #{tpu_custom_call.1} parent=91 // pred_fallthru
          _
        %s776 = sand.u32 %s32, 1
        %s777 = scalar_lea.sflag [#allocation4], %s776
        %s778 = sand.u32 %s82, 1
        %s779 = smul.addr %s778, 128
        %s780 = scalar_lea.vmem [#allocation8], %s779
        // Predicated region
        $region101: #{tpu_custom_call.1} parent=91 // pred_check
          %p781 = pneg %p95
        $region102: #{tpu_custom_call.1} parent=91 // pred_check_branch
          %783 = sbr.rel (%p781) target = $region104
        $region103: #{tpu_custom_call.1} parent=91 // pred_region
          %784 = dma.done %s777, 2048
        $region104: #{tpu_custom_call.1} parent=91 // pred_fallthru
          _
        %s785 = sand.u32 %s32, 1
        %s786 = scalar_lea.sflag [#allocation4], %s785
        %s787 = sand.u32 %s108, 1
        %s788 = smul.addr %s787, 128
        %s789 = scalar_lea.vmem [#allocation9], %s788
        // Predicated region
        $region105: #{tpu_custom_call.1} parent=91 // pred_check
          %p790 = pneg %p121
        $region106: #{tpu_custom_call.1} parent=91 // pred_check_branch
          %792 = sbr.rel (%p790) target = $region108
        $region107: #{tpu_custom_call.1} parent=91 // pred_region
          %793 = dma.done %s786, 2048
        $region108: #{tpu_custom_call.1} parent=91 // pred_fallthru
          _
        %s794 = sand.u32 %s32, 1
        %s795 = scalar_lea.sflag [#allocation4], %s794
        %s796 = sand.u32 %s134, 1
        %s797 = smul.addr %s796, 128
        %s798 = scalar_lea.vmem [#allocation10], %s797
        // Predicated region
        $region109: #{tpu_custom_call.1} parent=91 // pred_check
          %p799 = pneg %p147
        $region110: #{tpu_custom_call.1} parent=91 // pred_check_branch
          %801 = sbr.rel (%p799) target = $region112
        $region111: #{tpu_custom_call.1} parent=91 // pred_region
          %802 = dma.done %s795, 2048
        $region112: #{tpu_custom_call.1} parent=91 // pred_fallthru
          _
        %s803 = sand.u32 %s32, 1
        %s804 = scalar_lea.sflag [#allocation4], %s803
        %s805 = sand.u32 %s186, 1
        %s806 = smul.addr %s805, 8
        %s807 = scalar_lea.vmem [#allocation11], %s806
        // Predicated region
        $region113: #{tpu_custom_call.1} parent=91 // pred_check
          %p808 = pneg %p199
        $region114: #{tpu_custom_call.1} parent=91 // pred_check_branch
          %810 = sbr.rel (%p808) target = $region116
        $region115: #{tpu_custom_call.1} parent=91 // pred_region
          %811 = dma.done %s804, 128
        $region116: #{tpu_custom_call.1} parent=91 // pred_fallthru
          _
        %s812 = sand.u32 %s32, 1
        %s813 = scalar_lea.sflag [#allocation4], %s812
        %s814 = sand.u32 %s212, 1
        %s815 = smul.addr %s814, 8
        %s816 = scalar_lea.vmem [#allocation12], %s815
        // Predicated region
        $region117: #{tpu_custom_call.1} parent=91 // pred_check
          %p817 = pneg %p225
        $region118: #{tpu_custom_call.1} parent=91 // pred_check_branch
          %819 = sbr.rel (%p817) target = $region120
        $region119: #{tpu_custom_call.1} parent=91 // pred_region
          %820 = dma.done %s813, 128
        $region120: #{tpu_custom_call.1} parent=91 // pred_fallthru
          _
        %s821 = sand.u32 %s32, 1
        %s822 = scalar_lea.sflag [#allocation4], %s821
        %s823 = sand.u32 %s238, 1
        %s824 = smul.addr %s823, 128
        %s825 = scalar_lea.vmem [#allocation13], %s824
        // Predicated region
        $region121: #{tpu_custom_call.1} parent=91 // pred_check
          %p826 = pneg %p251
        $region122: #{tpu_custom_call.1} parent=91 // pred_check_branch
          %828 = sbr.rel (%p826) target = $region124
        $region123: #{tpu_custom_call.1} parent=91 // pred_region
          %829 = dma.done %s822, 2048
        $region124: #{tpu_custom_call.1} parent=91 // pred_fallthru
          _
        %s830 = sand.u32 %s32, 1
        %s831 = scalar_lea.sflag [#allocation4], %s830
        %s832 = sand.u32 %s394, 1
        %s833 = smul.addr %s832, 256
        %s834 = scalar_lea.vmem [#allocation14], %s833
        // Predicated region
        $region125: #{tpu_custom_call.1} parent=91 // pred_check
          %p835 = pneg %p407
        $region126: #{tpu_custom_call.1} parent=91 // pred_check_branch
          %837 = sbr.rel (%p835) target = $region128
        $region127: #{tpu_custom_call.1} parent=91 // pred_region
          %838 = dma.done %s831, 4096
        $region128: #{tpu_custom_call.1} parent=91 // pred_fallthru
          _
        %s839 = sand.u32 %s32, 1
        %s840 = scalar_lea.sflag [#allocation4], %s839
        %s841 = sand.u32 %s446, 1
        %s842 = smul.addr %s841, 256
        %s843 = scalar_lea.vmem [#allocation15], %s842
        // Predicated region
        $region129: #{tpu_custom_call.1} parent=91 // pred_check
          %p844 = pneg %p459
        $region130: #{tpu_custom_call.1} parent=91 // pred_check_branch
          %846 = sbr.rel (%p844) target = $region132
        $region131: #{tpu_custom_call.1} parent=91 // pred_region
          %847 = dma.done %s840, 4096
        $region132: #{tpu_custom_call.1} parent=91 // pred_fallthru
          _
        %p848 = pneg %p48
        %p849 = pneg %p45
        %p850 = pneg %p69
        %p851 = pneg %p66
        %s852 = sand.u32 %s32, 1
        %s853 = scalar_lea.sflag [#allocation4], %s852
        %s854 = sand.u32 %s82, 1
        %s855 = smul.addr %s854, 128
        %s856 = scalar_lea.vmem [#allocation8], %s855
        %p857 = pneg %p95
        %p858 = pneg %p92
        %s859 = sand.u32 %s32, 1
        %s860 = scalar_lea.sflag [#allocation4], %s859
        %s861 = sand.u32 %s108, 1
        %s862 = smul.addr %s861, 128
        %s863 = scalar_lea.vmem [#allocation9], %s862
        %p864 = pneg %p121
        %p865 = pneg %p118
        %s866 = sand.u32 %s32, 1
        %s867 = scalar_lea.sflag [#allocation4], %s866
        %s868 = sand.u32 %s134, 1
        %s869 = smul.addr %s868, 128
        %s870 = scalar_lea.vmem [#allocation10], %s869
        %p871 = pneg %p147
        %p872 = pneg %p144
        %p873 = scmp.lt.s32.totalorder %s32, 1
        %s874 = scalar_select %p873, %s32, 1
        %s875 = smul.addr %s874, 8
        %s876 = scalar_lea.vmem %s5, %s875
        %p877 = pneg %p173
        %p878 = pneg %p170
        %s879 = sand.u32 %s32, 1
        %s880 = scalar_lea.sflag [#allocation4], %s879
        %s881 = sand.u32 %s186, 1
        %s882 = smul.addr %s881, 8
        %s883 = scalar_lea.vmem [#allocation11], %s882
        %p884 = pneg %p199
        %p885 = pneg %p196
        %s886 = sand.u32 %s32, 1
        %s887 = scalar_lea.sflag [#allocation4], %s886
        %s888 = sand.u32 %s212, 1
        %s889 = smul.addr %s888, 8
        %s890 = scalar_lea.vmem [#allocation12], %s889
        %p891 = pneg %p225
        %p892 = pneg %p222
        %s893 = sand.u32 %s32, 1
        %s894 = scalar_lea.sflag [#allocation4], %s893
        %s895 = sand.u32 %s238, 1
        %s896 = smul.addr %s895, 128
        %s897 = scalar_lea.vmem [#allocation13], %s896
        %p898 = pneg %p251
        %p899 = pneg %p248
        %p900 = scmp.lt.s32.totalorder %s32, 1
        %s901 = scalar_select %p900, %s32, 1
        %s902 = scalar_lea.vmem %s9, %s901
        %p903 = pneg %p277
        %p904 = pneg %p274
        %p905 = scmp.lt.s32.totalorder %s32, 1
        %s906 = scalar_select %p905, %s32, 1
        %s907 = scalar_lea.vmem %s10, %s906
        %p908 = pneg %p303
        %p909 = pneg %p300
        %p910 = scmp.lt.s32.totalorder %s32, 1
        %s911 = scalar_select %p910, %s32, 1
        %s912 = scalar_lea.vmem %s11, %s911
        %p913 = pneg %p329
        %p914 = pneg %p326
        %p915 = scmp.lt.s32.totalorder %s32, 1
        %s916 = scalar_select %p915, %s32, 1
        %s917 = scalar_lea.vmem %s12, %s916
        %p918 = pneg %p355
        %p919 = pneg %p352
        %p920 = scmp.lt.s32.totalorder %s32, 1
        %s921 = scalar_select %p920, %s32, 1
        %s922 = scalar_lea.vmem %s13, %s921
        %p923 = pneg %p381
        %p924 = pneg %p378
        %s925 = sand.u32 %s32, 1
        %s926 = scalar_lea.sflag [#allocation4], %s925
        %s927 = sand.u32 %s394, 1
        %s928 = smul.addr %s927, 256
        %s929 = scalar_lea.vmem [#allocation14], %s928
        %p930 = pneg %p407
        %p931 = pneg %p404
        %p932 = scmp.lt.s32.totalorder %s32, 1
        %s933 = scalar_select %p932, %s32, 1
        %s934 = smul.addr %s933, 2
        %s935 = scalar_lea.vmem %s15, %s934
        %p936 = pneg %p433
        %p937 = pneg %p430
        %s938 = sand.u32 %s32, 1
        %s939 = scalar_lea.sflag [#allocation4], %s938
        %s940 = sand.u32 %s446, 1
        %s941 = smul.addr %s940, 256
        %s942 = scalar_lea.vmem [#allocation15], %s941
        %p943 = pneg %p459
        %p944 = pneg %p456
        %p945 = scmp.lt.s32.totalorder %s32, 1
        %s946 = scalar_select %p945, %s32, 1
        %s947 = scalar_lea.vmem %s17, %s946
        %p948 = pneg %p485
        %p949 = pneg %p482
        %p950 = pneg %p506
        %p951 = pneg %p503
        %p952 = scmp.lt.s32.totalorder %s32, 1
        %s953 = scalar_select %p952, %s32, 1
        %s954 = smul.addr %s953, 8
        %s955 = scalar_lea.vmem %s5, %s954
        %p956 = scmp.lt.s32.totalorder %s32, 1
        %s957 = scalar_select %p956, %s32, 1
        %s958 = scalar_lea.vmem %s9, %s957
        %p959 = scmp.lt.s32.totalorder %s32, 1
        %s960 = scalar_select %p959, %s32, 1
        %s961 = scalar_lea.vmem %s10, %s960
        %p962 = scmp.lt.s32.totalorder %s32, 1
        %s963 = scalar_select %p962, %s32, 1
        %s964 = scalar_lea.vmem %s11, %s963
        %p965 = scmp.lt.s32.totalorder %s32, 1
        %s966 = scalar_select %p965, %s32, 1
        %s967 = scalar_lea.vmem %s12, %s966
        %p968 = scmp.lt.s32.totalorder %s32, 1
        %s969 = scalar_select %p968, %s32, 1
        %s970 = scalar_lea.vmem %s13, %s969
        %p971 = scmp.lt.s32.totalorder %s32, 1
        %s972 = scalar_select %p971, %s32, 1
        %s973 = smul.addr %s972, 2
        %s974 = scalar_lea.vmem %s15, %s973
        %p975 = scmp.lt.s32.totalorder %s32, 1
        %s976 = scalar_select %p975, %s32, 1
        %s977 = scalar_lea.vmem %s17, %s976
        %p978 = scmp.eq.s32.totalorder %s32, 0
        // Predicated region
        $region133: #{tpu_custom_call.1} parent=91 // pred_check
          %p979 = pneg %p978
        $region134: #{tpu_custom_call.1} parent=91 // pred_check_branch
          %981 = sbr.rel (%p979) target = $region136
        $region135: #{tpu_custom_call.1} parent=91 // pred_region
          %v982 = vld [vmem:[#allocation3] sm:$0xff]
          %v983 = vld [vmem:[#allocation3 + $0x8] sm:$0xff]
          %v984 = vld [vmem:[#allocation6] sm:$0xff]
          %v985 = vadd.f32 %v982, %v984
          %v986 = vadd.f32 %v983, %v984
          %987 = vst [vmem:[#allocation2] sm:$0xff] %v985
          %988 = vst [vmem:[#allocation2 + $0x8] sm:$0xff] %v986
        $region136: #{tpu_custom_call.1} parent=91 // pred_fallthru
          _
        %v989 = vld [vmem:[#allocation2] sm:$0xff]
        %v990 = vld [vmem:[#allocation2 + $0x8] sm:$0xff]
        %v991 = vld [vmem:[%s780] sm:$0xff]
        %v992 = vld [vmem:[%s780 + $0x8] sm:$0xff]
        %v993 = vld [vmem:[%s955] sm:$0x1]
        %v994 = vlaneseq
        %v995 = vshrl.u32 %v994, 7
        %v996 = vsub.s32 0, %v995
        %v997 = vrot.slane %v993, %v996
        %998 = vmatprep.subr.mxu0 0.0
        %999 = vmatpush1.xpose.msra.mxu0 %v991
        %1000 = vmatprep.subr.mxu0 0.0
        %1001 = vmatpush1.xpose.msra.mxu0 %v992
        %1002 = vmatprep.subr.mxu0 0.0
        %1003 = vmatpush1.xpose.msra.mxu0 0.0
        %1004 = vmatprep.subr.mxu0 0.0
        %1005 = vmatpush1.xpose.msra.mxu0 0.0
        %1006 = vmatprep.subr.mxu0 0.0
        %1007 = vmatpush1.xpose.msra.mxu0 0.0
        %1008 = vmatprep.subr.mxu0 0.0
        %1009 = vmatpush1.xpose.msra.mxu0 0.0
        %1010 = vmatprep.subr.mxu0 0.0
        %1011 = vmatpush1.xpose.msra.mxu0 0.0
        %1012 = vmatprep.subr.mxu0 0.0
        %1013 = vmatpush1.xpose.msra.mxu0 0.0
        %1014 = vmatprep.subr.mxu0 0.0
        %1015 = vmatpush1.xpose.msra.mxu0 0.0
        %1016 = vmatprep.subr.mxu0 0.0
        %1017 = vmatpush1.xpose.msra.mxu0 0.0
        %1018 = vmatprep.subr.mxu0 0.0
        %1019 = vmatpush1.xpose.msra.mxu0 0.0
        %1020 = vmatprep.subr.mxu0 0.0
        %1021 = vmatpush1.xpose.msra.mxu0 0.0
        %1022 = vmatprep.subr.mxu0 0.0
        %1023 = vmatpush1.xpose.msra.mxu0 0.0
        %1024 = vmatprep.subr.mxu0 0.0
        %1025 = vmatpush1.xpose.msra.mxu0 0.0
        %1026 = vmatprep.subr.mxu0 0.0
        %1027 = vmatpush1.xpose.msra.mxu0 0.0
        %1028 = vmatprep.subr.mxu0 0.0
        %1029 = vmatpush1.xpose.msra.mxu0 0.0
        %1030 = vmatprep.subr.mxu0 0.0
        %1031 = vmatpush1.xpose.msra.mxu0 0.0
        %1032 = vmatprep.subr.mxu0 0.0
        %1033 = vmatpush1.xpose.msra.mxu0 0.0
        %1034 = vmatprep.subr.mxu0 0.0
        %1035 = vmatpush1.xpose.msra.mxu0 0.0
        %1036 = vmatprep.subr.mxu0 0.0
        %1037 = vmatpush1.xpose.msra.mxu0 0.0
        %1038 = vmatprep.subr.mxu0 0.0
        %1039 = vmatpush1.xpose.msra.mxu0 0.0
        %1040 = vmatprep.subr.mxu0 0.0
        %1041 = vmatpush1.xpose.msra.mxu0 0.0
        %1042 = vmatprep.subr.mxu0 0.0
        %1043 = vmatpush1.xpose.msra.mxu0 0.0
        %1044 = vmatprep.subr.mxu0 0.0
        %1045 = vmatpush1.xpose.msra.mxu0 0.0
        %1046 = vmatprep.subr.mxu0 0.0
        %1047 = vmatpush1.xpose.msra.mxu0 0.0
        %1048 = vmatprep.subr.mxu0 0.0
        %1049 = vmatpush1.xpose.msra.mxu0 0.0
        %1050 = vmatprep.subr.mxu0 0.0
        %1051 = vmatpush1.xpose.msra.mxu0 0.0
        %1052 = vmatprep.subr.mxu0 0.0
        %1053 = vmatpush1.xpose.msra.mxu0 0.0
        %1054 = vmatprep.subr.mxu0 0.0
        %1055 = vmatpush1.xpose.msra.mxu0 0.0
        %1056 = vmatprep.subr.mxu0 0.0
        %1057 = vmatpush1.xpose.msra.mxu0 0.0
        %1058 = vmatprep.subr.mxu0 0.0
        %1059 = vmatpush1.xpose.msra.mxu0 0.0
        %1060 = vmatprep.subr.mxu0 0.0
        %1061 = vmatpush1.xpose.msra.mxu0 0.0
        %1062 = vmatprep.mubr.f32.mxu0 0.0
        %1063 = vmatmul.mubr.f32.gmra.mrb[0].mxu0 %v989
        %v1064 = vpop.f32.mrb[0].mxu0
        %v1065 = vadd.f32 %v997, %v1064
        %v1066 = vpop.f32.mrb[0].mxu0
        %1067 = vmatprep.mubr.f32.mxu0 0.0
        %1068 = vmatmul.mubr.f32.gmra.mrb[0].mxu0 %v990
        %v1069 = vpop.f32.mrb[0].mxu0
        %v1070 = vadd.f32 %v997, %v1069
        %v1071 = vpop.f32.mrb[0].mxu0
        %1072 = vdwg.mxu0
        %v1073 = vld [vmem:[%s789] sm:$0xff]
        %v1074 = vld [vmem:[%s789 + $0x8] sm:$0xff]
        %v1075 = vld [vmem:[%s807] sm:$0x1]
        %v1076 = vlaneseq
        %v1077 = vshrl.u32 %v1076, 7
        %v1078 = vsub.s32 0, %v1077
        %v1079 = vrot.slane %v1075, %v1078
        %1080 = vmatprep.subr.mxu0 0.0
        %1081 = vmatpush1.xpose.msra.mxu0 %v1073
        %1082 = vmatprep.subr.mxu0 0.0
        %1083 = vmatpush1.xpose.msra.mxu0 %v1074
        %1084 = vmatprep.subr.mxu0 0.0
        %1085 = vmatpush1.xpose.msra.mxu0 0.0
        %1086 = vmatprep.subr.mxu0 0.0
        %1087 = vmatpush1.xpose.msra.mxu0 0.0
        %1088 = vmatprep.subr.mxu0 0.0
        %1089 = vmatpush1.xpose.msra.mxu0 0.0
        %1090 = vmatprep.subr.mxu0 0.0
        %1091 = vmatpush1.xpose.msra.mxu0 0.0
        %1092 = vmatprep.subr.mxu0 0.0
        %1093 = vmatpush1.xpose.msra.mxu0 0.0
        %1094 = vmatprep.subr.mxu0 0.0
        %1095 = vmatpush1.xpose.msra.mxu0 0.0
        %1096 = vmatprep.subr.mxu0 0.0
        %1097 = vmatpush1.xpose.msra.mxu0 0.0
        %1098 = vmatprep.subr.mxu0 0.0
        %1099 = vmatpush1.xpose.msra.mxu0 0.0
        %1100 = vmatprep.subr.mxu0 0.0
        %1101 = vmatpush1.xpose.msra.mxu0 0.0
        %1102 = vmatprep.subr.mxu0 0.0
        %1103 = vmatpush1.xpose.msra.mxu0 0.0
        %1104 = vmatprep.subr.mxu0 0.0
        %1105 = vmatpush1.xpose.msra.mxu0 0.0
        %1106 = vmatprep.subr.mxu0 0.0
        %1107 = vmatpush1.xpose.msra.mxu0 0.0
        %1108 = vmatprep.subr.mxu0 0.0
        %1109 = vmatpush1.xpose.msra.mxu0 0.0
        %1110 = vmatprep.subr.mxu0 0.0
        %1111 = vmatpush1.xpose.msra.mxu0 0.0
        %1112 = vmatprep.subr.mxu0 0.0
        %1113 = vmatpush1.xpose.msra.mxu0 0.0
        %1114 = vmatprep.subr.mxu0 0.0
        %1115 = vmatpush1.xpose.msra.mxu0 0.0
        %1116 = vmatprep.subr.mxu0 0.0
        %1117 = vmatpush1.xpose.msra.mxu0 0.0
        %1118 = vmatprep.subr.mxu0 0.0
        %1119 = vmatpush1.xpose.msra.mxu0 0.0
        %1120 = vmatprep.subr.mxu0 0.0
        %1121 = vmatpush1.xpose.msra.mxu0 0.0
        %1122 = vmatprep.subr.mxu0 0.0
        %1123 = vmatpush1.xpose.msra.mxu0 0.0
        %1124 = vmatprep.subr.mxu0 0.0
        %1125 = vmatpush1.xpose.msra.mxu0 0.0
        %1126 = vmatprep.subr.mxu0 0.0
        %1127 = vmatpush1.xpose.msra.mxu0 0.0
        %1128 = vmatprep.subr.mxu0 0.0
        %1129 = vmatpush1.xpose.msra.mxu0 0.0
        %1130 = vmatprep.subr.mxu0 0.0
        %1131 = vmatpush1.xpose.msra.mxu0 0.0
        %1132 = vmatprep.subr.mxu0 0.0
        %1133 = vmatpush1.xpose.msra.mxu0 0.0
        %1134 = vmatprep.subr.mxu0 0.0
        %1135 = vmatpush1.xpose.msra.mxu0 0.0
        %1136 = vmatprep.subr.mxu0 0.0
        %1137 = vmatpush1.xpose.msra.mxu0 0.0
        %1138 = vmatprep.subr.mxu0 0.0
        %1139 = vmatpush1.xpose.msra.mxu0 0.0
        %1140 = vmatprep.subr.mxu0 0.0
        %1141 = vmatpush1.xpose.msra.mxu0 0.0
        %1142 = vmatprep.subr.mxu0 0.0
        %1143 = vmatpush1.xpose.msra.mxu0 0.0
        %1144 = vmatprep.mubr.f32.mxu0 0.0
        %1145 = vmatmul.mubr.f32.gmra.mrb[0].mxu0 %v989
        %v1146 = vpop.f32.mrb[0].mxu0
        %v1147 = vadd.f32 %v1079, %v1146
        %v1148 = vpop.f32.mrb[0].mxu0
        %1149 = vmatprep.mubr.f32.mxu0 0.0
        %1150 = vmatmul.mubr.f32.gmra.mrb[0].mxu0 %v990
        %v1151 = vpop.f32.mrb[0].mxu0
        %v1152 = vadd.f32 %v1079, %v1151
        %v1153 = vpop.f32.mrb[0].mxu0
        %1154 = vdwg.mxu0
        %v1155 = vld [vmem:[%s798] sm:$0xff]
        %v1156 = vld [vmem:[%s798 + $0x8] sm:$0xff]
        %v1157 = vld [vmem:[%s816] sm:$0x1]
        %v1158 = vlaneseq
        %v1159 = vshrl.u32 %v1158, 7
        %v1160 = vsub.s32 0, %v1159
        %v1161 = vrot.slane %v1157, %v1160
        %1162 = vmatprep.subr.mxu0 0.0
        %1163 = vmatpush1.xpose.msra.mxu0 %v1155
        %1164 = vmatprep.subr.mxu0 0.0
        %1165 = vmatpush1.xpose.msra.mxu0 %v1156
        %1166 = vmatprep.subr.mxu0 0.0
        %1167 = vmatpush1.xpose.msra.mxu0 0.0
        %1168 = vmatprep.subr.mxu0 0.0
        %1169 = vmatpush1.xpose.msra.mxu0 0.0
        %1170 = vmatprep.subr.mxu0 0.0
        %1171 = vmatpush1.xpose.msra.mxu0 0.0
        %1172 = vmatprep.subr.mxu0 0.0
        %1173 = vmatpush1.xpose.msra.mxu0 0.0
        %1174 = vmatprep.subr.mxu0 0.0
        %1175 = vmatpush1.xpose.msra.mxu0 0.0
        %1176 = vmatprep.subr.mxu0 0.0
        %1177 = vmatpush1.xpose.msra.mxu0 0.0
        %1178 = vmatprep.subr.mxu0 0.0
        %1179 = vmatpush1.xpose.msra.mxu0 0.0
        %1180 = vmatprep.subr.mxu0 0.0
        %1181 = vmatpush1.xpose.msra.mxu0 0.0
        %1182 = vmatprep.subr.mxu0 0.0
        %1183 = vmatpush1.xpose.msra.mxu0 0.0
        %1184 = vmatprep.subr.mxu0 0.0
        %1185 = vmatpush1.xpose.msra.mxu0 0.0
        %1186 = vmatprep.subr.mxu0 0.0
        %1187 = vmatpush1.xpose.msra.mxu0 0.0
        %1188 = vmatprep.subr.mxu0 0.0
        %1189 = vmatpush1.xpose.msra.mxu0 0.0
        %1190 = vmatprep.subr.mxu0 0.0
        %1191 = vmatpush1.xpose.msra.mxu0 0.0
        %1192 = vmatprep.subr.mxu0 0.0
        %1193 = vmatpush1.xpose.msra.mxu0 0.0
        %1194 = vmatprep.subr.mxu0 0.0
        %1195 = vmatpush1.xpose.msra.mxu0 0.0
        %1196 = vmatprep.subr.mxu0 0.0
        %1197 = vmatpush1.xpose.msra.mxu0 0.0
        %1198 = vmatprep.subr.mxu0 0.0
        %1199 = vmatpush1.xpose.msra.mxu0 0.0
        %1200 = vmatprep.subr.mxu0 0.0
        %1201 = vmatpush1.xpose.msra.mxu0 0.0
        %1202 = vmatprep.subr.mxu0 0.0
        %1203 = vmatpush1.xpose.msra.mxu0 0.0
        %1204 = vmatprep.subr.mxu0 0.0
        %1205 = vmatpush1.xpose.msra.mxu0 0.0
        %1206 = vmatprep.subr.mxu0 0.0
        %1207 = vmatpush1.xpose.msra.mxu0 0.0
        %1208 = vmatprep.subr.mxu0 0.0
        %1209 = vmatpush1.xpose.msra.mxu0 0.0
        %1210 = vmatprep.subr.mxu0 0.0
        %1211 = vmatpush1.xpose.msra.mxu0 0.0
        %1212 = vmatprep.subr.mxu0 0.0
        %1213 = vmatpush1.xpose.msra.mxu0 0.0
        %1214 = vmatprep.subr.mxu0 0.0
        %1215 = vmatpush1.xpose.msra.mxu0 0.0
        %1216 = vmatprep.subr.mxu0 0.0
        %1217 = vmatpush1.xpose.msra.mxu0 0.0
        %1218 = vmatprep.subr.mxu0 0.0
        %1219 = vmatpush1.xpose.msra.mxu0 0.0
        %1220 = vmatprep.subr.mxu0 0.0
        %1221 = vmatpush1.xpose.msra.mxu0 0.0
        %1222 = vmatprep.subr.mxu0 0.0
        %1223 = vmatpush1.xpose.msra.mxu0 0.0
        %1224 = vmatprep.subr.mxu0 0.0
        %1225 = vmatpush1.xpose.msra.mxu0 0.0
        %1226 = vmatprep.mubr.f32.mxu0 0.0
        %1227 = vmatmul.mubr.f32.gmra.mrb[0].mxu0 %v989
        %v1228 = vpop.f32.mrb[0].mxu0
        %v1229 = vadd.f32 %v1161, %v1228
        %v1230 = vpop.f32.mrb[0].mxu0
        %1231 = vmatprep.mubr.f32.mxu0 0.0
        %1232 = vmatmul.mubr.f32.gmra.mrb[0].mxu0 %v990
        %v1233 = vpop.f32.mrb[0].mxu0
        %v1234 = vadd.f32 %v1161, %v1233
        %v1235 = vpop.f32.mrb[0].mxu0
        %1236 = vdwg.mxu0
        %v1237 = vmul.f32 %v1065, 0.25
        %v1238 = vmul.f32 %v1070, 0.25
        %vm1239 = vcmask 130048
        %v1241 = vsel %vm1239, %v1237, 0
        %v1244 = vsel %vm1239, %v1147, 0
        %1246 = vmatprep.subr.mxu0 0.0
        %1247 = vmatpush1.xpose.msra.mxu0 %v1244
        %1248 = vmatprep.subr.mxu0 0.0
        %1249 = vmatpush1.xpose.msra.mxu0 0.0
        %1250 = vmatprep.subr.mxu0 0.0
        %1251 = vmatpush1.xpose.msra.mxu0 0.0
        %1252 = vmatprep.subr.mxu0 0.0
        %1253 = vmatpush1.xpose.msra.mxu0 0.0
        %1254 = vmatprep.subr.mxu0 0.0
        %1255 = vmatpush1.xpose.msra.mxu0 0.0
        %1256 = vmatprep.subr.mxu0 0.0
        %1257 = vmatpush1.xpose.msra.mxu0 0.0
        %1258 = vmatprep.subr.mxu0 0.0
        %1259 = vmatpush1.xpose.msra.mxu0 0.0
        %1260 = vmatprep.subr.mxu0 0.0
        %1261 = vmatpush1.xpose.msra.mxu0 0.0
        %1262 = vmatprep.subr.mxu0 0.0
        %1263 = vmatpush1.xpose.msra.mxu0 0.0
        %1264 = vmatprep.subr.mxu0 0.0
        %1265 = vmatpush1.xpose.msra.mxu0 0.0
        %1266 = vmatprep.subr.mxu0 0.0
        %1267 = vmatpush1.xpose.msra.mxu0 0.0
        %1268 = vmatprep.subr.mxu0 0.0
        %1269 = vmatpush1.xpose.msra.mxu0 0.0
        %1270 = vmatprep.subr.mxu0 0.0
        %1271 = vmatpush1.xpose.msra.mxu0 0.0
        %1272 = vmatprep.subr.mxu0 0.0
        %1273 = vmatpush1.xpose.msra.mxu0 0.0
        %1274 = vmatprep.subr.mxu0 0.0
        %1275 = vmatpush1.xpose.msra.mxu0 0.0
        %1276 = vmatprep.subr.mxu0 0.0
        %1277 = vmatpush1.xpose.msra.mxu0 0.0
        %1278 = vmatprep.subr.mxu0 0.0
        %1279 = vmatpush1.xpose.msra.mxu0 0.0
        %1280 = vmatprep.subr.mxu0 0.0
        %1281 = vmatpush1.xpose.msra.mxu0 0.0
        %1282 = vmatprep.subr.mxu0 0.0
        %1283 = vmatpush1.xpose.msra.mxu0 0.0
        %1284 = vmatprep.subr.mxu0 0.0
        %1285 = vmatpush1.xpose.msra.mxu0 0.0
        %1286 = vmatprep.subr.mxu0 0.0
        %1287 = vmatpush1.xpose.msra.mxu0 0.0
        %1288 = vmatprep.subr.mxu0 0.0
        %1289 = vmatpush1.xpose.msra.mxu0 0.0
        %1290 = vmatprep.subr.mxu0 0.0
        %1291 = vmatpush1.xpose.msra.mxu0 0.0
        %1292 = vmatprep.subr.mxu0 0.0
        %1293 = vmatpush1.xpose.msra.mxu0 0.0
        %1294 = vmatprep.subr.mxu0 0.0
        %1295 = vmatpush1.xpose.msra.mxu0 0.0
        %1296 = vmatprep.subr.mxu0 0.0
        %1297 = vmatpush1.xpose.msra.mxu0 0.0
        %1298 = vmatprep.subr.mxu0 0.0
        %1299 = vmatpush1.xpose.msra.mxu0 0.0
        %1300 = vmatprep.subr.mxu0 0.0
        %1301 = vmatpush1.xpose.msra.mxu0 0.0
        %1302 = vmatprep.subr.mxu0 0.0
        %1303 = vmatpush1.xpose.msra.mxu0 0.0
        %1304 = vmatprep.subr.mxu0 0.0
        %1305 = vmatpush1.xpose.msra.mxu0 0.0
        %1306 = vmatprep.subr.mxu0 0.0
        %1307 = vmatpush1.xpose.msra.mxu0 0.0
        %1308 = vmatprep.subr.mxu0 0.0
        %1309 = vmatpush1.xpose.msra.mxu0 0.0
        %1310 = vmatprep.mubr.f32.mxu0 0.0
        %1311 = vmatmul.mubr.f32.gmra.mrb[0].mxu0 %v1241
        %v1312 = vpop.f32.mrb[0].mxu0
        %v1313 = vadd.f32 0.0, %v1312
        %v1314 = vpop.f32.mrb[0].mxu0
        %1315 = vdwg.mxu0
        %v1317 = vsel %vm1239, %v1238, 0
        %v1320 = vsel %vm1239, %v1152, 0
        %1322 = vmatprep.subr.mxu0 0.0
        %1323 = vmatpush1.xpose.msra.mxu0 %v1320
        %1324 = vmatprep.subr.mxu0 0.0
        %1325 = vmatpush1.xpose.msra.mxu0 0.0
        %1326 = vmatprep.subr.mxu0 0.0
        %1327 = vmatpush1.xpose.msra.mxu0 0.0
        %1328 = vmatprep.subr.mxu0 0.0
        %1329 = vmatpush1.xpose.msra.mxu0 0.0
        %1330 = vmatprep.subr.mxu0 0.0
        %1331 = vmatpush1.xpose.msra.mxu0 0.0
        %1332 = vmatprep.subr.mxu0 0.0
        %1333 = vmatpush1.xpose.msra.mxu0 0.0
        %1334 = vmatprep.subr.mxu0 0.0
        %1335 = vmatpush1.xpose.msra.mxu0 0.0
        %1336 = vmatprep.subr.mxu0 0.0
        %1337 = vmatpush1.xpose.msra.mxu0 0.0
        %1338 = vmatprep.subr.mxu0 0.0
        %1339 = vmatpush1.xpose.msra.mxu0 0.0
        %1340 = vmatprep.subr.mxu0 0.0
        %1341 = vmatpush1.xpose.msra.mxu0 0.0
        %1342 = vmatprep.subr.mxu0 0.0
        %1343 = vmatpush1.xpose.msra.mxu0 0.0
        %1344 = vmatprep.subr.mxu0 0.0
        %1345 = vmatpush1.xpose.msra.mxu0 0.0
        %1346 = vmatprep.subr.mxu0 0.0
        %1347 = vmatpush1.xpose.msra.mxu0 0.0
        %1348 = vmatprep.subr.mxu0 0.0
        %1349 = vmatpush1.xpose.msra.mxu0 0.0
        %1350 = vmatprep.subr.mxu0 0.0
        %1351 = vmatpush1.xpose.msra.mxu0 0.0
        %1352 = vmatprep.subr.mxu0 0.0
        %1353 = vmatpush1.xpose.msra.mxu0 0.0
        %1354 = vmatprep.subr.mxu0 0.0
        %1355 = vmatpush1.xpose.msra.mxu0 0.0
        %1356 = vmatprep.subr.mxu0 0.0
        %1357 = vmatpush1.xpose.msra.mxu0 0.0
        %1358 = vmatprep.subr.mxu0 0.0
        %1359 = vmatpush1.xpose.msra.mxu0 0.0
        %1360 = vmatprep.subr.mxu0 0.0
        %1361 = vmatpush1.xpose.msra.mxu0 0.0
        %1362 = vmatprep.subr.mxu0 0.0
        %1363 = vmatpush1.xpose.msra.mxu0 0.0
        %1364 = vmatprep.subr.mxu0 0.0
        %1365 = vmatpush1.xpose.msra.mxu0 0.0
        %1366 = vmatprep.subr.mxu0 0.0
        %1367 = vmatpush1.xpose.msra.mxu0 0.0
        %1368 = vmatprep.subr.mxu0 0.0
        %1369 = vmatpush1.xpose.msra.mxu0 0.0
        %1370 = vmatprep.subr.mxu0 0.0
        %1371 = vmatpush1.xpose.msra.mxu0 0.0
        %1372 = vmatprep.subr.mxu0 0.0
        %1373 = vmatpush1.xpose.msra.mxu0 0.0
        %1374 = vmatprep.subr.mxu0 0.0
        %1375 = vmatpush1.xpose.msra.mxu0 0.0
        %1376 = vmatprep.subr.mxu0 0.0
        %1377 = vmatpush1.xpose.msra.mxu0 0.0
        %1378 = vmatprep.subr.mxu0 0.0
        %1379 = vmatpush1.xpose.msra.mxu0 0.0
        %1380 = vmatprep.subr.mxu0 0.0
        %1381 = vmatpush1.xpose.msra.mxu0 0.0
        %1382 = vmatprep.subr.mxu0 0.0
        %1383 = vmatpush1.xpose.msra.mxu0 0.0
        %1384 = vmatprep.subr.mxu0 0.0
        %1385 = vmatpush1.xpose.msra.mxu0 0.0
        %1386 = vmatprep.mubr.f32.mxu0 0.0
        %1387 = vmatmul.mubr.f32.gmra.mrb[0].mxu0 %v1317
        %v1388 = vpop.f32.mrb[0].mxu0
        %v1389 = vadd.f32 0.0, %v1388
        %v1390 = vpop.f32.mrb[0].mxu0
        %1391 = vdwg.mxu0
        %vm1392 = vcmask 64512
        %v1393 = vsel %vm1392, %v1313, -inf
        %1394 = vmax.xlane.f32.xlu0 %v1393
        %v1395 = vpop.xlane.xlu0 %1394
        %v1396 = vsel %vm1392, %v1389, -inf
        %1397 = vmax.xlane.f32.xlu0 %v1396
        %v1398 = vpop.xlane.xlu0 %1397
        %v1399 = vsub.f32 %v1313, %v1395
        %v1400 = vsub.f32 %v1389, %v1398
        %v1401 = vmul.f32 %v1399, 1.442695
        %v1402 = vpow.pop %v1401
        %v1403 = vmul.f32 %v1400, 1.442695
        %v1404 = vpow.pop %v1403
        %v1405 = vsel %vm1392, %v1402, 0.0
        %1406 = vadd.xlane.f32.xlu0 %v1405
        %v1407 = vpop.xlane.xlu0 %1406
        %v1408 = vsel %vm1392, %v1404, 0.0
        %1409 = vadd.xlane.f32.xlu0 %v1408
        %v1410 = vpop.xlane.xlu0 %1409
        %v1411 = vrcp.pop %v1407
        %v1412 = vrcp.pop %v1410
        %v1413 = vmul.f32 %v1402, %v1411
        %v1414 = vmul.f32 %v1404, %v1412
        %v1416 = vsel %vm1392, %v1413, 0
        %1418 = vmatprep.subr.mxu0 0.0
        %1419 = vmatpush1.msra.mxu0 %v1229
        %1420 = vmatprep.subr.mxu0 0.0
        %1421 = vmatpush1.msra.mxu0 0.0
        %1422 = vmatprep.subr.mxu0 0.0
        %1423 = vmatpush1.msra.mxu0 0.0
        %1424 = vmatprep.subr.mxu0 0.0
        %1425 = vmatpush1.msra.mxu0 0.0
        %1426 = vmatprep.subr.mxu0 0.0
        %1427 = vmatpush1.msra.mxu0 0.0
        %1428 = vmatprep.subr.mxu0 0.0
        %1429 = vmatpush1.msra.mxu0 0.0
        %1430 = vmatprep.subr.mxu0 0.0
        %1431 = vmatpush1.msra.mxu0 0.0
        %1432 = vmatprep.subr.mxu0 0.0
        %1433 = vmatpush1.msra.mxu0 0.0
        %1434 = vmatprep.subr.mxu0 0.0
        %1435 = vmatpush1.msra.mxu0 0.0
        %1436 = vmatprep.subr.mxu0 0.0
        %1437 = vmatpush1.msra.mxu0 0.0
        %1438 = vmatprep.subr.mxu0 0.0
        %1439 = vmatpush1.msra.mxu0 0.0
        %1440 = vmatprep.subr.mxu0 0.0
        %1441 = vmatpush1.msra.mxu0 0.0
        %1442 = vmatprep.subr.mxu0 0.0
        %1443 = vmatpush1.msra.mxu0 0.0
        %1444 = vmatprep.subr.mxu0 0.0
        %1445 = vmatpush1.msra.mxu0 0.0
        %1446 = vmatprep.subr.mxu0 0.0
        %1447 = vmatpush1.msra.mxu0 0.0
        %1448 = vmatprep.subr.mxu0 0.0
        %1449 = vmatpush1.msra.mxu0 0.0
        %1450 = vmatprep.subr.mxu0 0.0
        %1451 = vmatpush1.msra.mxu0 0.0
        %1452 = vmatprep.subr.mxu0 0.0
        %1453 = vmatpush1.msra.mxu0 0.0
        %1454 = vmatprep.subr.mxu0 0.0
        %1455 = vmatpush1.msra.mxu0 0.0
        %1456 = vmatprep.subr.mxu0 0.0
        %1457 = vmatpush1.msra.mxu0 0.0
        %1458 = vmatprep.subr.mxu0 0.0
        %1459 = vmatpush1.msra.mxu0 0.0
        %1460 = vmatprep.subr.mxu0 0.0
        %1461 = vmatpush1.msra.mxu0 0.0
        %1462 = vmatprep.subr.mxu0 0.0
        %1463 = vmatpush1.msra.mxu0 0.0
        %1464 = vmatprep.subr.mxu0 0.0
        %1465 = vmatpush1.msra.mxu0 0.0
        %1466 = vmatprep.subr.mxu0 0.0
        %1467 = vmatpush1.msra.mxu0 0.0
        %1468 = vmatprep.subr.mxu0 0.0
        %1469 = vmatpush1.msra.mxu0 0.0
        %1470 = vmatprep.subr.mxu0 0.0
        %1471 = vmatpush1.msra.mxu0 0.0
        %1472 = vmatprep.subr.mxu0 0.0
        %1473 = vmatpush1.msra.mxu0 0.0
        %1474 = vmatprep.subr.mxu0 0.0
        %1475 = vmatpush1.msra.mxu0 0.0
        %1476 = vmatprep.subr.mxu0 0.0
        %1477 = vmatpush1.msra.mxu0 0.0
        %1478 = vmatprep.subr.mxu0 0.0
        %1479 = vmatpush1.msra.mxu0 0.0
        %1480 = vmatprep.subr.mxu0 0.0
        %1481 = vmatpush1.msra.mxu0 0.0
        %1482 = vmatprep.mubr.f32.mxu0 0.0
        %1483 = vmatmul.mubr.f32.gmra.mrb[0].mxu0 %v1416
        %v1484 = vpop.f32.mrb[0].mxu0
        %v1485 = vadd.f32 0.0, %v1484
        %v1486 = vpop.f32.mrb[0].mxu0
        %1487 = vdwg.mxu0
        %v1489 = vsel %vm1392, %v1414, 0
        %1491 = vmatprep.subr.mxu0 0.0
        %1492 = vmatpush1.msra.mxu0 %v1234
        %1493 = vmatprep.subr.mxu0 0.0
        %1494 = vmatpush1.msra.mxu0 0.0
        %1495 = vmatprep.subr.mxu0 0.0
        %1496 = vmatpush1.msra.mxu0 0.0
        %1497 = vmatprep.subr.mxu0 0.0
        %1498 = vmatpush1.msra.mxu0 0.0
        %1499 = vmatprep.subr.mxu0 0.0
        %1500 = vmatpush1.msra.mxu0 0.0
        %1501 = vmatprep.subr.mxu0 0.0
        %1502 = vmatpush1.msra.mxu0 0.0
        %1503 = vmatprep.subr.mxu0 0.0
        %1504 = vmatpush1.msra.mxu0 0.0
        %1505 = vmatprep.subr.mxu0 0.0
        %1506 = vmatpush1.msra.mxu0 0.0
        %1507 = vmatprep.subr.mxu0 0.0
        %1508 = vmatpush1.msra.mxu0 0.0
        %1509 = vmatprep.subr.mxu0 0.0
        %1510 = vmatpush1.msra.mxu0 0.0
        %1511 = vmatprep.subr.mxu0 0.0
        %1512 = vmatpush1.msra.mxu0 0.0
        %1513 = vmatprep.subr.mxu0 0.0
        %1514 = vmatpush1.msra.mxu0 0.0
        %1515 = vmatprep.subr.mxu0 0.0
        %1516 = vmatpush1.msra.mxu0 0.0
        %1517 = vmatprep.subr.mxu0 0.0
        %1518 = vmatpush1.msra.mxu0 0.0
        %1519 = vmatprep.subr.mxu0 0.0
        %1520 = vmatpush1.msra.mxu0 0.0
        %1521 = vmatprep.subr.mxu0 0.0
        %1522 = vmatpush1.msra.mxu0 0.0
        %1523 = vmatprep.subr.mxu0 0.0
        %1524 = vmatpush1.msra.mxu0 0.0
        %1525 = vmatprep.subr.mxu0 0.0
        %1526 = vmatpush1.msra.mxu0 0.0
        %1527 = vmatprep.subr.mxu0 0.0
        %1528 = vmatpush1.msra.mxu0 0.0
        %1529 = vmatprep.subr.mxu0 0.0
        %1530 = vmatpush1.msra.mxu0 0.0
        %1531 = vmatprep.subr.mxu0 0.0
        %1532 = vmatpush1.msra.mxu0 0.0
        %1533 = vmatprep.subr.mxu0 0.0
        %1534 = vmatpush1.msra.mxu0 0.0
        %1535 = vmatprep.subr.mxu0 0.0
        %1536 = vmatpush1.msra.mxu0 0.0
        %1537 = vmatprep.subr.mxu0 0.0
        %1538 = vmatpush1.msra.mxu0 0.0
        %1539 = vmatprep.subr.mxu0 0.0
        %1540 = vmatpush1.msra.mxu0 0.0
        %1541 = vmatprep.subr.mxu0 0.0
        %1542 = vmatpush1.msra.mxu0 0.0
        %1543 = vmatprep.subr.mxu0 0.0
        %1544 = vmatpush1.msra.mxu0 0.0
        %1545 = vmatprep.subr.mxu0 0.0
        %1546 = vmatpush1.msra.mxu0 0.0
        %1547 = vmatprep.subr.mxu0 0.0
        %1548 = vmatpush1.msra.mxu0 0.0
        %1549 = vmatprep.subr.mxu0 0.0
        %1550 = vmatpush1.msra.mxu0 0.0
        %1551 = vmatprep.subr.mxu0 0.0
        %1552 = vmatpush1.msra.mxu0 0.0
        %1553 = vmatprep.subr.mxu0 0.0
        %1554 = vmatpush1.msra.mxu0 0.0
        %1555 = vmatprep.mubr.f32.mxu0 0.0
        %1556 = vmatmul.mubr.f32.gmra.mrb[0].mxu0 %v1489
        %v1557 = vpop.f32.mrb[0].mxu0
        %v1558 = vadd.f32 0.0, %v1557
        %v1559 = vpop.f32.mrb[0].mxu0
        %1560 = vdwg.mxu0
        %v1561 = vld [vmem:[%s825] sm:$0xff]
        %v1562 = vld [vmem:[%s825 + $0x8] sm:$0xff]
        %s1563 = scalar_lea.vmem %s780, 16 [#allocation8]
        %v1564 = vld [vmem:[%s1563] sm:$0xff]
        %v1565 = vld [vmem:[%s1563 + $0x8] sm:$0xff]
        %v1566 = vld [vmem:[%s955 + $0x1] sm:$0x1]
        %v1567 = vlaneseq
        %v1568 = vshrl.u32 %v1567, 7
        %v1569 = vsub.s32 0, %v1568
        %v1570 = vrot.slane %v1566, %v1569
        %1571 = vmatprep.subr.mxu0 0.0
        %1572 = vmatpush1.xpose.msra.mxu0 %v1564
        %1573 = vmatprep.subr.mxu0 0.0
        %1574 = vmatpush1.xpose.msra.mxu0 %v1565
        %1575 = vmatprep.subr.mxu0 0.0
        %1576 = vmatpush1.xpose.msra.mxu0 0.0
        %1577 = vmatprep.subr.mxu0 0.0
        %1578 = vmatpush1.xpose.msra.mxu0 0.0
        %1579 = vmatprep.subr.mxu0 0.0
        %1580 = vmatpush1.xpose.msra.mxu0 0.0
        %1581 = vmatprep.subr.mxu0 0.0
        %1582 = vmatpush1.xpose.msra.mxu0 0.0
        %1583 = vmatprep.subr.mxu0 0.0
        %1584 = vmatpush1.xpose.msra.mxu0 0.0
        %1585 = vmatprep.subr.mxu0 0.0
        %1586 = vmatpush1.xpose.msra.mxu0 0.0
        %1587 = vmatprep.subr.mxu0 0.0
        %1588 = vmatpush1.xpose.msra.mxu0 0.0
        %1589 = vmatprep.subr.mxu0 0.0
        %1590 = vmatpush1.xpose.msra.mxu0 0.0
        %1591 = vmatprep.subr.mxu0 0.0
        %1592 = vmatpush1.xpose.msra.mxu0 0.0
        %1593 = vmatprep.subr.mxu0 0.0
        %1594 = vmatpush1.xpose.msra.mxu0 0.0
        %1595 = vmatprep.subr.mxu0 0.0
        %1596 = vmatpush1.xpose.msra.mxu0 0.0
        %1597 = vmatprep.subr.mxu0 0.0
        %1598 = vmatpush1.xpose.msra.mxu0 0.0
        %1599 = vmatprep.subr.mxu0 0.0
        %1600 = vmatpush1.xpose.msra.mxu0 0.0
        %1601 = vmatprep.subr.mxu0 0.0
        %1602 = vmatpush1.xpose.msra.mxu0 0.0
        %1603 = vmatprep.subr.mxu0 0.0
        %1604 = vmatpush1.xpose.msra.mxu0 0.0
        %1605 = vmatprep.subr.mxu0 0.0
        %1606 = vmatpush1.xpose.msra.mxu0 0.0
        %1607 = vmatprep.subr.mxu0 0.0
        %1608 = vmatpush1.xpose.msra.mxu0 0.0
        %1609 = vmatprep.subr.mxu0 0.0
        %1610 = vmatpush1.xpose.msra.mxu0 0.0
        %1611 = vmatprep.subr.mxu0 0.0
        %1612 = vmatpush1.xpose.msra.mxu0 0.0
        %1613 = vmatprep.subr.mxu0 0.0
        %1614 = vmatpush1.xpose.msra.mxu0 0.0
        %1615 = vmatprep.subr.mxu0 0.0
        %1616 = vmatpush1.xpose.msra.mxu0 0.0
        %1617 = vmatprep.subr.mxu0 0.0
        %1618 = vmatpush1.xpose.msra.mxu0 0.0
        %1619 = vmatprep.subr.mxu0 0.0
        %1620 = vmatpush1.xpose.msra.mxu0 0.0
        %1621 = vmatprep.subr.mxu0 0.0
        %1622 = vmatpush1.xpose.msra.mxu0 0.0
        %1623 = vmatprep.subr.mxu0 0.0
        %1624 = vmatpush1.xpose.msra.mxu0 0.0
        %1625 = vmatprep.subr.mxu0 0.0
        %1626 = vmatpush1.xpose.msra.mxu0 0.0
        %1627 = vmatprep.subr.mxu0 0.0
        %1628 = vmatpush1.xpose.msra.mxu0 0.0
        %1629 = vmatprep.subr.mxu0 0.0
        %1630 = vmatpush1.xpose.msra.mxu0 0.0
        %1631 = vmatprep.subr.mxu0 0.0
        %1632 = vmatpush1.xpose.msra.mxu0 0.0
        %1633 = vmatprep.subr.mxu0 0.0
        %1634 = vmatpush1.xpose.msra.mxu0 0.0
        %1635 = vmatprep.mubr.f32.mxu0 0.0
        %1636 = vmatmul.mubr.f32.gmra.mrb[0].mxu0 %v989
        %v1637 = vpop.f32.mrb[0].mxu0
        %v1638 = vadd.f32 %v1570, %v1637
        %v1639 = vpop.f32.mrb[0].mxu0
        %1640 = vmatprep.mubr.f32.mxu0 0.0
        %1641 = vmatmul.mubr.f32.gmra.mrb[0].mxu0 %v990
        %v1642 = vpop.f32.mrb[0].mxu0
        %v1643 = vadd.f32 %v1570, %v1642
        %v1644 = vpop.f32.mrb[0].mxu0
        %1645 = vdwg.mxu0
        %s1646 = scalar_lea.vmem %s789, 16 [#allocation9]
        %v1647 = vld [vmem:[%s1646] sm:$0xff]
        %v1648 = vld [vmem:[%s1646 + $0x8] sm:$0xff]
        %v1649 = vld [vmem:[%s807 + $0x1] sm:$0x1]
        %v1650 = vlaneseq
        %v1651 = vshrl.u32 %v1650, 7
        %v1652 = vsub.s32 0, %v1651
        %v1653 = vrot.slane %v1649, %v1652
        %1654 = vmatprep.subr.mxu0 0.0
        %1655 = vmatpush1.xpose.msra.mxu0 %v1647
        %1656 = vmatprep.subr.mxu0 0.0
        %1657 = vmatpush1.xpose.msra.mxu0 %v1648
        %1658 = vmatprep.subr.mxu0 0.0
        %1659 = vmatpush1.xpose.msra.mxu0 0.0
        %1660 = vmatprep.subr.mxu0 0.0
        %1661 = vmatpush1.xpose.msra.mxu0 0.0
        %1662 = vmatprep.subr.mxu0 0.0
        %1663 = vmatpush1.xpose.msra.mxu0 0.0
        %1664 = vmatprep.subr.mxu0 0.0
        %1665 = vmatpush1.xpose.msra.mxu0 0.0
        %1666 = vmatprep.subr.mxu0 0.0
        %1667 = vmatpush1.xpose.msra.mxu0 0.0
        %1668 = vmatprep.subr.mxu0 0.0
        %1669 = vmatpush1.xpose.msra.mxu0 0.0
        %1670 = vmatprep.subr.mxu0 0.0
        %1671 = vmatpush1.xpose.msra.mxu0 0.0
        %1672 = vmatprep.subr.mxu0 0.0
        %1673 = vmatpush1.xpose.msra.mxu0 0.0
        %1674 = vmatprep.subr.mxu0 0.0
        %1675 = vmatpush1.xpose.msra.mxu0 0.0
        %1676 = vmatprep.subr.mxu0 0.0
        %1677 = vmatpush1.xpose.msra.mxu0 0.0
        %1678 = vmatprep.subr.mxu0 0.0
        %1679 = vmatpush1.xpose.msra.mxu0 0.0
        %1680 = vmatprep.subr.mxu0 0.0
        %1681 = vmatpush1.xpose.msra.mxu0 0.0
        %1682 = vmatprep.subr.mxu0 0.0
        %1683 = vmatpush1.xpose.msra.mxu0 0.0
        %1684 = vmatprep.subr.mxu0 0.0
        %1685 = vmatpush1.xpose.msra.mxu0 0.0
        %1686 = vmatprep.subr.mxu0 0.0
        %1687 = vmatpush1.xpose.msra.mxu0 0.0
        %1688 = vmatprep.subr.mxu0 0.0
        %1689 = vmatpush1.xpose.msra.mxu0 0.0
        %1690 = vmatprep.subr.mxu0 0.0
        %1691 = vmatpush1.xpose.msra.mxu0 0.0
        %1692 = vmatprep.subr.mxu0 0.0
        %1693 = vmatpush1.xpose.msra.mxu0 0.0
        %1694 = vmatprep.subr.mxu0 0.0
        %1695 = vmatpush1.xpose.msra.mxu0 0.0
        %1696 = vmatprep.subr.mxu0 0.0
        %1697 = vmatpush1.xpose.msra.mxu0 0.0
        %1698 = vmatprep.subr.mxu0 0.0
        %1699 = vmatpush1.xpose.msra.mxu0 0.0
        %1700 = vmatprep.subr.mxu0 0.0
        %1701 = vmatpush1.xpose.msra.mxu0 0.0
        %1702 = vmatprep.subr.mxu0 0.0
        %1703 = vmatpush1.xpose.msra.mxu0 0.0
        %1704 = vmatprep.subr.mxu0 0.0
        %1705 = vmatpush1.xpose.msra.mxu0 0.0
        %1706 = vmatprep.subr.mxu0 0.0
        %1707 = vmatpush1.xpose.msra.mxu0 0.0
        %1708 = vmatprep.subr.mxu0 0.0
        %1709 = vmatpush1.xpose.msra.mxu0 0.0
        %1710 = vmatprep.subr.mxu0 0.0
        %1711 = vmatpush1.xpose.msra.mxu0 0.0
        %1712 = vmatprep.subr.mxu0 0.0
        %1713 = vmatpush1.xpose.msra.mxu0 0.0
        %1714 = vmatprep.subr.mxu0 0.0
        %1715 = vmatpush1.xpose.msra.mxu0 0.0
        %1716 = vmatprep.subr.mxu0 0.0
        %1717 = vmatpush1.xpose.msra.mxu0 0.0
        %1718 = vmatprep.mubr.f32.mxu0 0.0
        %1719 = vmatmul.mubr.f32.gmra.mrb[0].mxu0 %v989
        %v1720 = vpop.f32.mrb[0].mxu0
        %v1721 = vadd.f32 %v1653, %v1720
        %v1722 = vpop.f32.mrb[0].mxu0
        %1723 = vmatprep.mubr.f32.mxu0 0.0
        %1724 = vmatmul.mubr.f32.gmra.mrb[0].mxu0 %v990
        %v1725 = vpop.f32.mrb[0].mxu0
        %v1726 = vadd.f32 %v1653, %v1725
        %v1727 = vpop.f32.mrb[0].mxu0
        %1728 = vdwg.mxu0
        %s1729 = scalar_lea.vmem %s798, 16 [#allocation10]
        %v1730 = vld [vmem:[%s1729] sm:$0xff]
        %v1731 = vld [vmem:[%s1729 + $0x8] sm:$0xff]
        %v1732 = vld [vmem:[%s816 + $0x1] sm:$0x1]
        %v1733 = vlaneseq
        %v1734 = vshrl.u32 %v1733, 7
        %v1735 = vsub.s32 0, %v1734
        %v1736 = vrot.slane %v1732, %v1735
        %1737 = vmatprep.subr.mxu0 0.0
        %1738 = vmatpush1.xpose.msra.mxu0 %v1730
        %1739 = vmatprep.subr.mxu0 0.0
        %1740 = vmatpush1.xpose.msra.mxu0 %v1731
        %1741 = vmatprep.subr.mxu0 0.0
        %1742 = vmatpush1.xpose.msra.mxu0 0.0
        %1743 = vmatprep.subr.mxu0 0.0
        %1744 = vmatpush1.xpose.msra.mxu0 0.0
        %1745 = vmatprep.subr.mxu0 0.0
        %1746 = vmatpush1.xpose.msra.mxu0 0.0
        %1747 = vmatprep.subr.mxu0 0.0
        %1748 = vmatpush1.xpose.msra.mxu0 0.0
        %1749 = vmatprep.subr.mxu0 0.0
        %1750 = vmatpush1.xpose.msra.mxu0 0.0
        %1751 = vmatprep.subr.mxu0 0.0
        %1752 = vmatpush1.xpose.msra.mxu0 0.0
        %1753 = vmatprep.subr.mxu0 0.0
        %1754 = vmatpush1.xpose.msra.mxu0 0.0
        %1755 = vmatprep.subr.mxu0 0.0
        %1756 = vmatpush1.xpose.msra.mxu0 0.0
        %1757 = vmatprep.subr.mxu0 0.0
        %1758 = vmatpush1.xpose.msra.mxu0 0.0
        %1759 = vmatprep.subr.mxu0 0.0
        %1760 = vmatpush1.xpose.msra.mxu0 0.0
        %1761 = vmatprep.subr.mxu0 0.0
        %1762 = vmatpush1.xpose.msra.mxu0 0.0
        %1763 = vmatprep.subr.mxu0 0.0
        %1764 = vmatpush1.xpose.msra.mxu0 0.0
        %1765 = vmatprep.subr.mxu0 0.0
        %1766 = vmatpush1.xpose.msra.mxu0 0.0
        %1767 = vmatprep.subr.mxu0 0.0
        %1768 = vmatpush1.xpose.msra.mxu0 0.0
        %1769 = vmatprep.subr.mxu0 0.0
        %1770 = vmatpush1.xpose.msra.mxu0 0.0
        %1771 = vmatprep.subr.mxu0 0.0
        %1772 = vmatpush1.xpose.msra.mxu0 0.0
        %1773 = vmatprep.subr.mxu0 0.0
        %1774 = vmatpush1.xpose.msra.mxu0 0.0
        %1775 = vmatprep.subr.mxu0 0.0
        %1776 = vmatpush1.xpose.msra.mxu0 0.0
        %1777 = vmatprep.subr.mxu0 0.0
        %1778 = vmatpush1.xpose.msra.mxu0 0.0
        %1779 = vmatprep.subr.mxu0 0.0
        %1780 = vmatpush1.xpose.msra.mxu0 0.0
        %1781 = vmatprep.subr.mxu0 0.0
        %1782 = vmatpush1.xpose.msra.mxu0 0.0
        %1783 = vmatprep.subr.mxu0 0.0
        %1784 = vmatpush1.xpose.msra.mxu0 0.0
        %1785 = vmatprep.subr.mxu0 0.0
        %1786 = vmatpush1.xpose.msra.mxu0 0.0
        %1787 = vmatprep.subr.mxu0 0.0
        %1788 = vmatpush1.xpose.msra.mxu0 0.0
        %1789 = vmatprep.subr.mxu0 0.0
        %1790 = vmatpush1.xpose.msra.mxu0 0.0
        %1791 = vmatprep.subr.mxu0 0.0
        %1792 = vmatpush1.xpose.msra.mxu0 0.0
        %1793 = vmatprep.subr.mxu0 0.0
        %1794 = vmatpush1.xpose.msra.mxu0 0.0
        %1795 = vmatprep.subr.mxu0 0.0
        %1796 = vmatpush1.xpose.msra.mxu0 0.0
        %1797 = vmatprep.subr.mxu0 0.0
        %1798 = vmatpush1.xpose.msra.mxu0 0.0
        %1799 = vmatprep.subr.mxu0 0.0
        %1800 = vmatpush1.xpose.msra.mxu0 0.0
        %1801 = vmatprep.mubr.f32.mxu0 0.0
        %1802 = vmatmul.mubr.f32.gmra.mrb[0].mxu0 %v989
        %v1803 = vpop.f32.mrb[0].mxu0
        %v1804 = vadd.f32 %v1736, %v1803
        %v1805 = vpop.f32.mrb[0].mxu0
        %1806 = vmatprep.mubr.f32.mxu0 0.0
        %1807 = vmatmul.mubr.f32.gmra.mrb[0].mxu0 %v990
        %v1808 = vpop.f32.mrb[0].mxu0
        %v1809 = vadd.f32 %v1736, %v1808
        %v1810 = vpop.f32.mrb[0].mxu0
        %1811 = vdwg.mxu0
        %v1812 = vmul.f32 %v1638, 0.25
        %v1813 = vmul.f32 %v1643, 0.25
        %v1815 = vsel %vm1239, %v1812, 0
        %v1818 = vsel %vm1239, %v1721, 0
        %1820 = vmatprep.subr.mxu0 0.0
        %1821 = vmatpush1.xpose.msra.mxu0 %v1818
        %1822 = vmatprep.subr.mxu0 0.0
        %1823 = vmatpush1.xpose.msra.mxu0 0.0
        %1824 = vmatprep.subr.mxu0 0.0
        %1825 = vmatpush1.xpose.msra.mxu0 0.0
        %1826 = vmatprep.subr.mxu0 0.0
        %1827 = vmatpush1.xpose.msra.mxu0 0.0
        %1828 = vmatprep.subr.mxu0 0.0
        %1829 = vmatpush1.xpose.msra.mxu0 0.0
        %1830 = vmatprep.subr.mxu0 0.0
        %1831 = vmatpush1.xpose.msra.mxu0 0.0
        %1832 = vmatprep.subr.mxu0 0.0
        %1833 = vmatpush1.xpose.msra.mxu0 0.0
        %1834 = vmatprep.subr.mxu0 0.0
        %1835 = vmatpush1.xpose.msra.mxu0 0.0
        %1836 = vmatprep.subr.mxu0 0.0
        %1837 = vmatpush1.xpose.msra.mxu0 0.0
        %1838 = vmatprep.subr.mxu0 0.0
        %1839 = vmatpush1.xpose.msra.mxu0 0.0
        %1840 = vmatprep.subr.mxu0 0.0
        %1841 = vmatpush1.xpose.msra.mxu0 0.0
        %1842 = vmatprep.subr.mxu0 0.0
        %1843 = vmatpush1.xpose.msra.mxu0 0.0
        %1844 = vmatprep.subr.mxu0 0.0
        %1845 = vmatpush1.xpose.msra.mxu0 0.0
        %1846 = vmatprep.subr.mxu0 0.0
        %1847 = vmatpush1.xpose.msra.mxu0 0.0
        %1848 = vmatprep.subr.mxu0 0.0
        %1849 = vmatpush1.xpose.msra.mxu0 0.0
        %1850 = vmatprep.subr.mxu0 0.0
        %1851 = vmatpush1.xpose.msra.mxu0 0.0
        %1852 = vmatprep.subr.mxu0 0.0
        %1853 = vmatpush1.xpose.msra.mxu0 0.0
        %1854 = vmatprep.subr.mxu0 0.0
        %1855 = vmatpush1.xpose.msra.mxu0 0.0
        %1856 = vmatprep.subr.mxu0 0.0
        %1857 = vmatpush1.xpose.msra.mxu0 0.0
        %1858 = vmatprep.subr.mxu0 0.0
        %1859 = vmatpush1.xpose.msra.mxu0 0.0
        %1860 = vmatprep.subr.mxu0 0.0
        %1861 = vmatpush1.xpose.msra.mxu0 0.0
        %1862 = vmatprep.subr.mxu0 0.0
        %1863 = vmatpush1.xpose.msra.mxu0 0.0
        %1864 = vmatprep.subr.mxu0 0.0
        %1865 = vmatpush1.xpose.msra.mxu0 0.0
        %1866 = vmatprep.subr.mxu0 0.0
        %1867 = vmatpush1.xpose.msra.mxu0 0.0
        %1868 = vmatprep.subr.mxu0 0.0
        %1869 = vmatpush1.xpose.msra.mxu0 0.0
        %1870 = vmatprep.subr.mxu0 0.0
        %1871 = vmatpush1.xpose.msra.mxu0 0.0
        %1872 = vmatprep.subr.mxu0 0.0
        %1873 = vmatpush1.xpose.msra.mxu0 0.0
        %1874 = vmatprep.subr.mxu0 0.0
        %1875 = vmatpush1.xpose.msra.mxu0 0.0
        %1876 = vmatprep.subr.mxu0 0.0
        %1877 = vmatpush1.xpose.msra.mxu0 0.0
        %1878 = vmatprep.subr.mxu0 0.0
        %1879 = vmatpush1.xpose.msra.mxu0 0.0
        %1880 = vmatprep.subr.mxu0 0.0
        %1881 = vmatpush1.xpose.msra.mxu0 0.0
        %1882 = vmatprep.subr.mxu0 0.0
        %1883 = vmatpush1.xpose.msra.mxu0 0.0
        %1884 = vmatprep.mubr.f32.mxu0 0.0
        %1885 = vmatmul.mubr.f32.gmra.mrb[0].mxu0 %v1815
        %v1886 = vpop.f32.mrb[0].mxu0
        %v1887 = vadd.f32 0.0, %v1886
        %v1888 = vpop.f32.mrb[0].mxu0
        %1889 = vdwg.mxu0
        %v1891 = vsel %vm1239, %v1813, 0
        %v1894 = vsel %vm1239, %v1726, 0
        %1896 = vmatprep.subr.mxu0 0.0
        %1897 = vmatpush1.xpose.msra.mxu0 %v1894
        %1898 = vmatprep.subr.mxu0 0.0
        %1899 = vmatpush1.xpose.msra.mxu0 0.0
        %1900 = vmatprep.subr.mxu0 0.0
        %1901 = vmatpush1.xpose.msra.mxu0 0.0
        %1902 = vmatprep.subr.mxu0 0.0
        %1903 = vmatpush1.xpose.msra.mxu0 0.0
        %1904 = vmatprep.subr.mxu0 0.0
        %1905 = vmatpush1.xpose.msra.mxu0 0.0
        %1906 = vmatprep.subr.mxu0 0.0
        %1907 = vmatpush1.xpose.msra.mxu0 0.0
        %1908 = vmatprep.subr.mxu0 0.0
        %1909 = vmatpush1.xpose.msra.mxu0 0.0
        %1910 = vmatprep.subr.mxu0 0.0
        %1911 = vmatpush1.xpose.msra.mxu0 0.0
        %1912 = vmatprep.subr.mxu0 0.0
        %1913 = vmatpush1.xpose.msra.mxu0 0.0
        %1914 = vmatprep.subr.mxu0 0.0
        %1915 = vmatpush1.xpose.msra.mxu0 0.0
        %1916 = vmatprep.subr.mxu0 0.0
        %1917 = vmatpush1.xpose.msra.mxu0 0.0
        %1918 = vmatprep.subr.mxu0 0.0
        %1919 = vmatpush1.xpose.msra.mxu0 0.0
        %1920 = vmatprep.subr.mxu0 0.0
        %1921 = vmatpush1.xpose.msra.mxu0 0.0
        %1922 = vmatprep.subr.mxu0 0.0
        %1923 = vmatpush1.xpose.msra.mxu0 0.0
        %1924 = vmatprep.subr.mxu0 0.0
        %1925 = vmatpush1.xpose.msra.mxu0 0.0
        %1926 = vmatprep.subr.mxu0 0.0
        %1927 = vmatpush1.xpose.msra.mxu0 0.0
        %1928 = vmatprep.subr.mxu0 0.0
        %1929 = vmatpush1.xpose.msra.mxu0 0.0
        %1930 = vmatprep.subr.mxu0 0.0
        %1931 = vmatpush1.xpose.msra.mxu0 0.0
        %1932 = vmatprep.subr.mxu0 0.0
        %1933 = vmatpush1.xpose.msra.mxu0 0.0
        %1934 = vmatprep.subr.mxu0 0.0
        %1935 = vmatpush1.xpose.msra.mxu0 0.0
        %1936 = vmatprep.subr.mxu0 0.0
        %1937 = vmatpush1.xpose.msra.mxu0 0.0
        %1938 = vmatprep.subr.mxu0 0.0
        %1939 = vmatpush1.xpose.msra.mxu0 0.0
        %1940 = vmatprep.subr.mxu0 0.0
        %1941 = vmatpush1.xpose.msra.mxu0 0.0
        %1942 = vmatprep.subr.mxu0 0.0
        %1943 = vmatpush1.xpose.msra.mxu0 0.0
        %1944 = vmatprep.subr.mxu0 0.0
        %1945 = vmatpush1.xpose.msra.mxu0 0.0
        %1946 = vmatprep.subr.mxu0 0.0
        %1947 = vmatpush1.xpose.msra.mxu0 0.0
        %1948 = vmatprep.subr.mxu0 0.0
        %1949 = vmatpush1.xpose.msra.mxu0 0.0
        %1950 = vmatprep.subr.mxu0 0.0
        %1951 = vmatpush1.xpose.msra.mxu0 0.0
        %1952 = vmatprep.subr.mxu0 0.0
        %1953 = vmatpush1.xpose.msra.mxu0 0.0
        %1954 = vmatprep.subr.mxu0 0.0
        %1955 = vmatpush1.xpose.msra.mxu0 0.0
        %1956 = vmatprep.subr.mxu0 0.0
        %1957 = vmatpush1.xpose.msra.mxu0 0.0
        %1958 = vmatprep.subr.mxu0 0.0
        %1959 = vmatpush1.xpose.msra.mxu0 0.0
        %1960 = vmatprep.mubr.f32.mxu0 0.0
        %1961 = vmatmul.mubr.f32.gmra.mrb[0].mxu0 %v1891
        %v1962 = vpop.f32.mrb[0].mxu0
        %v1963 = vadd.f32 0.0, %v1962
        %v1964 = vpop.f32.mrb[0].mxu0
        %1965 = vdwg.mxu0
        %v1966 = vsel %vm1392, %v1887, -inf
        %1967 = vmax.xlane.f32.xlu0 %v1966
        %v1968 = vpop.xlane.xlu0 %1967
        %v1969 = vsel %vm1392, %v1963, -inf
        %1970 = vmax.xlane.f32.xlu0 %v1969
        %v1971 = vpop.xlane.xlu0 %1970
        %v1972 = vsub.f32 %v1887, %v1968
        %v1973 = vsub.f32 %v1963, %v1971
        %v1974 = vmul.f32 %v1972, 1.442695
        %v1975 = vpow.pop %v1974
        %v1976 = vmul.f32 %v1973, 1.442695
        %v1977 = vpow.pop %v1976
        %v1978 = vsel %vm1392, %v1975, 0.0
        %1979 = vadd.xlane.f32.xlu0 %v1978
        %v1980 = vpop.xlane.xlu0 %1979
        %v1981 = vsel %vm1392, %v1977, 0.0
        %1982 = vadd.xlane.f32.xlu0 %v1981
        %v1983 = vpop.xlane.xlu0 %1982
        %v1984 = vrcp.pop %v1980
        %v1985 = vrcp.pop %v1983
        %v1986 = vmul.f32 %v1975, %v1984
        %v1987 = vmul.f32 %v1977, %v1985
        %v1989 = vsel %vm1392, %v1986, 0
        %1991 = vmatprep.subr.mxu0 0.0
        %1992 = vmatpush1.msra.mxu0 %v1804
        %1993 = vmatprep.subr.mxu0 0.0
        %1994 = vmatpush1.msra.mxu0 0.0
        %1995 = vmatprep.subr.mxu0 0.0
        %1996 = vmatpush1.msra.mxu0 0.0
        %1997 = vmatprep.subr.mxu0 0.0
        %1998 = vmatpush1.msra.mxu0 0.0
        %1999 = vmatprep.subr.mxu0 0.0
        %2000 = vmatpush1.msra.mxu0 0.0
        %2001 = vmatprep.subr.mxu0 0.0
        %2002 = vmatpush1.msra.mxu0 0.0
        %2003 = vmatprep.subr.mxu0 0.0
        %2004 = vmatpush1.msra.mxu0 0.0
        %2005 = vmatprep.subr.mxu0 0.0
        %2006 = vmatpush1.msra.mxu0 0.0
        %2007 = vmatprep.subr.mxu0 0.0
        %2008 = vmatpush1.msra.mxu0 0.0
        %2009 = vmatprep.subr.mxu0 0.0
        %2010 = vmatpush1.msra.mxu0 0.0
        %2011 = vmatprep.subr.mxu0 0.0
        %2012 = vmatpush1.msra.mxu0 0.0
        %2013 = vmatprep.subr.mxu0 0.0
        %2014 = vmatpush1.msra.mxu0 0.0
        %2015 = vmatprep.subr.mxu0 0.0
        %2016 = vmatpush1.msra.mxu0 0.0
        %2017 = vmatprep.subr.mxu0 0.0
        %2018 = vmatpush1.msra.mxu0 0.0
        %2019 = vmatprep.subr.mxu0 0.0
        %2020 = vmatpush1.msra.mxu0 0.0
        %2021 = vmatprep.subr.mxu0 0.0
        %2022 = vmatpush1.msra.mxu0 0.0
        %2023 = vmatprep.subr.mxu0 0.0
        %2024 = vmatpush1.msra.mxu0 0.0
        %2025 = vmatprep.subr.mxu0 0.0
        %2026 = vmatpush1.msra.mxu0 0.0
        %2027 = vmatprep.subr.mxu0 0.0
        %2028 = vmatpush1.msra.mxu0 0.0
        %2029 = vmatprep.subr.mxu0 0.0
        %2030 = vmatpush1.msra.mxu0 0.0
        %2031 = vmatprep.subr.mxu0 0.0
        %2032 = vmatpush1.msra.mxu0 0.0
        %2033 = vmatprep.subr.mxu0 0.0
        %2034 = vmatpush1.msra.mxu0 0.0
        %2035 = vmatprep.subr.mxu0 0.0
        %2036 = vmatpush1.msra.mxu0 0.0
        %2037 = vmatprep.subr.mxu0 0.0
        %2038 = vmatpush1.msra.mxu0 0.0
        %2039 = vmatprep.subr.mxu0 0.0
        %2040 = vmatpush1.msra.mxu0 0.0
        %2041 = vmatprep.subr.mxu0 0.0
        %2042 = vmatpush1.msra.mxu0 0.0
        %2043 = vmatprep.subr.mxu0 0.0
        %2044 = vmatpush1.msra.mxu0 0.0
        %2045 = vmatprep.subr.mxu0 0.0
        %2046 = vmatpush1.msra.mxu0 0.0
        %2047 = vmatprep.subr.mxu0 0.0
        %2048 = vmatpush1.msra.mxu0 0.0
        %2049 = vmatprep.subr.mxu0 0.0
        %2050 = vmatpush1.msra.mxu0 0.0
        %2051 = vmatprep.subr.mxu0 0.0
        %2052 = vmatpush1.msra.mxu0 0.0
        %2053 = vmatprep.subr.mxu0 0.0
        %2054 = vmatpush1.msra.mxu0 0.0
        %2055 = vmatprep.mubr.f32.mxu0 0.0
        %2056 = vmatmul.mubr.f32.gmra.mrb[0].mxu0 %v1989
        %v2057 = vpop.f32.mrb[0].mxu0
        %v2058 = vadd.f32 0.0, %v2057
        %v2059 = vpop.f32.mrb[0].mxu0
        %2060 = vdwg.mxu0
        %v2062 = vsel %vm1392, %v1987, 0
        %2064 = vmatprep.subr.mxu0 0.0
        %2065 = vmatpush1.msra.mxu0 %v1809
        %2066 = vmatprep.subr.mxu0 0.0
        %2067 = vmatpush1.msra.mxu0 0.0
        %2068 = vmatprep.subr.mxu0 0.0
        %2069 = vmatpush1.msra.mxu0 0.0
        %2070 = vmatprep.subr.mxu0 0.0
        %2071 = vmatpush1.msra.mxu0 0.0
        %2072 = vmatprep.subr.mxu0 0.0
        %2073 = vmatpush1.msra.mxu0 0.0
        %2074 = vmatprep.subr.mxu0 0.0
        %2075 = vmatpush1.msra.mxu0 0.0
        %2076 = vmatprep.subr.mxu0 0.0
        %2077 = vmatpush1.msra.mxu0 0.0
        %2078 = vmatprep.subr.mxu0 0.0
        %2079 = vmatpush1.msra.mxu0 0.0
        %2080 = vmatprep.subr.mxu0 0.0
        %2081 = vmatpush1.msra.mxu0 0.0
        %2082 = vmatprep.subr.mxu0 0.0
        %2083 = vmatpush1.msra.mxu0 0.0
        %2084 = vmatprep.subr.mxu0 0.0
        %2085 = vmatpush1.msra.mxu0 0.0
        %2086 = vmatprep.subr.mxu0 0.0
        %2087 = vmatpush1.msra.mxu0 0.0
        %2088 = vmatprep.subr.mxu0 0.0
        %2089 = vmatpush1.msra.mxu0 0.0
        %2090 = vmatprep.subr.mxu0 0.0
        %2091 = vmatpush1.msra.mxu0 0.0
        %2092 = vmatprep.subr.mxu0 0.0
        %2093 = vmatpush1.msra.mxu0 0.0
        %2094 = vmatprep.subr.mxu0 0.0
        %2095 = vmatpush1.msra.mxu0 0.0
        %2096 = vmatprep.subr.mxu0 0.0
        %2097 = vmatpush1.msra.mxu0 0.0
        %2098 = vmatprep.subr.mxu0 0.0
        %2099 = vmatpush1.msra.mxu0 0.0
        %2100 = vmatprep.subr.mxu0 0.0
        %2101 = vmatpush1.msra.mxu0 0.0
        %2102 = vmatprep.subr.mxu0 0.0
        %2103 = vmatpush1.msra.mxu0 0.0
        %2104 = vmatprep.subr.mxu0 0.0
        %2105 = vmatpush1.msra.mxu0 0.0
        %2106 = vmatprep.subr.mxu0 0.0
        %2107 = vmatpush1.msra.mxu0 0.0
        %2108 = vmatprep.subr.mxu0 0.0
        %2109 = vmatpush1.msra.mxu0 0.0
        %2110 = vmatprep.subr.mxu0 0.0
        %2111 = vmatpush1.msra.mxu0 0.0
        %2112 = vmatprep.subr.mxu0 0.0
        %2113 = vmatpush1.msra.mxu0 0.0
        %2114 = vmatprep.subr.mxu0 0.0
        %2115 = vmatpush1.msra.mxu0 0.0
        %2116 = vmatprep.subr.mxu0 0.0
        %2117 = vmatpush1.msra.mxu0 0.0
        %2118 = vmatprep.subr.mxu0 0.0
        %2119 = vmatpush1.msra.mxu0 0.0
        %2120 = vmatprep.subr.mxu0 0.0
        %2121 = vmatpush1.msra.mxu0 0.0
        %2122 = vmatprep.subr.mxu0 0.0
        %2123 = vmatpush1.msra.mxu0 0.0
        %2124 = vmatprep.subr.mxu0 0.0
        %2125 = vmatpush1.msra.mxu0 0.0
        %2126 = vmatprep.subr.mxu0 0.0
        %2127 = vmatpush1.msra.mxu0 0.0
        %2128 = vmatprep.mubr.f32.mxu0 0.0
        %2129 = vmatmul.mubr.f32.gmra.mrb[0].mxu0 %v2062
        %v2130 = vpop.f32.mrb[0].mxu0
        %v2131 = vadd.f32 0.0, %v2130
        %v2132 = vpop.f32.mrb[0].mxu0
        %2133 = vdwg.mxu0
        %s2134 = scalar_lea.vmem %s825, 16 [#allocation13]
        %v2135 = vld [vmem:[%s2134] sm:$0xff]
        %v2136 = vld [vmem:[%s2134 + $0x8] sm:$0xff]
        %v2138 = vsel %vm1239, %v2058, 0
        %v2141 = vsel %vm1239, %v2131, 0
        %2143 = vmatprep.subr.mxu0 0.0
        %2144 = vmatpush1.msra.mxu0 %v2135
        %2145 = vmatprep.subr.mxu0 0.0
        %2146 = vmatpush1.msra.mxu0 %v2136
        %2147 = vmatprep.subr.mxu0 0.0
        %2148 = vmatpush1.msra.mxu0 0.0
        %2149 = vmatprep.subr.mxu0 0.0
        %2150 = vmatpush1.msra.mxu0 0.0
        %2151 = vmatprep.subr.mxu0 0.0
        %2152 = vmatpush1.msra.mxu0 0.0
        %2153 = vmatprep.subr.mxu0 0.0
        %2154 = vmatpush1.msra.mxu0 0.0
        %2155 = vmatprep.subr.mxu0 0.0
        %2156 = vmatpush1.msra.mxu0 0.0
        %2157 = vmatprep.subr.mxu0 0.0
        %2158 = vmatpush1.msra.mxu0 0.0
        %2159 = vmatprep.subr.mxu0 0.0
        %2160 = vmatpush1.msra.mxu0 0.0
        %2161 = vmatprep.subr.mxu0 0.0
        %2162 = vmatpush1.msra.mxu0 0.0
        %2163 = vmatprep.subr.mxu0 0.0
        %2164 = vmatpush1.msra.mxu0 0.0
        %2165 = vmatprep.subr.mxu0 0.0
        %2166 = vmatpush1.msra.mxu0 0.0
        %2167 = vmatprep.subr.mxu0 0.0
        %2168 = vmatpush1.msra.mxu0 0.0
        %2169 = vmatprep.subr.mxu0 0.0
        %2170 = vmatpush1.msra.mxu0 0.0
        %2171 = vmatprep.subr.mxu0 0.0
        %2172 = vmatpush1.msra.mxu0 0.0
        %2173 = vmatprep.subr.mxu0 0.0
        %2174 = vmatpush1.msra.mxu0 0.0
        %2175 = vmatprep.subr.mxu0 0.0
        %2176 = vmatpush1.msra.mxu0 0.0
        %2177 = vmatprep.subr.mxu0 0.0
        %2178 = vmatpush1.msra.mxu0 0.0
        %2179 = vmatprep.subr.mxu0 0.0
        %2180 = vmatpush1.msra.mxu0 0.0
        %2181 = vmatprep.subr.mxu0 0.0
        %2182 = vmatpush1.msra.mxu0 0.0
        %2183 = vmatprep.subr.mxu0 0.0
        %2184 = vmatpush1.msra.mxu0 0.0
        %2185 = vmatprep.subr.mxu0 0.0
        %2186 = vmatpush1.msra.mxu0 0.0
        %2187 = vmatprep.subr.mxu0 0.0
        %2188 = vmatpush1.msra.mxu0 0.0
        %2189 = vmatprep.subr.mxu0 0.0
        %2190 = vmatpush1.msra.mxu0 0.0
        %2191 = vmatprep.subr.mxu0 0.0
        %2192 = vmatpush1.msra.mxu0 0.0
        %2193 = vmatprep.subr.mxu0 0.0
        %2194 = vmatpush1.msra.mxu0 0.0
        %2195 = vmatprep.subr.mxu0 0.0
        %2196 = vmatpush1.msra.mxu0 0.0
        %2197 = vmatprep.subr.mxu0 0.0
        %2198 = vmatpush1.msra.mxu0 0.0
        %2199 = vmatprep.subr.mxu0 0.0
        %2200 = vmatpush1.msra.mxu0 0.0
        %2201 = vmatprep.subr.mxu0 0.0
        %2202 = vmatpush1.msra.mxu0 0.0
        %2203 = vmatprep.subr.mxu0 0.0
        %2204 = vmatpush1.msra.mxu0 0.0
        %2205 = vmatprep.subr.mxu0 0.0
        %2206 = vmatpush1.msra.mxu0 0.0
        %2207 = vmatprep.mubr.f32.mxu0 0.0
        %2208 = vmatmul.mubr.f32.gmra.mrb[0].mxu0 %v2138
        %v2209 = vpop.f32.mrb[0].mxu0
        %v2210 = vadd.f32 0.0, %v2209
        %v2211 = vpop.f32.mrb[0].mxu0
        %2212 = vmatprep.mubr.f32.mxu0 0.0
        %2213 = vmatmul.mubr.f32.gmra.mrb[0].mxu0 %v2141
        %v2214 = vpop.f32.mrb[0].mxu0
        %v2215 = vadd.f32 0.0, %v2214
        %v2216 = vpop.f32.mrb[0].mxu0
        %2217 = vdwg.mxu0
        %v2219 = vsel %vm1239, %v1485, 0
        %v2222 = vsel %vm1239, %v1558, 0
        %2224 = vmatprep.subr.mxu0 0.0
        %2225 = vmatpush1.msra.mxu0 %v1561
        %2226 = vmatprep.subr.mxu0 0.0
        %2227 = vmatpush1.msra.mxu0 %v1562
        %2228 = vmatprep.subr.mxu0 0.0
        %2229 = vmatpush1.msra.mxu0 0.0
        %2230 = vmatprep.subr.mxu0 0.0
        %2231 = vmatpush1.msra.mxu0 0.0
        %2232 = vmatprep.subr.mxu0 0.0
        %2233 = vmatpush1.msra.mxu0 0.0
        %2234 = vmatprep.subr.mxu0 0.0
        %2235 = vmatpush1.msra.mxu0 0.0
        %2236 = vmatprep.subr.mxu0 0.0
        %2237 = vmatpush1.msra.mxu0 0.0
        %2238 = vmatprep.subr.mxu0 0.0
        %2239 = vmatpush1.msra.mxu0 0.0
        %2240 = vmatprep.subr.mxu0 0.0
        %2241 = vmatpush1.msra.mxu0 0.0
        %2242 = vmatprep.subr.mxu0 0.0
        %2243 = vmatpush1.msra.mxu0 0.0
        %2244 = vmatprep.subr.mxu0 0.0
        %2245 = vmatpush1.msra.mxu0 0.0
        %2246 = vmatprep.subr.mxu0 0.0
        %2247 = vmatpush1.msra.mxu0 0.0
        %2248 = vmatprep.subr.mxu0 0.0
        %2249 = vmatpush1.msra.mxu0 0.0
        %2250 = vmatprep.subr.mxu0 0.0
        %2251 = vmatpush1.msra.mxu0 0.0
        %2252 = vmatprep.subr.mxu0 0.0
        %2253 = vmatpush1.msra.mxu0 0.0
        %2254 = vmatprep.subr.mxu0 0.0
        %2255 = vmatpush1.msra.mxu0 0.0
        %2256 = vmatprep.subr.mxu0 0.0
        %2257 = vmatpush1.msra.mxu0 0.0
        %2258 = vmatprep.subr.mxu0 0.0
        %2259 = vmatpush1.msra.mxu0 0.0
        %2260 = vmatprep.subr.mxu0 0.0
        %2261 = vmatpush1.msra.mxu0 0.0
        %2262 = vmatprep.subr.mxu0 0.0
        %2263 = vmatpush1.msra.mxu0 0.0
        %2264 = vmatprep.subr.mxu0 0.0
        %2265 = vmatpush1.msra.mxu0 0.0
        %2266 = vmatprep.subr.mxu0 0.0
        %2267 = vmatpush1.msra.mxu0 0.0
        %2268 = vmatprep.subr.mxu0 0.0
        %2269 = vmatpush1.msra.mxu0 0.0
        %2270 = vmatprep.subr.mxu0 0.0
        %2271 = vmatpush1.msra.mxu0 0.0
        %2272 = vmatprep.subr.mxu0 0.0
        %2273 = vmatpush1.msra.mxu0 0.0
        %2274 = vmatprep.subr.mxu0 0.0
        %2275 = vmatpush1.msra.mxu0 0.0
        %2276 = vmatprep.subr.mxu0 0.0
        %2277 = vmatpush1.msra.mxu0 0.0
        %2278 = vmatprep.subr.mxu0 0.0
        %2279 = vmatpush1.msra.mxu0 0.0
        %2280 = vmatprep.subr.mxu0 0.0
        %2281 = vmatpush1.msra.mxu0 0.0
        %2282 = vmatprep.subr.mxu0 0.0
        %2283 = vmatpush1.msra.mxu0 0.0
        %2284 = vmatprep.subr.mxu0 0.0
        %2285 = vmatpush1.msra.mxu0 0.0
        %2286 = vmatprep.subr.mxu0 0.0
        %2287 = vmatpush1.msra.mxu0 0.0
        %2288 = vmatprep.mubr.f32.mxu0 0.0
        %2289 = vmatmul.mubr.f32.gmra.mrb[0].mxu0 %v2219
        %v2290 = vpop.f32.mrb[0].mxu0
        %v2291 = vadd.f32 %v2210, %v2290
        %v2292 = vpop.f32.mrb[0].mxu0
        %2293 = vmatprep.mubr.f32.mxu0 0.0
        %2294 = vmatmul.mubr.f32.gmra.mrb[0].mxu0 %v2222
        %v2295 = vpop.f32.mrb[0].mxu0
        %v2296 = vadd.f32 %v2215, %v2295
        %v2297 = vpop.f32.mrb[0].mxu0
        %2298 = vdwg.mxu0
        %s2299 = scalar_lea.vmem %s780, 32 [#allocation8]
        %v2300 = vld [vmem:[%s2299] sm:$0xff]
        %v2301 = vld [vmem:[%s2299 + $0x8] sm:$0xff]
        %v2302 = vld [vmem:[%s955 + $0x2] sm:$0x1]
        %v2303 = vlaneseq
        %v2304 = vshrl.u32 %v2303, 7
        %v2305 = vsub.s32 0, %v2304
        %v2306 = vrot.slane %v2302, %v2305
        %2307 = vmatprep.subr.mxu0 0.0
        %2308 = vmatpush1.xpose.msra.mxu0 %v2300
        %2309 = vmatprep.subr.mxu0 0.0
        %2310 = vmatpush1.xpose.msra.mxu0 %v2301
        %2311 = vmatprep.subr.mxu0 0.0
        %2312 = vmatpush1.xpose.msra.mxu0 0.0
        %2313 = vmatprep.subr.mxu0 0.0
        %2314 = vmatpush1.xpose.msra.mxu0 0.0
        %2315 = vmatprep.subr.mxu0 0.0
        %2316 = vmatpush1.xpose.msra.mxu0 0.0
        %2317 = vmatprep.subr.mxu0 0.0
        %2318 = vmatpush1.xpose.msra.mxu0 0.0
        %2319 = vmatprep.subr.mxu0 0.0
        %2320 = vmatpush1.xpose.msra.mxu0 0.0
        %2321 = vmatprep.subr.mxu0 0.0
        %2322 = vmatpush1.xpose.msra.mxu0 0.0
        %2323 = vmatprep.subr.mxu0 0.0
        %2324 = vmatpush1.xpose.msra.mxu0 0.0
        %2325 = vmatprep.subr.mxu0 0.0
        %2326 = vmatpush1.xpose.msra.mxu0 0.0
        %2327 = vmatprep.subr.mxu0 0.0
        %2328 = vmatpush1.xpose.msra.mxu0 0.0
        %2329 = vmatprep.subr.mxu0 0.0
        %2330 = vmatpush1.xpose.msra.mxu0 0.0
        %2331 = vmatprep.subr.mxu0 0.0
        %2332 = vmatpush1.xpose.msra.mxu0 0.0
        %2333 = vmatprep.subr.mxu0 0.0
        %2334 = vmatpush1.xpose.msra.mxu0 0.0
        %2335 = vmatprep.subr.mxu0 0.0
        %2336 = vmatpush1.xpose.msra.mxu0 0.0
        %2337 = vmatprep.subr.mxu0 0.0
        %2338 = vmatpush1.xpose.msra.mxu0 0.0
        %2339 = vmatprep.subr.mxu0 0.0
        %2340 = vmatpush1.xpose.msra.mxu0 0.0
        %2341 = vmatprep.subr.mxu0 0.0
        %2342 = vmatpush1.xpose.msra.mxu0 0.0
        %2343 = vmatprep.subr.mxu0 0.0
        %2344 = vmatpush1.xpose.msra.mxu0 0.0
        %2345 = vmatprep.subr.mxu0 0.0
        %2346 = vmatpush1.xpose.msra.mxu0 0.0
        %2347 = vmatprep.subr.mxu0 0.0
        %2348 = vmatpush1.xpose.msra.mxu0 0.0
        %2349 = vmatprep.subr.mxu0 0.0
        %2350 = vmatpush1.xpose.msra.mxu0 0.0
        %2351 = vmatprep.subr.mxu0 0.0
        %2352 = vmatpush1.xpose.msra.mxu0 0.0
        %2353 = vmatprep.subr.mxu0 0.0
        %2354 = vmatpush1.xpose.msra.mxu0 0.0
        %2355 = vmatprep.subr.mxu0 0.0
        %2356 = vmatpush1.xpose.msra.mxu0 0.0
        %2357 = vmatprep.subr.mxu0 0.0
        %2358 = vmatpush1.xpose.msra.mxu0 0.0
        %2359 = vmatprep.subr.mxu0 0.0
        %2360 = vmatpush1.xpose.msra.mxu0 0.0
        %2361 = vmatprep.subr.mxu0 0.0
        %2362 = vmatpush1.xpose.msra.mxu0 0.0
        %2363 = vmatprep.subr.mxu0 0.0
        %2364 = vmatpush1.xpose.msra.mxu0 0.0
        %2365 = vmatprep.subr.mxu0 0.0
        %2366 = vmatpush1.xpose.msra.mxu0 0.0
        %2367 = vmatprep.subr.mxu0 0.0
        %2368 = vmatpush1.xpose.msra.mxu0 0.0
        %2369 = vmatprep.subr.mxu0 0.0
        %2370 = vmatpush1.xpose.msra.mxu0 0.0
        %2371 = vmatprep.mubr.f32.mxu0 0.0
        %2372 = vmatmul.mubr.f32.gmra.mrb[0].mxu0 %v989
        %v2373 = vpop.f32.mrb[0].mxu0
        %v2374 = vadd.f32 %v2306, %v2373
        %v2375 = vpop.f32.mrb[0].mxu0
        %2376 = vmatprep.mubr.f32.mxu0 0.0
        %2377 = vmatmul.mubr.f32.gmra.mrb[0].mxu0 %v990
        %v2378 = vpop.f32.mrb[0].mxu0
        %v2379 = vadd.f32 %v2306, %v2378
        %v2380 = vpop.f32.mrb[0].mxu0
        %2381 = vdwg.mxu0
        %s2382 = scalar_lea.vmem %s789, 32 [#allocation9]
        %v2383 = vld [vmem:[%s2382] sm:$0xff]
        %v2384 = vld [vmem:[%s2382 + $0x8] sm:$0xff]
        %v2385 = vld [vmem:[%s807 + $0x2] sm:$0x1]
        %v2386 = vlaneseq
        %v2387 = vshrl.u32 %v2386, 7
        %v2388 = vsub.s32 0, %v2387
        %v2389 = vrot.slane %v2385, %v2388
        %2390 = vmatprep.subr.mxu0 0.0
        %2391 = vmatpush1.xpose.msra.mxu0 %v2383
        %2392 = vmatprep.subr.mxu0 0.0
        %2393 = vmatpush1.xpose.msra.mxu0 %v2384
        %2394 = vmatprep.subr.mxu0 0.0
        %2395 = vmatpush1.xpose.msra.mxu0 0.0
        %2396 = vmatprep.subr.mxu0 0.0
        %2397 = vmatpush1.xpose.msra.mxu0 0.0
        %2398 = vmatprep.subr.mxu0 0.0
        %2399 = vmatpush1.xpose.msra.mxu0 0.0
        %2400 = vmatprep.subr.mxu0 0.0
        %2401 = vmatpush1.xpose.msra.mxu0 0.0
        %2402 = vmatprep.subr.mxu0 0.0
        %2403 = vmatpush1.xpose.msra.mxu0 0.0
        %2404 = vmatprep.subr.mxu0 0.0
        %2405 = vmatpush1.xpose.msra.mxu0 0.0
        %2406 = vmatprep.subr.mxu0 0.0
        %2407 = vmatpush1.xpose.msra.mxu0 0.0
        %2408 = vmatprep.subr.mxu0 0.0
        %2409 = vmatpush1.xpose.msra.mxu0 0.0
        %2410 = vmatprep.subr.mxu0 0.0
        %2411 = vmatpush1.xpose.msra.mxu0 0.0
        %2412 = vmatprep.subr.mxu0 0.0
        %2413 = vmatpush1.xpose.msra.mxu0 0.0
        %2414 = vmatprep.subr.mxu0 0.0
        %2415 = vmatpush1.xpose.msra.mxu0 0.0
        %2416 = vmatprep.subr.mxu0 0.0
        %2417 = vmatpush1.xpose.msra.mxu0 0.0
        %2418 = vmatprep.subr.mxu0 0.0
        %2419 = vmatpush1.xpose.msra.mxu0 0.0
        %2420 = vmatprep.subr.mxu0 0.0
        %2421 = vmatpush1.xpose.msra.mxu0 0.0
        %2422 = vmatprep.subr.mxu0 0.0
        %2423 = vmatpush1.xpose.msra.mxu0 0.0
        %2424 = vmatprep.subr.mxu0 0.0
        %2425 = vmatpush1.xpose.msra.mxu0 0.0
        %2426 = vmatprep.subr.mxu0 0.0
        %2427 = vmatpush1.xpose.msra.mxu0 0.0
        %2428 = vmatprep.subr.mxu0 0.0
        %2429 = vmatpush1.xpose.msra.mxu0 0.0
        %2430 = vmatprep.subr.mxu0 0.0
        %2431 = vmatpush1.xpose.msra.mxu0 0.0
        %2432 = vmatprep.subr.mxu0 0.0
        %2433 = vmatpush1.xpose.msra.mxu0 0.0
        %2434 = vmatprep.subr.mxu0 0.0
        %2435 = vmatpush1.xpose.msra.mxu0 0.0
        %2436 = vmatprep.subr.mxu0 0.0
        %2437 = vmatpush1.xpose.msra.mxu0 0.0
        %2438 = vmatprep.subr.mxu0 0.0
        %2439 = vmatpush1.xpose.msra.mxu0 0.0
        %2440 = vmatprep.subr.mxu0 0.0
        %2441 = vmatpush1.xpose.msra.mxu0 0.0
        %2442 = vmatprep.subr.mxu0 0.0
        %2443 = vmatpush1.xpose.msra.mxu0 0.0
        %2444 = vmatprep.subr.mxu0 0.0
        %2445 = vmatpush1.xpose.msra.mxu0 0.0
        %2446 = vmatprep.subr.mxu0 0.0
        %2447 = vmatpush1.xpose.msra.mxu0 0.0
        %2448 = vmatprep.subr.mxu0 0.0
        %2449 = vmatpush1.xpose.msra.mxu0 0.0
        %2450 = vmatprep.subr.mxu0 0.0
        %2451 = vmatpush1.xpose.msra.mxu0 0.0
        %2452 = vmatprep.subr.mxu0 0.0
        %2453 = vmatpush1.xpose.msra.mxu0 0.0
        %2454 = vmatprep.mubr.f32.mxu0 0.0
        %2455 = vmatmul.mubr.f32.gmra.mrb[0].mxu0 %v989
        %v2456 = vpop.f32.mrb[0].mxu0
        %v2457 = vadd.f32 %v2389, %v2456
        %v2458 = vpop.f32.mrb[0].mxu0
        %2459 = vmatprep.mubr.f32.mxu0 0.0
        %2460 = vmatmul.mubr.f32.gmra.mrb[0].mxu0 %v990
        %v2461 = vpop.f32.mrb[0].mxu0
        %v2462 = vadd.f32 %v2389, %v2461
        %v2463 = vpop.f32.mrb[0].mxu0
        %2464 = vdwg.mxu0
        %s2465 = scalar_lea.vmem %s798, 32 [#allocation10]
        %v2466 = vld [vmem:[%s2465] sm:$0xff]
        %v2467 = vld [vmem:[%s2465 + $0x8] sm:$0xff]
        %v2468 = vld [vmem:[%s816 + $0x2] sm:$0x1]
        %v2469 = vlaneseq
        %v2470 = vshrl.u32 %v2469, 7
        %v2471 = vsub.s32 0, %v2470
        %v2472 = vrot.slane %v2468, %v2471
        %2473 = vmatprep.subr.mxu0 0.0
        %2474 = vmatpush1.xpose.msra.mxu0 %v2466
        %2475 = vmatprep.subr.mxu0 0.0
        %2476 = vmatpush1.xpose.msra.mxu0 %v2467
        %2477 = vmatprep.subr.mxu0 0.0
        %2478 = vmatpush1.xpose.msra.mxu0 0.0
        %2479 = vmatprep.subr.mxu0 0.0
        %2480 = vmatpush1.xpose.msra.mxu0 0.0
        %2481 = vmatprep.subr.mxu0 0.0
        %2482 = vmatpush1.xpose.msra.mxu0 0.0
        %2483 = vmatprep.subr.mxu0 0.0
        %2484 = vmatpush1.xpose.msra.mxu0 0.0
        %2485 = vmatprep.subr.mxu0 0.0
        %2486 = vmatpush1.xpose.msra.mxu0 0.0
        %2487 = vmatprep.subr.mxu0 0.0
        %2488 = vmatpush1.xpose.msra.mxu0 0.0
        %2489 = vmatprep.subr.mxu0 0.0
        %2490 = vmatpush1.xpose.msra.mxu0 0.0
        %2491 = vmatprep.subr.mxu0 0.0
        %2492 = vmatpush1.xpose.msra.mxu0 0.0
        %2493 = vmatprep.subr.mxu0 0.0
        %2494 = vmatpush1.xpose.msra.mxu0 0.0
        %2495 = vmatprep.subr.mxu0 0.0
        %2496 = vmatpush1.xpose.msra.mxu0 0.0
        %2497 = vmatprep.subr.mxu0 0.0
        %2498 = vmatpush1.xpose.msra.mxu0 0.0
        %2499 = vmatprep.subr.mxu0 0.0
        %2500 = vmatpush1.xpose.msra.mxu0 0.0
        %2501 = vmatprep.subr.mxu0 0.0
        %2502 = vmatpush1.xpose.msra.mxu0 0.0
        %2503 = vmatprep.subr.mxu0 0.0
        %2504 = vmatpush1.xpose.msra.mxu0 0.0
        %2505 = vmatprep.subr.mxu0 0.0
        %2506 = vmatpush1.xpose.msra.mxu0 0.0
        %2507 = vmatprep.subr.mxu0 0.0
        %2508 = vmatpush1.xpose.msra.mxu0 0.0
        %2509 = vmatprep.subr.mxu0 0.0
        %2510 = vmatpush1.xpose.msra.mxu0 0.0
        %2511 = vmatprep.subr.mxu0 0.0
        %2512 = vmatpush1.xpose.msra.mxu0 0.0
        %2513 = vmatprep.subr.mxu0 0.0
        %2514 = vmatpush1.xpose.msra.mxu0 0.0
        %2515 = vmatprep.subr.mxu0 0.0
        %2516 = vmatpush1.xpose.msra.mxu0 0.0
        %2517 = vmatprep.subr.mxu0 0.0
        %2518 = vmatpush1.xpose.msra.mxu0 0.0
        %2519 = vmatprep.subr.mxu0 0.0
        %2520 = vmatpush1.xpose.msra.mxu0 0.0
        %2521 = vmatprep.subr.mxu0 0.0
        %2522 = vmatpush1.xpose.msra.mxu0 0.0
        %2523 = vmatprep.subr.mxu0 0.0
        %2524 = vmatpush1.xpose.msra.mxu0 0.0
        %2525 = vmatprep.subr.mxu0 0.0
        %2526 = vmatpush1.xpose.msra.mxu0 0.0
        %2527 = vmatprep.subr.mxu0 0.0
        %2528 = vmatpush1.xpose.msra.mxu0 0.0
        %2529 = vmatprep.subr.mxu0 0.0
        %2530 = vmatpush1.xpose.msra.mxu0 0.0
        %2531 = vmatprep.subr.mxu0 0.0
        %2532 = vmatpush1.xpose.msra.mxu0 0.0
        %2533 = vmatprep.subr.mxu0 0.0
        %2534 = vmatpush1.xpose.msra.mxu0 0.0
        %2535 = vmatprep.subr.mxu0 0.0
        %2536 = vmatpush1.xpose.msra.mxu0 0.0
        %2537 = vmatprep.mubr.f32.mxu0 0.0
        %2538 = vmatmul.mubr.f32.gmra.mrb[0].mxu0 %v989
        %v2539 = vpop.f32.mrb[0].mxu0
        %v2540 = vadd.f32 %v2472, %v2539
        %v2541 = vpop.f32.mrb[0].mxu0
        %2542 = vmatprep.mubr.f32.mxu0 0.0
        %2543 = vmatmul.mubr.f32.gmra.mrb[0].mxu0 %v990
        %v2544 = vpop.f32.mrb[0].mxu0
        %v2545 = vadd.f32 %v2472, %v2544
        %v2546 = vpop.f32.mrb[0].mxu0
        %2547 = vdwg.mxu0
        %v2548 = vmul.f32 %v2374, 0.25
        %v2549 = vmul.f32 %v2379, 0.25
        %v2551 = vsel %vm1239, %v2548, 0
        %v2554 = vsel %vm1239, %v2457, 0
        %2556 = vmatprep.subr.mxu0 0.0
        %2557 = vmatpush1.xpose.msra.mxu0 %v2554
        %2558 = vmatprep.subr.mxu0 0.0
        %2559 = vmatpush1.xpose.msra.mxu0 0.0
        %2560 = vmatprep.subr.mxu0 0.0
        %2561 = vmatpush1.xpose.msra.mxu0 0.0
        %2562 = vmatprep.subr.mxu0 0.0
        %2563 = vmatpush1.xpose.msra.mxu0 0.0
        %2564 = vmatprep.subr.mxu0 0.0
        %2565 = vmatpush1.xpose.msra.mxu0 0.0
        %2566 = vmatprep.subr.mxu0 0.0
        %2567 = vmatpush1.xpose.msra.mxu0 0.0
        %2568 = vmatprep.subr.mxu0 0.0
        %2569 = vmatpush1.xpose.msra.mxu0 0.0
        %2570 = vmatprep.subr.mxu0 0.0
        %2571 = vmatpush1.xpose.msra.mxu0 0.0
        %2572 = vmatprep.subr.mxu0 0.0
        %2573 = vmatpush1.xpose.msra.mxu0 0.0
        %2574 = vmatprep.subr.mxu0 0.0
        %2575 = vmatpush1.xpose.msra.mxu0 0.0
        %2576 = vmatprep.subr.mxu0 0.0
        %2577 = vmatpush1.xpose.msra.mxu0 0.0
        %2578 = vmatprep.subr.mxu0 0.0
        %2579 = vmatpush1.xpose.msra.mxu0 0.0
        %2580 = vmatprep.subr.mxu0 0.0
        %2581 = vmatpush1.xpose.msra.mxu0 0.0
        %2582 = vmatprep.subr.mxu0 0.0
        %2583 = vmatpush1.xpose.msra.mxu0 0.0
        %2584 = vmatprep.subr.mxu0 0.0
        %2585 = vmatpush1.xpose.msra.mxu0 0.0
        %2586 = vmatprep.subr.mxu0 0.0
        %2587 = vmatpush1.xpose.msra.mxu0 0.0
        %2588 = vmatprep.subr.mxu0 0.0
        %2589 = vmatpush1.xpose.msra.mxu0 0.0
        %2590 = vmatprep.subr.mxu0 0.0
        %2591 = vmatpush1.xpose.msra.mxu0 0.0
        %2592 = vmatprep.subr.mxu0 0.0
        %2593 = vmatpush1.xpose.msra.mxu0 0.0
        %2594 = vmatprep.subr.mxu0 0.0
        %2595 = vmatpush1.xpose.msra.mxu0 0.0
        %2596 = vmatprep.subr.mxu0 0.0
        %2597 = vmatpush1.xpose.msra.mxu0 0.0
        %2598 = vmatprep.subr.mxu0 0.0
        %2599 = vmatpush1.xpose.msra.mxu0 0.0
        %2600 = vmatprep.subr.mxu0 0.0
        %2601 = vmatpush1.xpose.msra.mxu0 0.0
        %2602 = vmatprep.subr.mxu0 0.0
        %2603 = vmatpush1.xpose.msra.mxu0 0.0
        %2604 = vmatprep.subr.mxu0 0.0
        %2605 = vmatpush1.xpose.msra.mxu0 0.0
        %2606 = vmatprep.subr.mxu0 0.0
        %2607 = vmatpush1.xpose.msra.mxu0 0.0
        %2608 = vmatprep.subr.mxu0 0.0
        %2609 = vmatpush1.xpose.msra.mxu0 0.0
        %2610 = vmatprep.subr.mxu0 0.0
        %2611 = vmatpush1.xpose.msra.mxu0 0.0
        %2612 = vmatprep.subr.mxu0 0.0
        %2613 = vmatpush1.xpose.msra.mxu0 0.0
        %2614 = vmatprep.subr.mxu0 0.0
        %2615 = vmatpush1.xpose.msra.mxu0 0.0
        %2616 = vmatprep.subr.mxu0 0.0
        %2617 = vmatpush1.xpose.msra.mxu0 0.0
        %2618 = vmatprep.subr.mxu0 0.0
        %2619 = vmatpush1.xpose.msra.mxu0 0.0
        %2620 = vmatprep.mubr.f32.mxu0 0.0
        %2621 = vmatmul.mubr.f32.gmra.mrb[0].mxu0 %v2551
        %v2622 = vpop.f32.mrb[0].mxu0
        %v2623 = vadd.f32 0.0, %v2622
        %v2624 = vpop.f32.mrb[0].mxu0
        %2625 = vdwg.mxu0
        %v2627 = vsel %vm1239, %v2549, 0
        %v2630 = vsel %vm1239, %v2462, 0
        %2632 = vmatprep.subr.mxu0 0.0
        %2633 = vmatpush1.xpose.msra.mxu0 %v2630
        %2634 = vmatprep.subr.mxu0 0.0
        %2635 = vmatpush1.xpose.msra.mxu0 0.0
        %2636 = vmatprep.subr.mxu0 0.0
        %2637 = vmatpush1.xpose.msra.mxu0 0.0
        %2638 = vmatprep.subr.mxu0 0.0
        %2639 = vmatpush1.xpose.msra.mxu0 0.0
        %2640 = vmatprep.subr.mxu0 0.0
        %2641 = vmatpush1.xpose.msra.mxu0 0.0
        %2642 = vmatprep.subr.mxu0 0.0
        %2643 = vmatpush1.xpose.msra.mxu0 0.0
        %2644 = vmatprep.subr.mxu0 0.0
        %2645 = vmatpush1.xpose.msra.mxu0 0.0
        %2646 = vmatprep.subr.mxu0 0.0
        %2647 = vmatpush1.xpose.msra.mxu0 0.0
        %2648 = vmatprep.subr.mxu0 0.0
        %2649 = vmatpush1.xpose.msra.mxu0 0.0
        %2650 = vmatprep.subr.mxu0 0.0
        %2651 = vmatpush1.xpose.msra.mxu0 0.0
        %2652 = vmatprep.subr.mxu0 0.0
        %2653 = vmatpush1.xpose.msra.mxu0 0.0
        %2654 = vmatprep.subr.mxu0 0.0
        %2655 = vmatpush1.xpose.msra.mxu0 0.0
        %2656 = vmatprep.subr.mxu0 0.0
        %2657 = vmatpush1.xpose.msra.mxu0 0.0
        %2658 = vmatprep.subr.mxu0 0.0
        %2659 = vmatpush1.xpose.msra.mxu0 0.0
        %2660 = vmatprep.subr.mxu0 0.0
        %2661 = vmatpush1.xpose.msra.mxu0 0.0
        %2662 = vmatprep.subr.mxu0 0.0
        %2663 = vmatpush1.xpose.msra.mxu0 0.0
        %2664 = vmatprep.subr.mxu0 0.0
        %2665 = vmatpush1.xpose.msra.mxu0 0.0
        %2666 = vmatprep.subr.mxu0 0.0
        %2667 = vmatpush1.xpose.msra.mxu0 0.0
        %2668 = vmatprep.subr.mxu0 0.0
        %2669 = vmatpush1.xpose.msra.mxu0 0.0
        %2670 = vmatprep.subr.mxu0 0.0
        %2671 = vmatpush1.xpose.msra.mxu0 0.0
        %2672 = vmatprep.subr.mxu0 0.0
        %2673 = vmatpush1.xpose.msra.mxu0 0.0
        %2674 = vmatprep.subr.mxu0 0.0
        %2675 = vmatpush1.xpose.msra.mxu0 0.0
        %2676 = vmatprep.subr.mxu0 0.0
        %2677 = vmatpush1.xpose.msra.mxu0 0.0
        %2678 = vmatprep.subr.mxu0 0.0
        %2679 = vmatpush1.xpose.msra.mxu0 0.0
        %2680 = vmatprep.subr.mxu0 0.0
        %2681 = vmatpush1.xpose.msra.mxu0 0.0
        %2682 = vmatprep.subr.mxu0 0.0
        %2683 = vmatpush1.xpose.msra.mxu0 0.0
        %2684 = vmatprep.subr.mxu0 0.0
        %2685 = vmatpush1.xpose.msra.mxu0 0.0
        %2686 = vmatprep.subr.mxu0 0.0
        %2687 = vmatpush1.xpose.msra.mxu0 0.0
        %2688 = vmatprep.subr.mxu0 0.0
        %2689 = vmatpush1.xpose.msra.mxu0 0.0
        %2690 = vmatprep.subr.mxu0 0.0
        %2691 = vmatpush1.xpose.msra.mxu0 0.0
        %2692 = vmatprep.subr.mxu0 0.0
        %2693 = vmatpush1.xpose.msra.mxu0 0.0
        %2694 = vmatprep.subr.mxu0 0.0
        %2695 = vmatpush1.xpose.msra.mxu0 0.0
        %2696 = vmatprep.mubr.f32.mxu0 0.0
        %2697 = vmatmul.mubr.f32.gmra.mrb[0].mxu0 %v2627
        %v2698 = vpop.f32.mrb[0].mxu0
        %v2699 = vadd.f32 0.0, %v2698
        %v2700 = vpop.f32.mrb[0].mxu0
        %2701 = vdwg.mxu0
        %v2702 = vsel %vm1392, %v2623, -inf
        %2703 = vmax.xlane.f32.xlu0 %v2702
        %v2704 = vpop.xlane.xlu0 %2703
        %v2705 = vsel %vm1392, %v2699, -inf
        %2706 = vmax.xlane.f32.xlu0 %v2705
        %v2707 = vpop.xlane.xlu0 %2706
        %v2708 = vsub.f32 %v2623, %v2704
        %v2709 = vsub.f32 %v2699, %v2707
        %v2710 = vmul.f32 %v2708, 1.442695
        %v2711 = vpow.pop %v2710
        %v2712 = vmul.f32 %v2709, 1.442695
        %v2713 = vpow.pop %v2712
        %v2714 = vsel %vm1392, %v2711, 0.0
        %2715 = vadd.xlane.f32.xlu0 %v2714
        %v2716 = vpop.xlane.xlu0 %2715
        %v2717 = vsel %vm1392, %v2713, 0.0
        %2718 = vadd.xlane.f32.xlu0 %v2717
        %v2719 = vpop.xlane.xlu0 %2718
        %v2720 = vrcp.pop %v2716
        %v2721 = vrcp.pop %v2719
        %v2722 = vmul.f32 %v2711, %v2720
        %v2723 = vmul.f32 %v2713, %v2721
        %v2725 = vsel %vm1392, %v2722, 0
        %2727 = vmatprep.subr.mxu0 0.0
        %2728 = vmatpush1.msra.mxu0 %v2540
        %2729 = vmatprep.subr.mxu0 0.0
        %2730 = vmatpush1.msra.mxu0 0.0
        %2731 = vmatprep.subr.mxu0 0.0
        %2732 = vmatpush1.msra.mxu0 0.0
        %2733 = vmatprep.subr.mxu0 0.0
        %2734 = vmatpush1.msra.mxu0 0.0
        %2735 = vmatprep.subr.mxu0 0.0
        %2736 = vmatpush1.msra.mxu0 0.0
        %2737 = vmatprep.subr.mxu0 0.0
        %2738 = vmatpush1.msra.mxu0 0.0
        %2739 = vmatprep.subr.mxu0 0.0
        %2740 = vmatpush1.msra.mxu0 0.0
        %2741 = vmatprep.subr.mxu0 0.0
        %2742 = vmatpush1.msra.mxu0 0.0
        %2743 = vmatprep.subr.mxu0 0.0
        %2744 = vmatpush1.msra.mxu0 0.0
        %2745 = vmatprep.subr.mxu0 0.0
        %2746 = vmatpush1.msra.mxu0 0.0
        %2747 = vmatprep.subr.mxu0 0.0
        %2748 = vmatpush1.msra.mxu0 0.0
        %2749 = vmatprep.subr.mxu0 0.0
        %2750 = vmatpush1.msra.mxu0 0.0
        %2751 = vmatprep.subr.mxu0 0.0
        %2752 = vmatpush1.msra.mxu0 0.0
        %2753 = vmatprep.subr.mxu0 0.0
        %2754 = vmatpush1.msra.mxu0 0.0
        %2755 = vmatprep.subr.mxu0 0.0
        %2756 = vmatpush1.msra.mxu0 0.0
        %2757 = vmatprep.subr.mxu0 0.0
        %2758 = vmatpush1.msra.mxu0 0.0
        %2759 = vmatprep.subr.mxu0 0.0
        %2760 = vmatpush1.msra.mxu0 0.0
        %2761 = vmatprep.subr.mxu0 0.0
        %2762 = vmatpush1.msra.mxu0 0.0
        %2763 = vmatprep.subr.mxu0 0.0
        %2764 = vmatpush1.msra.mxu0 0.0
        %2765 = vmatprep.subr.mxu0 0.0
        %2766 = vmatpush1.msra.mxu0 0.0
        %2767 = vmatprep.subr.mxu0 0.0
        %2768 = vmatpush1.msra.mxu0 0.0
        %2769 = vmatprep.subr.mxu0 0.0
        %2770 = vmatpush1.msra.mxu0 0.0
        %2771 = vmatprep.subr.mxu0 0.0
        %2772 = vmatpush1.msra.mxu0 0.0
        %2773 = vmatprep.subr.mxu0 0.0
        %2774 = vmatpush1.msra.mxu0 0.0
        %2775 = vmatprep.subr.mxu0 0.0
        %2776 = vmatpush1.msra.mxu0 0.0
        %2777 = vmatprep.subr.mxu0 0.0
        %2778 = vmatpush1.msra.mxu0 0.0
        %2779 = vmatprep.subr.mxu0 0.0
        %2780 = vmatpush1.msra.mxu0 0.0
        %2781 = vmatprep.subr.mxu0 0.0
        %2782 = vmatpush1.msra.mxu0 0.0
        %2783 = vmatprep.subr.mxu0 0.0
        %2784 = vmatpush1.msra.mxu0 0.0
        %2785 = vmatprep.subr.mxu0 0.0
        %2786 = vmatpush1.msra.mxu0 0.0
        %2787 = vmatprep.subr.mxu0 0.0
        %2788 = vmatpush1.msra.mxu0 0.0
        %2789 = vmatprep.subr.mxu0 0.0
        %2790 = vmatpush1.msra.mxu0 0.0
        %2791 = vmatprep.mubr.f32.mxu0 0.0
        %2792 = vmatmul.mubr.f32.gmra.mrb[0].mxu0 %v2725
        %v2793 = vpop.f32.mrb[0].mxu0
        %v2794 = vadd.f32 0.0, %v2793
        %v2795 = vpop.f32.mrb[0].mxu0
        %2796 = vdwg.mxu0
        %v2798 = vsel %vm1392, %v2723, 0
        %2800 = vmatprep.subr.mxu0 0.0
        %2801 = vmatpush1.msra.mxu0 %v2545
        %2802 = vmatprep.subr.mxu0 0.0
        %2803 = vmatpush1.msra.mxu0 0.0
        %2804 = vmatprep.subr.mxu0 0.0
        %2805 = vmatpush1.msra.mxu0 0.0
        %2806 = vmatprep.subr.mxu0 0.0
        %2807 = vmatpush1.msra.mxu0 0.0
        %2808 = vmatprep.subr.mxu0 0.0
        %2809 = vmatpush1.msra.mxu0 0.0
        %2810 = vmatprep.subr.mxu0 0.0
        %2811 = vmatpush1.msra.mxu0 0.0
        %2812 = vmatprep.subr.mxu0 0.0
        %2813 = vmatpush1.msra.mxu0 0.0
        %2814 = vmatprep.subr.mxu0 0.0
        %2815 = vmatpush1.msra.mxu0 0.0
        %2816 = vmatprep.subr.mxu0 0.0
        %2817 = vmatpush1.msra.mxu0 0.0
        %2818 = vmatprep.subr.mxu0 0.0
        %2819 = vmatpush1.msra.mxu0 0.0
        %2820 = vmatprep.subr.mxu0 0.0
        %2821 = vmatpush1.msra.mxu0 0.0
        %2822 = vmatprep.subr.mxu0 0.0
        %2823 = vmatpush1.msra.mxu0 0.0
        %2824 = vmatprep.subr.mxu0 0.0
        %2825 = vmatpush1.msra.mxu0 0.0
        %2826 = vmatprep.subr.mxu0 0.0
        %2827 = vmatpush1.msra.mxu0 0.0
        %2828 = vmatprep.subr.mxu0 0.0
        %2829 = vmatpush1.msra.mxu0 0.0
        %2830 = vmatprep.subr.mxu0 0.0
        %2831 = vmatpush1.msra.mxu0 0.0
        %2832 = vmatprep.subr.mxu0 0.0
        %2833 = vmatpush1.msra.mxu0 0.0
        %2834 = vmatprep.subr.mxu0 0.0
        %2835 = vmatpush1.msra.mxu0 0.0
        %2836 = vmatprep.subr.mxu0 0.0
        %2837 = vmatpush1.msra.mxu0 0.0
        %2838 = vmatprep.subr.mxu0 0.0
        %2839 = vmatpush1.msra.mxu0 0.0
        %2840 = vmatprep.subr.mxu0 0.0
        %2841 = vmatpush1.msra.mxu0 0.0
        %2842 = vmatprep.subr.mxu0 0.0
        %2843 = vmatpush1.msra.mxu0 0.0
        %2844 = vmatprep.subr.mxu0 0.0
        %2845 = vmatpush1.msra.mxu0 0.0
        %2846 = vmatprep.subr.mxu0 0.0
        %2847 = vmatpush1.msra.mxu0 0.0
        %2848 = vmatprep.subr.mxu0 0.0
        %2849 = vmatpush1.msra.mxu0 0.0
        %2850 = vmatprep.subr.mxu0 0.0
        %2851 = vmatpush1.msra.mxu0 0.0
        %2852 = vmatprep.subr.mxu0 0.0
        %2853 = vmatpush1.msra.mxu0 0.0
        %2854 = vmatprep.subr.mxu0 0.0
        %2855 = vmatpush1.msra.mxu0 0.0
        %2856 = vmatprep.subr.mxu0 0.0
        %2857 = vmatpush1.msra.mxu0 0.0
        %2858 = vmatprep.subr.mxu0 0.0
        %2859 = vmatpush1.msra.mxu0 0.0
        %2860 = vmatprep.subr.mxu0 0.0
        %2861 = vmatpush1.msra.mxu0 0.0
        %2862 = vmatprep.subr.mxu0 0.0
        %2863 = vmatpush1.msra.mxu0 0.0
        %2864 = vmatprep.mubr.f32.mxu0 0.0
        %2865 = vmatmul.mubr.f32.gmra.mrb[0].mxu0 %v2798
        %v2866 = vpop.f32.mrb[0].mxu0
        %v2867 = vadd.f32 0.0, %v2866
        %v2868 = vpop.f32.mrb[0].mxu0
        %2869 = vdwg.mxu0
        %s2870 = scalar_lea.vmem %s825, 32 [#allocation13]
        %v2871 = vld [vmem:[%s2870] sm:$0xff]
        %v2872 = vld [vmem:[%s2870 + $0x8] sm:$0xff]
        %v2874 = vsel %vm1239, %v2794, 0
        %v2877 = vsel %vm1239, %v2867, 0
        %2879 = vmatprep.subr.mxu0 0.0
        %2880 = vmatpush1.msra.mxu0 %v2871
        %2881 = vmatprep.subr.mxu0 0.0
        %2882 = vmatpush1.msra.mxu0 %v2872
        %2883 = vmatprep.subr.mxu0 0.0
        %2884 = vmatpush1.msra.mxu0 0.0
        %2885 = vmatprep.subr.mxu0 0.0
        %2886 = vmatpush1.msra.mxu0 0.0
        %2887 = vmatprep.subr.mxu0 0.0
        %2888 = vmatpush1.msra.mxu0 0.0
        %2889 = vmatprep.subr.mxu0 0.0
        %2890 = vmatpush1.msra.mxu0 0.0
        %2891 = vmatprep.subr.mxu0 0.0
        %2892 = vmatpush1.msra.mxu0 0.0
        %2893 = vmatprep.subr.mxu0 0.0
        %2894 = vmatpush1.msra.mxu0 0.0
        %2895 = vmatprep.subr.mxu0 0.0
        %2896 = vmatpush1.msra.mxu0 0.0
        %2897 = vmatprep.subr.mxu0 0.0
        %2898 = vmatpush1.msra.mxu0 0.0
        %2899 = vmatprep.subr.mxu0 0.0
        %2900 = vmatpush1.msra.mxu0 0.0
        %2901 = vmatprep.subr.mxu0 0.0
        %2902 = vmatpush1.msra.mxu0 0.0
        %2903 = vmatprep.subr.mxu0 0.0
        %2904 = vmatpush1.msra.mxu0 0.0
        %2905 = vmatprep.subr.mxu0 0.0
        %2906 = vmatpush1.msra.mxu0 0.0
        %2907 = vmatprep.subr.mxu0 0.0
        %2908 = vmatpush1.msra.mxu0 0.0
        %2909 = vmatprep.subr.mxu0 0.0
        %2910 = vmatpush1.msra.mxu0 0.0
        %2911 = vmatprep.subr.mxu0 0.0
        %2912 = vmatpush1.msra.mxu0 0.0
        %2913 = vmatprep.subr.mxu0 0.0
        %2914 = vmatpush1.msra.mxu0 0.0
        %2915 = vmatprep.subr.mxu0 0.0
        %2916 = vmatpush1.msra.mxu0 0.0
        %2917 = vmatprep.subr.mxu0 0.0
        %2918 = vmatpush1.msra.mxu0 0.0
        %2919 = vmatprep.subr.mxu0 0.0
        %2920 = vmatpush1.msra.mxu0 0.0
        %2921 = vmatprep.subr.mxu0 0.0
        %2922 = vmatpush1.msra.mxu0 0.0
        %2923 = vmatprep.subr.mxu0 0.0
        %2924 = vmatpush1.msra.mxu0 0.0
        %2925 = vmatprep.subr.mxu0 0.0
        %2926 = vmatpush1.msra.mxu0 0.0
        %2927 = vmatprep.subr.mxu0 0.0
        %2928 = vmatpush1.msra.mxu0 0.0
        %2929 = vmatprep.subr.mxu0 0.0
        %2930 = vmatpush1.msra.mxu0 0.0
        %2931 = vmatprep.subr.mxu0 0.0
        %2932 = vmatpush1.msra.mxu0 0.0
        %2933 = vmatprep.subr.mxu0 0.0
        %2934 = vmatpush1.msra.mxu0 0.0
        %2935 = vmatprep.subr.mxu0 0.0
        %2936 = vmatpush1.msra.mxu0 0.0
        %2937 = vmatprep.subr.mxu0 0.0
        %2938 = vmatpush1.msra.mxu0 0.0
        %2939 = vmatprep.subr.mxu0 0.0
        %2940 = vmatpush1.msra.mxu0 0.0
        %2941 = vmatprep.subr.mxu0 0.0
        %2942 = vmatpush1.msra.mxu0 0.0
        %2943 = vmatprep.mubr.f32.mxu0 0.0
        %2944 = vmatmul.mubr.f32.gmra.mrb[0].mxu0 %v2874
        %v2945 = vpop.f32.mrb[0].mxu0
        %v2946 = vadd.f32 0.0, %v2945
        %v2947 = vpop.f32.mrb[0].mxu0
        %2948 = vmatprep.mubr.f32.mxu0 0.0
        %2949 = vmatmul.mubr.f32.gmra.mrb[0].mxu0 %v2877
        %v2950 = vpop.f32.mrb[0].mxu0
        %v2951 = vadd.f32 0.0, %v2950
        %v2952 = vpop.f32.mrb[0].mxu0
        %2953 = vdwg.mxu0
        %v2954 = vadd.f32 %v2291, %v2946
        %v2955 = vadd.f32 %v2296, %v2951
        %s2956 = scalar_lea.vmem %s780, 48 [#allocation8]
        %v2957 = vld [vmem:[%s2956] sm:$0xff]
        %v2958 = vld [vmem:[%s2956 + $0x8] sm:$0xff]
        %v2959 = vld [vmem:[%s955 + $0x3] sm:$0x1]
        %v2960 = vlaneseq
        %v2961 = vshrl.u32 %v2960, 7
        %v2962 = vsub.s32 0, %v2961
        %v2963 = vrot.slane %v2959, %v2962
        %2964 = vmatprep.subr.mxu0 0.0
        %2965 = vmatpush1.xpose.msra.mxu0 %v2957
        %2966 = vmatprep.subr.mxu0 0.0
        %2967 = vmatpush1.xpose.msra.mxu0 %v2958
        %2968 = vmatprep.subr.mxu0 0.0
        %2969 = vmatpush1.xpose.msra.mxu0 0.0
        %2970 = vmatprep.subr.mxu0 0.0
        %2971 = vmatpush1.xpose.msra.mxu0 0.0
        %2972 = vmatprep.subr.mxu0 0.0
        %2973 = vmatpush1.xpose.msra.mxu0 0.0
        %2974 = vmatprep.subr.mxu0 0.0
        %2975 = vmatpush1.xpose.msra.mxu0 0.0
        %2976 = vmatprep.subr.mxu0 0.0
        %2977 = vmatpush1.xpose.msra.mxu0 0.0
        %2978 = vmatprep.subr.mxu0 0.0
        %2979 = vmatpush1.xpose.msra.mxu0 0.0
        %2980 = vmatprep.subr.mxu0 0.0
        %2981 = vmatpush1.xpose.msra.mxu0 0.0
        %2982 = vmatprep.subr.mxu0 0.0
        %2983 = vmatpush1.xpose.msra.mxu0 0.0
        %2984 = vmatprep.subr.mxu0 0.0
        %2985 = vmatpush1.xpose.msra.mxu0 0.0
        %2986 = vmatprep.subr.mxu0 0.0
        %2987 = vmatpush1.xpose.msra.mxu0 0.0
        %2988 = vmatprep.subr.mxu0 0.0
        %2989 = vmatpush1.xpose.msra.mxu0 0.0
        %2990 = vmatprep.subr.mxu0 0.0
        %2991 = vmatpush1.xpose.msra.mxu0 0.0
        %2992 = vmatprep.subr.mxu0 0.0
        %2993 = vmatpush1.xpose.msra.mxu0 0.0
        %2994 = vmatprep.subr.mxu0 0.0
        %2995 = vmatpush1.xpose.msra.mxu0 0.0
        %2996 = vmatprep.subr.mxu0 0.0
        %2997 = vmatpush1.xpose.msra.mxu0 0.0
        %2998 = vmatprep.subr.mxu0 0.0
        %2999 = vmatpush1.xpose.msra.mxu0 0.0
        %3000 = vmatprep.subr.mxu0 0.0
        %3001 = vmatpush1.xpose.msra.mxu0 0.0
        %3002 = vmatprep.subr.mxu0 0.0
        %3003 = vmatpush1.xpose.msra.mxu0 0.0
        %3004 = vmatprep.subr.mxu0 0.0
        %3005 = vmatpush1.xpose.msra.mxu0 0.0
        %3006 = vmatprep.subr.mxu0 0.0
        %3007 = vmatpush1.xpose.msra.mxu0 0.0
        %3008 = vmatprep.subr.mxu0 0.0
        %3009 = vmatpush1.xpose.msra.mxu0 0.0
        %3010 = vmatprep.subr.mxu0 0.0
        %3011 = vmatpush1.xpose.msra.mxu0 0.0
        %3012 = vmatprep.subr.mxu0 0.0
        %3013 = vmatpush1.xpose.msra.mxu0 0.0
        %3014 = vmatprep.subr.mxu0 0.0
        %3015 = vmatpush1.xpose.msra.mxu0 0.0
        %3016 = vmatprep.subr.mxu0 0.0
        %3017 = vmatpush1.xpose.msra.mxu0 0.0
        %3018 = vmatprep.subr.mxu0 0.0
        %3019 = vmatpush1.xpose.msra.mxu0 0.0
        %3020 = vmatprep.subr.mxu0 0.0
        %3021 = vmatpush1.xpose.msra.mxu0 0.0
        %3022 = vmatprep.subr.mxu0 0.0
        %3023 = vmatpush1.xpose.msra.mxu0 0.0
        %3024 = vmatprep.subr.mxu0 0.0
        %3025 = vmatpush1.xpose.msra.mxu0 0.0
        %3026 = vmatprep.subr.mxu0 0.0
        %3027 = vmatpush1.xpose.msra.mxu0 0.0
        %3028 = vmatprep.mubr.f32.mxu0 0.0
        %3029 = vmatmul.mubr.f32.gmra.mrb[0].mxu0 %v989
        %v3030 = vpop.f32.mrb[0].mxu0
        %v3031 = vadd.f32 %v2963, %v3030
        %v3032 = vpop.f32.mrb[0].mxu0
        %3033 = vmatprep.mubr.f32.mxu0 0.0
        %3034 = vmatmul.mubr.f32.gmra.mrb[0].mxu0 %v990
        %v3035 = vpop.f32.mrb[0].mxu0
        %v3036 = vadd.f32 %v2963, %v3035
        %v3037 = vpop.f32.mrb[0].mxu0
        %3038 = vdwg.mxu0
        %s3039 = scalar_lea.vmem %s789, 48 [#allocation9]
        %v3040 = vld [vmem:[%s3039] sm:$0xff]
        %v3041 = vld [vmem:[%s3039 + $0x8] sm:$0xff]
        %v3042 = vld [vmem:[%s807 + $0x3] sm:$0x1]
        %v3043 = vlaneseq
        %v3044 = vshrl.u32 %v3043, 7
        %v3045 = vsub.s32 0, %v3044
        %v3046 = vrot.slane %v3042, %v3045
        %3047 = vmatprep.subr.mxu0 0.0
        %3048 = vmatpush1.xpose.msra.mxu0 %v3040
        %3049 = vmatprep.subr.mxu0 0.0
        %3050 = vmatpush1.xpose.msra.mxu0 %v3041
        %3051 = vmatprep.subr.mxu0 0.0
        %3052 = vmatpush1.xpose.msra.mxu0 0.0
        %3053 = vmatprep.subr.mxu0 0.0
        %3054 = vmatpush1.xpose.msra.mxu0 0.0
        %3055 = vmatprep.subr.mxu0 0.0
        %3056 = vmatpush1.xpose.msra.mxu0 0.0
        %3057 = vmatprep.subr.mxu0 0.0
        %3058 = vmatpush1.xpose.msra.mxu0 0.0
        %3059 = vmatprep.subr.mxu0 0.0
        %3060 = vmatpush1.xpose.msra.mxu0 0.0
        %3061 = vmatprep.subr.mxu0 0.0
        %3062 = vmatpush1.xpose.msra.mxu0 0.0
        %3063 = vmatprep.subr.mxu0 0.0
        %3064 = vmatpush1.xpose.msra.mxu0 0.0
        %3065 = vmatprep.subr.mxu0 0.0
        %3066 = vmatpush1.xpose.msra.mxu0 0.0
        %3067 = vmatprep.subr.mxu0 0.0
        %3068 = vmatpush1.xpose.msra.mxu0 0.0
        %3069 = vmatprep.subr.mxu0 0.0
        %3070 = vmatpush1.xpose.msra.mxu0 0.0
        %3071 = vmatprep.subr.mxu0 0.0
        %3072 = vmatpush1.xpose.msra.mxu0 0.0
        %3073 = vmatprep.subr.mxu0 0.0
        %3074 = vmatpush1.xpose.msra.mxu0 0.0
        %3075 = vmatprep.subr.mxu0 0.0
        %3076 = vmatpush1.xpose.msra.mxu0 0.0
        %3077 = vmatprep.subr.mxu0 0.0
        %3078 = vmatpush1.xpose.msra.mxu0 0.0
        %3079 = vmatprep.subr.mxu0 0.0
        %3080 = vmatpush1.xpose.msra.mxu0 0.0
        %3081 = vmatprep.subr.mxu0 0.0
        %3082 = vmatpush1.xpose.msra.mxu0 0.0
        %3083 = vmatprep.subr.mxu0 0.0
        %3084 = vmatpush1.xpose.msra.mxu0 0.0
        %3085 = vmatprep.subr.mxu0 0.0
        %3086 = vmatpush1.xpose.msra.mxu0 0.0
        %3087 = vmatprep.subr.mxu0 0.0
        %3088 = vmatpush1.xpose.msra.mxu0 0.0
        %3089 = vmatprep.subr.mxu0 0.0
        %3090 = vmatpush1.xpose.msra.mxu0 0.0
        %3091 = vmatprep.subr.mxu0 0.0
        %3092 = vmatpush1.xpose.msra.mxu0 0.0
        %3093 = vmatprep.subr.mxu0 0.0
        %3094 = vmatpush1.xpose.msra.mxu0 0.0
        %3095 = vmatprep.subr.mxu0 0.0
        %3096 = vmatpush1.xpose.msra.mxu0 0.0
        %3097 = vmatprep.subr.mxu0 0.0
        %3098 = vmatpush1.xpose.msra.mxu0 0.0
        %3099 = vmatprep.subr.mxu0 0.0
        %3100 = vmatpush1.xpose.msra.mxu0 0.0
        %3101 = vmatprep.subr.mxu0 0.0
        %3102 = vmatpush1.xpose.msra.mxu0 0.0
        %3103 = vmatprep.subr.mxu0 0.0
        %3104 = vmatpush1.xpose.msra.mxu0 0.0
        %3105 = vmatprep.subr.mxu0 0.0
        %3106 = vmatpush1.xpose.msra.mxu0 0.0
        %3107 = vmatprep.subr.mxu0 0.0
        %3108 = vmatpush1.xpose.msra.mxu0 0.0
        %3109 = vmatprep.subr.mxu0 0.0
        %3110 = vmatpush1.xpose.msra.mxu0 0.0
        %3111 = vmatprep.mubr.f32.mxu0 0.0
        %3112 = vmatmul.mubr.f32.gmra.mrb[0].mxu0 %v989
        %v3113 = vpop.f32.mrb[0].mxu0
        %v3114 = vadd.f32 %v3046, %v3113
        %v3115 = vpop.f32.mrb[0].mxu0
        %3116 = vmatprep.mubr.f32.mxu0 0.0
        %3117 = vmatmul.mubr.f32.gmra.mrb[0].mxu0 %v990
        %v3118 = vpop.f32.mrb[0].mxu0
        %v3119 = vadd.f32 %v3046, %v3118
        %v3120 = vpop.f32.mrb[0].mxu0
        %3121 = vdwg.mxu0
        %s3122 = scalar_lea.vmem %s798, 48 [#allocation10]
        %v3123 = vld [vmem:[%s3122] sm:$0xff]
        %v3124 = vld [vmem:[%s3122 + $0x8] sm:$0xff]
        %v3125 = vld [vmem:[%s816 + $0x3] sm:$0x1]
        %v3126 = vlaneseq
        %v3127 = vshrl.u32 %v3126, 7
        %v3128 = vsub.s32 0, %v3127
        %v3129 = vrot.slane %v3125, %v3128
        %3130 = vmatprep.subr.mxu0 0.0
        %3131 = vmatpush1.xpose.msra.mxu0 %v3123
        %3132 = vmatprep.subr.mxu0 0.0
        %3133 = vmatpush1.xpose.msra.mxu0 %v3124
        %3134 = vmatprep.subr.mxu0 0.0
        %3135 = vmatpush1.xpose.msra.mxu0 0.0
        %3136 = vmatprep.subr.mxu0 0.0
        %3137 = vmatpush1.xpose.msra.mxu0 0.0
        %3138 = vmatprep.subr.mxu0 0.0
        %3139 = vmatpush1.xpose.msra.mxu0 0.0
        %3140 = vmatprep.subr.mxu0 0.0
        %3141 = vmatpush1.xpose.msra.mxu0 0.0
        %3142 = vmatprep.subr.mxu0 0.0
        %3143 = vmatpush1.xpose.msra.mxu0 0.0
        %3144 = vmatprep.subr.mxu0 0.0
        %3145 = vmatpush1.xpose.msra.mxu0 0.0
        %3146 = vmatprep.subr.mxu0 0.0
        %3147 = vmatpush1.xpose.msra.mxu0 0.0
        %3148 = vmatprep.subr.mxu0 0.0
        %3149 = vmatpush1.xpose.msra.mxu0 0.0
        %3150 = vmatprep.subr.mxu0 0.0
        %3151 = vmatpush1.xpose.msra.mxu0 0.0
        %3152 = vmatprep.subr.mxu0 0.0
        %3153 = vmatpush1.xpose.msra.mxu0 0.0
        %3154 = vmatprep.subr.mxu0 0.0
        %3155 = vmatpush1.xpose.msra.mxu0 0.0
        %3156 = vmatprep.subr.mxu0 0.0
        %3157 = vmatpush1.xpose.msra.mxu0 0.0
        %3158 = vmatprep.subr.mxu0 0.0
        %3159 = vmatpush1.xpose.msra.mxu0 0.0
        %3160 = vmatprep.subr.mxu0 0.0
        %3161 = vmatpush1.xpose.msra.mxu0 0.0
        %3162 = vmatprep.subr.mxu0 0.0
        %3163 = vmatpush1.xpose.msra.mxu0 0.0
        %3164 = vmatprep.subr.mxu0 0.0
        %3165 = vmatpush1.xpose.msra.mxu0 0.0
        %3166 = vmatprep.subr.mxu0 0.0
        %3167 = vmatpush1.xpose.msra.mxu0 0.0
        %3168 = vmatprep.subr.mxu0 0.0
        %3169 = vmatpush1.xpose.msra.mxu0 0.0
        %3170 = vmatprep.subr.mxu0 0.0
        %3171 = vmatpush1.xpose.msra.mxu0 0.0
        %3172 = vmatprep.subr.mxu0 0.0
        %3173 = vmatpush1.xpose.msra.mxu0 0.0
        %3174 = vmatprep.subr.mxu0 0.0
        %3175 = vmatpush1.xpose.msra.mxu0 0.0
        %3176 = vmatprep.subr.mxu0 0.0
        %3177 = vmatpush1.xpose.msra.mxu0 0.0
        %3178 = vmatprep.subr.mxu0 0.0
        %3179 = vmatpush1.xpose.msra.mxu0 0.0
        %3180 = vmatprep.subr.mxu0 0.0
        %3181 = vmatpush1.xpose.msra.mxu0 0.0
        %3182 = vmatprep.subr.mxu0 0.0
        %3183 = vmatpush1.xpose.msra.mxu0 0.0
        %3184 = vmatprep.subr.mxu0 0.0
        %3185 = vmatpush1.xpose.msra.mxu0 0.0
        %3186 = vmatprep.subr.mxu0 0.0
        %3187 = vmatpush1.xpose.msra.mxu0 0.0
        %3188 = vmatprep.subr.mxu0 0.0
        %3189 = vmatpush1.xpose.msra.mxu0 0.0
        %3190 = vmatprep.subr.mxu0 0.0
        %3191 = vmatpush1.xpose.msra.mxu0 0.0
        %3192 = vmatprep.subr.mxu0 0.0
        %3193 = vmatpush1.xpose.msra.mxu0 0.0
        %3194 = vmatprep.mubr.f32.mxu0 0.0
        %3195 = vmatmul.mubr.f32.gmra.mrb[0].mxu0 %v989
        %v3196 = vpop.f32.mrb[0].mxu0
        %v3197 = vadd.f32 %v3129, %v3196
        %v3198 = vpop.f32.mrb[0].mxu0
        %3199 = vmatprep.mubr.f32.mxu0 0.0
        %3200 = vmatmul.mubr.f32.gmra.mrb[0].mxu0 %v990
        %v3201 = vpop.f32.mrb[0].mxu0
        %v3202 = vadd.f32 %v3129, %v3201
        %v3203 = vpop.f32.mrb[0].mxu0
        %3204 = vdwg.mxu0
        %v3205 = vmul.f32 %v3031, 0.25
        %v3206 = vmul.f32 %v3036, 0.25
        %v3208 = vsel %vm1239, %v3205, 0
        %v3211 = vsel %vm1239, %v3114, 0
        %3213 = vmatprep.subr.mxu0 0.0
        %3214 = vmatpush1.xpose.msra.mxu0 %v3211
        %3215 = vmatprep.subr.mxu0 0.0
        %3216 = vmatpush1.xpose.msra.mxu0 0.0
        %3217 = vmatprep.subr.mxu0 0.0
        %3218 = vmatpush1.xpose.msra.mxu0 0.0
        %3219 = vmatprep.subr.mxu0 0.0
        %3220 = vmatpush1.xpose.msra.mxu0 0.0
        %3221 = vmatprep.subr.mxu0 0.0
        %3222 = vmatpush1.xpose.msra.mxu0 0.0
        %3223 = vmatprep.subr.mxu0 0.0
        %3224 = vmatpush1.xpose.msra.mxu0 0.0
        %3225 = vmatprep.subr.mxu0 0.0
        %3226 = vmatpush1.xpose.msra.mxu0 0.0
        %3227 = vmatprep.subr.mxu0 0.0
        %3228 = vmatpush1.xpose.msra.mxu0 0.0
        %3229 = vmatprep.subr.mxu0 0.0
        %3230 = vmatpush1.xpose.msra.mxu0 0.0
        %3231 = vmatprep.subr.mxu0 0.0
        %3232 = vmatpush1.xpose.msra.mxu0 0.0
        %3233 = vmatprep.subr.mxu0 0.0
        %3234 = vmatpush1.xpose.msra.mxu0 0.0
        %3235 = vmatprep.subr.mxu0 0.0
        %3236 = vmatpush1.xpose.msra.mxu0 0.0
        %3237 = vmatprep.subr.mxu0 0.0
        %3238 = vmatpush1.xpose.msra.mxu0 0.0
        %3239 = vmatprep.subr.mxu0 0.0
        %3240 = vmatpush1.xpose.msra.mxu0 0.0
        %3241 = vmatprep.subr.mxu0 0.0
        %3242 = vmatpush1.xpose.msra.mxu0 0.0
        %3243 = vmatprep.subr.mxu0 0.0
        %3244 = vmatpush1.xpose.msra.mxu0 0.0
        %3245 = vmatprep.subr.mxu0 0.0
        %3246 = vmatpush1.xpose.msra.mxu0 0.0
        %3247 = vmatprep.subr.mxu0 0.0
        %3248 = vmatpush1.xpose.msra.mxu0 0.0
        %3249 = vmatprep.subr.mxu0 0.0
        %3250 = vmatpush1.xpose.msra.mxu0 0.0
        %3251 = vmatprep.subr.mxu0 0.0
        %3252 = vmatpush1.xpose.msra.mxu0 0.0
        %3253 = vmatprep.subr.mxu0 0.0
        %3254 = vmatpush1.xpose.msra.mxu0 0.0
        %3255 = vmatprep.subr.mxu0 0.0
        %3256 = vmatpush1.xpose.msra.mxu0 0.0
        %3257 = vmatprep.subr.mxu0 0.0
        %3258 = vmatpush1.xpose.msra.mxu0 0.0
        %3259 = vmatprep.subr.mxu0 0.0
        %3260 = vmatpush1.xpose.msra.mxu0 0.0
        %3261 = vmatprep.subr.mxu0 0.0
        %3262 = vmatpush1.xpose.msra.mxu0 0.0
        %3263 = vmatprep.subr.mxu0 0.0
        %3264 = vmatpush1.xpose.msra.mxu0 0.0
        %3265 = vmatprep.subr.mxu0 0.0
        %3266 = vmatpush1.xpose.msra.mxu0 0.0
        %3267 = vmatprep.subr.mxu0 0.0
        %3268 = vmatpush1.xpose.msra.mxu0 0.0
        %3269 = vmatprep.subr.mxu0 0.0
        %3270 = vmatpush1.xpose.msra.mxu0 0.0
        %3271 = vmatprep.subr.mxu0 0.0
        %3272 = vmatpush1.xpose.msra.mxu0 0.0
        %3273 = vmatprep.subr.mxu0 0.0
        %3274 = vmatpush1.xpose.msra.mxu0 0.0
        %3275 = vmatprep.subr.mxu0 0.0
        %3276 = vmatpush1.xpose.msra.mxu0 0.0
        %3277 = vmatprep.mubr.f32.mxu0 0.0
        %3278 = vmatmul.mubr.f32.gmra.mrb[0].mxu0 %v3208
        %v3279 = vpop.f32.mrb[0].mxu0
        %v3280 = vadd.f32 0.0, %v3279
        %v3281 = vpop.f32.mrb[0].mxu0
        %3282 = vdwg.mxu0
        %v3284 = vsel %vm1239, %v3206, 0
        %v3287 = vsel %vm1239, %v3119, 0
        %3289 = vmatprep.subr.mxu0 0.0
        %3290 = vmatpush1.xpose.msra.mxu0 %v3287
        %3291 = vmatprep.subr.mxu0 0.0
        %3292 = vmatpush1.xpose.msra.mxu0 0.0
        %3293 = vmatprep.subr.mxu0 0.0
        %3294 = vmatpush1.xpose.msra.mxu0 0.0
        %3295 = vmatprep.subr.mxu0 0.0
        %3296 = vmatpush1.xpose.msra.mxu0 0.0
        %3297 = vmatprep.subr.mxu0 0.0
        %3298 = vmatpush1.xpose.msra.mxu0 0.0
        %3299 = vmatprep.subr.mxu0 0.0
        %3300 = vmatpush1.xpose.msra.mxu0 0.0
        %3301 = vmatprep.subr.mxu0 0.0
        %3302 = vmatpush1.xpose.msra.mxu0 0.0
        %3303 = vmatprep.subr.mxu0 0.0
        %3304 = vmatpush1.xpose.msra.mxu0 0.0
        %3305 = vmatprep.subr.mxu0 0.0
        %3306 = vmatpush1.xpose.msra.mxu0 0.0
        %3307 = vmatprep.subr.mxu0 0.0
        %3308 = vmatpush1.xpose.msra.mxu0 0.0
        %3309 = vmatprep.subr.mxu0 0.0
        %3310 = vmatpush1.xpose.msra.mxu0 0.0
        %3311 = vmatprep.subr.mxu0 0.0
        %3312 = vmatpush1.xpose.msra.mxu0 0.0
        %3313 = vmatprep.subr.mxu0 0.0
        %3314 = vmatpush1.xpose.msra.mxu0 0.0
        %3315 = vmatprep.subr.mxu0 0.0
        %3316 = vmatpush1.xpose.msra.mxu0 0.0
        %3317 = vmatprep.subr.mxu0 0.0
        %3318 = vmatpush1.xpose.msra.mxu0 0.0
        %3319 = vmatprep.subr.mxu0 0.0
        %3320 = vmatpush1.xpose.msra.mxu0 0.0
        %3321 = vmatprep.subr.mxu0 0.0
        %3322 = vmatpush1.xpose.msra.mxu0 0.0
        %3323 = vmatprep.subr.mxu0 0.0
        %3324 = vmatpush1.xpose.msra.mxu0 0.0
        %3325 = vmatprep.subr.mxu0 0.0
        %3326 = vmatpush1.xpose.msra.mxu0 0.0
        %3327 = vmatprep.subr.mxu0 0.0
        %3328 = vmatpush1.xpose.msra.mxu0 0.0
        %3329 = vmatprep.subr.mxu0 0.0
        %3330 = vmatpush1.xpose.msra.mxu0 0.0
        %3331 = vmatprep.subr.mxu0 0.0
        %3332 = vmatpush1.xpose.msra.mxu0 0.0
        %3333 = vmatprep.subr.mxu0 0.0
        %3334 = vmatpush1.xpose.msra.mxu0 0.0
        %3335 = vmatprep.subr.mxu0 0.0
        %3336 = vmatpush1.xpose.msra.mxu0 0.0
        %3337 = vmatprep.subr.mxu0 0.0
        %3338 = vmatpush1.xpose.msra.mxu0 0.0
        %3339 = vmatprep.subr.mxu0 0.0
        %3340 = vmatpush1.xpose.msra.mxu0 0.0
        %3341 = vmatprep.subr.mxu0 0.0
        %3342 = vmatpush1.xpose.msra.mxu0 0.0
        %3343 = vmatprep.subr.mxu0 0.0
        %3344 = vmatpush1.xpose.msra.mxu0 0.0
        %3345 = vmatprep.subr.mxu0 0.0
        %3346 = vmatpush1.xpose.msra.mxu0 0.0
        %3347 = vmatprep.subr.mxu0 0.0
        %3348 = vmatpush1.xpose.msra.mxu0 0.0
        %3349 = vmatprep.subr.mxu0 0.0
        %3350 = vmatpush1.xpose.msra.mxu0 0.0
        %3351 = vmatprep.subr.mxu0 0.0
        %3352 = vmatpush1.xpose.msra.mxu0 0.0
        %3353 = vmatprep.mubr.f32.mxu0 0.0
        %3354 = vmatmul.mubr.f32.gmra.mrb[0].mxu0 %v3284
        %v3355 = vpop.f32.mrb[0].mxu0
        %v3356 = vadd.f32 0.0, %v3355
        %v3357 = vpop.f32.mrb[0].mxu0
        %3358 = vdwg.mxu0
        %v3359 = vsel %vm1392, %v3280, -inf
        %3360 = vmax.xlane.f32.xlu0 %v3359
        %v3361 = vpop.xlane.xlu0 %3360
        %v3362 = vsel %vm1392, %v3356, -inf
        %3363 = vmax.xlane.f32.xlu0 %v3362
        %v3364 = vpop.xlane.xlu0 %3363
        %v3365 = vsub.f32 %v3280, %v3361
        %v3366 = vsub.f32 %v3356, %v3364
        %v3367 = vmul.f32 %v3365, 1.442695
        %v3368 = vpow.pop %v3367
        %v3369 = vmul.f32 %v3366, 1.442695
        %v3370 = vpow.pop %v3369
        %v3371 = vsel %vm1392, %v3368, 0.0
        %3372 = vadd.xlane.f32.xlu0 %v3371
        %v3373 = vpop.xlane.xlu0 %3372
        %v3374 = vsel %vm1392, %v3370, 0.0
        %3375 = vadd.xlane.f32.xlu0 %v3374
        %v3376 = vpop.xlane.xlu0 %3375
        %v3377 = vrcp.pop %v3373
        %v3378 = vrcp.pop %v3376
        %v3379 = vmul.f32 %v3368, %v3377
        %v3380 = vmul.f32 %v3370, %v3378
        %v3382 = vsel %vm1392, %v3379, 0
        %3384 = vmatprep.subr.mxu0 0.0
        %3385 = vmatpush1.msra.mxu0 %v3197
        %3386 = vmatprep.subr.mxu0 0.0
        %3387 = vmatpush1.msra.mxu0 0.0
        %3388 = vmatprep.subr.mxu0 0.0
        %3389 = vmatpush1.msra.mxu0 0.0
        %3390 = vmatprep.subr.mxu0 0.0
        %3391 = vmatpush1.msra.mxu0 0.0
        %3392 = vmatprep.subr.mxu0 0.0
        %3393 = vmatpush1.msra.mxu0 0.0
        %3394 = vmatprep.subr.mxu0 0.0
        %3395 = vmatpush1.msra.mxu0 0.0
        %3396 = vmatprep.subr.mxu0 0.0
        %3397 = vmatpush1.msra.mxu0 0.0
        %3398 = vmatprep.subr.mxu0 0.0
        %3399 = vmatpush1.msra.mxu0 0.0
        %3400 = vmatprep.subr.mxu0 0.0
        %3401 = vmatpush1.msra.mxu0 0.0
        %3402 = vmatprep.subr.mxu0 0.0
        %3403 = vmatpush1.msra.mxu0 0.0
        %3404 = vmatprep.subr.mxu0 0.0
        %3405 = vmatpush1.msra.mxu0 0.0
        %3406 = vmatprep.subr.mxu0 0.0
        %3407 = vmatpush1.msra.mxu0 0.0
        %3408 = vmatprep.subr.mxu0 0.0
        %3409 = vmatpush1.msra.mxu0 0.0
        %3410 = vmatprep.subr.mxu0 0.0
        %3411 = vmatpush1.msra.mxu0 0.0
        %3412 = vmatprep.subr.mxu0 0.0
        %3413 = vmatpush1.msra.mxu0 0.0
        %3414 = vmatprep.subr.mxu0 0.0
        %3415 = vmatpush1.msra.mxu0 0.0
        %3416 = vmatprep.subr.mxu0 0.0
        %3417 = vmatpush1.msra.mxu0 0.0
        %3418 = vmatprep.subr.mxu0 0.0
        %3419 = vmatpush1.msra.mxu0 0.0
        %3420 = vmatprep.subr.mxu0 0.0
        %3421 = vmatpush1.msra.mxu0 0.0
        %3422 = vmatprep.subr.mxu0 0.0
        %3423 = vmatpush1.msra.mxu0 0.0
        %3424 = vmatprep.subr.mxu0 0.0
        %3425 = vmatpush1.msra.mxu0 0.0
        %3426 = vmatprep.subr.mxu0 0.0
        %3427 = vmatpush1.msra.mxu0 0.0
        %3428 = vmatprep.subr.mxu0 0.0
        %3429 = vmatpush1.msra.mxu0 0.0
        %3430 = vmatprep.subr.mxu0 0.0
        %3431 = vmatpush1.msra.mxu0 0.0
        %3432 = vmatprep.subr.mxu0 0.0
        %3433 = vmatpush1.msra.mxu0 0.0
        %3434 = vmatprep.subr.mxu0 0.0
        %3435 = vmatpush1.msra.mxu0 0.0
        %3436 = vmatprep.subr.mxu0 0.0
        %3437 = vmatpush1.msra.mxu0 0.0
        %3438 = vmatprep.subr.mxu0 0.0
        %3439 = vmatpush1.msra.mxu0 0.0
        %3440 = vmatprep.subr.mxu0 0.0
        %3441 = vmatpush1.msra.mxu0 0.0
        %3442 = vmatprep.subr.mxu0 0.0
        %3443 = vmatpush1.msra.mxu0 0.0
        %3444 = vmatprep.subr.mxu0 0.0
        %3445 = vmatpush1.msra.mxu0 0.0
        %3446 = vmatprep.subr.mxu0 0.0
        %3447 = vmatpush1.msra.mxu0 0.0
        %3448 = vmatprep.mubr.f32.mxu0 0.0
        %3449 = vmatmul.mubr.f32.gmra.mrb[0].mxu0 %v3382
        %v3450 = vpop.f32.mrb[0].mxu0
        %v3451 = vadd.f32 0.0, %v3450
        %v3452 = vpop.f32.mrb[0].mxu0
        %3453 = vdwg.mxu0
        %v3455 = vsel %vm1392, %v3380, 0
        %3457 = vmatprep.subr.mxu0 0.0
        %3458 = vmatpush1.msra.mxu0 %v3202
        %3459 = vmatprep.subr.mxu0 0.0
        %3460 = vmatpush1.msra.mxu0 0.0
        %3461 = vmatprep.subr.mxu0 0.0
        %3462 = vmatpush1.msra.mxu0 0.0
        %3463 = vmatprep.subr.mxu0 0.0
        %3464 = vmatpush1.msra.mxu0 0.0
        %3465 = vmatprep.subr.mxu0 0.0
        %3466 = vmatpush1.msra.mxu0 0.0
        %3467 = vmatprep.subr.mxu0 0.0
        %3468 = vmatpush1.msra.mxu0 0.0
        %3469 = vmatprep.subr.mxu0 0.0
        %3470 = vmatpush1.msra.mxu0 0.0
        %3471 = vmatprep.subr.mxu0 0.0
        %3472 = vmatpush1.msra.mxu0 0.0
        %3473 = vmatprep.subr.mxu0 0.0
        %3474 = vmatpush1.msra.mxu0 0.0
        %3475 = vmatprep.subr.mxu0 0.0
        %3476 = vmatpush1.msra.mxu0 0.0
        %3477 = vmatprep.subr.mxu0 0.0
        %3478 = vmatpush1.msra.mxu0 0.0
        %3479 = vmatprep.subr.mxu0 0.0
        %3480 = vmatpush1.msra.mxu0 0.0
        %3481 = vmatprep.subr.mxu0 0.0
        %3482 = vmatpush1.msra.mxu0 0.0
        %3483 = vmatprep.subr.mxu0 0.0
        %3484 = vmatpush1.msra.mxu0 0.0
        %3485 = vmatprep.subr.mxu0 0.0
        %3486 = vmatpush1.msra.mxu0 0.0
        %3487 = vmatprep.subr.mxu0 0.0
        %3488 = vmatpush1.msra.mxu0 0.0
        %3489 = vmatprep.subr.mxu0 0.0
        %3490 = vmatpush1.msra.mxu0 0.0
        %3491 = vmatprep.subr.mxu0 0.0
        %3492 = vmatpush1.msra.mxu0 0.0
        %3493 = vmatprep.subr.mxu0 0.0
        %3494 = vmatpush1.msra.mxu0 0.0
        %3495 = vmatprep.subr.mxu0 0.0
        %3496 = vmatpush1.msra.mxu0 0.0
        %3497 = vmatprep.subr.mxu0 0.0
        %3498 = vmatpush1.msra.mxu0 0.0
        %3499 = vmatprep.subr.mxu0 0.0
        %3500 = vmatpush1.msra.mxu0 0.0
        %3501 = vmatprep.subr.mxu0 0.0
        %3502 = vmatpush1.msra.mxu0 0.0
        %3503 = vmatprep.subr.mxu0 0.0
        %3504 = vmatpush1.msra.mxu0 0.0
        %3505 = vmatprep.subr.mxu0 0.0
        %3506 = vmatpush1.msra.mxu0 0.0
        %3507 = vmatprep.subr.mxu0 0.0
        %3508 = vmatpush1.msra.mxu0 0.0
        %3509 = vmatprep.subr.mxu0 0.0
        %3510 = vmatpush1.msra.mxu0 0.0
        %3511 = vmatprep.subr.mxu0 0.0
        %3512 = vmatpush1.msra.mxu0 0.0
        %3513 = vmatprep.subr.mxu0 0.0
        %3514 = vmatpush1.msra.mxu0 0.0
        %3515 = vmatprep.subr.mxu0 0.0
        %3516 = vmatpush1.msra.mxu0 0.0
        %3517 = vmatprep.subr.mxu0 0.0
        %3518 = vmatpush1.msra.mxu0 0.0
        %3519 = vmatprep.subr.mxu0 0.0
        %3520 = vmatpush1.msra.mxu0 0.0
        %3521 = vmatprep.mubr.f32.mxu0 0.0
        %3522 = vmatmul.mubr.f32.gmra.mrb[0].mxu0 %v3455
        %v3523 = vpop.f32.mrb[0].mxu0
        %v3524 = vadd.f32 0.0, %v3523
        %v3525 = vpop.f32.mrb[0].mxu0
        %3526 = vdwg.mxu0
        %s3527 = scalar_lea.vmem %s825, 48 [#allocation13]
        %v3528 = vld [vmem:[%s3527] sm:$0xff]
        %v3529 = vld [vmem:[%s3527 + $0x8] sm:$0xff]
        %v3531 = vsel %vm1239, %v3451, 0
        %v3534 = vsel %vm1239, %v3524, 0
        %3536 = vmatprep.subr.mxu0 0.0
        %3537 = vmatpush1.msra.mxu0 %v3528
        %3538 = vmatprep.subr.mxu0 0.0
        %3539 = vmatpush1.msra.mxu0 %v3529
        %3540 = vmatprep.subr.mxu0 0.0
        %3541 = vmatpush1.msra.mxu0 0.0
        %3542 = vmatprep.subr.mxu0 0.0
        %3543 = vmatpush1.msra.mxu0 0.0
        %3544 = vmatprep.subr.mxu0 0.0
        %3545 = vmatpush1.msra.mxu0 0.0
        %3546 = vmatprep.subr.mxu0 0.0
        %3547 = vmatpush1.msra.mxu0 0.0
        %3548 = vmatprep.subr.mxu0 0.0
        %3549 = vmatpush1.msra.mxu0 0.0
        %3550 = vmatprep.subr.mxu0 0.0
        %3551 = vmatpush1.msra.mxu0 0.0
        %3552 = vmatprep.subr.mxu0 0.0
        %3553 = vmatpush1.msra.mxu0 0.0
        %3554 = vmatprep.subr.mxu0 0.0
        %3555 = vmatpush1.msra.mxu0 0.0
        %3556 = vmatprep.subr.mxu0 0.0
        %3557 = vmatpush1.msra.mxu0 0.0
        %3558 = vmatprep.subr.mxu0 0.0
        %3559 = vmatpush1.msra.mxu0 0.0
        %3560 = vmatprep.subr.mxu0 0.0
        %3561 = vmatpush1.msra.mxu0 0.0
        %3562 = vmatprep.subr.mxu0 0.0
        %3563 = vmatpush1.msra.mxu0 0.0
        %3564 = vmatprep.subr.mxu0 0.0
        %3565 = vmatpush1.msra.mxu0 0.0
        %3566 = vmatprep.subr.mxu0 0.0
        %3567 = vmatpush1.msra.mxu0 0.0
        %3568 = vmatprep.subr.mxu0 0.0
        %3569 = vmatpush1.msra.mxu0 0.0
        %3570 = vmatprep.subr.mxu0 0.0
        %3571 = vmatpush1.msra.mxu0 0.0
        %3572 = vmatprep.subr.mxu0 0.0
        %3573 = vmatpush1.msra.mxu0 0.0
        %3574 = vmatprep.subr.mxu0 0.0
        %3575 = vmatpush1.msra.mxu0 0.0
        %3576 = vmatprep.subr.mxu0 0.0
        %3577 = vmatpush1.msra.mxu0 0.0
        %3578 = vmatprep.subr.mxu0 0.0
        %3579 = vmatpush1.msra.mxu0 0.0
        %3580 = vmatprep.subr.mxu0 0.0
        %3581 = vmatpush1.msra.mxu0 0.0
        %3582 = vmatprep.subr.mxu0 0.0
        %3583 = vmatpush1.msra.mxu0 0.0
        %3584 = vmatprep.subr.mxu0 0.0
        %3585 = vmatpush1.msra.mxu0 0.0
        %3586 = vmatprep.subr.mxu0 0.0
        %3587 = vmatpush1.msra.mxu0 0.0
        %3588 = vmatprep.subr.mxu0 0.0
        %3589 = vmatpush1.msra.mxu0 0.0
        %3590 = vmatprep.subr.mxu0 0.0
        %3591 = vmatpush1.msra.mxu0 0.0
        %3592 = vmatprep.subr.mxu0 0.0
        %3593 = vmatpush1.msra.mxu0 0.0
        %3594 = vmatprep.subr.mxu0 0.0
        %3595 = vmatpush1.msra.mxu0 0.0
        %3596 = vmatprep.subr.mxu0 0.0
        %3597 = vmatpush1.msra.mxu0 0.0
        %3598 = vmatprep.subr.mxu0 0.0
        %3599 = vmatpush1.msra.mxu0 0.0
        %3600 = vmatprep.mubr.f32.mxu0 0.0
        %3601 = vmatmul.mubr.f32.gmra.mrb[0].mxu0 %v3531
        %v3602 = vpop.f32.mrb[0].mxu0
        %v3603 = vadd.f32 0.0, %v3602
        %v3604 = vpop.f32.mrb[0].mxu0
        %3605 = vmatprep.mubr.f32.mxu0 0.0
        %3606 = vmatmul.mubr.f32.gmra.mrb[0].mxu0 %v3534
        %v3607 = vpop.f32.mrb[0].mxu0
        %v3608 = vadd.f32 0.0, %v3607
        %v3609 = vpop.f32.mrb[0].mxu0
        %3610 = vdwg.mxu0
        %v3611 = vadd.f32 %v2954, %v3603
        %v3612 = vadd.f32 %v2955, %v3608
        %s3613 = scalar_lea.vmem %s780, 64 [#allocation8]
        %v3614 = vld [vmem:[%s3613] sm:$0xff]
        %v3615 = vld [vmem:[%s3613 + $0x8] sm:$0xff]
        %v3616 = vld [vmem:[%s955 + $0x4] sm:$0x1]
        %v3617 = vlaneseq
        %v3618 = vshrl.u32 %v3617, 7
        %v3619 = vsub.s32 0, %v3618
        %v3620 = vrot.slane %v3616, %v3619
        %3621 = vmatprep.subr.mxu0 0.0
        %3622 = vmatpush1.xpose.msra.mxu0 %v3614
        %3623 = vmatprep.subr.mxu0 0.0
        %3624 = vmatpush1.xpose.msra.mxu0 %v3615
        %3625 = vmatprep.subr.mxu0 0.0
        %3626 = vmatpush1.xpose.msra.mxu0 0.0
        %3627 = vmatprep.subr.mxu0 0.0
        %3628 = vmatpush1.xpose.msra.mxu0 0.0
        %3629 = vmatprep.subr.mxu0 0.0
        %3630 = vmatpush1.xpose.msra.mxu0 0.0
        %3631 = vmatprep.subr.mxu0 0.0
        %3632 = vmatpush1.xpose.msra.mxu0 0.0
        %3633 = vmatprep.subr.mxu0 0.0
        %3634 = vmatpush1.xpose.msra.mxu0 0.0
        %3635 = vmatprep.subr.mxu0 0.0
        %3636 = vmatpush1.xpose.msra.mxu0 0.0
        %3637 = vmatprep.subr.mxu0 0.0
        %3638 = vmatpush1.xpose.msra.mxu0 0.0
        %3639 = vmatprep.subr.mxu0 0.0
        %3640 = vmatpush1.xpose.msra.mxu0 0.0
        %3641 = vmatprep.subr.mxu0 0.0
        %3642 = vmatpush1.xpose.msra.mxu0 0.0
        %3643 = vmatprep.subr.mxu0 0.0
        %3644 = vmatpush1.xpose.msra.mxu0 0.0
        %3645 = vmatprep.subr.mxu0 0.0
        %3646 = vmatpush1.xpose.msra.mxu0 0.0
        %3647 = vmatprep.subr.mxu0 0.0
        %3648 = vmatpush1.xpose.msra.mxu0 0.0
        %3649 = vmatprep.subr.mxu0 0.0
        %3650 = vmatpush1.xpose.msra.mxu0 0.0
        %3651 = vmatprep.subr.mxu0 0.0
        %3652 = vmatpush1.xpose.msra.mxu0 0.0
        %3653 = vmatprep.subr.mxu0 0.0
        %3654 = vmatpush1.xpose.msra.mxu0 0.0
        %3655 = vmatprep.subr.mxu0 0.0
        %3656 = vmatpush1.xpose.msra.mxu0 0.0
        %3657 = vmatprep.subr.mxu0 0.0
        %3658 = vmatpush1.xpose.msra.mxu0 0.0
        %3659 = vmatprep.subr.mxu0 0.0
        %3660 = vmatpush1.xpose.msra.mxu0 0.0
        %3661 = vmatprep.subr.mxu0 0.0
        %3662 = vmatpush1.xpose.msra.mxu0 0.0
        %3663 = vmatprep.subr.mxu0 0.0
        %3664 = vmatpush1.xpose.msra.mxu0 0.0
        %3665 = vmatprep.subr.mxu0 0.0
        %3666 = vmatpush1.xpose.msra.mxu0 0.0
        %3667 = vmatprep.subr.mxu0 0.0
        %3668 = vmatpush1.xpose.msra.mxu0 0.0
        %3669 = vmatprep.subr.mxu0 0.0
        %3670 = vmatpush1.xpose.msra.mxu0 0.0
        %3671 = vmatprep.subr.mxu0 0.0
        %3672 = vmatpush1.xpose.msra.mxu0 0.0
        %3673 = vmatprep.subr.mxu0 0.0
        %3674 = vmatpush1.xpose.msra.mxu0 0.0
        %3675 = vmatprep.subr.mxu0 0.0
        %3676 = vmatpush1.xpose.msra.mxu0 0.0
        %3677 = vmatprep.subr.mxu0 0.0
        %3678 = vmatpush1.xpose.msra.mxu0 0.0
        %3679 = vmatprep.subr.mxu0 0.0
        %3680 = vmatpush1.xpose.msra.mxu0 0.0
        %3681 = vmatprep.subr.mxu0 0.0
        %3682 = vmatpush1.xpose.msra.mxu0 0.0
        %3683 = vmatprep.subr.mxu0 0.0
        %3684 = vmatpush1.xpose.msra.mxu0 0.0
        %3685 = vmatprep.mubr.f32.mxu0 0.0
        %3686 = vmatmul.mubr.f32.gmra.mrb[0].mxu0 %v989
        %v3687 = vpop.f32.mrb[0].mxu0
        %v3688 = vadd.f32 %v3620, %v3687
        %v3689 = vpop.f32.mrb[0].mxu0
        %3690 = vmatprep.mubr.f32.mxu0 0.0
        %3691 = vmatmul.mubr.f32.gmra.mrb[0].mxu0 %v990
        %v3692 = vpop.f32.mrb[0].mxu0
        %v3693 = vadd.f32 %v3620, %v3692
        %v3694 = vpop.f32.mrb[0].mxu0
        %3695 = vdwg.mxu0
        %s3696 = scalar_lea.vmem %s789, 64 [#allocation9]
        %v3697 = vld [vmem:[%s3696] sm:$0xff]
        %v3698 = vld [vmem:[%s3696 + $0x8] sm:$0xff]
        %v3699 = vld [vmem:[%s807 + $0x4] sm:$0x1]
        %v3700 = vlaneseq
        %v3701 = vshrl.u32 %v3700, 7
        %v3702 = vsub.s32 0, %v3701
        %v3703 = vrot.slane %v3699, %v3702
        %3704 = vmatprep.subr.mxu0 0.0
        %3705 = vmatpush1.xpose.msra.mxu0 %v3697
        %3706 = vmatprep.subr.mxu0 0.0
        %3707 = vmatpush1.xpose.msra.mxu0 %v3698
        %3708 = vmatprep.subr.mxu0 0.0
        %3709 = vmatpush1.xpose.msra.mxu0 0.0
        %3710 = vmatprep.subr.mxu0 0.0
        %3711 = vmatpush1.xpose.msra.mxu0 0.0
        %3712 = vmatprep.subr.mxu0 0.0
        %3713 = vmatpush1.xpose.msra.mxu0 0.0
        %3714 = vmatprep.subr.mxu0 0.0
        %3715 = vmatpush1.xpose.msra.mxu0 0.0
        %3716 = vmatprep.subr.mxu0 0.0
        %3717 = vmatpush1.xpose.msra.mxu0 0.0
        %3718 = vmatprep.subr.mxu0 0.0
        %3719 = vmatpush1.xpose.msra.mxu0 0.0
        %3720 = vmatprep.subr.mxu0 0.0
        %3721 = vmatpush1.xpose.msra.mxu0 0.0
        %3722 = vmatprep.subr.mxu0 0.0
        %3723 = vmatpush1.xpose.msra.mxu0 0.0
        %3724 = vmatprep.subr.mxu0 0.0
        %3725 = vmatpush1.xpose.msra.mxu0 0.0
        %3726 = vmatprep.subr.mxu0 0.0
        %3727 = vmatpush1.xpose.msra.mxu0 0.0
        %3728 = vmatprep.subr.mxu0 0.0
        %3729 = vmatpush1.xpose.msra.mxu0 0.0
        %3730 = vmatprep.subr.mxu0 0.0
        %3731 = vmatpush1.xpose.msra.mxu0 0.0
        %3732 = vmatprep.subr.mxu0 0.0
        %3733 = vmatpush1.xpose.msra.mxu0 0.0
        %3734 = vmatprep.subr.mxu0 0.0
        %3735 = vmatpush1.xpose.msra.mxu0 0.0
        %3736 = vmatprep.subr.mxu0 0.0
        %3737 = vmatpush1.xpose.msra.mxu0 0.0
        %3738 = vmatprep.subr.mxu0 0.0
        %3739 = vmatpush1.xpose.msra.mxu0 0.0
        %3740 = vmatprep.subr.mxu0 0.0
        %3741 = vmatpush1.xpose.msra.mxu0 0.0
        %3742 = vmatprep.subr.mxu0 0.0
        %3743 = vmatpush1.xpose.msra.mxu0 0.0
        %3744 = vmatprep.subr.mxu0 0.0
        %3745 = vmatpush1.xpose.msra.mxu0 0.0
        %3746 = vmatprep.subr.mxu0 0.0
        %3747 = vmatpush1.xpose.msra.mxu0 0.0
        %3748 = vmatprep.subr.mxu0 0.0
        %3749 = vmatpush1.xpose.msra.mxu0 0.0
        %3750 = vmatprep.subr.mxu0 0.0
        %3751 = vmatpush1.xpose.msra.mxu0 0.0
        %3752 = vmatprep.subr.mxu0 0.0
        %3753 = vmatpush1.xpose.msra.mxu0 0.0
        %3754 = vmatprep.subr.mxu0 0.0
        %3755 = vmatpush1.xpose.msra.mxu0 0.0
        %3756 = vmatprep.subr.mxu0 0.0
        %3757 = vmatpush1.xpose.msra.mxu0 0.0
        %3758 = vmatprep.subr.mxu0 0.0
        %3759 = vmatpush1.xpose.msra.mxu0 0.0
        %3760 = vmatprep.subr.mxu0 0.0
        %3761 = vmatpush1.xpose.msra.mxu0 0.0
        %3762 = vmatprep.subr.mxu0 0.0
        %3763 = vmatpush1.xpose.msra.mxu0 0.0
        %3764 = vmatprep.subr.mxu0 0.0
        %3765 = vmatpush1.xpose.msra.mxu0 0.0
        %3766 = vmatprep.subr.mxu0 0.0
        %3767 = vmatpush1.xpose.msra.mxu0 0.0
        %3768 = vmatprep.mubr.f32.mxu0 0.0
        %3769 = vmatmul.mubr.f32.gmra.mrb[0].mxu0 %v989
        %v3770 = vpop.f32.mrb[0].mxu0
        %v3771 = vadd.f32 %v3703, %v3770
        %v3772 = vpop.f32.mrb[0].mxu0
        %3773 = vmatprep.mubr.f32.mxu0 0.0
        %3774 = vmatmul.mubr.f32.gmra.mrb[0].mxu0 %v990
        %v3775 = vpop.f32.mrb[0].mxu0
        %v3776 = vadd.f32 %v3703, %v3775
        %v3777 = vpop.f32.mrb[0].mxu0
        %3778 = vdwg.mxu0
        %s3779 = scalar_lea.vmem %s798, 64 [#allocation10]
        %v3780 = vld [vmem:[%s3779] sm:$0xff]
        %v3781 = vld [vmem:[%s3779 + $0x8] sm:$0xff]
        %v3782 = vld [vmem:[%s816 + $0x4] sm:$0x1]
        %v3783 = vlaneseq
        %v3784 = vshrl.u32 %v3783, 7
        %v3785 = vsub.s32 0, %v3784
        %v3786 = vrot.slane %v3782, %v3785
        %3787 = vmatprep.subr.mxu0 0.0
        %3788 = vmatpush1.xpose.msra.mxu0 %v3780
        %3789 = vmatprep.subr.mxu0 0.0
        %3790 = vmatpush1.xpose.msra.mxu0 %v3781
        %3791 = vmatprep.subr.mxu0 0.0
        %3792 = vmatpush1.xpose.msra.mxu0 0.0
        %3793 = vmatprep.subr.mxu0 0.0
        %3794 = vmatpush1.xpose.msra.mxu0 0.0
        %3795 = vmatprep.subr.mxu0 0.0
        %3796 = vmatpush1.xpose.msra.mxu0 0.0
        %3797 = vmatprep.subr.mxu0 0.0
        %3798 = vmatpush1.xpose.msra.mxu0 0.0
        %3799 = vmatprep.subr.mxu0 0.0
        %3800 = vmatpush1.xpose.msra.mxu0 0.0
        %3801 = vmatprep.subr.mxu0 0.0
        %3802 = vmatpush1.xpose.msra.mxu0 0.0
        %3803 = vmatprep.subr.mxu0 0.0
        %3804 = vmatpush1.xpose.msra.mxu0 0.0
        %3805 = vmatprep.subr.mxu0 0.0
        %3806 = vmatpush1.xpose.msra.mxu0 0.0
        %3807 = vmatprep.subr.mxu0 0.0
        %3808 = vmatpush1.xpose.msra.mxu0 0.0
        %3809 = vmatprep.subr.mxu0 0.0
        %3810 = vmatpush1.xpose.msra.mxu0 0.0
        %3811 = vmatprep.subr.mxu0 0.0
        %3812 = vmatpush1.xpose.msra.mxu0 0.0
        %3813 = vmatprep.subr.mxu0 0.0
        %3814 = vmatpush1.xpose.msra.mxu0 0.0
        %3815 = vmatprep.subr.mxu0 0.0
        %3816 = vmatpush1.xpose.msra.mxu0 0.0
        %3817 = vmatprep.subr.mxu0 0.0
        %3818 = vmatpush1.xpose.msra.mxu0 0.0
        %3819 = vmatprep.subr.mxu0 0.0
        %3820 = vmatpush1.xpose.msra.mxu0 0.0
        %3821 = vmatprep.subr.mxu0 0.0
        %3822 = vmatpush1.xpose.msra.mxu0 0.0
        %3823 = vmatprep.subr.mxu0 0.0
        %3824 = vmatpush1.xpose.msra.mxu0 0.0
        %3825 = vmatprep.subr.mxu0 0.0
        %3826 = vmatpush1.xpose.msra.mxu0 0.0
        %3827 = vmatprep.subr.mxu0 0.0
        %3828 = vmatpush1.xpose.msra.mxu0 0.0
        %3829 = vmatprep.subr.mxu0 0.0
        %3830 = vmatpush1.xpose.msra.mxu0 0.0
        %3831 = vmatprep.subr.mxu0 0.0
        %3832 = vmatpush1.xpose.msra.mxu0 0.0
        %3833 = vmatprep.subr.mxu0 0.0
        %3834 = vmatpush1.xpose.msra.mxu0 0.0
        %3835 = vmatprep.subr.mxu0 0.0
        %3836 = vmatpush1.xpose.msra.mxu0 0.0
        %3837 = vmatprep.subr.mxu0 0.0
        %3838 = vmatpush1.xpose.msra.mxu0 0.0
        %3839 = vmatprep.subr.mxu0 0.0
        %3840 = vmatpush1.xpose.msra.mxu0 0.0
        %3841 = vmatprep.subr.mxu0 0.0
        %3842 = vmatpush1.xpose.msra.mxu0 0.0
        %3843 = vmatprep.subr.mxu0 0.0
        %3844 = vmatpush1.xpose.msra.mxu0 0.0
        %3845 = vmatprep.subr.mxu0 0.0
        %3846 = vmatpush1.xpose.msra.mxu0 0.0
        %3847 = vmatprep.subr.mxu0 0.0
        %3848 = vmatpush1.xpose.msra.mxu0 0.0
        %3849 = vmatprep.subr.mxu0 0.0
        %3850 = vmatpush1.xpose.msra.mxu0 0.0
        %3851 = vmatprep.mubr.f32.mxu0 0.0
        %3852 = vmatmul.mubr.f32.gmra.mrb[0].mxu0 %v989
        %v3853 = vpop.f32.mrb[0].mxu0
        %v3854 = vadd.f32 %v3786, %v3853
        %v3855 = vpop.f32.mrb[0].mxu0
        %3856 = vmatprep.mubr.f32.mxu0 0.0
        %3857 = vmatmul.mubr.f32.gmra.mrb[0].mxu0 %v990
        %v3858 = vpop.f32.mrb[0].mxu0
        %v3859 = vadd.f32 %v3786, %v3858
        %v3860 = vpop.f32.mrb[0].mxu0
        %3861 = vdwg.mxu0
        %v3862 = vmul.f32 %v3688, 0.25
        %v3863 = vmul.f32 %v3693, 0.25
        %v3865 = vsel %vm1239, %v3862, 0
        %v3868 = vsel %vm1239, %v3771, 0
        %3870 = vmatprep.subr.mxu0 0.0
        %3871 = vmatpush1.xpose.msra.mxu0 %v3868
        %3872 = vmatprep.subr.mxu0 0.0
        %3873 = vmatpush1.xpose.msra.mxu0 0.0
        %3874 = vmatprep.subr.mxu0 0.0
        %3875 = vmatpush1.xpose.msra.mxu0 0.0
        %3876 = vmatprep.subr.mxu0 0.0
        %3877 = vmatpush1.xpose.msra.mxu0 0.0
        %3878 = vmatprep.subr.mxu0 0.0
        %3879 = vmatpush1.xpose.msra.mxu0 0.0
        %3880 = vmatprep.subr.mxu0 0.0
        %3881 = vmatpush1.xpose.msra.mxu0 0.0
        %3882 = vmatprep.subr.mxu0 0.0
        %3883 = vmatpush1.xpose.msra.mxu0 0.0
        %3884 = vmatprep.subr.mxu0 0.0
        %3885 = vmatpush1.xpose.msra.mxu0 0.0
        %3886 = vmatprep.subr.mxu0 0.0
        %3887 = vmatpush1.xpose.msra.mxu0 0.0
        %3888 = vmatprep.subr.mxu0 0.0
        %3889 = vmatpush1.xpose.msra.mxu0 0.0
        %3890 = vmatprep.subr.mxu0 0.0
        %3891 = vmatpush1.xpose.msra.mxu0 0.0
        %3892 = vmatprep.subr.mxu0 0.0
        %3893 = vmatpush1.xpose.msra.mxu0 0.0
        %3894 = vmatprep.subr.mxu0 0.0
        %3895 = vmatpush1.xpose.msra.mxu0 0.0
        %3896 = vmatprep.subr.mxu0 0.0
        %3897 = vmatpush1.xpose.msra.mxu0 0.0
        %3898 = vmatprep.subr.mxu0 0.0
        %3899 = vmatpush1.xpose.msra.mxu0 0.0
        %3900 = vmatprep.subr.mxu0 0.0
        %3901 = vmatpush1.xpose.msra.mxu0 0.0
        %3902 = vmatprep.subr.mxu0 0.0
        %3903 = vmatpush1.xpose.msra.mxu0 0.0
        %3904 = vmatprep.subr.mxu0 0.0
        %3905 = vmatpush1.xpose.msra.mxu0 0.0
        %3906 = vmatprep.subr.mxu0 0.0
        %3907 = vmatpush1.xpose.msra.mxu0 0.0
        %3908 = vmatprep.subr.mxu0 0.0
        %3909 = vmatpush1.xpose.msra.mxu0 0.0
        %3910 = vmatprep.subr.mxu0 0.0
        %3911 = vmatpush1.xpose.msra.mxu0 0.0
        %3912 = vmatprep.subr.mxu0 0.0
        %3913 = vmatpush1.xpose.msra.mxu0 0.0
        %3914 = vmatprep.subr.mxu0 0.0
        %3915 = vmatpush1.xpose.msra.mxu0 0.0
        %3916 = vmatprep.subr.mxu0 0.0
        %3917 = vmatpush1.xpose.msra.mxu0 0.0
        %3918 = vmatprep.subr.mxu0 0.0
        %3919 = vmatpush1.xpose.msra.mxu0 0.0
        %3920 = vmatprep.subr.mxu0 0.0
        %3921 = vmatpush1.xpose.msra.mxu0 0.0
        %3922 = vmatprep.subr.mxu0 0.0
        %3923 = vmatpush1.xpose.msra.mxu0 0.0
        %3924 = vmatprep.subr.mxu0 0.0
        %3925 = vmatpush1.xpose.msra.mxu0 0.0
        %3926 = vmatprep.subr.mxu0 0.0
        %3927 = vmatpush1.xpose.msra.mxu0 0.0
        %3928 = vmatprep.subr.mxu0 0.0
        %3929 = vmatpush1.xpose.msra.mxu0 0.0
        %3930 = vmatprep.subr.mxu0 0.0
        %3931 = vmatpush1.xpose.msra.mxu0 0.0
        %3932 = vmatprep.subr.mxu0 0.0
        %3933 = vmatpush1.xpose.msra.mxu0 0.0
        %3934 = vmatprep.mubr.f32.mxu0 0.0
        %3935 = vmatmul.mubr.f32.gmra.mrb[0].mxu0 %v3865
        %v3936 = vpop.f32.mrb[0].mxu0
        %v3937 = vadd.f32 0.0, %v3936
        %v3938 = vpop.f32.mrb[0].mxu0
        %3939 = vdwg.mxu0
        %v3941 = vsel %vm1239, %v3863, 0
        %v3944 = vsel %vm1239, %v3776, 0
        %3946 = vmatprep.subr.mxu0 0.0
        %3947 = vmatpush1.xpose.msra.mxu0 %v3944
        %3948 = vmatprep.subr.mxu0 0.0
        %3949 = vmatpush1.xpose.msra.mxu0 0.0
        %3950 = vmatprep.subr.mxu0 0.0
        %3951 = vmatpush1.xpose.msra.mxu0 0.0
        %3952 = vmatprep.subr.mxu0 0.0
        %3953 = vmatpush1.xpose.msra.mxu0 0.0
        %3954 = vmatprep.subr.mxu0 0.0
        %3955 = vmatpush1.xpose.msra.mxu0 0.0
        %3956 = vmatprep.subr.mxu0 0.0
        %3957 = vmatpush1.xpose.msra.mxu0 0.0
        %3958 = vmatprep.subr.mxu0 0.0
        %3959 = vmatpush1.xpose.msra.mxu0 0.0
        %3960 = vmatprep.subr.mxu0 0.0
        %3961 = vmatpush1.xpose.msra.mxu0 0.0
        %3962 = vmatprep.subr.mxu0 0.0
        %3963 = vmatpush1.xpose.msra.mxu0 0.0
        %3964 = vmatprep.subr.mxu0 0.0
        %3965 = vmatpush1.xpose.msra.mxu0 0.0
        %3966 = vmatprep.subr.mxu0 0.0
        %3967 = vmatpush1.xpose.msra.mxu0 0.0
        %3968 = vmatprep.subr.mxu0 0.0
        %3969 = vmatpush1.xpose.msra.mxu0 0.0
        %3970 = vmatprep.subr.mxu0 0.0
        %3971 = vmatpush1.xpose.msra.mxu0 0.0
        %3972 = vmatprep.subr.mxu0 0.0
        %3973 = vmatpush1.xpose.msra.mxu0 0.0
        %3974 = vmatprep.subr.mxu0 0.0
        %3975 = vmatpush1.xpose.msra.mxu0 0.0
        %3976 = vmatprep.subr.mxu0 0.0
        %3977 = vmatpush1.xpose.msra.mxu0 0.0
        %3978 = vmatprep.subr.mxu0 0.0
        %3979 = vmatpush1.xpose.msra.mxu0 0.0
        %3980 = vmatprep.subr.mxu0 0.0
        %3981 = vmatpush1.xpose.msra.mxu0 0.0
        %3982 = vmatprep.subr.mxu0 0.0
        %3983 = vmatpush1.xpose.msra.mxu0 0.0
        %3984 = vmatprep.subr.mxu0 0.0
        %3985 = vmatpush1.xpose.msra.mxu0 0.0
        %3986 = vmatprep.subr.mxu0 0.0
        %3987 = vmatpush1.xpose.msra.mxu0 0.0
        %3988 = vmatprep.subr.mxu0 0.0
        %3989 = vmatpush1.xpose.msra.mxu0 0.0
        %3990 = vmatprep.subr.mxu0 0.0
        %3991 = vmatpush1.xpose.msra.mxu0 0.0
        %3992 = vmatprep.subr.mxu0 0.0
        %3993 = vmatpush1.xpose.msra.mxu0 0.0
        %3994 = vmatprep.subr.mxu0 0.0
        %3995 = vmatpush1.xpose.msra.mxu0 0.0
        %3996 = vmatprep.subr.mxu0 0.0
        %3997 = vmatpush1.xpose.msra.mxu0 0.0
        %3998 = vmatprep.subr.mxu0 0.0
        %3999 = vmatpush1.xpose.msra.mxu0 0.0
        %4000 = vmatprep.subr.mxu0 0.0
        %4001 = vmatpush1.xpose.msra.mxu0 0.0
        %4002 = vmatprep.subr.mxu0 0.0
        %4003 = vmatpush1.xpose.msra.mxu0 0.0
        %4004 = vmatprep.subr.mxu0 0.0
        %4005 = vmatpush1.xpose.msra.mxu0 0.0
        %4006 = vmatprep.subr.mxu0 0.0
        %4007 = vmatpush1.xpose.msra.mxu0 0.0
        %4008 = vmatprep.subr.mxu0 0.0
        %4009 = vmatpush1.xpose.msra.mxu0 0.0
        %4010 = vmatprep.mubr.f32.mxu0 0.0
        %4011 = vmatmul.mubr.f32.gmra.mrb[0].mxu0 %v3941
        %v4012 = vpop.f32.mrb[0].mxu0
        %v4013 = vadd.f32 0.0, %v4012
        %v4014 = vpop.f32.mrb[0].mxu0
        %4015 = vdwg.mxu0
        %v4016 = vsel %vm1392, %v3937, -inf
        %4017 = vmax.xlane.f32.xlu0 %v4016
        %v4018 = vpop.xlane.xlu0 %4017
        %v4019 = vsel %vm1392, %v4013, -inf
        %4020 = vmax.xlane.f32.xlu0 %v4019
        %v4021 = vpop.xlane.xlu0 %4020
        %v4022 = vsub.f32 %v3937, %v4018
        %v4023 = vsub.f32 %v4013, %v4021
        %v4024 = vmul.f32 %v4022, 1.442695
        %v4025 = vpow.pop %v4024
        %v4026 = vmul.f32 %v4023, 1.442695
        %v4027 = vpow.pop %v4026
        %v4028 = vsel %vm1392, %v4025, 0.0
        %4029 = vadd.xlane.f32.xlu0 %v4028
        %v4030 = vpop.xlane.xlu0 %4029
        %v4031 = vsel %vm1392, %v4027, 0.0
        %4032 = vadd.xlane.f32.xlu0 %v4031
        %v4033 = vpop.xlane.xlu0 %4032
        %v4034 = vrcp.pop %v4030
        %v4035 = vrcp.pop %v4033
        %v4036 = vmul.f32 %v4025, %v4034
        %v4037 = vmul.f32 %v4027, %v4035
        %v4039 = vsel %vm1392, %v4036, 0
        %4041 = vmatprep.subr.mxu0 0.0
        %4042 = vmatpush1.msra.mxu0 %v3854
        %4043 = vmatprep.subr.mxu0 0.0
        %4044 = vmatpush1.msra.mxu0 0.0
        %4045 = vmatprep.subr.mxu0 0.0
        %4046 = vmatpush1.msra.mxu0 0.0
        %4047 = vmatprep.subr.mxu0 0.0
        %4048 = vmatpush1.msra.mxu0 0.0
        %4049 = vmatprep.subr.mxu0 0.0
        %4050 = vmatpush1.msra.mxu0 0.0
        %4051 = vmatprep.subr.mxu0 0.0
        %4052 = vmatpush1.msra.mxu0 0.0
        %4053 = vmatprep.subr.mxu0 0.0
        %4054 = vmatpush1.msra.mxu0 0.0
        %4055 = vmatprep.subr.mxu0 0.0
        %4056 = vmatpush1.msra.mxu0 0.0
        %4057 = vmatprep.subr.mxu0 0.0
        %4058 = vmatpush1.msra.mxu0 0.0
        %4059 = vmatprep.subr.mxu0 0.0
        %4060 = vmatpush1.msra.mxu0 0.0
        %4061 = vmatprep.subr.mxu0 0.0
        %4062 = vmatpush1.msra.mxu0 0.0
        %4063 = vmatprep.subr.mxu0 0.0
        %4064 = vmatpush1.msra.mxu0 0.0
        %4065 = vmatprep.subr.mxu0 0.0
        %4066 = vmatpush1.msra.mxu0 0.0
        %4067 = vmatprep.subr.mxu0 0.0
        %4068 = vmatpush1.msra.mxu0 0.0
        %4069 = vmatprep.subr.mxu0 0.0
        %4070 = vmatpush1.msra.mxu0 0.0
        %4071 = vmatprep.subr.mxu0 0.0
        %4072 = vmatpush1.msra.mxu0 0.0
        %4073 = vmatprep.subr.mxu0 0.0
        %4074 = vmatpush1.msra.mxu0 0.0
        %4075 = vmatprep.subr.mxu0 0.0
        %4076 = vmatpush1.msra.mxu0 0.0
        %4077 = vmatprep.subr.mxu0 0.0
        %4078 = vmatpush1.msra.mxu0 0.0
        %4079 = vmatprep.subr.mxu0 0.0
        %4080 = vmatpush1.msra.mxu0 0.0
        %4081 = vmatprep.subr.mxu0 0.0
        %4082 = vmatpush1.msra.mxu0 0.0
        %4083 = vmatprep.subr.mxu0 0.0
        %4084 = vmatpush1.msra.mxu0 0.0
        %4085 = vmatprep.subr.mxu0 0.0
        %4086 = vmatpush1.msra.mxu0 0.0
        %4087 = vmatprep.subr.mxu0 0.0
        %4088 = vmatpush1.msra.mxu0 0.0
        %4089 = vmatprep.subr.mxu0 0.0
        %4090 = vmatpush1.msra.mxu0 0.0
        %4091 = vmatprep.subr.mxu0 0.0
        %4092 = vmatpush1.msra.mxu0 0.0
        %4093 = vmatprep.subr.mxu0 0.0
        %4094 = vmatpush1.msra.mxu0 0.0
        %4095 = vmatprep.subr.mxu0 0.0
        %4096 = vmatpush1.msra.mxu0 0.0
        %4097 = vmatprep.subr.mxu0 0.0
        %4098 = vmatpush1.msra.mxu0 0.0
        %4099 = vmatprep.subr.mxu0 0.0
        %4100 = vmatpush1.msra.mxu0 0.0
        %4101 = vmatprep.subr.mxu0 0.0
        %4102 = vmatpush1.msra.mxu0 0.0
        %4103 = vmatprep.subr.mxu0 0.0
        %4104 = vmatpush1.msra.mxu0 0.0
        %4105 = vmatprep.mubr.f32.mxu0 0.0
        %4106 = vmatmul.mubr.f32.gmra.mrb[0].mxu0 %v4039
        %v4107 = vpop.f32.mrb[0].mxu0
        %v4108 = vadd.f32 0.0, %v4107
        %v4109 = vpop.f32.mrb[0].mxu0
        %4110 = vdwg.mxu0
        %v4112 = vsel %vm1392, %v4037, 0
        %4114 = vmatprep.subr.mxu0 0.0
        %4115 = vmatpush1.msra.mxu0 %v3859
        %4116 = vmatprep.subr.mxu0 0.0
        %4117 = vmatpush1.msra.mxu0 0.0
        %4118 = vmatprep.subr.mxu0 0.0
        %4119 = vmatpush1.msra.mxu0 0.0
        %4120 = vmatprep.subr.mxu0 0.0
        %4121 = vmatpush1.msra.mxu0 0.0
        %4122 = vmatprep.subr.mxu0 0.0
        %4123 = vmatpush1.msra.mxu0 0.0
        %4124 = vmatprep.subr.mxu0 0.0
        %4125 = vmatpush1.msra.mxu0 0.0
        %4126 = vmatprep.subr.mxu0 0.0
        %4127 = vmatpush1.msra.mxu0 0.0
        %4128 = vmatprep.subr.mxu0 0.0
        %4129 = vmatpush1.msra.mxu0 0.0
        %4130 = vmatprep.subr.mxu0 0.0
        %4131 = vmatpush1.msra.mxu0 0.0
        %4132 = vmatprep.subr.mxu0 0.0
        %4133 = vmatpush1.msra.mxu0 0.0
        %4134 = vmatprep.subr.mxu0 0.0
        %4135 = vmatpush1.msra.mxu0 0.0
        %4136 = vmatprep.subr.mxu0 0.0
        %4137 = vmatpush1.msra.mxu0 0.0
        %4138 = vmatprep.subr.mxu0 0.0
        %4139 = vmatpush1.msra.mxu0 0.0
        %4140 = vmatprep.subr.mxu0 0.0
        %4141 = vmatpush1.msra.mxu0 0.0
        %4142 = vmatprep.subr.mxu0 0.0
        %4143 = vmatpush1.msra.mxu0 0.0
        %4144 = vmatprep.subr.mxu0 0.0
        %4145 = vmatpush1.msra.mxu0 0.0
        %4146 = vmatprep.subr.mxu0 0.0
        %4147 = vmatpush1.msra.mxu0 0.0
        %4148 = vmatprep.subr.mxu0 0.0
        %4149 = vmatpush1.msra.mxu0 0.0
        %4150 = vmatprep.subr.mxu0 0.0
        %4151 = vmatpush1.msra.mxu0 0.0
        %4152 = vmatprep.subr.mxu0 0.0
        %4153 = vmatpush1.msra.mxu0 0.0
        %4154 = vmatprep.subr.mxu0 0.0
        %4155 = vmatpush1.msra.mxu0 0.0
        %4156 = vmatprep.subr.mxu0 0.0
        %4157 = vmatpush1.msra.mxu0 0.0
        %4158 = vmatprep.subr.mxu0 0.0
        %4159 = vmatpush1.msra.mxu0 0.0
        %4160 = vmatprep.subr.mxu0 0.0
        %4161 = vmatpush1.msra.mxu0 0.0
        %4162 = vmatprep.subr.mxu0 0.0
        %4163 = vmatpush1.msra.mxu0 0.0
        %4164 = vmatprep.subr.mxu0 0.0
        %4165 = vmatpush1.msra.mxu0 0.0
        %4166 = vmatprep.subr.mxu0 0.0
        %4167 = vmatpush1.msra.mxu0 0.0
        %4168 = vmatprep.subr.mxu0 0.0
        %4169 = vmatpush1.msra.mxu0 0.0
        %4170 = vmatprep.subr.mxu0 0.0
        %4171 = vmatpush1.msra.mxu0 0.0
        %4172 = vmatprep.subr.mxu0 0.0
        %4173 = vmatpush1.msra.mxu0 0.0
        %4174 = vmatprep.subr.mxu0 0.0
        %4175 = vmatpush1.msra.mxu0 0.0
        %4176 = vmatprep.subr.mxu0 0.0
        %4177 = vmatpush1.msra.mxu0 0.0
        %4178 = vmatprep.mubr.f32.mxu0 0.0
        %4179 = vmatmul.mubr.f32.gmra.mrb[0].mxu0 %v4112
        %v4180 = vpop.f32.mrb[0].mxu0
        %v4181 = vadd.f32 0.0, %v4180
        %v4182 = vpop.f32.mrb[0].mxu0
        %4183 = vdwg.mxu0
        %s4184 = scalar_lea.vmem %s825, 64 [#allocation13]
        %v4185 = vld [vmem:[%s4184] sm:$0xff]
        %v4186 = vld [vmem:[%s4184 + $0x8] sm:$0xff]
        %v4188 = vsel %vm1239, %v4108, 0
        %v4191 = vsel %vm1239, %v4181, 0
        %4193 = vmatprep.subr.mxu0 0.0
        %4194 = vmatpush1.msra.mxu0 %v4185
        %4195 = vmatprep.subr.mxu0 0.0
        %4196 = vmatpush1.msra.mxu0 %v4186
        %4197 = vmatprep.subr.mxu0 0.0
        %4198 = vmatpush1.msra.mxu0 0.0
        %4199 = vmatprep.subr.mxu0 0.0
        %4200 = vmatpush1.msra.mxu0 0.0
        %4201 = vmatprep.subr.mxu0 0.0
        %4202 = vmatpush1.msra.mxu0 0.0
        %4203 = vmatprep.subr.mxu0 0.0
        %4204 = vmatpush1.msra.mxu0 0.0
        %4205 = vmatprep.subr.mxu0 0.0
        %4206 = vmatpush1.msra.mxu0 0.0
        %4207 = vmatprep.subr.mxu0 0.0
        %4208 = vmatpush1.msra.mxu0 0.0
        %4209 = vmatprep.subr.mxu0 0.0
        %4210 = vmatpush1.msra.mxu0 0.0
        %4211 = vmatprep.subr.mxu0 0.0
        %4212 = vmatpush1.msra.mxu0 0.0
        %4213 = vmatprep.subr.mxu0 0.0
        %4214 = vmatpush1.msra.mxu0 0.0
        %4215 = vmatprep.subr.mxu0 0.0
        %4216 = vmatpush1.msra.mxu0 0.0
        %4217 = vmatprep.subr.mxu0 0.0
        %4218 = vmatpush1.msra.mxu0 0.0
        %4219 = vmatprep.subr.mxu0 0.0
        %4220 = vmatpush1.msra.mxu0 0.0
        %4221 = vmatprep.subr.mxu0 0.0
        %4222 = vmatpush1.msra.mxu0 0.0
        %4223 = vmatprep.subr.mxu0 0.0
        %4224 = vmatpush1.msra.mxu0 0.0
        %4225 = vmatprep.subr.mxu0 0.0
        %4226 = vmatpush1.msra.mxu0 0.0
        %4227 = vmatprep.subr.mxu0 0.0
        %4228 = vmatpush1.msra.mxu0 0.0
        %4229 = vmatprep.subr.mxu0 0.0
        %4230 = vmatpush1.msra.mxu0 0.0
        %4231 = vmatprep.subr.mxu0 0.0
        %4232 = vmatpush1.msra.mxu0 0.0
        %4233 = vmatprep.subr.mxu0 0.0
        %4234 = vmatpush1.msra.mxu0 0.0
        %4235 = vmatprep.subr.mxu0 0.0
        %4236 = vmatpush1.msra.mxu0 0.0
        %4237 = vmatprep.subr.mxu0 0.0
        %4238 = vmatpush1.msra.mxu0 0.0
        %4239 = vmatprep.subr.mxu0 0.0
        %4240 = vmatpush1.msra.mxu0 0.0
        %4241 = vmatprep.subr.mxu0 0.0
        %4242 = vmatpush1.msra.mxu0 0.0
        %4243 = vmatprep.subr.mxu0 0.0
        %4244 = vmatpush1.msra.mxu0 0.0
        %4245 = vmatprep.subr.mxu0 0.0
        %4246 = vmatpush1.msra.mxu0 0.0
        %4247 = vmatprep.subr.mxu0 0.0
        %4248 = vmatpush1.msra.mxu0 0.0
        %4249 = vmatprep.subr.mxu0 0.0
        %4250 = vmatpush1.msra.mxu0 0.0
        %4251 = vmatprep.subr.mxu0 0.0
        %4252 = vmatpush1.msra.mxu0 0.0
        %4253 = vmatprep.subr.mxu0 0.0
        %4254 = vmatpush1.msra.mxu0 0.0
        %4255 = vmatprep.subr.mxu0 0.0
        %4256 = vmatpush1.msra.mxu0 0.0
        %4257 = vmatprep.mubr.f32.mxu0 0.0
        %4258 = vmatmul.mubr.f32.gmra.mrb[0].mxu0 %v4188
        %v4259 = vpop.f32.mrb[0].mxu0
        %v4260 = vadd.f32 0.0, %v4259
        %v4261 = vpop.f32.mrb[0].mxu0
        %4262 = vmatprep.mubr.f32.mxu0 0.0
        %4263 = vmatmul.mubr.f32.gmra.mrb[0].mxu0 %v4191
        %v4264 = vpop.f32.mrb[0].mxu0
        %v4265 = vadd.f32 0.0, %v4264
        %v4266 = vpop.f32.mrb[0].mxu0
        %4267 = vdwg.mxu0
        %v4268 = vadd.f32 %v3611, %v4260
        %v4269 = vadd.f32 %v3612, %v4265
        %s4270 = scalar_lea.vmem %s780, 80 [#allocation8]
        %v4271 = vld [vmem:[%s4270] sm:$0xff]
        %v4272 = vld [vmem:[%s4270 + $0x8] sm:$0xff]
        %v4273 = vld [vmem:[%s955 + $0x5] sm:$0x1]
        %v4274 = vlaneseq
        %v4275 = vshrl.u32 %v4274, 7
        %v4276 = vsub.s32 0, %v4275
        %v4277 = vrot.slane %v4273, %v4276
        %4278 = vmatprep.subr.mxu0 0.0
        %4279 = vmatpush1.xpose.msra.mxu0 %v4271
        %4280 = vmatprep.subr.mxu0 0.0
        %4281 = vmatpush1.xpose.msra.mxu0 %v4272
        %4282 = vmatprep.subr.mxu0 0.0
        %4283 = vmatpush1.xpose.msra.mxu0 0.0
        %4284 = vmatprep.subr.mxu0 0.0
        %4285 = vmatpush1.xpose.msra.mxu0 0.0
        %4286 = vmatprep.subr.mxu0 0.0
        %4287 = vmatpush1.xpose.msra.mxu0 0.0
        %4288 = vmatprep.subr.mxu0 0.0
        %4289 = vmatpush1.xpose.msra.mxu0 0.0
        %4290 = vmatprep.subr.mxu0 0.0
        %4291 = vmatpush1.xpose.msra.mxu0 0.0
        %4292 = vmatprep.subr.mxu0 0.0
        %4293 = vmatpush1.xpose.msra.mxu0 0.0
        %4294 = vmatprep.subr.mxu0 0.0
        %4295 = vmatpush1.xpose.msra.mxu0 0.0
        %4296 = vmatprep.subr.mxu0 0.0
        %4297 = vmatpush1.xpose.msra.mxu0 0.0
        %4298 = vmatprep.subr.mxu0 0.0
        %4299 = vmatpush1.xpose.msra.mxu0 0.0
        %4300 = vmatprep.subr.mxu0 0.0
        %4301 = vmatpush1.xpose.msra.mxu0 0.0
        %4302 = vmatprep.subr.mxu0 0.0
        %4303 = vmatpush1.xpose.msra.mxu0 0.0
        %4304 = vmatprep.subr.mxu0 0.0
        %4305 = vmatpush1.xpose.msra.mxu0 0.0
        %4306 = vmatprep.subr.mxu0 0.0
        %4307 = vmatpush1.xpose.msra.mxu0 0.0
        %4308 = vmatprep.subr.mxu0 0.0
        %4309 = vmatpush1.xpose.msra.mxu0 0.0
        %4310 = vmatprep.subr.mxu0 0.0
        %4311 = vmatpush1.xpose.msra.mxu0 0.0
        %4312 = vmatprep.subr.mxu0 0.0
        %4313 = vmatpush1.xpose.msra.mxu0 0.0
        %4314 = vmatprep.subr.mxu0 0.0
        %4315 = vmatpush1.xpose.msra.mxu0 0.0
        %4316 = vmatprep.subr.mxu0 0.0
        %4317 = vmatpush1.xpose.msra.mxu0 0.0
        %4318 = vmatprep.subr.mxu0 0.0
        %4319 = vmatpush1.xpose.msra.mxu0 0.0
        %4320 = vmatprep.subr.mxu0 0.0
        %4321 = vmatpush1.xpose.msra.mxu0 0.0
        %4322 = vmatprep.subr.mxu0 0.0
        %4323 = vmatpush1.xpose.msra.mxu0 0.0
        %4324 = vmatprep.subr.mxu0 0.0
        %4325 = vmatpush1.xpose.msra.mxu0 0.0
        %4326 = vmatprep.subr.mxu0 0.0
        %4327 = vmatpush1.xpose.msra.mxu0 0.0
        %4328 = vmatprep.subr.mxu0 0.0
        %4329 = vmatpush1.xpose.msra.mxu0 0.0
        %4330 = vmatprep.subr.mxu0 0.0
        %4331 = vmatpush1.xpose.msra.mxu0 0.0
        %4332 = vmatprep.subr.mxu0 0.0
        %4333 = vmatpush1.xpose.msra.mxu0 0.0
        %4334 = vmatprep.subr.mxu0 0.0
        %4335 = vmatpush1.xpose.msra.mxu0 0.0
        %4336 = vmatprep.subr.mxu0 0.0
        %4337 = vmatpush1.xpose.msra.mxu0 0.0
        %4338 = vmatprep.subr.mxu0 0.0
        %4339 = vmatpush1.xpose.msra.mxu0 0.0
        %4340 = vmatprep.subr.mxu0 0.0
        %4341 = vmatpush1.xpose.msra.mxu0 0.0
        %4342 = vmatprep.mubr.f32.mxu0 0.0
        %4343 = vmatmul.mubr.f32.gmra.mrb[0].mxu0 %v989
        %v4344 = vpop.f32.mrb[0].mxu0
        %v4345 = vadd.f32 %v4277, %v4344
        %v4346 = vpop.f32.mrb[0].mxu0
        %4347 = vmatprep.mubr.f32.mxu0 0.0
        %4348 = vmatmul.mubr.f32.gmra.mrb[0].mxu0 %v990
        %v4349 = vpop.f32.mrb[0].mxu0
        %v4350 = vadd.f32 %v4277, %v4349
        %v4351 = vpop.f32.mrb[0].mxu0
        %4352 = vdwg.mxu0
        %s4353 = scalar_lea.vmem %s789, 80 [#allocation9]
        %v4354 = vld [vmem:[%s4353] sm:$0xff]
        %v4355 = vld [vmem:[%s4353 + $0x8] sm:$0xff]
        %v4356 = vld [vmem:[%s807 + $0x5] sm:$0x1]
        %v4357 = vlaneseq
        %v4358 = vshrl.u32 %v4357, 7
        %v4359 = vsub.s32 0, %v4358
        %v4360 = vrot.slane %v4356, %v4359
        %4361 = vmatprep.subr.mxu0 0.0
        %4362 = vmatpush1.xpose.msra.mxu0 %v4354
        %4363 = vmatprep.subr.mxu0 0.0
        %4364 = vmatpush1.xpose.msra.mxu0 %v4355
        %4365 = vmatprep.subr.mxu0 0.0
        %4366 = vmatpush1.xpose.msra.mxu0 0.0
        %4367 = vmatprep.subr.mxu0 0.0
        %4368 = vmatpush1.xpose.msra.mxu0 0.0
        %4369 = vmatprep.subr.mxu0 0.0
        %4370 = vmatpush1.xpose.msra.mxu0 0.0
        %4371 = vmatprep.subr.mxu0 0.0
        %4372 = vmatpush1.xpose.msra.mxu0 0.0
        %4373 = vmatprep.subr.mxu0 0.0
        %4374 = vmatpush1.xpose.msra.mxu0 0.0
        %4375 = vmatprep.subr.mxu0 0.0
        %4376 = vmatpush1.xpose.msra.mxu0 0.0
        %4377 = vmatprep.subr.mxu0 0.0
        %4378 = vmatpush1.xpose.msra.mxu0 0.0
        %4379 = vmatprep.subr.mxu0 0.0
        %4380 = vmatpush1.xpose.msra.mxu0 0.0
        %4381 = vmatprep.subr.mxu0 0.0
        %4382 = vmatpush1.xpose.msra.mxu0 0.0
        %4383 = vmatprep.subr.mxu0 0.0
        %4384 = vmatpush1.xpose.msra.mxu0 0.0
        %4385 = vmatprep.subr.mxu0 0.0
        %4386 = vmatpush1.xpose.msra.mxu0 0.0
        %4387 = vmatprep.subr.mxu0 0.0
        %4388 = vmatpush1.xpose.msra.mxu0 0.0
        %4389 = vmatprep.subr.mxu0 0.0
        %4390 = vmatpush1.xpose.msra.mxu0 0.0
        %4391 = vmatprep.subr.mxu0 0.0
        %4392 = vmatpush1.xpose.msra.mxu0 0.0
        %4393 = vmatprep.subr.mxu0 0.0
        %4394 = vmatpush1.xpose.msra.mxu0 0.0
        %4395 = vmatprep.subr.mxu0 0.0
        %4396 = vmatpush1.xpose.msra.mxu0 0.0
        %4397 = vmatprep.subr.mxu0 0.0
        %4398 = vmatpush1.xpose.msra.mxu0 0.0
        %4399 = vmatprep.subr.mxu0 0.0
        %4400 = vmatpush1.xpose.msra.mxu0 0.0
        %4401 = vmatprep.subr.mxu0 0.0
        %4402 = vmatpush1.xpose.msra.mxu0 0.0
        %4403 = vmatprep.subr.mxu0 0.0
        %4404 = vmatpush1.xpose.msra.mxu0 0.0
        %4405 = vmatprep.subr.mxu0 0.0
        %4406 = vmatpush1.xpose.msra.mxu0 0.0
        %4407 = vmatprep.subr.mxu0 0.0
        %4408 = vmatpush1.xpose.msra.mxu0 0.0
        %4409 = vmatprep.subr.mxu0 0.0
        %4410 = vmatpush1.xpose.msra.mxu0 0.0
        %4411 = vmatprep.subr.mxu0 0.0
        %4412 = vmatpush1.xpose.msra.mxu0 0.0
        %4413 = vmatprep.subr.mxu0 0.0
        %4414 = vmatpush1.xpose.msra.mxu0 0.0
        %4415 = vmatprep.subr.mxu0 0.0
        %4416 = vmatpush1.xpose.msra.mxu0 0.0
        %4417 = vmatprep.subr.mxu0 0.0
        %4418 = vmatpush1.xpose.msra.mxu0 0.0
        %4419 = vmatprep.subr.mxu0 0.0
        %4420 = vmatpush1.xpose.msra.mxu0 0.0
        %4421 = vmatprep.subr.mxu0 0.0
        %4422 = vmatpush1.xpose.msra.mxu0 0.0
        %4423 = vmatprep.subr.mxu0 0.0
        %4424 = vmatpush1.xpose.msra.mxu0 0.0
        %4425 = vmatprep.mubr.f32.mxu0 0.0
        %4426 = vmatmul.mubr.f32.gmra.mrb[0].mxu0 %v989
        %v4427 = vpop.f32.mrb[0].mxu0
        %v4428 = vadd.f32 %v4360, %v4427
        %v4429 = vpop.f32.mrb[0].mxu0
        %4430 = vmatprep.mubr.f32.mxu0 0.0
        %4431 = vmatmul.mubr.f32.gmra.mrb[0].mxu0 %v990
        %v4432 = vpop.f32.mrb[0].mxu0
        %v4433 = vadd.f32 %v4360, %v4432
        %v4434 = vpop.f32.mrb[0].mxu0
        %4435 = vdwg.mxu0
        %s4436 = scalar_lea.vmem %s798, 80 [#allocation10]
        %v4437 = vld [vmem:[%s4436] sm:$0xff]
        %v4438 = vld [vmem:[%s4436 + $0x8] sm:$0xff]
        %v4439 = vld [vmem:[%s816 + $0x5] sm:$0x1]
        %v4440 = vlaneseq
        %v4441 = vshrl.u32 %v4440, 7
        %v4442 = vsub.s32 0, %v4441
        %v4443 = vrot.slane %v4439, %v4442
        %4444 = vmatprep.subr.mxu0 0.0
        %4445 = vmatpush1.xpose.msra.mxu0 %v4437
        %4446 = vmatprep.subr.mxu0 0.0
        %4447 = vmatpush1.xpose.msra.mxu0 %v4438
        %4448 = vmatprep.subr.mxu0 0.0
        %4449 = vmatpush1.xpose.msra.mxu0 0.0
        %4450 = vmatprep.subr.mxu0 0.0
        %4451 = vmatpush1.xpose.msra.mxu0 0.0
        %4452 = vmatprep.subr.mxu0 0.0
        %4453 = vmatpush1.xpose.msra.mxu0 0.0
        %4454 = vmatprep.subr.mxu0 0.0
        %4455 = vmatpush1.xpose.msra.mxu0 0.0
        %4456 = vmatprep.subr.mxu0 0.0
        %4457 = vmatpush1.xpose.msra.mxu0 0.0
        %4458 = vmatprep.subr.mxu0 0.0
        %4459 = vmatpush1.xpose.msra.mxu0 0.0
        %4460 = vmatprep.subr.mxu0 0.0
        %4461 = vmatpush1.xpose.msra.mxu0 0.0
        %4462 = vmatprep.subr.mxu0 0.0
        %4463 = vmatpush1.xpose.msra.mxu0 0.0
        %4464 = vmatprep.subr.mxu0 0.0
        %4465 = vmatpush1.xpose.msra.mxu0 0.0
        %4466 = vmatprep.subr.mxu0 0.0
        %4467 = vmatpush1.xpose.msra.mxu0 0.0
        %4468 = vmatprep.subr.mxu0 0.0
        %4469 = vmatpush1.xpose.msra.mxu0 0.0
        %4470 = vmatprep.subr.mxu0 0.0
        %4471 = vmatpush1.xpose.msra.mxu0 0.0
        %4472 = vmatprep.subr.mxu0 0.0
        %4473 = vmatpush1.xpose.msra.mxu0 0.0
        %4474 = vmatprep.subr.mxu0 0.0
        %4475 = vmatpush1.xpose.msra.mxu0 0.0
        %4476 = vmatprep.subr.mxu0 0.0
        %4477 = vmatpush1.xpose.msra.mxu0 0.0
        %4478 = vmatprep.subr.mxu0 0.0
        %4479 = vmatpush1.xpose.msra.mxu0 0.0
        %4480 = vmatprep.subr.mxu0 0.0
        %4481 = vmatpush1.xpose.msra.mxu0 0.0
        %4482 = vmatprep.subr.mxu0 0.0
        %4483 = vmatpush1.xpose.msra.mxu0 0.0
        %4484 = vmatprep.subr.mxu0 0.0
        %4485 = vmatpush1.xpose.msra.mxu0 0.0
        %4486 = vmatprep.subr.mxu0 0.0
        %4487 = vmatpush1.xpose.msra.mxu0 0.0
        %4488 = vmatprep.subr.mxu0 0.0
        %4489 = vmatpush1.xpose.msra.mxu0 0.0
        %4490 = vmatprep.subr.mxu0 0.0
        %4491 = vmatpush1.xpose.msra.mxu0 0.0
        %4492 = vmatprep.subr.mxu0 0.0
        %4493 = vmatpush1.xpose.msra.mxu0 0.0
        %4494 = vmatprep.subr.mxu0 0.0
        %4495 = vmatpush1.xpose.msra.mxu0 0.0
        %4496 = vmatprep.subr.mxu0 0.0
        %4497 = vmatpush1.xpose.msra.mxu0 0.0
        %4498 = vmatprep.subr.mxu0 0.0
        %4499 = vmatpush1.xpose.msra.mxu0 0.0
        %4500 = vmatprep.subr.mxu0 0.0
        %4501 = vmatpush1.xpose.msra.mxu0 0.0
        %4502 = vmatprep.subr.mxu0 0.0
        %4503 = vmatpush1.xpose.msra.mxu0 0.0
        %4504 = vmatprep.subr.mxu0 0.0
        %4505 = vmatpush1.xpose.msra.mxu0 0.0
        %4506 = vmatprep.subr.mxu0 0.0
        %4507 = vmatpush1.xpose.msra.mxu0 0.0
        %4508 = vmatprep.mubr.f32.mxu0 0.0
        %4509 = vmatmul.mubr.f32.gmra.mrb[0].mxu0 %v989
        %v4510 = vpop.f32.mrb[0].mxu0
        %v4511 = vadd.f32 %v4443, %v4510
        %v4512 = vpop.f32.mrb[0].mxu0
        %4513 = vmatprep.mubr.f32.mxu0 0.0
        %4514 = vmatmul.mubr.f32.gmra.mrb[0].mxu0 %v990
        %v4515 = vpop.f32.mrb[0].mxu0
        %v4516 = vadd.f32 %v4443, %v4515
        %v4517 = vpop.f32.mrb[0].mxu0
        %4518 = vdwg.mxu0
        %v4519 = vmul.f32 %v4345, 0.25
        %v4520 = vmul.f32 %v4350, 0.25
        %v4522 = vsel %vm1239, %v4519, 0
        %v4525 = vsel %vm1239, %v4428, 0
        %4527 = vmatprep.subr.mxu0 0.0
        %4528 = vmatpush1.xpose.msra.mxu0 %v4525
        %4529 = vmatprep.subr.mxu0 0.0
        %4530 = vmatpush1.xpose.msra.mxu0 0.0
        %4531 = vmatprep.subr.mxu0 0.0
        %4532 = vmatpush1.xpose.msra.mxu0 0.0
        %4533 = vmatprep.subr.mxu0 0.0
        %4534 = vmatpush1.xpose.msra.mxu0 0.0
        %4535 = vmatprep.subr.mxu0 0.0
        %4536 = vmatpush1.xpose.msra.mxu0 0.0
        %4537 = vmatprep.subr.mxu0 0.0
        %4538 = vmatpush1.xpose.msra.mxu0 0.0
        %4539 = vmatprep.subr.mxu0 0.0
        %4540 = vmatpush1.xpose.msra.mxu0 0.0
        %4541 = vmatprep.subr.mxu0 0.0
        %4542 = vmatpush1.xpose.msra.mxu0 0.0
        %4543 = vmatprep.subr.mxu0 0.0
        %4544 = vmatpush1.xpose.msra.mxu0 0.0
        %4545 = vmatprep.subr.mxu0 0.0
        %4546 = vmatpush1.xpose.msra.mxu0 0.0
        %4547 = vmatprep.subr.mxu0 0.0
        %4548 = vmatpush1.xpose.msra.mxu0 0.0
        %4549 = vmatprep.subr.mxu0 0.0
        %4550 = vmatpush1.xpose.msra.mxu0 0.0
        %4551 = vmatprep.subr.mxu0 0.0
        %4552 = vmatpush1.xpose.msra.mxu0 0.0
        %4553 = vmatprep.subr.mxu0 0.0
        %4554 = vmatpush1.xpose.msra.mxu0 0.0
        %4555 = vmatprep.subr.mxu0 0.0
        %4556 = vmatpush1.xpose.msra.mxu0 0.0
        %4557 = vmatprep.subr.mxu0 0.0
        %4558 = vmatpush1.xpose.msra.mxu0 0.0
        %4559 = vmatprep.subr.mxu0 0.0
        %4560 = vmatpush1.xpose.msra.mxu0 0.0
        %4561 = vmatprep.subr.mxu0 0.0
        %4562 = vmatpush1.xpose.msra.mxu0 0.0
        %4563 = vmatprep.subr.mxu0 0.0
        %4564 = vmatpush1.xpose.msra.mxu0 0.0
        %4565 = vmatprep.subr.mxu0 0.0
        %4566 = vmatpush1.xpose.msra.mxu0 0.0
        %4567 = vmatprep.subr.mxu0 0.0
        %4568 = vmatpush1.xpose.msra.mxu0 0.0
        %4569 = vmatprep.subr.mxu0 0.0
        %4570 = vmatpush1.xpose.msra.mxu0 0.0
        %4571 = vmatprep.subr.mxu0 0.0
        %4572 = vmatpush1.xpose.msra.mxu0 0.0
        %4573 = vmatprep.subr.mxu0 0.0
        %4574 = vmatpush1.xpose.msra.mxu0 0.0
        %4575 = vmatprep.subr.mxu0 0.0
        %4576 = vmatpush1.xpose.msra.mxu0 0.0
        %4577 = vmatprep.subr.mxu0 0.0
        %4578 = vmatpush1.xpose.msra.mxu0 0.0
        %4579 = vmatprep.subr.mxu0 0.0
        %4580 = vmatpush1.xpose.msra.mxu0 0.0
        %4581 = vmatprep.subr.mxu0 0.0
        %4582 = vmatpush1.xpose.msra.mxu0 0.0
        %4583 = vmatprep.subr.mxu0 0.0
        %4584 = vmatpush1.xpose.msra.mxu0 0.0
        %4585 = vmatprep.subr.mxu0 0.0
        %4586 = vmatpush1.xpose.msra.mxu0 0.0
        %4587 = vmatprep.subr.mxu0 0.0
        %4588 = vmatpush1.xpose.msra.mxu0 0.0
        %4589 = vmatprep.subr.mxu0 0.0
        %4590 = vmatpush1.xpose.msra.mxu0 0.0
        %4591 = vmatprep.mubr.f32.mxu0 0.0
        %4592 = vmatmul.mubr.f32.gmra.mrb[0].mxu0 %v4522
        %v4593 = vpop.f32.mrb[0].mxu0
        %v4594 = vadd.f32 0.0, %v4593
        %v4595 = vpop.f32.mrb[0].mxu0
        %4596 = vdwg.mxu0
        %v4598 = vsel %vm1239, %v4520, 0
        %v4601 = vsel %vm1239, %v4433, 0
        %4603 = vmatprep.subr.mxu0 0.0
        %4604 = vmatpush1.xpose.msra.mxu0 %v4601
        %4605 = vmatprep.subr.mxu0 0.0
        %4606 = vmatpush1.xpose.msra.mxu0 0.0
        %4607 = vmatprep.subr.mxu0 0.0
        %4608 = vmatpush1.xpose.msra.mxu0 0.0
        %4609 = vmatprep.subr.mxu0 0.0
        %4610 = vmatpush1.xpose.msra.mxu0 0.0
        %4611 = vmatprep.subr.mxu0 0.0
        %4612 = vmatpush1.xpose.msra.mxu0 0.0
        %4613 = vmatprep.subr.mxu0 0.0
        %4614 = vmatpush1.xpose.msra.mxu0 0.0
        %4615 = vmatprep.subr.mxu0 0.0
        %4616 = vmatpush1.xpose.msra.mxu0 0.0
        %4617 = vmatprep.subr.mxu0 0.0
        %4618 = vmatpush1.xpose.msra.mxu0 0.0
        %4619 = vmatprep.subr.mxu0 0.0
        %4620 = vmatpush1.xpose.msra.mxu0 0.0
        %4621 = vmatprep.subr.mxu0 0.0
        %4622 = vmatpush1.xpose.msra.mxu0 0.0
        %4623 = vmatprep.subr.mxu0 0.0
        %4624 = vmatpush1.xpose.msra.mxu0 0.0
        %4625 = vmatprep.subr.mxu0 0.0
        %4626 = vmatpush1.xpose.msra.mxu0 0.0
        %4627 = vmatprep.subr.mxu0 0.0
        %4628 = vmatpush1.xpose.msra.mxu0 0.0
        %4629 = vmatprep.subr.mxu0 0.0
        %4630 = vmatpush1.xpose.msra.mxu0 0.0
        %4631 = vmatprep.subr.mxu0 0.0
        %4632 = vmatpush1.xpose.msra.mxu0 0.0
        %4633 = vmatprep.subr.mxu0 0.0
        %4634 = vmatpush1.xpose.msra.mxu0 0.0
        %4635 = vmatprep.subr.mxu0 0.0
        %4636 = vmatpush1.xpose.msra.mxu0 0.0
        %4637 = vmatprep.subr.mxu0 0.0
        %4638 = vmatpush1.xpose.msra.mxu0 0.0
        %4639 = vmatprep.subr.mxu0 0.0
        %4640 = vmatpush1.xpose.msra.mxu0 0.0
        %4641 = vmatprep.subr.mxu0 0.0
        %4642 = vmatpush1.xpose.msra.mxu0 0.0
        %4643 = vmatprep.subr.mxu0 0.0
        %4644 = vmatpush1.xpose.msra.mxu0 0.0
        %4645 = vmatprep.subr.mxu0 0.0
        %4646 = vmatpush1.xpose.msra.mxu0 0.0
        %4647 = vmatprep.subr.mxu0 0.0
        %4648 = vmatpush1.xpose.msra.mxu0 0.0
        %4649 = vmatprep.subr.mxu0 0.0
        %4650 = vmatpush1.xpose.msra.mxu0 0.0
        %4651 = vmatprep.subr.mxu0 0.0
        %4652 = vmatpush1.xpose.msra.mxu0 0.0
        %4653 = vmatprep.subr.mxu0 0.0
        %4654 = vmatpush1.xpose.msra.mxu0 0.0
        %4655 = vmatprep.subr.mxu0 0.0
        %4656 = vmatpush1.xpose.msra.mxu0 0.0
        %4657 = vmatprep.subr.mxu0 0.0
        %4658 = vmatpush1.xpose.msra.mxu0 0.0
        %4659 = vmatprep.subr.mxu0 0.0
        %4660 = vmatpush1.xpose.msra.mxu0 0.0
        %4661 = vmatprep.subr.mxu0 0.0
        %4662 = vmatpush1.xpose.msra.mxu0 0.0
        %4663 = vmatprep.subr.mxu0 0.0
        %4664 = vmatpush1.xpose.msra.mxu0 0.0
        %4665 = vmatprep.subr.mxu0 0.0
        %4666 = vmatpush1.xpose.msra.mxu0 0.0
        %4667 = vmatprep.mubr.f32.mxu0 0.0
        %4668 = vmatmul.mubr.f32.gmra.mrb[0].mxu0 %v4598
        %v4669 = vpop.f32.mrb[0].mxu0
        %v4670 = vadd.f32 0.0, %v4669
        %v4671 = vpop.f32.mrb[0].mxu0
        %4672 = vdwg.mxu0
        %v4673 = vsel %vm1392, %v4594, -inf
        %4674 = vmax.xlane.f32.xlu0 %v4673
        %v4675 = vpop.xlane.xlu0 %4674
        %v4676 = vsel %vm1392, %v4670, -inf
        %4677 = vmax.xlane.f32.xlu0 %v4676
        %v4678 = vpop.xlane.xlu0 %4677
        %v4679 = vsub.f32 %v4594, %v4675
        %v4680 = vsub.f32 %v4670, %v4678
        %v4681 = vmul.f32 %v4679, 1.442695
        %v4682 = vpow.pop %v4681
        %v4683 = vmul.f32 %v4680, 1.442695
        %v4684 = vpow.pop %v4683
        %v4685 = vsel %vm1392, %v4682, 0.0
        %4686 = vadd.xlane.f32.xlu0 %v4685
        %v4687 = vpop.xlane.xlu0 %4686
        %v4688 = vsel %vm1392, %v4684, 0.0
        %4689 = vadd.xlane.f32.xlu0 %v4688
        %v4690 = vpop.xlane.xlu0 %4689
        %v4691 = vrcp.pop %v4687
        %v4692 = vrcp.pop %v4690
        %v4693 = vmul.f32 %v4682, %v4691
        %v4694 = vmul.f32 %v4684, %v4692
        %v4696 = vsel %vm1392, %v4693, 0
        %4698 = vmatprep.subr.mxu0 0.0
        %4699 = vmatpush1.msra.mxu0 %v4511
        %4700 = vmatprep.subr.mxu0 0.0
        %4701 = vmatpush1.msra.mxu0 0.0
        %4702 = vmatprep.subr.mxu0 0.0
        %4703 = vmatpush1.msra.mxu0 0.0
        %4704 = vmatprep.subr.mxu0 0.0
        %4705 = vmatpush1.msra.mxu0 0.0
        %4706 = vmatprep.subr.mxu0 0.0
        %4707 = vmatpush1.msra.mxu0 0.0
        %4708 = vmatprep.subr.mxu0 0.0
        %4709 = vmatpush1.msra.mxu0 0.0
        %4710 = vmatprep.subr.mxu0 0.0
        %4711 = vmatpush1.msra.mxu0 0.0
        %4712 = vmatprep.subr.mxu0 0.0
        %4713 = vmatpush1.msra.mxu0 0.0
        %4714 = vmatprep.subr.mxu0 0.0
        %4715 = vmatpush1.msra.mxu0 0.0
        %4716 = vmatprep.subr.mxu0 0.0
        %4717 = vmatpush1.msra.mxu0 0.0
        %4718 = vmatprep.subr.mxu0 0.0
        %4719 = vmatpush1.msra.mxu0 0.0
        %4720 = vmatprep.subr.mxu0 0.0
        %4721 = vmatpush1.msra.mxu0 0.0
        %4722 = vmatprep.subr.mxu0 0.0
        %4723 = vmatpush1.msra.mxu0 0.0
        %4724 = vmatprep.subr.mxu0 0.0
        %4725 = vmatpush1.msra.mxu0 0.0
        %4726 = vmatprep.subr.mxu0 0.0
        %4727 = vmatpush1.msra.mxu0 0.0
        %4728 = vmatprep.subr.mxu0 0.0
        %4729 = vmatpush1.msra.mxu0 0.0
        %4730 = vmatprep.subr.mxu0 0.0
        %4731 = vmatpush1.msra.mxu0 0.0
        %4732 = vmatprep.subr.mxu0 0.0
        %4733 = vmatpush1.msra.mxu0 0.0
        %4734 = vmatprep.subr.mxu0 0.0
        %4735 = vmatpush1.msra.mxu0 0.0
        %4736 = vmatprep.subr.mxu0 0.0
        %4737 = vmatpush1.msra.mxu0 0.0
        %4738 = vmatprep.subr.mxu0 0.0
        %4739 = vmatpush1.msra.mxu0 0.0
        %4740 = vmatprep.subr.mxu0 0.0
        %4741 = vmatpush1.msra.mxu0 0.0
        %4742 = vmatprep.subr.mxu0 0.0
        %4743 = vmatpush1.msra.mxu0 0.0
        %4744 = vmatprep.subr.mxu0 0.0
        %4745 = vmatpush1.msra.mxu0 0.0
        %4746 = vmatprep.subr.mxu0 0.0
        %4747 = vmatpush1.msra.mxu0 0.0
        %4748 = vmatprep.subr.mxu0 0.0
        %4749 = vmatpush1.msra.mxu0 0.0
        %4750 = vmatprep.subr.mxu0 0.0
        %4751 = vmatpush1.msra.mxu0 0.0
        %4752 = vmatprep.subr.mxu0 0.0
        %4753 = vmatpush1.msra.mxu0 0.0
        %4754 = vmatprep.subr.mxu0 0.0
        %4755 = vmatpush1.msra.mxu0 0.0
        %4756 = vmatprep.subr.mxu0 0.0
        %4757 = vmatpush1.msra.mxu0 0.0
        %4758 = vmatprep.subr.mxu0 0.0
        %4759 = vmatpush1.msra.mxu0 0.0
        %4760 = vmatprep.subr.mxu0 0.0
        %4761 = vmatpush1.msra.mxu0 0.0
        %4762 = vmatprep.mubr.f32.mxu0 0.0
        %4763 = vmatmul.mubr.f32.gmra.mrb[0].mxu0 %v4696
        %v4764 = vpop.f32.mrb[0].mxu0
        %v4765 = vadd.f32 0.0, %v4764
        %v4766 = vpop.f32.mrb[0].mxu0
        %4767 = vdwg.mxu0
        %v4769 = vsel %vm1392, %v4694, 0
        %4771 = vmatprep.subr.mxu0 0.0
        %4772 = vmatpush1.msra.mxu0 %v4516
        %4773 = vmatprep.subr.mxu0 0.0
        %4774 = vmatpush1.msra.mxu0 0.0
        %4775 = vmatprep.subr.mxu0 0.0
        %4776 = vmatpush1.msra.mxu0 0.0
        %4777 = vmatprep.subr.mxu0 0.0
        %4778 = vmatpush1.msra.mxu0 0.0
        %4779 = vmatprep.subr.mxu0 0.0
        %4780 = vmatpush1.msra.mxu0 0.0
        %4781 = vmatprep.subr.mxu0 0.0
        %4782 = vmatpush1.msra.mxu0 0.0
        %4783 = vmatprep.subr.mxu0 0.0
        %4784 = vmatpush1.msra.mxu0 0.0
        %4785 = vmatprep.subr.mxu0 0.0
        %4786 = vmatpush1.msra.mxu0 0.0
        %4787 = vmatprep.subr.mxu0 0.0
        %4788 = vmatpush1.msra.mxu0 0.0
        %4789 = vmatprep.subr.mxu0 0.0
        %4790 = vmatpush1.msra.mxu0 0.0
        %4791 = vmatprep.subr.mxu0 0.0
        %4792 = vmatpush1.msra.mxu0 0.0
        %4793 = vmatprep.subr.mxu0 0.0
        %4794 = vmatpush1.msra.mxu0 0.0
        %4795 = vmatprep.subr.mxu0 0.0
        %4796 = vmatpush1.msra.mxu0 0.0
        %4797 = vmatprep.subr.mxu0 0.0
        %4798 = vmatpush1.msra.mxu0 0.0
        %4799 = vmatprep.subr.mxu0 0.0
        %4800 = vmatpush1.msra.mxu0 0.0
        %4801 = vmatprep.subr.mxu0 0.0
        %4802 = vmatpush1.msra.mxu0 0.0
        %4803 = vmatprep.subr.mxu0 0.0
        %4804 = vmatpush1.msra.mxu0 0.0
        %4805 = vmatprep.subr.mxu0 0.0
        %4806 = vmatpush1.msra.mxu0 0.0
        %4807 = vmatprep.subr.mxu0 0.0
        %4808 = vmatpush1.msra.mxu0 0.0
        %4809 = vmatprep.subr.mxu0 0.0
        %4810 = vmatpush1.msra.mxu0 0.0
        %4811 = vmatprep.subr.mxu0 0.0
        %4812 = vmatpush1.msra.mxu0 0.0
        %4813 = vmatprep.subr.mxu0 0.0
        %4814 = vmatpush1.msra.mxu0 0.0
        %4815 = vmatprep.subr.mxu0 0.0
        %4816 = vmatpush1.msra.mxu0 0.0
        %4817 = vmatprep.subr.mxu0 0.0
        %4818 = vmatpush1.msra.mxu0 0.0
        %4819 = vmatprep.subr.mxu0 0.0
        %4820 = vmatpush1.msra.mxu0 0.0
        %4821 = vmatprep.subr.mxu0 0.0
        %4822 = vmatpush1.msra.mxu0 0.0
        %4823 = vmatprep.subr.mxu0 0.0
        %4824 = vmatpush1.msra.mxu0 0.0
        %4825 = vmatprep.subr.mxu0 0.0
        %4826 = vmatpush1.msra.mxu0 0.0
        %4827 = vmatprep.subr.mxu0 0.0
        %4828 = vmatpush1.msra.mxu0 0.0
        %4829 = vmatprep.subr.mxu0 0.0
        %4830 = vmatpush1.msra.mxu0 0.0
        %4831 = vmatprep.subr.mxu0 0.0
        %4832 = vmatpush1.msra.mxu0 0.0
        %4833 = vmatprep.subr.mxu0 0.0
        %4834 = vmatpush1.msra.mxu0 0.0
        %4835 = vmatprep.mubr.f32.mxu0 0.0
        %4836 = vmatmul.mubr.f32.gmra.mrb[0].mxu0 %v4769
        %v4837 = vpop.f32.mrb[0].mxu0
        %v4838 = vadd.f32 0.0, %v4837
        %v4839 = vpop.f32.mrb[0].mxu0
        %4840 = vdwg.mxu0
        %s4841 = scalar_lea.vmem %s825, 80 [#allocation13]
        %v4842 = vld [vmem:[%s4841] sm:$0xff]
        %v4843 = vld [vmem:[%s4841 + $0x8] sm:$0xff]
        %v4845 = vsel %vm1239, %v4765, 0
        %v4848 = vsel %vm1239, %v4838, 0
        %4850 = vmatprep.subr.mxu0 0.0
        %4851 = vmatpush1.msra.mxu0 %v4842
        %4852 = vmatprep.subr.mxu0 0.0
        %4853 = vmatpush1.msra.mxu0 %v4843
        %4854 = vmatprep.subr.mxu0 0.0
        %4855 = vmatpush1.msra.mxu0 0.0
        %4856 = vmatprep.subr.mxu0 0.0
        %4857 = vmatpush1.msra.mxu0 0.0
        %4858 = vmatprep.subr.mxu0 0.0
        %4859 = vmatpush1.msra.mxu0 0.0
        %4860 = vmatprep.subr.mxu0 0.0
        %4861 = vmatpush1.msra.mxu0 0.0
        %4862 = vmatprep.subr.mxu0 0.0
        %4863 = vmatpush1.msra.mxu0 0.0
        %4864 = vmatprep.subr.mxu0 0.0
        %4865 = vmatpush1.msra.mxu0 0.0
        %4866 = vmatprep.subr.mxu0 0.0
        %4867 = vmatpush1.msra.mxu0 0.0
        %4868 = vmatprep.subr.mxu0 0.0
        %4869 = vmatpush1.msra.mxu0 0.0
        %4870 = vmatprep.subr.mxu0 0.0
        %4871 = vmatpush1.msra.mxu0 0.0
        %4872 = vmatprep.subr.mxu0 0.0
        %4873 = vmatpush1.msra.mxu0 0.0
        %4874 = vmatprep.subr.mxu0 0.0
        %4875 = vmatpush1.msra.mxu0 0.0
        %4876 = vmatprep.subr.mxu0 0.0
        %4877 = vmatpush1.msra.mxu0 0.0
        %4878 = vmatprep.subr.mxu0 0.0
        %4879 = vmatpush1.msra.mxu0 0.0
        %4880 = vmatprep.subr.mxu0 0.0
        %4881 = vmatpush1.msra.mxu0 0.0
        %4882 = vmatprep.subr.mxu0 0.0
        %4883 = vmatpush1.msra.mxu0 0.0
        %4884 = vmatprep.subr.mxu0 0.0
        %4885 = vmatpush1.msra.mxu0 0.0
        %4886 = vmatprep.subr.mxu0 0.0
        %4887 = vmatpush1.msra.mxu0 0.0
        %4888 = vmatprep.subr.mxu0 0.0
        %4889 = vmatpush1.msra.mxu0 0.0
        %4890 = vmatprep.subr.mxu0 0.0
        %4891 = vmatpush1.msra.mxu0 0.0
        %4892 = vmatprep.subr.mxu0 0.0
        %4893 = vmatpush1.msra.mxu0 0.0
        %4894 = vmatprep.subr.mxu0 0.0
        %4895 = vmatpush1.msra.mxu0 0.0
        %4896 = vmatprep.subr.mxu0 0.0
        %4897 = vmatpush1.msra.mxu0 0.0
        %4898 = vmatprep.subr.mxu0 0.0
        %4899 = vmatpush1.msra.mxu0 0.0
        %4900 = vmatprep.subr.mxu0 0.0
        %4901 = vmatpush1.msra.mxu0 0.0
        %4902 = vmatprep.subr.mxu0 0.0
        %4903 = vmatpush1.msra.mxu0 0.0
        %4904 = vmatprep.subr.mxu0 0.0
        %4905 = vmatpush1.msra.mxu0 0.0
        %4906 = vmatprep.subr.mxu0 0.0
        %4907 = vmatpush1.msra.mxu0 0.0
        %4908 = vmatprep.subr.mxu0 0.0
        %4909 = vmatpush1.msra.mxu0 0.0
        %4910 = vmatprep.subr.mxu0 0.0
        %4911 = vmatpush1.msra.mxu0 0.0
        %4912 = vmatprep.subr.mxu0 0.0
        %4913 = vmatpush1.msra.mxu0 0.0
        %4914 = vmatprep.mubr.f32.mxu0 0.0
        %4915 = vmatmul.mubr.f32.gmra.mrb[0].mxu0 %v4845
        %v4916 = vpop.f32.mrb[0].mxu0
        %v4917 = vadd.f32 0.0, %v4916
        %v4918 = vpop.f32.mrb[0].mxu0
        %4919 = vmatprep.mubr.f32.mxu0 0.0
        %4920 = vmatmul.mubr.f32.gmra.mrb[0].mxu0 %v4848
        %v4921 = vpop.f32.mrb[0].mxu0
        %v4922 = vadd.f32 0.0, %v4921
        %v4923 = vpop.f32.mrb[0].mxu0
        %4924 = vdwg.mxu0
        %v4925 = vadd.f32 %v4268, %v4917
        %v4926 = vadd.f32 %v4269, %v4922
        %s4927 = scalar_lea.vmem %s780, 96 [#allocation8]
        %v4928 = vld [vmem:[%s4927] sm:$0xff]
        %v4929 = vld [vmem:[%s4927 + $0x8] sm:$0xff]
        %v4930 = vld [vmem:[%s955 + $0x6] sm:$0x1]
        %v4931 = vlaneseq
        %v4932 = vshrl.u32 %v4931, 7
        %v4933 = vsub.s32 0, %v4932
        %v4934 = vrot.slane %v4930, %v4933
        %4935 = vmatprep.subr.mxu0 0.0
        %4936 = vmatpush1.xpose.msra.mxu0 %v4928
        %4937 = vmatprep.subr.mxu0 0.0
        %4938 = vmatpush1.xpose.msra.mxu0 %v4929
        %4939 = vmatprep.subr.mxu0 0.0
        %4940 = vmatpush1.xpose.msra.mxu0 0.0
        %4941 = vmatprep.subr.mxu0 0.0
        %4942 = vmatpush1.xpose.msra.mxu0 0.0
        %4943 = vmatprep.subr.mxu0 0.0
        %4944 = vmatpush1.xpose.msra.mxu0 0.0
        %4945 = vmatprep.subr.mxu0 0.0
        %4946 = vmatpush1.xpose.msra.mxu0 0.0
        %4947 = vmatprep.subr.mxu0 0.0
        %4948 = vmatpush1.xpose.msra.mxu0 0.0
        %4949 = vmatprep.subr.mxu0 0.0
        %4950 = vmatpush1.xpose.msra.mxu0 0.0
        %4951 = vmatprep.subr.mxu0 0.0
        %4952 = vmatpush1.xpose.msra.mxu0 0.0
        %4953 = vmatprep.subr.mxu0 0.0
        %4954 = vmatpush1.xpose.msra.mxu0 0.0
        %4955 = vmatprep.subr.mxu0 0.0
        %4956 = vmatpush1.xpose.msra.mxu0 0.0
        %4957 = vmatprep.subr.mxu0 0.0
        %4958 = vmatpush1.xpose.msra.mxu0 0.0
        %4959 = vmatprep.subr.mxu0 0.0
        %4960 = vmatpush1.xpose.msra.mxu0 0.0
        %4961 = vmatprep.subr.mxu0 0.0
        %4962 = vmatpush1.xpose.msra.mxu0 0.0
        %4963 = vmatprep.subr.mxu0 0.0
        %4964 = vmatpush1.xpose.msra.mxu0 0.0
        %4965 = vmatprep.subr.mxu0 0.0
        %4966 = vmatpush1.xpose.msra.mxu0 0.0
        %4967 = vmatprep.subr.mxu0 0.0
        %4968 = vmatpush1.xpose.msra.mxu0 0.0
        %4969 = vmatprep.subr.mxu0 0.0
        %4970 = vmatpush1.xpose.msra.mxu0 0.0
        %4971 = vmatprep.subr.mxu0 0.0
        %4972 = vmatpush1.xpose.msra.mxu0 0.0
        %4973 = vmatprep.subr.mxu0 0.0
        %4974 = vmatpush1.xpose.msra.mxu0 0.0
        %4975 = vmatprep.subr.mxu0 0.0
        %4976 = vmatpush1.xpose.msra.mxu0 0.0
        %4977 = vmatprep.subr.mxu0 0.0
        %4978 = vmatpush1.xpose.msra.mxu0 0.0
        %4979 = vmatprep.subr.mxu0 0.0
        %4980 = vmatpush1.xpose.msra.mxu0 0.0
        %4981 = vmatprep.subr.mxu0 0.0
        %4982 = vmatpush1.xpose.msra.mxu0 0.0
        %4983 = vmatprep.subr.mxu0 0.0
        %4984 = vmatpush1.xpose.msra.mxu0 0.0
        %4985 = vmatprep.subr.mxu0 0.0
        %4986 = vmatpush1.xpose.msra.mxu0 0.0
        %4987 = vmatprep.subr.mxu0 0.0
        %4988 = vmatpush1.xpose.msra.mxu0 0.0
        %4989 = vmatprep.subr.mxu0 0.0
        %4990 = vmatpush1.xpose.msra.mxu0 0.0
        %4991 = vmatprep.subr.mxu0 0.0
        %4992 = vmatpush1.xpose.msra.mxu0 0.0
        %4993 = vmatprep.subr.mxu0 0.0
        %4994 = vmatpush1.xpose.msra.mxu0 0.0
        %4995 = vmatprep.subr.mxu0 0.0
        %4996 = vmatpush1.xpose.msra.mxu0 0.0
        %4997 = vmatprep.subr.mxu0 0.0
        %4998 = vmatpush1.xpose.msra.mxu0 0.0
        %4999 = vmatprep.mubr.f32.mxu0 0.0
        %5000 = vmatmul.mubr.f32.gmra.mrb[0].mxu0 %v989
        %v5001 = vpop.f32.mrb[0].mxu0
        %v5002 = vadd.f32 %v4934, %v5001
        %v5003 = vpop.f32.mrb[0].mxu0
        %5004 = vmatprep.mubr.f32.mxu0 0.0
        %5005 = vmatmul.mubr.f32.gmra.mrb[0].mxu0 %v990
        %v5006 = vpop.f32.mrb[0].mxu0
        %v5007 = vadd.f32 %v4934, %v5006
        %v5008 = vpop.f32.mrb[0].mxu0
        %5009 = vdwg.mxu0
        %s5010 = scalar_lea.vmem %s789, 96 [#allocation9]
        %v5011 = vld [vmem:[%s5010] sm:$0xff]
        %v5012 = vld [vmem:[%s5010 + $0x8] sm:$0xff]
        %v5013 = vld [vmem:[%s807 + $0x6] sm:$0x1]
        %v5014 = vlaneseq
        %v5015 = vshrl.u32 %v5014, 7
        %v5016 = vsub.s32 0, %v5015
        %v5017 = vrot.slane %v5013, %v5016
        %5018 = vmatprep.subr.mxu0 0.0
        %5019 = vmatpush1.xpose.msra.mxu0 %v5011
        %5020 = vmatprep.subr.mxu0 0.0
        %5021 = vmatpush1.xpose.msra.mxu0 %v5012
        %5022 = vmatprep.subr.mxu0 0.0
        %5023 = vmatpush1.xpose.msra.mxu0 0.0
        %5024 = vmatprep.subr.mxu0 0.0
        %5025 = vmatpush1.xpose.msra.mxu0 0.0
        %5026 = vmatprep.subr.mxu0 0.0
        %5027 = vmatpush1.xpose.msra.mxu0 0.0
        %5028 = vmatprep.subr.mxu0 0.0
        %5029 = vmatpush1.xpose.msra.mxu0 0.0
        %5030 = vmatprep.subr.mxu0 0.0
        %5031 = vmatpush1.xpose.msra.mxu0 0.0
        %5032 = vmatprep.subr.mxu0 0.0
        %5033 = vmatpush1.xpose.msra.mxu0 0.0
        %5034 = vmatprep.subr.mxu0 0.0
        %5035 = vmatpush1.xpose.msra.mxu0 0.0
        %5036 = vmatprep.subr.mxu0 0.0
        %5037 = vmatpush1.xpose.msra.mxu0 0.0
        %5038 = vmatprep.subr.mxu0 0.0
        %5039 = vmatpush1.xpose.msra.mxu0 0.0
        %5040 = vmatprep.subr.mxu0 0.0
        %5041 = vmatpush1.xpose.msra.mxu0 0.0
        %5042 = vmatprep.subr.mxu0 0.0
        %5043 = vmatpush1.xpose.msra.mxu0 0.0
        %5044 = vmatprep.subr.mxu0 0.0
        %5045 = vmatpush1.xpose.msra.mxu0 0.0
        %5046 = vmatprep.subr.mxu0 0.0
        %5047 = vmatpush1.xpose.msra.mxu0 0.0
        %5048 = vmatprep.subr.mxu0 0.0
        %5049 = vmatpush1.xpose.msra.mxu0 0.0
        %5050 = vmatprep.subr.mxu0 0.0
        %5051 = vmatpush1.xpose.msra.mxu0 0.0
        %5052 = vmatprep.subr.mxu0 0.0
        %5053 = vmatpush1.xpose.msra.mxu0 0.0
        %5054 = vmatprep.subr.mxu0 0.0
        %5055 = vmatpush1.xpose.msra.mxu0 0.0
        %5056 = vmatprep.subr.mxu0 0.0
        %5057 = vmatpush1.xpose.msra.mxu0 0.0
        %5058 = vmatprep.subr.mxu0 0.0
        %5059 = vmatpush1.xpose.msra.mxu0 0.0
        %5060 = vmatprep.subr.mxu0 0.0
        %5061 = vmatpush1.xpose.msra.mxu0 0.0
        %5062 = vmatprep.subr.mxu0 0.0
        %5063 = vmatpush1.xpose.msra.mxu0 0.0
        %5064 = vmatprep.subr.mxu0 0.0
        %5065 = vmatpush1.xpose.msra.mxu0 0.0
        %5066 = vmatprep.subr.mxu0 0.0
        %5067 = vmatpush1.xpose.msra.mxu0 0.0
        %5068 = vmatprep.subr.mxu0 0.0
        %5069 = vmatpush1.xpose.msra.mxu0 0.0
        %5070 = vmatprep.subr.mxu0 0.0
        %5071 = vmatpush1.xpose.msra.mxu0 0.0
        %5072 = vmatprep.subr.mxu0 0.0
        %5073 = vmatpush1.xpose.msra.mxu0 0.0
        %5074 = vmatprep.subr.mxu0 0.0
        %5075 = vmatpush1.xpose.msra.mxu0 0.0
        %5076 = vmatprep.subr.mxu0 0.0
        %5077 = vmatpush1.xpose.msra.mxu0 0.0
        %5078 = vmatprep.subr.mxu0 0.0
        %5079 = vmatpush1.xpose.msra.mxu0 0.0
        %5080 = vmatprep.subr.mxu0 0.0
        %5081 = vmatpush1.xpose.msra.mxu0 0.0
        %5082 = vmatprep.mubr.f32.mxu0 0.0
        %5083 = vmatmul.mubr.f32.gmra.mrb[0].mxu0 %v989
        %v5084 = vpop.f32.mrb[0].mxu0
        %v5085 = vadd.f32 %v5017, %v5084
        %v5086 = vpop.f32.mrb[0].mxu0
        %5087 = vmatprep.mubr.f32.mxu0 0.0
        %5088 = vmatmul.mubr.f32.gmra.mrb[0].mxu0 %v990
        %v5089 = vpop.f32.mrb[0].mxu0
        %v5090 = vadd.f32 %v5017, %v5089
        %v5091 = vpop.f32.mrb[0].mxu0
        %5092 = vdwg.mxu0
        %s5093 = scalar_lea.vmem %s798, 96 [#allocation10]
        %v5094 = vld [vmem:[%s5093] sm:$0xff]
        %v5095 = vld [vmem:[%s5093 + $0x8] sm:$0xff]
        %v5096 = vld [vmem:[%s816 + $0x6] sm:$0x1]
        %v5097 = vlaneseq
        %v5098 = vshrl.u32 %v5097, 7
        %v5099 = vsub.s32 0, %v5098
        %v5100 = vrot.slane %v5096, %v5099
        %5101 = vmatprep.subr.mxu0 0.0
        %5102 = vmatpush1.xpose.msra.mxu0 %v5094
        %5103 = vmatprep.subr.mxu0 0.0
        %5104 = vmatpush1.xpose.msra.mxu0 %v5095
        %5105 = vmatprep.subr.mxu0 0.0
        %5106 = vmatpush1.xpose.msra.mxu0 0.0
        %5107 = vmatprep.subr.mxu0 0.0
        %5108 = vmatpush1.xpose.msra.mxu0 0.0
        %5109 = vmatprep.subr.mxu0 0.0
        %5110 = vmatpush1.xpose.msra.mxu0 0.0
        %5111 = vmatprep.subr.mxu0 0.0
        %5112 = vmatpush1.xpose.msra.mxu0 0.0
        %5113 = vmatprep.subr.mxu0 0.0
        %5114 = vmatpush1.xpose.msra.mxu0 0.0
        %5115 = vmatprep.subr.mxu0 0.0
        %5116 = vmatpush1.xpose.msra.mxu0 0.0
        %5117 = vmatprep.subr.mxu0 0.0
        %5118 = vmatpush1.xpose.msra.mxu0 0.0
        %5119 = vmatprep.subr.mxu0 0.0
        %5120 = vmatpush1.xpose.msra.mxu0 0.0
        %5121 = vmatprep.subr.mxu0 0.0
        %5122 = vmatpush1.xpose.msra.mxu0 0.0
        %5123 = vmatprep.subr.mxu0 0.0
        %5124 = vmatpush1.xpose.msra.mxu0 0.0
        %5125 = vmatprep.subr.mxu0 0.0
        %5126 = vmatpush1.xpose.msra.mxu0 0.0
        %5127 = vmatprep.subr.mxu0 0.0
        %5128 = vmatpush1.xpose.msra.mxu0 0.0
        %5129 = vmatprep.subr.mxu0 0.0
        %5130 = vmatpush1.xpose.msra.mxu0 0.0
        %5131 = vmatprep.subr.mxu0 0.0
        %5132 = vmatpush1.xpose.msra.mxu0 0.0
        %5133 = vmatprep.subr.mxu0 0.0
        %5134 = vmatpush1.xpose.msra.mxu0 0.0
        %5135 = vmatprep.subr.mxu0 0.0
        %5136 = vmatpush1.xpose.msra.mxu0 0.0
        %5137 = vmatprep.subr.mxu0 0.0
        %5138 = vmatpush1.xpose.msra.mxu0 0.0
        %5139 = vmatprep.subr.mxu0 0.0
        %5140 = vmatpush1.xpose.msra.mxu0 0.0
        %5141 = vmatprep.subr.mxu0 0.0
        %5142 = vmatpush1.xpose.msra.mxu0 0.0
        %5143 = vmatprep.subr.mxu0 0.0
        %5144 = vmatpush1.xpose.msra.mxu0 0.0
        %5145 = vmatprep.subr.mxu0 0.0
        %5146 = vmatpush1.xpose.msra.mxu0 0.0
        %5147 = vmatprep.subr.mxu0 0.0
        %5148 = vmatpush1.xpose.msra.mxu0 0.0
        %5149 = vmatprep.subr.mxu0 0.0
        %5150 = vmatpush1.xpose.msra.mxu0 0.0
        %5151 = vmatprep.subr.mxu0 0.0
        %5152 = vmatpush1.xpose.msra.mxu0 0.0
        %5153 = vmatprep.subr.mxu0 0.0
        %5154 = vmatpush1.xpose.msra.mxu0 0.0
        %5155 = vmatprep.subr.mxu0 0.0
        %5156 = vmatpush1.xpose.msra.mxu0 0.0
        %5157 = vmatprep.subr.mxu0 0.0
        %5158 = vmatpush1.xpose.msra.mxu0 0.0
        %5159 = vmatprep.subr.mxu0 0.0
        %5160 = vmatpush1.xpose.msra.mxu0 0.0
        %5161 = vmatprep.subr.mxu0 0.0
        %5162 = vmatpush1.xpose.msra.mxu0 0.0
        %5163 = vmatprep.subr.mxu0 0.0
        %5164 = vmatpush1.xpose.msra.mxu0 0.0
        %5165 = vmatprep.mubr.f32.mxu0 0.0
        %5166 = vmatmul.mubr.f32.gmra.mrb[0].mxu0 %v989
        %v5167 = vpop.f32.mrb[0].mxu0
        %v5168 = vadd.f32 %v5100, %v5167
        %v5169 = vpop.f32.mrb[0].mxu0
        %5170 = vmatprep.mubr.f32.mxu0 0.0
        %5171 = vmatmul.mubr.f32.gmra.mrb[0].mxu0 %v990
        %v5172 = vpop.f32.mrb[0].mxu0
        %v5173 = vadd.f32 %v5100, %v5172
        %v5174 = vpop.f32.mrb[0].mxu0
        %5175 = vdwg.mxu0
        %v5176 = vmul.f32 %v5002, 0.25
        %v5177 = vmul.f32 %v5007, 0.25
        %v5179 = vsel %vm1239, %v5176, 0
        %v5182 = vsel %vm1239, %v5085, 0
        %5184 = vmatprep.subr.mxu0 0.0
        %5185 = vmatpush1.xpose.msra.mxu0 %v5182
        %5186 = vmatprep.subr.mxu0 0.0
        %5187 = vmatpush1.xpose.msra.mxu0 0.0
        %5188 = vmatprep.subr.mxu0 0.0
        %5189 = vmatpush1.xpose.msra.mxu0 0.0
        %5190 = vmatprep.subr.mxu0 0.0
        %5191 = vmatpush1.xpose.msra.mxu0 0.0
        %5192 = vmatprep.subr.mxu0 0.0
        %5193 = vmatpush1.xpose.msra.mxu0 0.0
        %5194 = vmatprep.subr.mxu0 0.0
        %5195 = vmatpush1.xpose.msra.mxu0 0.0
        %5196 = vmatprep.subr.mxu0 0.0
        %5197 = vmatpush1.xpose.msra.mxu0 0.0
        %5198 = vmatprep.subr.mxu0 0.0
        %5199 = vmatpush1.xpose.msra.mxu0 0.0
        %5200 = vmatprep.subr.mxu0 0.0
        %5201 = vmatpush1.xpose.msra.mxu0 0.0
        %5202 = vmatprep.subr.mxu0 0.0
        %5203 = vmatpush1.xpose.msra.mxu0 0.0
        %5204 = vmatprep.subr.mxu0 0.0
        %5205 = vmatpush1.xpose.msra.mxu0 0.0
        %5206 = vmatprep.subr.mxu0 0.0
        %5207 = vmatpush1.xpose.msra.mxu0 0.0
        %5208 = vmatprep.subr.mxu0 0.0
        %5209 = vmatpush1.xpose.msra.mxu0 0.0
        %5210 = vmatprep.subr.mxu0 0.0
        %5211 = vmatpush1.xpose.msra.mxu0 0.0
        %5212 = vmatprep.subr.mxu0 0.0
        %5213 = vmatpush1.xpose.msra.mxu0 0.0
        %5214 = vmatprep.subr.mxu0 0.0
        %5215 = vmatpush1.xpose.msra.mxu0 0.0
        %5216 = vmatprep.subr.mxu0 0.0
        %5217 = vmatpush1.xpose.msra.mxu0 0.0
        %5218 = vmatprep.subr.mxu0 0.0
        %5219 = vmatpush1.xpose.msra.mxu0 0.0
        %5220 = vmatprep.subr.mxu0 0.0
        %5221 = vmatpush1.xpose.msra.mxu0 0.0
        %5222 = vmatprep.subr.mxu0 0.0
        %5223 = vmatpush1.xpose.msra.mxu0 0.0
        %5224 = vmatprep.subr.mxu0 0.0
        %5225 = vmatpush1.xpose.msra.mxu0 0.0
        %5226 = vmatprep.subr.mxu0 0.0
        %5227 = vmatpush1.xpose.msra.mxu0 0.0
        %5228 = vmatprep.subr.mxu0 0.0
        %5229 = vmatpush1.xpose.msra.mxu0 0.0
        %5230 = vmatprep.subr.mxu0 0.0
        %5231 = vmatpush1.xpose.msra.mxu0 0.0
        %5232 = vmatprep.subr.mxu0 0.0
        %5233 = vmatpush1.xpose.msra.mxu0 0.0
        %5234 = vmatprep.subr.mxu0 0.0
        %5235 = vmatpush1.xpose.msra.mxu0 0.0
        %5236 = vmatprep.subr.mxu0 0.0
        %5237 = vmatpush1.xpose.msra.mxu0 0.0
        %5238 = vmatprep.subr.mxu0 0.0
        %5239 = vmatpush1.xpose.msra.mxu0 0.0
        %5240 = vmatprep.subr.mxu0 0.0
        %5241 = vmatpush1.xpose.msra.mxu0 0.0
        %5242 = vmatprep.subr.mxu0 0.0
        %5243 = vmatpush1.xpose.msra.mxu0 0.0
        %5244 = vmatprep.subr.mxu0 0.0
        %5245 = vmatpush1.xpose.msra.mxu0 0.0
        %5246 = vmatprep.subr.mxu0 0.0
        %5247 = vmatpush1.xpose.msra.mxu0 0.0
        %5248 = vmatprep.mubr.f32.mxu0 0.0
        %5249 = vmatmul.mubr.f32.gmra.mrb[0].mxu0 %v5179
        %v5250 = vpop.f32.mrb[0].mxu0
        %v5251 = vadd.f32 0.0, %v5250
        %v5252 = vpop.f32.mrb[0].mxu0
        %5253 = vdwg.mxu0
        %v5255 = vsel %vm1239, %v5177, 0
        %v5258 = vsel %vm1239, %v5090, 0
        %5260 = vmatprep.subr.mxu0 0.0
        %5261 = vmatpush1.xpose.msra.mxu0 %v5258
        %5262 = vmatprep.subr.mxu0 0.0
        %5263 = vmatpush1.xpose.msra.mxu0 0.0
        %5264 = vmatprep.subr.mxu0 0.0
        %5265 = vmatpush1.xpose.msra.mxu0 0.0
        %5266 = vmatprep.subr.mxu0 0.0
        %5267 = vmatpush1.xpose.msra.mxu0 0.0
        %5268 = vmatprep.subr.mxu0 0.0
        %5269 = vmatpush1.xpose.msra.mxu0 0.0
        %5270 = vmatprep.subr.mxu0 0.0
        %5271 = vmatpush1.xpose.msra.mxu0 0.0
        %5272 = vmatprep.subr.mxu0 0.0
        %5273 = vmatpush1.xpose.msra.mxu0 0.0
        %5274 = vmatprep.subr.mxu0 0.0
        %5275 = vmatpush1.xpose.msra.mxu0 0.0
        %5276 = vmatprep.subr.mxu0 0.0
        %5277 = vmatpush1.xpose.msra.mxu0 0.0
        %5278 = vmatprep.subr.mxu0 0.0
        %5279 = vmatpush1.xpose.msra.mxu0 0.0
        %5280 = vmatprep.subr.mxu0 0.0
        %5281 = vmatpush1.xpose.msra.mxu0 0.0
        %5282 = vmatprep.subr.mxu0 0.0
        %5283 = vmatpush1.xpose.msra.mxu0 0.0
        %5284 = vmatprep.subr.mxu0 0.0
        %5285 = vmatpush1.xpose.msra.mxu0 0.0
        %5286 = vmatprep.subr.mxu0 0.0
        %5287 = vmatpush1.xpose.msra.mxu0 0.0
        %5288 = vmatprep.subr.mxu0 0.0
        %5289 = vmatpush1.xpose.msra.mxu0 0.0
        %5290 = vmatprep.subr.mxu0 0.0
        %5291 = vmatpush1.xpose.msra.mxu0 0.0
        %5292 = vmatprep.subr.mxu0 0.0
        %5293 = vmatpush1.xpose.msra.mxu0 0.0
        %5294 = vmatprep.subr.mxu0 0.0
        %5295 = vmatpush1.xpose.msra.mxu0 0.0
        %5296 = vmatprep.subr.mxu0 0.0
        %5297 = vmatpush1.xpose.msra.mxu0 0.0
        %5298 = vmatprep.subr.mxu0 0.0
        %5299 = vmatpush1.xpose.msra.mxu0 0.0
        %5300 = vmatprep.subr.mxu0 0.0
        %5301 = vmatpush1.xpose.msra.mxu0 0.0
        %5302 = vmatprep.subr.mxu0 0.0
        %5303 = vmatpush1.xpose.msra.mxu0 0.0
        %5304 = vmatprep.subr.mxu0 0.0
        %5305 = vmatpush1.xpose.msra.mxu0 0.0
        %5306 = vmatprep.subr.mxu0 0.0
        %5307 = vmatpush1.xpose.msra.mxu0 0.0
        %5308 = vmatprep.subr.mxu0 0.0
        %5309 = vmatpush1.xpose.msra.mxu0 0.0
        %5310 = vmatprep.subr.mxu0 0.0
        %5311 = vmatpush1.xpose.msra.mxu0 0.0
        %5312 = vmatprep.subr.mxu0 0.0
        %5313 = vmatpush1.xpose.msra.mxu0 0.0
        %5314 = vmatprep.subr.mxu0 0.0
        %5315 = vmatpush1.xpose.msra.mxu0 0.0
        %5316 = vmatprep.subr.mxu0 0.0
        %5317 = vmatpush1.xpose.msra.mxu0 0.0
        %5318 = vmatprep.subr.mxu0 0.0
        %5319 = vmatpush1.xpose.msra.mxu0 0.0
        %5320 = vmatprep.subr.mxu0 0.0
        %5321 = vmatpush1.xpose.msra.mxu0 0.0
        %5322 = vmatprep.subr.mxu0 0.0
        %5323 = vmatpush1.xpose.msra.mxu0 0.0
        %5324 = vmatprep.mubr.f32.mxu0 0.0
        %5325 = vmatmul.mubr.f32.gmra.mrb[0].mxu0 %v5255
        %v5326 = vpop.f32.mrb[0].mxu0
        %v5327 = vadd.f32 0.0, %v5326
        %v5328 = vpop.f32.mrb[0].mxu0
        %5329 = vdwg.mxu0
        %v5330 = vsel %vm1392, %v5251, -inf
        %5331 = vmax.xlane.f32.xlu0 %v5330
        %v5332 = vpop.xlane.xlu0 %5331
        %v5333 = vsel %vm1392, %v5327, -inf
        %5334 = vmax.xlane.f32.xlu0 %v5333
        %v5335 = vpop.xlane.xlu0 %5334
        %v5336 = vsub.f32 %v5251, %v5332
        %v5337 = vsub.f32 %v5327, %v5335
        %v5338 = vmul.f32 %v5336, 1.442695
        %v5339 = vpow.pop %v5338
        %v5340 = vmul.f32 %v5337, 1.442695
        %v5341 = vpow.pop %v5340
        %v5342 = vsel %vm1392, %v5339, 0.0
        %5343 = vadd.xlane.f32.xlu0 %v5342
        %v5344 = vpop.xlane.xlu0 %5343
        %v5345 = vsel %vm1392, %v5341, 0.0
        %5346 = vadd.xlane.f32.xlu0 %v5345
        %v5347 = vpop.xlane.xlu0 %5346
        %v5348 = vrcp.pop %v5344
        %v5349 = vrcp.pop %v5347
        %v5350 = vmul.f32 %v5339, %v5348
        %v5351 = vmul.f32 %v5341, %v5349
        %v5353 = vsel %vm1392, %v5350, 0
        %5355 = vmatprep.subr.mxu0 0.0
        %5356 = vmatpush1.msra.mxu0 %v5168
        %5357 = vmatprep.subr.mxu0 0.0
        %5358 = vmatpush1.msra.mxu0 0.0
        %5359 = vmatprep.subr.mxu0 0.0
        %5360 = vmatpush1.msra.mxu0 0.0
        %5361 = vmatprep.subr.mxu0 0.0
        %5362 = vmatpush1.msra.mxu0 0.0
        %5363 = vmatprep.subr.mxu0 0.0
        %5364 = vmatpush1.msra.mxu0 0.0
        %5365 = vmatprep.subr.mxu0 0.0
        %5366 = vmatpush1.msra.mxu0 0.0
        %5367 = vmatprep.subr.mxu0 0.0
        %5368 = vmatpush1.msra.mxu0 0.0
        %5369 = vmatprep.subr.mxu0 0.0
        %5370 = vmatpush1.msra.mxu0 0.0
        %5371 = vmatprep.subr.mxu0 0.0
        %5372 = vmatpush1.msra.mxu0 0.0
        %5373 = vmatprep.subr.mxu0 0.0
        %5374 = vmatpush1.msra.mxu0 0.0
        %5375 = vmatprep.subr.mxu0 0.0
        %5376 = vmatpush1.msra.mxu0 0.0
        %5377 = vmatprep.subr.mxu0 0.0
        %5378 = vmatpush1.msra.mxu0 0.0
        %5379 = vmatprep.subr.mxu0 0.0
        %5380 = vmatpush1.msra.mxu0 0.0
        %5381 = vmatprep.subr.mxu0 0.0
        %5382 = vmatpush1.msra.mxu0 0.0
        %5383 = vmatprep.subr.mxu0 0.0
        %5384 = vmatpush1.msra.mxu0 0.0
        %5385 = vmatprep.subr.mxu0 0.0
        %5386 = vmatpush1.msra.mxu0 0.0
        %5387 = vmatprep.subr.mxu0 0.0
        %5388 = vmatpush1.msra.mxu0 0.0
        %5389 = vmatprep.subr.mxu0 0.0
        %5390 = vmatpush1.msra.mxu0 0.0
        %5391 = vmatprep.subr.mxu0 0.0
        %5392 = vmatpush1.msra.mxu0 0.0
        %5393 = vmatprep.subr.mxu0 0.0
        %5394 = vmatpush1.msra.mxu0 0.0
        %5395 = vmatprep.subr.mxu0 0.0
        %5396 = vmatpush1.msra.mxu0 0.0
        %5397 = vmatprep.subr.mxu0 0.0
        %5398 = vmatpush1.msra.mxu0 0.0
        %5399 = vmatprep.subr.mxu0 0.0
        %5400 = vmatpush1.msra.mxu0 0.0
        %5401 = vmatprep.subr.mxu0 0.0
        %5402 = vmatpush1.msra.mxu0 0.0
        %5403 = vmatprep.subr.mxu0 0.0
        %5404 = vmatpush1.msra.mxu0 0.0
        %5405 = vmatprep.subr.mxu0 0.0
        %5406 = vmatpush1.msra.mxu0 0.0
        %5407 = vmatprep.subr.mxu0 0.0
        %5408 = vmatpush1.msra.mxu0 0.0
        %5409 = vmatprep.subr.mxu0 0.0
        %5410 = vmatpush1.msra.mxu0 0.0
        %5411 = vmatprep.subr.mxu0 0.0
        %5412 = vmatpush1.msra.mxu0 0.0
        %5413 = vmatprep.subr.mxu0 0.0
        %5414 = vmatpush1.msra.mxu0 0.0
        %5415 = vmatprep.subr.mxu0 0.0
        %5416 = vmatpush1.msra.mxu0 0.0
        %5417 = vmatprep.subr.mxu0 0.0
        %5418 = vmatpush1.msra.mxu0 0.0
        %5419 = vmatprep.mubr.f32.mxu0 0.0
        %5420 = vmatmul.mubr.f32.gmra.mrb[0].mxu0 %v5353
        %v5421 = vpop.f32.mrb[0].mxu0
        %v5422 = vadd.f32 0.0, %v5421
        %v5423 = vpop.f32.mrb[0].mxu0
        %5424 = vdwg.mxu0
        %v5426 = vsel %vm1392, %v5351, 0
        %5428 = vmatprep.subr.mxu0 0.0
        %5429 = vmatpush1.msra.mxu0 %v5173
        %5430 = vmatprep.subr.mxu0 0.0
        %5431 = vmatpush1.msra.mxu0 0.0
        %5432 = vmatprep.subr.mxu0 0.0
        %5433 = vmatpush1.msra.mxu0 0.0
        %5434 = vmatprep.subr.mxu0 0.0
        %5435 = vmatpush1.msra.mxu0 0.0
        %5436 = vmatprep.subr.mxu0 0.0
        %5437 = vmatpush1.msra.mxu0 0.0
        %5438 = vmatprep.subr.mxu0 0.0
        %5439 = vmatpush1.msra.mxu0 0.0
        %5440 = vmatprep.subr.mxu0 0.0
        %5441 = vmatpush1.msra.mxu0 0.0
        %5442 = vmatprep.subr.mxu0 0.0
        %5443 = vmatpush1.msra.mxu0 0.0
        %5444 = vmatprep.subr.mxu0 0.0
        %5445 = vmatpush1.msra.mxu0 0.0
        %5446 = vmatprep.subr.mxu0 0.0
        %5447 = vmatpush1.msra.mxu0 0.0
        %5448 = vmatprep.subr.mxu0 0.0
        %5449 = vmatpush1.msra.mxu0 0.0
        %5450 = vmatprep.subr.mxu0 0.0
        %5451 = vmatpush1.msra.mxu0 0.0
        %5452 = vmatprep.subr.mxu0 0.0
        %5453 = vmatpush1.msra.mxu0 0.0
        %5454 = vmatprep.subr.mxu0 0.0
        %5455 = vmatpush1.msra.mxu0 0.0
        %5456 = vmatprep.subr.mxu0 0.0
        %5457 = vmatpush1.msra.mxu0 0.0
        %5458 = vmatprep.subr.mxu0 0.0
        %5459 = vmatpush1.msra.mxu0 0.0
        %5460 = vmatprep.subr.mxu0 0.0
        %5461 = vmatpush1.msra.mxu0 0.0
        %5462 = vmatprep.subr.mxu0 0.0
        %5463 = vmatpush1.msra.mxu0 0.0
        %5464 = vmatprep.subr.mxu0 0.0
        %5465 = vmatpush1.msra.mxu0 0.0
        %5466 = vmatprep.subr.mxu0 0.0
        %5467 = vmatpush1.msra.mxu0 0.0
        %5468 = vmatprep.subr.mxu0 0.0
        %5469 = vmatpush1.msra.mxu0 0.0
        %5470 = vmatprep.subr.mxu0 0.0
        %5471 = vmatpush1.msra.mxu0 0.0
        %5472 = vmatprep.subr.mxu0 0.0
        %5473 = vmatpush1.msra.mxu0 0.0
        %5474 = vmatprep.subr.mxu0 0.0
        %5475 = vmatpush1.msra.mxu0 0.0
        %5476 = vmatprep.subr.mxu0 0.0
        %5477 = vmatpush1.msra.mxu0 0.0
        %5478 = vmatprep.subr.mxu0 0.0
        %5479 = vmatpush1.msra.mxu0 0.0
        %5480 = vmatprep.subr.mxu0 0.0
        %5481 = vmatpush1.msra.mxu0 0.0
        %5482 = vmatprep.subr.mxu0 0.0
        %5483 = vmatpush1.msra.mxu0 0.0
        %5484 = vmatprep.subr.mxu0 0.0
        %5485 = vmatpush1.msra.mxu0 0.0
        %5486 = vmatprep.subr.mxu0 0.0
        %5487 = vmatpush1.msra.mxu0 0.0
        %5488 = vmatprep.subr.mxu0 0.0
        %5489 = vmatpush1.msra.mxu0 0.0
        %5490 = vmatprep.subr.mxu0 0.0
        %5491 = vmatpush1.msra.mxu0 0.0
        %5492 = vmatprep.mubr.f32.mxu0 0.0
        %5493 = vmatmul.mubr.f32.gmra.mrb[0].mxu0 %v5426
        %v5494 = vpop.f32.mrb[0].mxu0
        %v5495 = vadd.f32 0.0, %v5494
        %v5496 = vpop.f32.mrb[0].mxu0
        %5497 = vdwg.mxu0
        %s5498 = scalar_lea.vmem %s825, 96 [#allocation13]
        %v5499 = vld [vmem:[%s5498] sm:$0xff]
        %v5500 = vld [vmem:[%s5498 + $0x8] sm:$0xff]
        %v5502 = vsel %vm1239, %v5422, 0
        %v5505 = vsel %vm1239, %v5495, 0
        %5507 = vmatprep.subr.mxu0 0.0
        %5508 = vmatpush1.msra.mxu0 %v5499
        %5509 = vmatprep.subr.mxu0 0.0
        %5510 = vmatpush1.msra.mxu0 %v5500
        %5511 = vmatprep.subr.mxu0 0.0
        %5512 = vmatpush1.msra.mxu0 0.0
        %5513 = vmatprep.subr.mxu0 0.0
        %5514 = vmatpush1.msra.mxu0 0.0
        %5515 = vmatprep.subr.mxu0 0.0
        %5516 = vmatpush1.msra.mxu0 0.0
        %5517 = vmatprep.subr.mxu0 0.0
        %5518 = vmatpush1.msra.mxu0 0.0
        %5519 = vmatprep.subr.mxu0 0.0
        %5520 = vmatpush1.msra.mxu0 0.0
        %5521 = vmatprep.subr.mxu0 0.0
        %5522 = vmatpush1.msra.mxu0 0.0
        %5523 = vmatprep.subr.mxu0 0.0
        %5524 = vmatpush1.msra.mxu0 0.0
        %5525 = vmatprep.subr.mxu0 0.0
        %5526 = vmatpush1.msra.mxu0 0.0
        %5527 = vmatprep.subr.mxu0 0.0
        %5528 = vmatpush1.msra.mxu0 0.0
        %5529 = vmatprep.subr.mxu0 0.0
        %5530 = vmatpush1.msra.mxu0 0.0
        %5531 = vmatprep.subr.mxu0 0.0
        %5532 = vmatpush1.msra.mxu0 0.0
        %5533 = vmatprep.subr.mxu0 0.0
        %5534 = vmatpush1.msra.mxu0 0.0
        %5535 = vmatprep.subr.mxu0 0.0
        %5536 = vmatpush1.msra.mxu0 0.0
        %5537 = vmatprep.subr.mxu0 0.0
        %5538 = vmatpush1.msra.mxu0 0.0
        %5539 = vmatprep.subr.mxu0 0.0
        %5540 = vmatpush1.msra.mxu0 0.0
        %5541 = vmatprep.subr.mxu0 0.0
        %5542 = vmatpush1.msra.mxu0 0.0
        %5543 = vmatprep.subr.mxu0 0.0
        %5544 = vmatpush1.msra.mxu0 0.0
        %5545 = vmatprep.subr.mxu0 0.0
        %5546 = vmatpush1.msra.mxu0 0.0
        %5547 = vmatprep.subr.mxu0 0.0
        %5548 = vmatpush1.msra.mxu0 0.0
        %5549 = vmatprep.subr.mxu0 0.0
        %5550 = vmatpush1.msra.mxu0 0.0
        %5551 = vmatprep.subr.mxu0 0.0
        %5552 = vmatpush1.msra.mxu0 0.0
        %5553 = vmatprep.subr.mxu0 0.0
        %5554 = vmatpush1.msra.mxu0 0.0
        %5555 = vmatprep.subr.mxu0 0.0
        %5556 = vmatpush1.msra.mxu0 0.0
        %5557 = vmatprep.subr.mxu0 0.0
        %5558 = vmatpush1.msra.mxu0 0.0
        %5559 = vmatprep.subr.mxu0 0.0
        %5560 = vmatpush1.msra.mxu0 0.0
        %5561 = vmatprep.subr.mxu0 0.0
        %5562 = vmatpush1.msra.mxu0 0.0
        %5563 = vmatprep.subr.mxu0 0.0
        %5564 = vmatpush1.msra.mxu0 0.0
        %5565 = vmatprep.subr.mxu0 0.0
        %5566 = vmatpush1.msra.mxu0 0.0
        %5567 = vmatprep.subr.mxu0 0.0
        %5568 = vmatpush1.msra.mxu0 0.0
        %5569 = vmatprep.subr.mxu0 0.0
        %5570 = vmatpush1.msra.mxu0 0.0
        %5571 = vmatprep.mubr.f32.mxu0 0.0
        %5572 = vmatmul.mubr.f32.gmra.mrb[0].mxu0 %v5502
        %v5573 = vpop.f32.mrb[0].mxu0
        %v5574 = vadd.f32 0.0, %v5573
        %v5575 = vpop.f32.mrb[0].mxu0
        %5576 = vmatprep.mubr.f32.mxu0 0.0
        %5577 = vmatmul.mubr.f32.gmra.mrb[0].mxu0 %v5505
        %v5578 = vpop.f32.mrb[0].mxu0
        %v5579 = vadd.f32 0.0, %v5578
        %v5580 = vpop.f32.mrb[0].mxu0
        %5581 = vdwg.mxu0
        %v5582 = vadd.f32 %v4925, %v5574
        %v5583 = vadd.f32 %v4926, %v5579
        %s5584 = scalar_lea.vmem %s780, 112 [#allocation8]
        %v5585 = vld [vmem:[%s5584] sm:$0xff]
        %v5586 = vld [vmem:[%s5584 + $0x8] sm:$0xff]
        %v5587 = vld [vmem:[%s955 + $0x7] sm:$0x1]
        %v5588 = vlaneseq
        %v5589 = vshrl.u32 %v5588, 7
        %v5590 = vsub.s32 0, %v5589
        %v5591 = vrot.slane %v5587, %v5590
        %5592 = vmatprep.subr.mxu0 0.0
        %5593 = vmatpush1.xpose.msra.mxu0 %v5585
        %5594 = vmatprep.subr.mxu0 0.0
        %5595 = vmatpush1.xpose.msra.mxu0 %v5586
        %5596 = vmatprep.subr.mxu0 0.0
        %5597 = vmatpush1.xpose.msra.mxu0 0.0
        %5598 = vmatprep.subr.mxu0 0.0
        %5599 = vmatpush1.xpose.msra.mxu0 0.0
        %5600 = vmatprep.subr.mxu0 0.0
        %5601 = vmatpush1.xpose.msra.mxu0 0.0
        %5602 = vmatprep.subr.mxu0 0.0
        %5603 = vmatpush1.xpose.msra.mxu0 0.0
        %5604 = vmatprep.subr.mxu0 0.0
        %5605 = vmatpush1.xpose.msra.mxu0 0.0
        %5606 = vmatprep.subr.mxu0 0.0
        %5607 = vmatpush1.xpose.msra.mxu0 0.0
        %5608 = vmatprep.subr.mxu0 0.0
        %5609 = vmatpush1.xpose.msra.mxu0 0.0
        %5610 = vmatprep.subr.mxu0 0.0
        %5611 = vmatpush1.xpose.msra.mxu0 0.0
        %5612 = vmatprep.subr.mxu0 0.0
        %5613 = vmatpush1.xpose.msra.mxu0 0.0
        %5614 = vmatprep.subr.mxu0 0.0
        %5615 = vmatpush1.xpose.msra.mxu0 0.0
        %5616 = vmatprep.subr.mxu0 0.0
        %5617 = vmatpush1.xpose.msra.mxu0 0.0
        %5618 = vmatprep.subr.mxu0 0.0
        %5619 = vmatpush1.xpose.msra.mxu0 0.0
        %5620 = vmatprep.subr.mxu0 0.0
        %5621 = vmatpush1.xpose.msra.mxu0 0.0
        %5622 = vmatprep.subr.mxu0 0.0
        %5623 = vmatpush1.xpose.msra.mxu0 0.0
        %5624 = vmatprep.subr.mxu0 0.0
        %5625 = vmatpush1.xpose.msra.mxu0 0.0
        %5626 = vmatprep.subr.mxu0 0.0
        %5627 = vmatpush1.xpose.msra.mxu0 0.0
        %5628 = vmatprep.subr.mxu0 0.0
        %5629 = vmatpush1.xpose.msra.mxu0 0.0
        %5630 = vmatprep.subr.mxu0 0.0
        %5631 = vmatpush1.xpose.msra.mxu0 0.0
        %5632 = vmatprep.subr.mxu0 0.0
        %5633 = vmatpush1.xpose.msra.mxu0 0.0
        %5634 = vmatprep.subr.mxu0 0.0
        %5635 = vmatpush1.xpose.msra.mxu0 0.0
        %5636 = vmatprep.subr.mxu0 0.0
        %5637 = vmatpush1.xpose.msra.mxu0 0.0
        %5638 = vmatprep.subr.mxu0 0.0
        %5639 = vmatpush1.xpose.msra.mxu0 0.0
        %5640 = vmatprep.subr.mxu0 0.0
        %5641 = vmatpush1.xpose.msra.mxu0 0.0
        %5642 = vmatprep.subr.mxu0 0.0
        %5643 = vmatpush1.xpose.msra.mxu0 0.0
        %5644 = vmatprep.subr.mxu0 0.0
        %5645 = vmatpush1.xpose.msra.mxu0 0.0
        %5646 = vmatprep.subr.mxu0 0.0
        %5647 = vmatpush1.xpose.msra.mxu0 0.0
        %5648 = vmatprep.subr.mxu0 0.0
        %5649 = vmatpush1.xpose.msra.mxu0 0.0
        %5650 = vmatprep.subr.mxu0 0.0
        %5651 = vmatpush1.xpose.msra.mxu0 0.0
        %5652 = vmatprep.subr.mxu0 0.0
        %5653 = vmatpush1.xpose.msra.mxu0 0.0
        %5654 = vmatprep.subr.mxu0 0.0
        %5655 = vmatpush1.xpose.msra.mxu0 0.0
        %5656 = vmatprep.mubr.f32.mxu0 0.0
        %5657 = vmatmul.mubr.f32.gmra.mrb[0].mxu0 %v989
        %v5658 = vpop.f32.mrb[0].mxu0
        %v5659 = vadd.f32 %v5591, %v5658
        %v5660 = vpop.f32.mrb[0].mxu0
        %5661 = vmatprep.mubr.f32.mxu0 0.0
        %5662 = vmatmul.mubr.f32.gmra.mrb[0].mxu0 %v990
        %v5663 = vpop.f32.mrb[0].mxu0
        %v5664 = vadd.f32 %v5591, %v5663
        %v5665 = vpop.f32.mrb[0].mxu0
        %5666 = vdwg.mxu0
        %s5667 = scalar_lea.vmem %s789, 112 [#allocation9]
        %v5668 = vld [vmem:[%s5667] sm:$0xff]
        %v5669 = vld [vmem:[%s5667 + $0x8] sm:$0xff]
        %v5670 = vld [vmem:[%s807 + $0x7] sm:$0x1]
        %v5671 = vlaneseq
        %v5672 = vshrl.u32 %v5671, 7
        %v5673 = vsub.s32 0, %v5672
        %v5674 = vrot.slane %v5670, %v5673
        %5675 = vmatprep.subr.mxu0 0.0
        %5676 = vmatpush1.xpose.msra.mxu0 %v5668
        %5677 = vmatprep.subr.mxu0 0.0
        %5678 = vmatpush1.xpose.msra.mxu0 %v5669
        %5679 = vmatprep.subr.mxu0 0.0
        %5680 = vmatpush1.xpose.msra.mxu0 0.0
        %5681 = vmatprep.subr.mxu0 0.0
        %5682 = vmatpush1.xpose.msra.mxu0 0.0
        %5683 = vmatprep.subr.mxu0 0.0
        %5684 = vmatpush1.xpose.msra.mxu0 0.0
        %5685 = vmatprep.subr.mxu0 0.0
        %5686 = vmatpush1.xpose.msra.mxu0 0.0
        %5687 = vmatprep.subr.mxu0 0.0
        %5688 = vmatpush1.xpose.msra.mxu0 0.0
        %5689 = vmatprep.subr.mxu0 0.0
        %5690 = vmatpush1.xpose.msra.mxu0 0.0
        %5691 = vmatprep.subr.mxu0 0.0
        %5692 = vmatpush1.xpose.msra.mxu0 0.0
        %5693 = vmatprep.subr.mxu0 0.0
        %5694 = vmatpush1.xpose.msra.mxu0 0.0
        %5695 = vmatprep.subr.mxu0 0.0
        %5696 = vmatpush1.xpose.msra.mxu0 0.0
        %5697 = vmatprep.subr.mxu0 0.0
        %5698 = vmatpush1.xpose.msra.mxu0 0.0
        %5699 = vmatprep.subr.mxu0 0.0
        %5700 = vmatpush1.xpose.msra.mxu0 0.0
        %5701 = vmatprep.subr.mxu0 0.0
        %5702 = vmatpush1.xpose.msra.mxu0 0.0
        %5703 = vmatprep.subr.mxu0 0.0
        %5704 = vmatpush1.xpose.msra.mxu0 0.0
        %5705 = vmatprep.subr.mxu0 0.0
        %5706 = vmatpush1.xpose.msra.mxu0 0.0
        %5707 = vmatprep.subr.mxu0 0.0
        %5708 = vmatpush1.xpose.msra.mxu0 0.0
        %5709 = vmatprep.subr.mxu0 0.0
        %5710 = vmatpush1.xpose.msra.mxu0 0.0
        %5711 = vmatprep.subr.mxu0 0.0
        %5712 = vmatpush1.xpose.msra.mxu0 0.0
        %5713 = vmatprep.subr.mxu0 0.0
        %5714 = vmatpush1.xpose.msra.mxu0 0.0
        %5715 = vmatprep.subr.mxu0 0.0
        %5716 = vmatpush1.xpose.msra.mxu0 0.0
        %5717 = vmatprep.subr.mxu0 0.0
        %5718 = vmatpush1.xpose.msra.mxu0 0.0
        %5719 = vmatprep.subr.mxu0 0.0
        %5720 = vmatpush1.xpose.msra.mxu0 0.0
        %5721 = vmatprep.subr.mxu0 0.0
        %5722 = vmatpush1.xpose.msra.mxu0 0.0
        %5723 = vmatprep.subr.mxu0 0.0
        %5724 = vmatpush1.xpose.msra.mxu0 0.0
        %5725 = vmatprep.subr.mxu0 0.0
        %5726 = vmatpush1.xpose.msra.mxu0 0.0
        %5727 = vmatprep.subr.mxu0 0.0
        %5728 = vmatpush1.xpose.msra.mxu0 0.0
        %5729 = vmatprep.subr.mxu0 0.0
        %5730 = vmatpush1.xpose.msra.mxu0 0.0
        %5731 = vmatprep.subr.mxu0 0.0
        %5732 = vmatpush1.xpose.msra.mxu0 0.0
        %5733 = vmatprep.subr.mxu0 0.0
        %5734 = vmatpush1.xpose.msra.mxu0 0.0
        %5735 = vmatprep.subr.mxu0 0.0
        %5736 = vmatpush1.xpose.msra.mxu0 0.0
        %5737 = vmatprep.subr.mxu0 0.0
        %5738 = vmatpush1.xpose.msra.mxu0 0.0
        %5739 = vmatprep.mubr.f32.mxu0 0.0
        %5740 = vmatmul.mubr.f32.gmra.mrb[0].mxu0 %v989
        %v5741 = vpop.f32.mrb[0].mxu0
        %v5742 = vadd.f32 %v5674, %v5741
        %v5743 = vpop.f32.mrb[0].mxu0
        %5744 = vmatprep.mubr.f32.mxu0 0.0
        %5745 = vmatmul.mubr.f32.gmra.mrb[0].mxu0 %v990
        %v5746 = vpop.f32.mrb[0].mxu0
        %v5747 = vadd.f32 %v5674, %v5746
        %v5748 = vpop.f32.mrb[0].mxu0
        %5749 = vdwg.mxu0
        %s5750 = scalar_lea.vmem %s798, 112 [#allocation10]
        %v5751 = vld [vmem:[%s5750] sm:$0xff]
        %v5752 = vld [vmem:[%s5750 + $0x8] sm:$0xff]
        %v5753 = vld [vmem:[%s816 + $0x7] sm:$0x1]
        %v5754 = vlaneseq
        %v5755 = vshrl.u32 %v5754, 7
        %v5756 = vsub.s32 0, %v5755
        %v5757 = vrot.slane %v5753, %v5756
        %5758 = vmatprep.subr.mxu0 0.0
        %5759 = vmatpush1.xpose.msra.mxu0 %v5751
        %5760 = vmatprep.subr.mxu0 0.0
        %5761 = vmatpush1.xpose.msra.mxu0 %v5752
        %5762 = vmatprep.subr.mxu0 0.0
        %5763 = vmatpush1.xpose.msra.mxu0 0.0
        %5764 = vmatprep.subr.mxu0 0.0
        %5765 = vmatpush1.xpose.msra.mxu0 0.0
        %5766 = vmatprep.subr.mxu0 0.0
        %5767 = vmatpush1.xpose.msra.mxu0 0.0
        %5768 = vmatprep.subr.mxu0 0.0
        %5769 = vmatpush1.xpose.msra.mxu0 0.0
        %5770 = vmatprep.subr.mxu0 0.0
        %5771 = vmatpush1.xpose.msra.mxu0 0.0
        %5772 = vmatprep.subr.mxu0 0.0
        %5773 = vmatpush1.xpose.msra.mxu0 0.0
        %5774 = vmatprep.subr.mxu0 0.0
        %5775 = vmatpush1.xpose.msra.mxu0 0.0
        %5776 = vmatprep.subr.mxu0 0.0
        %5777 = vmatpush1.xpose.msra.mxu0 0.0
        %5778 = vmatprep.subr.mxu0 0.0
        %5779 = vmatpush1.xpose.msra.mxu0 0.0
        %5780 = vmatprep.subr.mxu0 0.0
        %5781 = vmatpush1.xpose.msra.mxu0 0.0
        %5782 = vmatprep.subr.mxu0 0.0
        %5783 = vmatpush1.xpose.msra.mxu0 0.0
        %5784 = vmatprep.subr.mxu0 0.0
        %5785 = vmatpush1.xpose.msra.mxu0 0.0
        %5786 = vmatprep.subr.mxu0 0.0
        %5787 = vmatpush1.xpose.msra.mxu0 0.0
        %5788 = vmatprep.subr.mxu0 0.0
        %5789 = vmatpush1.xpose.msra.mxu0 0.0
        %5790 = vmatprep.subr.mxu0 0.0
        %5791 = vmatpush1.xpose.msra.mxu0 0.0
        %5792 = vmatprep.subr.mxu0 0.0
        %5793 = vmatpush1.xpose.msra.mxu0 0.0
        %5794 = vmatprep.subr.mxu0 0.0
        %5795 = vmatpush1.xpose.msra.mxu0 0.0
        %5796 = vmatprep.subr.mxu0 0.0
        %5797 = vmatpush1.xpose.msra.mxu0 0.0
        %5798 = vmatprep.subr.mxu0 0.0
        %5799 = vmatpush1.xpose.msra.mxu0 0.0
        %5800 = vmatprep.subr.mxu0 0.0
        %5801 = vmatpush1.xpose.msra.mxu0 0.0
        %5802 = vmatprep.subr.mxu0 0.0
        %5803 = vmatpush1.xpose.msra.mxu0 0.0
        %5804 = vmatprep.subr.mxu0 0.0
        %5805 = vmatpush1.xpose.msra.mxu0 0.0
        %5806 = vmatprep.subr.mxu0 0.0
        %5807 = vmatpush1.xpose.msra.mxu0 0.0
        %5808 = vmatprep.subr.mxu0 0.0
        %5809 = vmatpush1.xpose.msra.mxu0 0.0
        %5810 = vmatprep.subr.mxu0 0.0
        %5811 = vmatpush1.xpose.msra.mxu0 0.0
        %5812 = vmatprep.subr.mxu0 0.0
        %5813 = vmatpush1.xpose.msra.mxu0 0.0
        %5814 = vmatprep.subr.mxu0 0.0
        %5815 = vmatpush1.xpose.msra.mxu0 0.0
        %5816 = vmatprep.subr.mxu0 0.0
        %5817 = vmatpush1.xpose.msra.mxu0 0.0
        %5818 = vmatprep.subr.mxu0 0.0
        %5819 = vmatpush1.xpose.msra.mxu0 0.0
        %5820 = vmatprep.subr.mxu0 0.0
        %5821 = vmatpush1.xpose.msra.mxu0 0.0
        %5822 = vmatprep.mubr.f32.mxu0 0.0
        %5823 = vmatmul.mubr.f32.gmra.mrb[0].mxu0 %v989
        %v5824 = vpop.f32.mrb[0].mxu0
        %v5825 = vadd.f32 %v5757, %v5824
        %v5826 = vpop.f32.mrb[0].mxu0
        %5827 = vmatprep.mubr.f32.mxu0 0.0
        %5828 = vmatmul.mubr.f32.gmra.mrb[0].mxu0 %v990
        %v5829 = vpop.f32.mrb[0].mxu0
        %v5830 = vadd.f32 %v5757, %v5829
        %v5831 = vpop.f32.mrb[0].mxu0
        %5832 = vdwg.mxu0
        %v5833 = vmul.f32 %v5659, 0.25
        %v5834 = vmul.f32 %v5664, 0.25
        %v5836 = vsel %vm1239, %v5833, 0
        %v5839 = vsel %vm1239, %v5742, 0
        %5841 = vmatprep.subr.mxu0 0.0
        %5842 = vmatpush1.xpose.msra.mxu0 %v5839
        %5843 = vmatprep.subr.mxu0 0.0
        %5844 = vmatpush1.xpose.msra.mxu0 0.0
        %5845 = vmatprep.subr.mxu0 0.0
        %5846 = vmatpush1.xpose.msra.mxu0 0.0
        %5847 = vmatprep.subr.mxu0 0.0
        %5848 = vmatpush1.xpose.msra.mxu0 0.0
        %5849 = vmatprep.subr.mxu0 0.0
        %5850 = vmatpush1.xpose.msra.mxu0 0.0
        %5851 = vmatprep.subr.mxu0 0.0
        %5852 = vmatpush1.xpose.msra.mxu0 0.0
        %5853 = vmatprep.subr.mxu0 0.0
        %5854 = vmatpush1.xpose.msra.mxu0 0.0
        %5855 = vmatprep.subr.mxu0 0.0
        %5856 = vmatpush1.xpose.msra.mxu0 0.0
        %5857 = vmatprep.subr.mxu0 0.0
        %5858 = vmatpush1.xpose.msra.mxu0 0.0
        %5859 = vmatprep.subr.mxu0 0.0
        %5860 = vmatpush1.xpose.msra.mxu0 0.0
        %5861 = vmatprep.subr.mxu0 0.0
        %5862 = vmatpush1.xpose.msra.mxu0 0.0
        %5863 = vmatprep.subr.mxu0 0.0
        %5864 = vmatpush1.xpose.msra.mxu0 0.0
        %5865 = vmatprep.subr.mxu0 0.0
        %5866 = vmatpush1.xpose.msra.mxu0 0.0
        %5867 = vmatprep.subr.mxu0 0.0
        %5868 = vmatpush1.xpose.msra.mxu0 0.0
        %5869 = vmatprep.subr.mxu0 0.0
        %5870 = vmatpush1.xpose.msra.mxu0 0.0
        %5871 = vmatprep.subr.mxu0 0.0
        %5872 = vmatpush1.xpose.msra.mxu0 0.0
        %5873 = vmatprep.subr.mxu0 0.0
        %5874 = vmatpush1.xpose.msra.mxu0 0.0
        %5875 = vmatprep.subr.mxu0 0.0
        %5876 = vmatpush1.xpose.msra.mxu0 0.0
        %5877 = vmatprep.subr.mxu0 0.0
        %5878 = vmatpush1.xpose.msra.mxu0 0.0
        %5879 = vmatprep.subr.mxu0 0.0
        %5880 = vmatpush1.xpose.msra.mxu0 0.0
        %5881 = vmatprep.subr.mxu0 0.0
        %5882 = vmatpush1.xpose.msra.mxu0 0.0
        %5883 = vmatprep.subr.mxu0 0.0
        %5884 = vmatpush1.xpose.msra.mxu0 0.0
        %5885 = vmatprep.subr.mxu0 0.0
        %5886 = vmatpush1.xpose.msra.mxu0 0.0
        %5887 = vmatprep.subr.mxu0 0.0
        %5888 = vmatpush1.xpose.msra.mxu0 0.0
        %5889 = vmatprep.subr.mxu0 0.0
        %5890 = vmatpush1.xpose.msra.mxu0 0.0
        %5891 = vmatprep.subr.mxu0 0.0
        %5892 = vmatpush1.xpose.msra.mxu0 0.0
        %5893 = vmatprep.subr.mxu0 0.0
        %5894 = vmatpush1.xpose.msra.mxu0 0.0
        %5895 = vmatprep.subr.mxu0 0.0
        %5896 = vmatpush1.xpose.msra.mxu0 0.0
        %5897 = vmatprep.subr.mxu0 0.0
        %5898 = vmatpush1.xpose.msra.mxu0 0.0
        %5899 = vmatprep.subr.mxu0 0.0
        %5900 = vmatpush1.xpose.msra.mxu0 0.0
        %5901 = vmatprep.subr.mxu0 0.0
        %5902 = vmatpush1.xpose.msra.mxu0 0.0
        %5903 = vmatprep.subr.mxu0 0.0
        %5904 = vmatpush1.xpose.msra.mxu0 0.0
        %5905 = vmatprep.mubr.f32.mxu0 0.0
        %5906 = vmatmul.mubr.f32.gmra.mrb[0].mxu0 %v5836
        %v5907 = vpop.f32.mrb[0].mxu0
        %v5908 = vadd.f32 0.0, %v5907
        %v5909 = vpop.f32.mrb[0].mxu0
        %5910 = vdwg.mxu0
        %v5912 = vsel %vm1239, %v5834, 0
        %v5915 = vsel %vm1239, %v5747, 0
        %5917 = vmatprep.subr.mxu0 0.0
        %5918 = vmatpush1.xpose.msra.mxu0 %v5915
        %5919 = vmatprep.subr.mxu0 0.0
        %5920 = vmatpush1.xpose.msra.mxu0 0.0
        %5921 = vmatprep.subr.mxu0 0.0
        %5922 = vmatpush1.xpose.msra.mxu0 0.0
        %5923 = vmatprep.subr.mxu0 0.0
        %5924 = vmatpush1.xpose.msra.mxu0 0.0
        %5925 = vmatprep.subr.mxu0 0.0
        %5926 = vmatpush1.xpose.msra.mxu0 0.0
        %5927 = vmatprep.subr.mxu0 0.0
        %5928 = vmatpush1.xpose.msra.mxu0 0.0
        %5929 = vmatprep.subr.mxu0 0.0
        %5930 = vmatpush1.xpose.msra.mxu0 0.0
        %5931 = vmatprep.subr.mxu0 0.0
        %5932 = vmatpush1.xpose.msra.mxu0 0.0
        %5933 = vmatprep.subr.mxu0 0.0
        %5934 = vmatpush1.xpose.msra.mxu0 0.0
        %5935 = vmatprep.subr.mxu0 0.0
        %5936 = vmatpush1.xpose.msra.mxu0 0.0
        %5937 = vmatprep.subr.mxu0 0.0
        %5938 = vmatpush1.xpose.msra.mxu0 0.0
        %5939 = vmatprep.subr.mxu0 0.0
        %5940 = vmatpush1.xpose.msra.mxu0 0.0
        %5941 = vmatprep.subr.mxu0 0.0
        %5942 = vmatpush1.xpose.msra.mxu0 0.0
        %5943 = vmatprep.subr.mxu0 0.0
        %5944 = vmatpush1.xpose.msra.mxu0 0.0
        %5945 = vmatprep.subr.mxu0 0.0
        %5946 = vmatpush1.xpose.msra.mxu0 0.0
        %5947 = vmatprep.subr.mxu0 0.0
        %5948 = vmatpush1.xpose.msra.mxu0 0.0
        %5949 = vmatprep.subr.mxu0 0.0
        %5950 = vmatpush1.xpose.msra.mxu0 0.0
        %5951 = vmatprep.subr.mxu0 0.0
        %5952 = vmatpush1.xpose.msra.mxu0 0.0
        %5953 = vmatprep.subr.mxu0 0.0
        %5954 = vmatpush1.xpose.msra.mxu0 0.0
        %5955 = vmatprep.subr.mxu0 0.0
        %5956 = vmatpush1.xpose.msra.mxu0 0.0
        %5957 = vmatprep.subr.mxu0 0.0
        %5958 = vmatpush1.xpose.msra.mxu0 0.0
        %5959 = vmatprep.subr.mxu0 0.0
        %5960 = vmatpush1.xpose.msra.mxu0 0.0
        %5961 = vmatprep.subr.mxu0 0.0
        %5962 = vmatpush1.xpose.msra.mxu0 0.0
        %5963 = vmatprep.subr.mxu0 0.0
        %5964 = vmatpush1.xpose.msra.mxu0 0.0
        %5965 = vmatprep.subr.mxu0 0.0
        %5966 = vmatpush1.xpose.msra.mxu0 0.0
        %5967 = vmatprep.subr.mxu0 0.0
        %5968 = vmatpush1.xpose.msra.mxu0 0.0
        %5969 = vmatprep.subr.mxu0 0.0
        %5970 = vmatpush1.xpose.msra.mxu0 0.0
        %5971 = vmatprep.subr.mxu0 0.0
        %5972 = vmatpush1.xpose.msra.mxu0 0.0
        %5973 = vmatprep.subr.mxu0 0.0
        %5974 = vmatpush1.xpose.msra.mxu0 0.0
        %5975 = vmatprep.subr.mxu0 0.0
        %5976 = vmatpush1.xpose.msra.mxu0 0.0
        %5977 = vmatprep.subr.mxu0 0.0
        %5978 = vmatpush1.xpose.msra.mxu0 0.0
        %5979 = vmatprep.subr.mxu0 0.0
        %5980 = vmatpush1.xpose.msra.mxu0 0.0
        %5981 = vmatprep.mubr.f32.mxu0 0.0
        %5982 = vmatmul.mubr.f32.gmra.mrb[0].mxu0 %v5912
        %v5983 = vpop.f32.mrb[0].mxu0
        %v5984 = vadd.f32 0.0, %v5983
        %v5985 = vpop.f32.mrb[0].mxu0
        %5986 = vdwg.mxu0
        %v5987 = vsel %vm1392, %v5908, -inf
        %5988 = vmax.xlane.f32.xlu0 %v5987
        %v5989 = vpop.xlane.xlu0 %5988
        %v5990 = vsel %vm1392, %v5984, -inf
        %5991 = vmax.xlane.f32.xlu0 %v5990
        %v5992 = vpop.xlane.xlu0 %5991
        %v5993 = vsub.f32 %v5908, %v5989
        %v5994 = vsub.f32 %v5984, %v5992
        %v5995 = vmul.f32 %v5993, 1.442695
        %v5996 = vpow.pop %v5995
        %v5997 = vmul.f32 %v5994, 1.442695
        %v5998 = vpow.pop %v5997
        %v5999 = vsel %vm1392, %v5996, 0.0
        %6000 = vadd.xlane.f32.xlu0 %v5999
        %v6001 = vpop.xlane.xlu0 %6000
        %v6002 = vsel %vm1392, %v5998, 0.0
        %6003 = vadd.xlane.f32.xlu0 %v6002
        %v6004 = vpop.xlane.xlu0 %6003
        %v6005 = vrcp.pop %v6001
        %v6006 = vrcp.pop %v6004
        %v6007 = vmul.f32 %v5996, %v6005
        %v6008 = vmul.f32 %v5998, %v6006
        %v6010 = vsel %vm1392, %v6007, 0
        %6012 = vmatprep.subr.mxu0 0.0
        %6013 = vmatpush1.msra.mxu0 %v5825
        %6014 = vmatprep.subr.mxu0 0.0
        %6015 = vmatpush1.msra.mxu0 0.0
        %6016 = vmatprep.subr.mxu0 0.0
        %6017 = vmatpush1.msra.mxu0 0.0
        %6018 = vmatprep.subr.mxu0 0.0
        %6019 = vmatpush1.msra.mxu0 0.0
        %6020 = vmatprep.subr.mxu0 0.0
        %6021 = vmatpush1.msra.mxu0 0.0
        %6022 = vmatprep.subr.mxu0 0.0
        %6023 = vmatpush1.msra.mxu0 0.0
        %6024 = vmatprep.subr.mxu0 0.0
        %6025 = vmatpush1.msra.mxu0 0.0
        %6026 = vmatprep.subr.mxu0 0.0
        %6027 = vmatpush1.msra.mxu0 0.0
        %6028 = vmatprep.subr.mxu0 0.0
        %6029 = vmatpush1.msra.mxu0 0.0
        %6030 = vmatprep.subr.mxu0 0.0
        %6031 = vmatpush1.msra.mxu0 0.0
        %6032 = vmatprep.subr.mxu0 0.0
        %6033 = vmatpush1.msra.mxu0 0.0
        %6034 = vmatprep.subr.mxu0 0.0
        %6035 = vmatpush1.msra.mxu0 0.0
        %6036 = vmatprep.subr.mxu0 0.0
        %6037 = vmatpush1.msra.mxu0 0.0
        %6038 = vmatprep.subr.mxu0 0.0
        %6039 = vmatpush1.msra.mxu0 0.0
        %6040 = vmatprep.subr.mxu0 0.0
        %6041 = vmatpush1.msra.mxu0 0.0
        %6042 = vmatprep.subr.mxu0 0.0
        %6043 = vmatpush1.msra.mxu0 0.0
        %6044 = vmatprep.subr.mxu0 0.0
        %6045 = vmatpush1.msra.mxu0 0.0
        %6046 = vmatprep.subr.mxu0 0.0
        %6047 = vmatpush1.msra.mxu0 0.0
        %6048 = vmatprep.subr.mxu0 0.0
        %6049 = vmatpush1.msra.mxu0 0.0
        %6050 = vmatprep.subr.mxu0 0.0
        %6051 = vmatpush1.msra.mxu0 0.0
        %6052 = vmatprep.subr.mxu0 0.0
        %6053 = vmatpush1.msra.mxu0 0.0
        %6054 = vmatprep.subr.mxu0 0.0
        %6055 = vmatpush1.msra.mxu0 0.0
        %6056 = vmatprep.subr.mxu0 0.0
        %6057 = vmatpush1.msra.mxu0 0.0
        %6058 = vmatprep.subr.mxu0 0.0
        %6059 = vmatpush1.msra.mxu0 0.0
        %6060 = vmatprep.subr.mxu0 0.0
        %6061 = vmatpush1.msra.mxu0 0.0
        %6062 = vmatprep.subr.mxu0 0.0
        %6063 = vmatpush1.msra.mxu0 0.0
        %6064 = vmatprep.subr.mxu0 0.0
        %6065 = vmatpush1.msra.mxu0 0.0
        %6066 = vmatprep.subr.mxu0 0.0
        %6067 = vmatpush1.msra.mxu0 0.0
        %6068 = vmatprep.subr.mxu0 0.0
        %6069 = vmatpush1.msra.mxu0 0.0
        %6070 = vmatprep.subr.mxu0 0.0
        %6071 = vmatpush1.msra.mxu0 0.0
        %6072 = vmatprep.subr.mxu0 0.0
        %6073 = vmatpush1.msra.mxu0 0.0
        %6074 = vmatprep.subr.mxu0 0.0
        %6075 = vmatpush1.msra.mxu0 0.0
        %6076 = vmatprep.mubr.f32.mxu0 0.0
        %6077 = vmatmul.mubr.f32.gmra.mrb[0].mxu0 %v6010
        %v6078 = vpop.f32.mrb[0].mxu0
        %v6079 = vadd.f32 0.0, %v6078
        %v6080 = vpop.f32.mrb[0].mxu0
        %6081 = vdwg.mxu0
        %v6083 = vsel %vm1392, %v6008, 0
        %6085 = vmatprep.subr.mxu0 0.0
        %6086 = vmatpush1.msra.mxu0 %v5830
        %6087 = vmatprep.subr.mxu0 0.0
        %6088 = vmatpush1.msra.mxu0 0.0
        %6089 = vmatprep.subr.mxu0 0.0
        %6090 = vmatpush1.msra.mxu0 0.0
        %6091 = vmatprep.subr.mxu0 0.0
        %6092 = vmatpush1.msra.mxu0 0.0
        %6093 = vmatprep.subr.mxu0 0.0
        %6094 = vmatpush1.msra.mxu0 0.0
        %6095 = vmatprep.subr.mxu0 0.0
        %6096 = vmatpush1.msra.mxu0 0.0
        %6097 = vmatprep.subr.mxu0 0.0
        %6098 = vmatpush1.msra.mxu0 0.0
        %6099 = vmatprep.subr.mxu0 0.0
        %6100 = vmatpush1.msra.mxu0 0.0
        %6101 = vmatprep.subr.mxu0 0.0
        %6102 = vmatpush1.msra.mxu0 0.0
        %6103 = vmatprep.subr.mxu0 0.0
        %6104 = vmatpush1.msra.mxu0 0.0
        %6105 = vmatprep.subr.mxu0 0.0
        %6106 = vmatpush1.msra.mxu0 0.0
        %6107 = vmatprep.subr.mxu0 0.0
        %6108 = vmatpush1.msra.mxu0 0.0
        %6109 = vmatprep.subr.mxu0 0.0
        %6110 = vmatpush1.msra.mxu0 0.0
        %6111 = vmatprep.subr.mxu0 0.0
        %6112 = vmatpush1.msra.mxu0 0.0
        %6113 = vmatprep.subr.mxu0 0.0
        %6114 = vmatpush1.msra.mxu0 0.0
        %6115 = vmatprep.subr.mxu0 0.0
        %6116 = vmatpush1.msra.mxu0 0.0
        %6117 = vmatprep.subr.mxu0 0.0
        %6118 = vmatpush1.msra.mxu0 0.0
        %6119 = vmatprep.subr.mxu0 0.0
        %6120 = vmatpush1.msra.mxu0 0.0
        %6121 = vmatprep.subr.mxu0 0.0
        %6122 = vmatpush1.msra.mxu0 0.0
        %6123 = vmatprep.subr.mxu0 0.0
        %6124 = vmatpush1.msra.mxu0 0.0
        %6125 = vmatprep.subr.mxu0 0.0
        %6126 = vmatpush1.msra.mxu0 0.0
        %6127 = vmatprep.subr.mxu0 0.0
        %6128 = vmatpush1.msra.mxu0 0.0
        %6129 = vmatprep.subr.mxu0 0.0
        %6130 = vmatpush1.msra.mxu0 0.0
        %6131 = vmatprep.subr.mxu0 0.0
        %6132 = vmatpush1.msra.mxu0 0.0
        %6133 = vmatprep.subr.mxu0 0.0
        %6134 = vmatpush1.msra.mxu0 0.0
        %6135 = vmatprep.subr.mxu0 0.0
        %6136 = vmatpush1.msra.mxu0 0.0
        %6137 = vmatprep.subr.mxu0 0.0
        %6138 = vmatpush1.msra.mxu0 0.0
        %6139 = vmatprep.subr.mxu0 0.0
        %6140 = vmatpush1.msra.mxu0 0.0
        %6141 = vmatprep.subr.mxu0 0.0
        %6142 = vmatpush1.msra.mxu0 0.0
        %6143 = vmatprep.subr.mxu0 0.0
        %6144 = vmatpush1.msra.mxu0 0.0
        %6145 = vmatprep.subr.mxu0 0.0
        %6146 = vmatpush1.msra.mxu0 0.0
        %6147 = vmatprep.subr.mxu0 0.0
        %6148 = vmatpush1.msra.mxu0 0.0
        %6149 = vmatprep.mubr.f32.mxu0 0.0
        %6150 = vmatmul.mubr.f32.gmra.mrb[0].mxu0 %v6083
        %v6151 = vpop.f32.mrb[0].mxu0
        %v6152 = vadd.f32 0.0, %v6151
        %v6153 = vpop.f32.mrb[0].mxu0
        %6154 = vdwg.mxu0
        %s6155 = scalar_lea.vmem %s825, 112 [#allocation13]
        %v6156 = vld [vmem:[%s6155] sm:$0xff]
        %v6157 = vld [vmem:[%s6155 + $0x8] sm:$0xff]
        %v6159 = vsel %vm1239, %v6079, 0
        %v6162 = vsel %vm1239, %v6152, 0
        %6164 = vmatprep.subr.mxu0 0.0
        %6165 = vmatpush1.msra.mxu0 %v6156
        %6166 = vmatprep.subr.mxu0 0.0
        %6167 = vmatpush1.msra.mxu0 %v6157
        %6168 = vmatprep.subr.mxu0 0.0
        %6169 = vmatpush1.msra.mxu0 0.0
        %6170 = vmatprep.subr.mxu0 0.0
        %6171 = vmatpush1.msra.mxu0 0.0
        %6172 = vmatprep.subr.mxu0 0.0
        %6173 = vmatpush1.msra.mxu0 0.0
        %6174 = vmatprep.subr.mxu0 0.0
        %6175 = vmatpush1.msra.mxu0 0.0
        %6176 = vmatprep.subr.mxu0 0.0
        %6177 = vmatpush1.msra.mxu0 0.0
        %6178 = vmatprep.subr.mxu0 0.0
        %6179 = vmatpush1.msra.mxu0 0.0
        %6180 = vmatprep.subr.mxu0 0.0
        %6181 = vmatpush1.msra.mxu0 0.0
        %6182 = vmatprep.subr.mxu0 0.0
        %6183 = vmatpush1.msra.mxu0 0.0
        %6184 = vmatprep.subr.mxu0 0.0
        %6185 = vmatpush1.msra.mxu0 0.0
        %6186 = vmatprep.subr.mxu0 0.0
        %6187 = vmatpush1.msra.mxu0 0.0
        %6188 = vmatprep.subr.mxu0 0.0
        %6189 = vmatpush1.msra.mxu0 0.0
        %6190 = vmatprep.subr.mxu0 0.0
        %6191 = vmatpush1.msra.mxu0 0.0
        %6192 = vmatprep.subr.mxu0 0.0
        %6193 = vmatpush1.msra.mxu0 0.0
        %6194 = vmatprep.subr.mxu0 0.0
        %6195 = vmatpush1.msra.mxu0 0.0
        %6196 = vmatprep.subr.mxu0 0.0
        %6197 = vmatpush1.msra.mxu0 0.0
        %6198 = vmatprep.subr.mxu0 0.0
        %6199 = vmatpush1.msra.mxu0 0.0
        %6200 = vmatprep.subr.mxu0 0.0
        %6201 = vmatpush1.msra.mxu0 0.0
        %6202 = vmatprep.subr.mxu0 0.0
        %6203 = vmatpush1.msra.mxu0 0.0
        %6204 = vmatprep.subr.mxu0 0.0
        %6205 = vmatpush1.msra.mxu0 0.0
        %6206 = vmatprep.subr.mxu0 0.0
        %6207 = vmatpush1.msra.mxu0 0.0
        %6208 = vmatprep.subr.mxu0 0.0
        %6209 = vmatpush1.msra.mxu0 0.0
        %6210 = vmatprep.subr.mxu0 0.0
        %6211 = vmatpush1.msra.mxu0 0.0
        %6212 = vmatprep.subr.mxu0 0.0
        %6213 = vmatpush1.msra.mxu0 0.0
        %6214 = vmatprep.subr.mxu0 0.0
        %6215 = vmatpush1.msra.mxu0 0.0
        %6216 = vmatprep.subr.mxu0 0.0
        %6217 = vmatpush1.msra.mxu0 0.0
        %6218 = vmatprep.subr.mxu0 0.0
        %6219 = vmatpush1.msra.mxu0 0.0
        %6220 = vmatprep.subr.mxu0 0.0
        %6221 = vmatpush1.msra.mxu0 0.0
        %6222 = vmatprep.subr.mxu0 0.0
        %6223 = vmatpush1.msra.mxu0 0.0
        %6224 = vmatprep.subr.mxu0 0.0
        %6225 = vmatpush1.msra.mxu0 0.0
        %6226 = vmatprep.subr.mxu0 0.0
        %6227 = vmatpush1.msra.mxu0 0.0
        %6228 = vmatprep.mubr.f32.mxu0 0.0
        %6229 = vmatmul.mubr.f32.gmra.mrb[0].mxu0 %v6159
        %v6230 = vpop.f32.mrb[0].mxu0
        %v6231 = vadd.f32 0.0, %v6230
        %v6232 = vpop.f32.mrb[0].mxu0
        %6233 = vmatprep.mubr.f32.mxu0 0.0
        %6234 = vmatmul.mubr.f32.gmra.mrb[0].mxu0 %v6162
        %v6235 = vpop.f32.mrb[0].mxu0
        %v6236 = vadd.f32 0.0, %v6235
        %v6237 = vpop.f32.mrb[0].mxu0
        %6238 = vdwg.mxu0
        %v6239 = vadd.f32 %v5582, %v6231
        %v6240 = vadd.f32 %v5583, %v6236
        %v6241 = vld [vmem:[%s958] sm:$0x1]
        %v6243 = vlaneseq
        %v6244 = vshrl.u32 %v6243, 7
        %v6245 = vsub.s32 0, %v6244
        %v6246 = vrot.slane %v6241, %v6245
        %v6248 = vadd.f32 %v6239, %v6246
        %v6249 = vadd.f32 %v6240, %v6246
        %v6250 = vadd.f32 %v989, %v6248
        %v6251 = vadd.f32 %v990, %v6249
        %6252 = vadd.xlane.f32.xlu0 %v6250
        %v6253 = vpop.xlane.xlu0 %6252
        %6254 = vadd.xlane.f32.xlu0 %v6251
        %v6255 = vpop.xlane.xlu0 %6254
        %v6256 = vrcp.pop 128.0
        %v6257 = vmul.f32 %v6253, %v6256
        %v6258 = vmul.f32 %v6255, %v6256
        %v6259 = vsub.f32 %v6250, %v6257
        %v6260 = vsub.f32 %v6251, %v6258
        %v6261 = vmul.f32 %v6259, %v6259
        %v6262 = vmul.f32 %v6260, %v6260
        %6263 = vadd.xlane.f32.xlu0 %v6261
        %v6264 = vpop.xlane.xlu0 %6263
        %6265 = vadd.xlane.f32.xlu0 %v6262
        %v6266 = vpop.xlane.xlu0 %6265
        %v6267 = vmul.f32 %v6264, %v6256
        %v6268 = vmul.f32 %v6266, %v6256
        %v6269 = vadd.f32 %v6267, 1e-05
        %v6270 = vadd.f32 %v6268, 1e-05
        %v6271 = vrsqrt.pop %v6269
        %v6272 = vrsqrt.pop %v6270
        %v6273 = vmul.f32 %v6259, %v6271
        %v6274 = vmul.f32 %v6260, %v6272
        %v6275 = vld [vmem:[%s961] sm:$0x1]
        %v6277 = vlaneseq
        %v6278 = vshrl.u32 %v6277, 7
        %v6279 = vsub.s32 0, %v6278
        %v6280 = vrot.slane %v6275, %v6279
        %v6282 = vmul.f32 %v6273, %v6280
        %v6283 = vmul.f32 %v6274, %v6280
        %v6284 = vld [vmem:[%s964] sm:$0x1]
        %v6286 = vlaneseq
        %v6287 = vshrl.u32 %v6286, 7
        %v6288 = vsub.s32 0, %v6287
        %v6289 = vrot.slane %v6284, %v6288
        %v6291 = vadd.f32 %v6282, %v6289
        %v6292 = vadd.f32 %v6283, %v6289
        %v6293 = vld [vmem:[%s834] sm:$0xff]
        %v6294 = vld [vmem:[%s834 + $0x8] sm:$0xff]
        %v6295 = vld [vmem:[%s834 + $0x10] sm:$0xff]
        %v6296 = vld [vmem:[%s834 + $0x18] sm:$0xff]
        %v6297 = vld [vmem:[%s834 + $0x20] sm:$0xff]
        %v6298 = vld [vmem:[%s834 + $0x28] sm:$0xff]
        %v6299 = vld [vmem:[%s834 + $0x30] sm:$0xff]
        %v6300 = vld [vmem:[%s834 + $0x38] sm:$0xff]
        %v6301 = vld [vmem:[%s834 + $0x40] sm:$0xff]
        %v6302 = vld [vmem:[%s834 + $0x48] sm:$0xff]
        %v6303 = vld [vmem:[%s834 + $0x50] sm:$0xff]
        %v6304 = vld [vmem:[%s834 + $0x58] sm:$0xff]
        %v6305 = vld [vmem:[%s834 + $0x60] sm:$0xff]
        %v6306 = vld [vmem:[%s834 + $0x68] sm:$0xff]
        %v6307 = vld [vmem:[%s834 + $0x70] sm:$0xff]
        %v6308 = vld [vmem:[%s834 + $0x78] sm:$0xff]
        %v6309 = vld [vmem:[%s834 + $0x80] sm:$0xff]
        %v6310 = vld [vmem:[%s834 + $0x88] sm:$0xff]
        %v6311 = vld [vmem:[%s834 + $0x90] sm:$0xff]
        %v6312 = vld [vmem:[%s834 + $0x98] sm:$0xff]
        %v6313 = vld [vmem:[%s834 + $0xa0] sm:$0xff]
        %v6314 = vld [vmem:[%s834 + $0xa8] sm:$0xff]
        %v6315 = vld [vmem:[%s834 + $0xb0] sm:$0xff]
        %v6316 = vld [vmem:[%s834 + $0xb8] sm:$0xff]
        %v6317 = vld [vmem:[%s834 + $0xc0] sm:$0xff]
        %v6318 = vld [vmem:[%s834 + $0xc8] sm:$0xff]
        %v6319 = vld [vmem:[%s834 + $0xd0] sm:$0xff]
        %v6320 = vld [vmem:[%s834 + $0xd8] sm:$0xff]
        %v6321 = vld [vmem:[%s834 + $0xe0] sm:$0xff]
        %v6322 = vld [vmem:[%s834 + $0xe8] sm:$0xff]
        %v6323 = vld [vmem:[%s834 + $0xf0] sm:$0xff]
        %v6324 = vld [vmem:[%s834 + $0xf8] sm:$0xff]
        %v6325 = vld [vmem:[%s974] sm:$0x3]
        %v6327 = vlaneseq
        %v6328 = vshrl.u32 %v6327, 7
        %v6329 = vsub.s32 0, %v6328
        %v6330 = vrot.slane %v6325, %v6329
        %v6331 = vlaneseq
        %v6332 = vshrl.u32 %v6331, 7
        %v6333 = vsub.s32 1, %v6332
        %v6334 = vrot.slane %v6325, %v6333
        %6337 = vmatprep.subr.mxu0 %v6294
        %6338 = vmatpush1.msra.mxu0 %v6293
        %6339 = vmatprep.subr.mxu0 %v6296
        %6340 = vmatpush1.msra.mxu0 %v6295
        %6341 = vmatprep.subr.mxu0 %v6298
        %6342 = vmatpush1.msra.mxu0 %v6297
        %6343 = vmatprep.subr.mxu0 %v6300
        %6344 = vmatpush1.msra.mxu0 %v6299
        %6345 = vmatprep.subr.mxu0 %v6302
        %6346 = vmatpush1.msra.mxu0 %v6301
        %6347 = vmatprep.subr.mxu0 %v6304
        %6348 = vmatpush1.msra.mxu0 %v6303
        %6349 = vmatprep.subr.mxu0 %v6306
        %6350 = vmatpush1.msra.mxu0 %v6305
        %6351 = vmatprep.subr.mxu0 %v6308
        %6352 = vmatpush1.msra.mxu0 %v6307
        %6353 = vmatprep.subr.mxu0 %v6310
        %6354 = vmatpush1.msra.mxu0 %v6309
        %6355 = vmatprep.subr.mxu0 %v6312
        %6356 = vmatpush1.msra.mxu0 %v6311
        %6357 = vmatprep.subr.mxu0 %v6314
        %6358 = vmatpush1.msra.mxu0 %v6313
        %6359 = vmatprep.subr.mxu0 %v6316
        %6360 = vmatpush1.msra.mxu0 %v6315
        %6361 = vmatprep.subr.mxu0 %v6318
        %6362 = vmatpush1.msra.mxu0 %v6317
        %6363 = vmatprep.subr.mxu0 %v6320
        %6364 = vmatpush1.msra.mxu0 %v6319
        %6365 = vmatprep.subr.mxu0 %v6322
        %6366 = vmatpush1.msra.mxu0 %v6321
        %6367 = vmatprep.subr.mxu0 %v6324
        %6368 = vmatpush1.msra.mxu0 %v6323
        %6369 = vmatprep.subr.mxu0 0.0
        %6370 = vmatpush1.msra.mxu0 0.0
        %6371 = vmatprep.subr.mxu0 0.0
        %6372 = vmatpush1.msra.mxu0 0.0
        %6373 = vmatprep.subr.mxu0 0.0
        %6374 = vmatpush1.msra.mxu0 0.0
        %6375 = vmatprep.subr.mxu0 0.0
        %6376 = vmatpush1.msra.mxu0 0.0
        %6377 = vmatprep.subr.mxu0 0.0
        %6378 = vmatpush1.msra.mxu0 0.0
        %6379 = vmatprep.subr.mxu0 0.0
        %6380 = vmatpush1.msra.mxu0 0.0
        %6381 = vmatprep.subr.mxu0 0.0
        %6382 = vmatpush1.msra.mxu0 0.0
        %6383 = vmatprep.subr.mxu0 0.0
        %6384 = vmatpush1.msra.mxu0 0.0
        %6385 = vmatprep.subr.mxu0 0.0
        %6386 = vmatpush1.msra.mxu0 0.0
        %6387 = vmatprep.subr.mxu0 0.0
        %6388 = vmatpush1.msra.mxu0 0.0
        %6389 = vmatprep.subr.mxu0 0.0
        %6390 = vmatpush1.msra.mxu0 0.0
        %6391 = vmatprep.subr.mxu0 0.0
        %6392 = vmatpush1.msra.mxu0 0.0
        %6393 = vmatprep.subr.mxu0 0.0
        %6394 = vmatpush1.msra.mxu0 0.0
        %6395 = vmatprep.subr.mxu0 0.0
        %6396 = vmatpush1.msra.mxu0 0.0
        %6397 = vmatprep.subr.mxu0 0.0
        %6398 = vmatpush1.msra.mxu0 0.0
        %6399 = vmatprep.subr.mxu0 0.0
        %6400 = vmatpush1.msra.mxu0 0.0
        %6401 = vmatprep.mubr.f32.mxu0 0.0
        %6402 = vmatmul.mubr.f32.gmra.mrb[0].mxu0 %v6291
        %v6403 = vpop.f32.mrb[0].mxu0
        %v6404 = vadd.f32 %v6330, %v6403
        %v6405 = vpop.f32.mrb[0].mxu0
        %v6406 = vadd.f32 %v6334, %v6405
        %6407 = vmatprep.mubr.f32.mxu0 0.0
        %6408 = vmatmul.mubr.f32.gmra.mrb[0].mxu0 %v6292
        %v6409 = vpop.f32.mrb[0].mxu0
        %v6410 = vadd.f32 %v6330, %v6409
        %v6411 = vpop.f32.mrb[0].mxu0
        %v6412 = vadd.f32 %v6334, %v6411
        %6413 = vdwg.mxu0
        %v6414 = vmax.f32 %v6404, 0.0
        %v6415 = vmax.f32 %v6406, 0.0
        %v6416 = vmax.f32 %v6410, 0.0
        %v6417 = vmax.f32 %v6412, 0.0
        %v6418 = vld [vmem:[%s843] sm:$0xff]
        %v6419 = vld [vmem:[%s843 + $0x8] sm:$0xff]
        %v6420 = vld [vmem:[%s843 + $0x10] sm:$0xff]
        %v6421 = vld [vmem:[%s843 + $0x18] sm:$0xff]
        %v6422 = vld [vmem:[%s843 + $0x20] sm:$0xff]
        %v6423 = vld [vmem:[%s843 + $0x28] sm:$0xff]
        %v6424 = vld [vmem:[%s843 + $0x30] sm:$0xff]
        %v6425 = vld [vmem:[%s843 + $0x38] sm:$0xff]
        %v6426 = vld [vmem:[%s843 + $0x40] sm:$0xff]
        %v6427 = vld [vmem:[%s843 + $0x48] sm:$0xff]
        %v6428 = vld [vmem:[%s843 + $0x50] sm:$0xff]
        %v6429 = vld [vmem:[%s843 + $0x58] sm:$0xff]
        %v6430 = vld [vmem:[%s843 + $0x60] sm:$0xff]
        %v6431 = vld [vmem:[%s843 + $0x68] sm:$0xff]
        %v6432 = vld [vmem:[%s843 + $0x70] sm:$0xff]
        %v6433 = vld [vmem:[%s843 + $0x78] sm:$0xff]
        %v6434 = vld [vmem:[%s843 + $0x80] sm:$0xff]
        %v6435 = vld [vmem:[%s843 + $0x88] sm:$0xff]
        %v6436 = vld [vmem:[%s843 + $0x90] sm:$0xff]
        %v6437 = vld [vmem:[%s843 + $0x98] sm:$0xff]
        %v6438 = vld [vmem:[%s843 + $0xa0] sm:$0xff]
        %v6439 = vld [vmem:[%s843 + $0xa8] sm:$0xff]
        %v6440 = vld [vmem:[%s843 + $0xb0] sm:$0xff]
        %v6441 = vld [vmem:[%s843 + $0xb8] sm:$0xff]
        %v6442 = vld [vmem:[%s843 + $0xc0] sm:$0xff]
        %v6443 = vld [vmem:[%s843 + $0xc8] sm:$0xff]
        %v6444 = vld [vmem:[%s843 + $0xd0] sm:$0xff]
        %v6445 = vld [vmem:[%s843 + $0xd8] sm:$0xff]
        %v6446 = vld [vmem:[%s843 + $0xe0] sm:$0xff]
        %v6447 = vld [vmem:[%s843 + $0xe8] sm:$0xff]
        %v6448 = vld [vmem:[%s843 + $0xf0] sm:$0xff]
        %v6449 = vld [vmem:[%s843 + $0xf8] sm:$0xff]
        %v6450 = vld [vmem:[%s977] sm:$0x1]
        %v6452 = vlaneseq
        %v6453 = vshrl.u32 %v6452, 7
        %v6454 = vsub.s32 0, %v6453
        %v6455 = vrot.slane %v6450, %v6454
        %6457 = vmatprep.subr.mxu0 0.0
        %6458 = vmatpush1.msra.mxu0 %v6418
        %6459 = vmatprep.subr.mxu0 0.0
        %6460 = vmatpush1.msra.mxu0 %v6419
        %6461 = vmatprep.subr.mxu0 0.0
        %6462 = vmatpush1.msra.mxu0 %v6420
        %6463 = vmatprep.subr.mxu0 0.0
        %6464 = vmatpush1.msra.mxu0 %v6421
        %6465 = vmatprep.subr.mxu0 0.0
        %6466 = vmatpush1.msra.mxu0 %v6422
        %6467 = vmatprep.subr.mxu0 0.0
        %6468 = vmatpush1.msra.mxu0 %v6423
        %6469 = vmatprep.subr.mxu0 0.0
        %6470 = vmatpush1.msra.mxu0 %v6424
        %6471 = vmatprep.subr.mxu0 0.0
        %6472 = vmatpush1.msra.mxu0 %v6425
        %6473 = vmatprep.subr.mxu0 0.0
        %6474 = vmatpush1.msra.mxu0 %v6426
        %6475 = vmatprep.subr.mxu0 0.0
        %6476 = vmatpush1.msra.mxu0 %v6427
        %6477 = vmatprep.subr.mxu0 0.0
        %6478 = vmatpush1.msra.mxu0 %v6428
        %6479 = vmatprep.subr.mxu0 0.0
        %6480 = vmatpush1.msra.mxu0 %v6429
        %6481 = vmatprep.subr.mxu0 0.0
        %6482 = vmatpush1.msra.mxu0 %v6430
        %6483 = vmatprep.subr.mxu0 0.0
        %6484 = vmatpush1.msra.mxu0 %v6431
        %6485 = vmatprep.subr.mxu0 0.0
        %6486 = vmatpush1.msra.mxu0 %v6432
        %6487 = vmatprep.subr.mxu0 0.0
        %6488 = vmatpush1.msra.mxu0 %v6433
        %6489 = vmatprep.subr.mxu0 0.0
        %6490 = vmatpush1.msra.mxu0 %v6434
        %6491 = vmatprep.subr.mxu0 0.0
        %6492 = vmatpush1.msra.mxu0 %v6435
        %6493 = vmatprep.subr.mxu0 0.0
        %6494 = vmatpush1.msra.mxu0 %v6436
        %6495 = vmatprep.subr.mxu0 0.0
        %6496 = vmatpush1.msra.mxu0 %v6437
        %6497 = vmatprep.subr.mxu0 0.0
        %6498 = vmatpush1.msra.mxu0 %v6438
        %6499 = vmatprep.subr.mxu0 0.0
        %6500 = vmatpush1.msra.mxu0 %v6439
        %6501 = vmatprep.subr.mxu0 0.0
        %6502 = vmatpush1.msra.mxu0 %v6440
        %6503 = vmatprep.subr.mxu0 0.0
        %6504 = vmatpush1.msra.mxu0 %v6441
        %6505 = vmatprep.subr.mxu0 0.0
        %6506 = vmatpush1.msra.mxu0 %v6442
        %6507 = vmatprep.subr.mxu0 0.0
        %6508 = vmatpush1.msra.mxu0 %v6443
        %6509 = vmatprep.subr.mxu0 0.0
        %6510 = vmatpush1.msra.mxu0 %v6444
        %6511 = vmatprep.subr.mxu0 0.0
        %6512 = vmatpush1.msra.mxu0 %v6445
        %6513 = vmatprep.subr.mxu0 0.0
        %6514 = vmatpush1.msra.mxu0 %v6446
        %6515 = vmatprep.subr.mxu0 0.0
        %6516 = vmatpush1.msra.mxu0 %v6447
        %6517 = vmatprep.subr.mxu0 0.0
        %6518 = vmatpush1.msra.mxu0 %v6448
        %6519 = vmatprep.subr.mxu0 0.0
        %6520 = vmatpush1.msra.mxu0 %v6449
        %6521 = vmatprep.mubr.f32.mxu0 %v6415
        %6522 = vmatmul.mubr.f32.gmra.mrb[0].mxu0 %v6414
        %v6523 = vpop.f32.mrb[0].mxu0
        %v6524 = vadd.f32 %v6455, %v6523
        %v6525 = vpop.f32.mrb[0].mxu0
        %6526 = vmatprep.mubr.f32.mxu0 %v6417
        %6527 = vmatmul.mubr.f32.gmra.mrb[0].mxu0 %v6416
        %v6528 = vpop.f32.mrb[0].mxu0
        %v6529 = vadd.f32 %v6455, %v6528
        %v6530 = vpop.f32.mrb[0].mxu0
        %6531 = vdwg.mxu0
        %v6532 = vadd.f32 %v6291, %v6524
        %v6533 = vadd.f32 %v6292, %v6529
        %6534 = vadd.xlane.f32.xlu0 %v6532
        %v6535 = vpop.xlane.xlu0 %6534
        %6536 = vadd.xlane.f32.xlu0 %v6533
        %v6537 = vpop.xlane.xlu0 %6536
        %v6538 = vmul.f32 %v6535, %v6256
        %v6539 = vmul.f32 %v6537, %v6256
        %v6540 = vsub.f32 %v6532, %v6538
        %v6541 = vsub.f32 %v6533, %v6539
        %v6542 = vmul.f32 %v6540, %v6540
        %v6543 = vmul.f32 %v6541, %v6541
        %6544 = vadd.xlane.f32.xlu0 %v6542
        %v6545 = vpop.xlane.xlu0 %6544
        %6546 = vadd.xlane.f32.xlu0 %v6543
        %v6547 = vpop.xlane.xlu0 %6546
        %v6548 = vmul.f32 %v6545, %v6256
        %v6549 = vmul.f32 %v6547, %v6256
        %v6550 = vadd.f32 %v6548, 1e-05
        %v6551 = vadd.f32 %v6549, 1e-05
        %v6552 = vrsqrt.pop %v6550
        %v6553 = vrsqrt.pop %v6551
        %v6554 = vmul.f32 %v6540, %v6552
        %v6555 = vmul.f32 %v6541, %v6553
        %v6556 = vld [vmem:[%s967] sm:$0x1]
        %v6558 = vlaneseq
        %v6559 = vshrl.u32 %v6558, 7
        %v6560 = vsub.s32 0, %v6559
        %v6561 = vrot.slane %v6556, %v6560
        %v6563 = vmul.f32 %v6554, %v6561
        %v6564 = vmul.f32 %v6555, %v6561
        %v6565 = vld [vmem:[%s970] sm:$0x1]
        %v6567 = vlaneseq
        %v6568 = vshrl.u32 %v6567, 7
        %v6569 = vsub.s32 0, %v6568
        %v6570 = vrot.slane %v6565, %v6569
        %v6572 = vadd.f32 %v6563, %v6570
        %v6573 = vadd.f32 %v6564, %v6570
        %6574 = vst [vmem:[#allocation2] sm:$0xff] %v6572
        %6575 = vst [vmem:[#allocation2 + $0x8] sm:$0xff] %v6573
        %p6576 = scmp.eq.s32.totalorder %s32, 1
        // Predicated region
        $region137: #{tpu_custom_call.1} parent=91 // pred_check
          %p6577 = pneg %p6576
        $region138: #{tpu_custom_call.1} parent=91 // pred_check_branch
          %6579 = sbr.rel (%p6577) target = $region140
        $region139: #{tpu_custom_call.1} parent=91 // pred_region
          %v6580 = vrot.slane %v6572, 4
          %v6581 = vadd.f32 %v6572, %v6580
          %v6582 = vrot.slane %v6581, 2
          %v6583 = vadd.f32 %v6581, %v6582
          %v6584 = vrot.slane %v6583, 1
          %v6585 = vadd.f32 %v6583, %v6584
          %v6586 = vrot.slane %v6573, 4
          %v6587 = vadd.f32 %v6573, %v6586
          %v6588 = vrot.slane %v6587, 2
          %v6589 = vadd.f32 %v6587, %v6588
          %v6590 = vrot.slane %v6589, 1
          %v6591 = vadd.f32 %v6589, %v6590
          %v6592 = vrcp.pop 8.0
          %v6593 = vmul.f32 %v6585, %v6592
          %v6594 = vmul.f32 %v6591, %v6592
          %vm6597 = vcmask 1041409
          %v6598 = vsel %vm6597, %v6594, %v6593
          %6600 = vst [vmem:[#allocation16] sm:$0x3] %v6598
        $region140: #{tpu_custom_call.1} parent=91 // pred_fallthru
          _
        // Predicated region
        $region141: #{tpu_custom_call.1} parent=91 // pred_check
          %p6601 = pneg %p503
        $region142: #{tpu_custom_call.1} parent=91 // pred_check_branch
          %6603 = sbr.rel (%p6601) target = $region144
        $region143: #{tpu_custom_call.1} parent=91 // pred_region
          %s6605 = ssub.s32 32, 32
          %6606 = vsyncadd [#allocation5], %s6605
          %s6608 = sshll.u32 [#allocation16], 4
          %s6609 = int_to_ptr.vmem [resolvable:$true] %s6608
          %6611 = dma.vmem_to_hbm [thread:$0]  %s6609, 32, %s18, [#allocation5]
        $region144: #{tpu_custom_call.1} parent=91 // pred_fallthru
          _
        // Predicated region
        $region145: #{tpu_custom_call.1} parent=91 // pred_check
          %p6612 = pneg %p503
        $region146: #{tpu_custom_call.1} parent=91 // pred_check_branch
          %6614 = sbr.rel (%p6612) target = $region148
        $region147: #{tpu_custom_call.1} parent=91 // pred_region
          %6615 = dma.done [#allocation5], 32
        $region148: #{tpu_custom_call.1} parent=91 // pred_fallthru
          _
      $region92: #{tpu_custom_call.1} parent=5 // pred_fallthru
        _
      %p6616 = scmp.le.s32.totalorder 2, %s27
      // Predicated region
      $region149: #{tpu_custom_call.1} parent=5 // pred_check
        %p6617 = pneg %p6616
      $region150: #{tpu_custom_call.1} parent=5 // pred_check_branch
        %6619 = sbr.rel (%p6617) target = $region152
      $region151: #{tpu_custom_call.1} parent=5 // pred_region
        %s6620 = ssub.s32 %s27, 2
      $region152: #{tpu_custom_call.1} parent=5 // pred_fallthru
        _
    $region6: #{tpu_custom_call.1} parent=1 // loop_footer
      %s31 = sadd.s32 1, %s27
    $region7: #{tpu_custom_call.1} parent=1 // loop_footer_branch
      %26 = sbr.rel target = $region3
    $region8: #{tpu_custom_call.1} parent=1 // loop_exit
      _
    %6621 = vsyncpa [#allocation4], 1
    %s6622 = scalar_lea.sflag [#allocation4], 1
    %6623 = vsyncpa %s6622, 1
    %6624 = vsyncpa [#allocation7], 1
    %6625 = vsyncpa [#allocation5], 1
    %s6626 = scalar_lea.sflag [#allocation5], 1
    %6627 = vsyncpa %s6626, 1

</llo_original>
